<compile_context>
chip_gen: v6e
topology: v6e:2x2x1
jax: 0.10.0
libtpu: 0.0.40
codegen_flags: <defaults>
</compile_context>

<pallas_src>
import functools

import jax
import jax.numpy as jnp
from jax import lax
from jax.experimental import pallas as pl
from jax.experimental.pallas import tpu as pltpu


def _elu(y):
    # F.elu (alpha=1).  expm1(y) == tanh(y/2) * (exp(y) + 1): accurate for small
    # |y| and uses only Mosaic-supported EUP ops.
    return jnp.where(y > 0, y, jnp.tanh(0.5 * y) * (jnp.exp(y) + 1.0))


# ----------------------------------------------------------------------------
# Hardware-aware sizing
# ----------------------------------------------------------------------------

def _vmem_capacity_bytes():
    try:
        cap = int(getattr(pltpu.get_tpu_info(), "vmem_capacity_bytes", 0))
        if cap > 0:
            return cap
    except Exception:
        pass
    return 64 * 1024 * 1024        # conservative (v7x-sized) fallback


def _prefer_two_pass_energy():
    # v7x has 2 TensorCores/chip: the serial fused-energy carry pins L streaming
    # to one core, so prefer the row-parallel two-pass scheme there.
    try:
        kind = jax.devices()[0].device_kind.lower()
        return ("v7" in kind) or ("7x" in kind)
    except Exception:
        return False


def _sheaf_vmem_limit():
    cap = _vmem_capacity_bytes()
    return int(min(cap - (8 << 20), 100 << 20))


def _choose_row_tile(nd, h):
    """Largest 128-multiple divisor of nd whose double-buffered bf16 L tiles
    (plus resident xl / yz scratch) fit VMEM with headroom, while keeping
    >= 4 pipeline steps so the L DMA overlaps compute."""
    cap = _vmem_capacity_bytes()
    resident = (2 * nd * h * 2          # xl bf16 (double-buffered)
                + nd * 2 * h * 2        # yz scratch bf16 (fused-energy path)
                + 4 * h * h * 4         # Wr^T
                + (2 << 20))            # x0 / out tiles, misc
    budget = max(cap - (12 << 20) - resident, 2 << 20)
    tm_cap = budget // (2 * 2 * nd)     # 2 buffers x bf16 x (tm, nd)
    tm_cap = min(int(tm_cap), 1024)
    if nd >= 4 * 256:
        tm_cap = min(tm_cap, nd // 4)   # keep the pipeline busy
    tm_cap = max(128, (tm_cap // 128) * 128)
    for tm in range(tm_cap, 0, -128):
        if nd % tm == 0:
            return tm
    return nd                            # full-array block is always legal


# ----------------------------------------------------------------------------
# Generic row-tiled linear:  y = x @ W.T + b  (+ optional ELU), bf16 operands
# ----------------------------------------------------------------------------

def _linear_kernel(x_ref, wt_ref, b_ref, o_ref, *, act):
    y = jnp.dot(x_ref[...], wt_ref[...],
                preferred_element_type=jnp.float32) + b_ref[...]
    if act == "elu":
        y = _elu(y)
    o_ref[...] = y


def pallas_linear(x, w, b=None, *, act="none", row_tile=256):
    """nn.Linear (+ activation), row-tiled; bf16 MXU operands, f32 accumulation."""
    R, K = x.shape
    F = w.shape[0]
    wt = w.T.astype(jnp.bfloat16)                      # [K, F]
    xb = x.astype(jnp.bfloat16)
    if b is None:
        b = jnp.zeros((F,), jnp.float32)
    b2 = b.reshape(1, F).astype(jnp.float32)

    tr = min(row_tile, R)
    grid = (pl.cdiv(R, tr),)                           # no pad/slice HBM copies

    return pl.pallas_call(
        functools.partial(_linear_kernel, act=act),
        out_shape=jax.ShapeDtypeStruct((R, F), jnp.float32),
        grid=grid,
        in_specs=[pl.BlockSpec((tr, K), lambda i: (i, 0)),
                  pl.BlockSpec((K, F), lambda i: (0, 0)),
                  pl.BlockSpec((1, F), lambda i: (0, 0))],
        out_specs=pl.BlockSpec((tr, F), lambda i: (i, 0)),
        compiler_params=pltpu.CompilerParams(
            dimension_semantics=("parallel",)),
    )(xb, wt, b2)


# ----------------------------------------------------------------------------
# Sheaf diffusion layer: z = ELU((L @ xl) @ Wr^T); x_new = coeff * x0 - z
# (optionally with the Dirichlet energy sum(z * (L @ z)) computed as well)
# ----------------------------------------------------------------------------

def _coeff_column(coeff_ref, row0, tm, fd):
    # coeff for global row r is coeff[r % fd]  (fd distinct scalars in SMEM).
    rows = row0 + lax.broadcasted_iota(jnp.int32, (tm, 1), 0)
    stalk = rows % fd
    c = jnp.zeros((tm, 1), jnp.float32) + coeff_ref[fd - 1]
    for k in range(fd - 2, -1, -1):
        c = jnp.where(stalk == k, coeff_ref[k], c)
    return c


def _sheaf_diffuse_kernel(l_ref, xl_ref, wrt_ref, x0_ref, coeff_ref,
                          xnew_ref, *rest, tm, h, fd, emit_z):
    i = pl.program_id(0)
    row0 = pl.multiple_of(i * tm, tm)
    # right weights fused: L @ (xl @ Wr^T) == (L @ xl) @ Wr^T
    lx = jnp.dot(l_ref[...], xl_ref[...], preferred_element_type=jnp.float32)
    z = _elu(jnp.dot(lx, wrt_ref[...], preferred_element_type=jnp.float32))
    c = _coeff_column(coeff_ref, row0, tm, fd)
    xnew_ref[...] = c * x0_ref[...] - z
    if emit_z:
        rest[0][...] = z.astype(jnp.bfloat16)


def _sheaf_energy_fused_kernel(l_ref, xl_ref, wrt_ref, x0_ref, coeff_ref,
                               xnew_ref, e_ref, yz_ref, *, tm, h, fd):
    i = pl.program_id(0)
    row0 = pl.multiple_of(i * tm, tm)

    @pl.when(i == 0)
    def _init():
        yz_ref[:, :h] = xl_ref[...]
        yz_ref[:, h:] = jnp.zeros((yz_ref.shape[0], h), jnp.bfloat16)
        e_ref[...] = jnp.zeros_like(e_ref)

    l = l_ref[...]                                              # [tm, Nd] bf16
    # ONE wide matmul per tile: [tm,Nd] @ [Nd,2H] = [ L@xl | L@z_{<i} ]
    lz2 = jnp.dot(l, yz_ref[...], preferred_element_type=jnp.float32)
    z = _elu(jnp.dot(lz2[:, :h], wrt_ref[...],
                     preferred_element_type=jnp.float32))       # [tm, H] f32

    c = _coeff_column(coeff_ref, row0, tm, fd)
    xnew_ref[...] = c * x0_ref[...] - z

    # Dirichlet energy folded into the same single pass over L (L symmetric):
    #   energy = sum_t [ 2 * <z_t, L_{t,<t} z_{<t}> + <z_t, L_{tt} z_t> ]
    zb = z.astype(jnp.bfloat16)
    dia = jnp.dot(l_ref[:, pl.ds(row0, tm)], zb,
                  preferred_element_type=jnp.float32)           # [tm, H]
    e_ref[...] += (2.0 * jnp.sum(z * lz2[:, h:], axis=(0, 1), keepdims=True)
                   + jnp.sum(z * dia, axis=(0, 1), keepdims=True))
    # publish this tile's z for later tiles' prefix term
    yz_ref[pl.ds(row0, tm), pl.ds(h, h)] = zb


def _energy_pass2_kernel(l_ref, z_ref, e_ref, *, tm):
    # per-row-tile partial energy  e_i = <z_i, L_i @ z>  (row-parallel)
    i = pl.program_id(0)
    row0 = pl.multiple_of(i * tm, tm)
    lz = jnp.dot(l_ref[...], z_ref[...], preferred_element_type=jnp.float32)
    zt = z_ref[pl.ds(row0, tm), :].astype(jnp.float32)
    e = jnp.sum(zt * lz, axis=(0, 1), keepdims=True)            # (1, 1)
    e_ref[...] = jnp.broadcast_to(e, e_ref.shape)


def pallas_sheaf_layer(L_bf, xl_bf, wrt, x0, coeff, *, fd,
                       compute_energy=True, two_pass_energy=False):
    Nd, H = x0.shape
    tm = _choose_row_tile(Nd, H)
    n_tiles = Nd // tm
    grid = (n_tiles,)

    l_spec = pl.BlockSpec((tm, Nd), lambda i: (i, 0))
    xl_spec = pl.BlockSpec((Nd, H), lambda i: (0, 0))           # VMEM-resident
    wrt_spec = pl.BlockSpec((H, H), lambda i: (0, 0))
    x0_spec = pl.BlockSpec((tm, H), lambda i: (i, 0))
    coeff_spec = pl.BlockSpec(memory_space=pltpu.MemorySpace.SMEM)
    xnew_spec = pl.BlockSpec((tm, H), lambda i: (i, 0))

    vlim = _sheaf_vmem_limit()
    par = pltpu.CompilerParams(dimension_semantics=("parallel",),
                               vmem_limit_bytes=vlim)

    if not compute_energy:
        x_new = pl.pallas_call(
            functools.partial(_sheaf_diffuse_kernel, tm=tm, h=H, fd=fd,
                              emit_z=False),
            out_shape=jax.ShapeDtypeStruct((Nd, H), jnp.float32),
            grid=grid,
            in_specs=[l_spec, xl_spec, wrt_spec, x0_spec, coeff_spec],
            out_specs=xnew_spec,
            input_output_aliases={3: 0},            # donate x0 -> x_new
            compiler_params=par,
        )(L_bf, xl_bf, wrt, x0, coeff)
        return x_new, None

    if two_pass_energy:
        # pass 1: diffusion (row-parallel across TensorCores), also emits z
        x_new, z = pl.pallas_call(
            functools.partial(_sheaf_diffuse_kernel, tm=tm, h=H, fd=fd,
                              emit_z=True),
            out_shape=(jax.ShapeDtypeStruct((Nd, H), jnp.float32),
                       jax.ShapeDtypeStruct((Nd, H), jnp.bfloat16)),
            grid=grid,
            in_specs=[l_spec, xl_spec, wrt_spec, x0_spec, coeff_spec],
            out_specs=(xnew_spec, pl.BlockSpec((tm, H), lambda i: (i, 0))),
            input_output_aliases={3: 0},
            compiler_params=par,
        )(L_bf, xl_bf, wrt, x0, coeff)
        # pass 2: per-tile partial energies (row-parallel), reduced in wrapper
        partials = pl.pallas_call(
            functools.partial(_energy_pass2_kernel, tm=tm),
            out_shape=jax.ShapeDtypeStruct((n_tiles * 8, 128), jnp.float32),
            grid=grid,
            in_specs=[l_spec, pl.BlockSpec((Nd, H), lambda i: (0, 0))],
            out_specs=pl.BlockSpec((8, 128), lambda i: (i, 0)),
            compiler_params=par,
        )(L_bf, z)
        return x_new, jnp.sum(partials[::8, 0])

    # fused single pass over L (energy prefix carry -> serial grid axis)
    x_new, energy = pl.pallas_call(
        functools.partial(_sheaf_energy_fused_kernel, tm=tm, h=H, fd=fd),
        out_shape=(jax.ShapeDtypeStruct((Nd, H), jnp.float32),
                   jax.ShapeDtypeStruct((1, 1), jnp.float32)),
        grid=grid,
        in_specs=[l_spec, xl_spec, wrt_spec, x0_spec, coeff_spec],
        out_specs=(xnew_spec, pl.BlockSpec((1, 1), lambda i: (0, 0))),
        scratch_shapes=[pltpu.VMEM((Nd, 2 * H), jnp.bfloat16)],
        input_output_aliases={3: 0},
        compiler_params=pltpu.CompilerParams(
            dimension_semantics=("arbitrary",), vmem_limit_bytes=vlim),
    )(L_bf, xl_bf, wrt, x0, coeff)
    return x_new, energy[0, 0]


# ----------------------------------------------------------------------------
# Glue: normalized connection Laplacian (dense, emitted directly in bf16)
# ----------------------------------------------------------------------------

def build_connection_laplacian(maps, edge_weights, edge_index, num_nodes, d):
    # TODO(synk): exact NormConnectionLaplacianBuilder + householder orth_map
    # source was not provided; here d==2 rotation restriction maps + weighted
    # normalized connection Laplacian L = I - D^{-1/2} A D^{-1/2}.
    # TODO(synk): for large graphs keep L block-sparse per edge and stream the
    # d x d blocks into the sheaf kernel via PrefetchScalarGridSpec instead of
    # materializing the dense [N*d, N*d] matrix.
    src, dst = edge_index[0], edge_index[1]
    theta = maps[:, 0]
    c, s = jnp.cos(theta), jnp.sin(theta)
    R = jnp.stack([jnp.stack([c, -s], -1), jnp.stack([s, c], -1)], -2)   # [E,2,2]
    w = edge_weights.reshape(-1)
    blk_uv = w[:, None, None] * jnp.swapaxes(R, -1, -2)                  # F_u^T F_v
    blk_vu = w[:, None, None] * R                                        # F_v^T F_u

    Nd = num_nodes * d
    ar = jnp.arange(d)
    rows_uv = src[:, None, None] * d + ar[None, :, None]
    cols_uv = dst[:, None, None] * d + ar[None, None, :]
    rows_vu = dst[:, None, None] * d + ar[None, :, None]
    cols_vu = src[:, None, None] * d + ar[None, None, :]

    A = jnp.zeros((Nd, Nd), jnp.float32)
    A = A.at[rows_uv, cols_uv].add(blk_uv)
    A = A.at[rows_vu, cols_vu].add(blk_vu)

    deg = jnp.zeros((num_nodes,), jnp.float32).at[src].add(w).at[dst].add(w)
    dinv = 1.0 / jnp.sqrt(deg + 1e-8)
    dinv_rep = jnp.repeat(dinv, d)                                       # [Nd]
    scale = dinv_rep[:, None] * dinv_rep[None, :]                        # symmetric
    A = A * scale
    # emit L directly in bf16 (eye-subtract + cast fuse into one output pass);
    # elementwise symmetry is preserved by the cast (needed by the fused
    # single-pass Dirichlet-energy scheme).
    return (jnp.eye(Nd, dtype=jnp.float32) - A).astype(jnp.bfloat16)


# ----------------------------------------------------------------------------
# Parameters
# ----------------------------------------------------------------------------

def init_params(key, in_ch, H, fd, out_ch, num_layers, param_size):
    ks = jax.random.split(key, 2 + 3 * num_layers)

    def lin_init(k, fan_in, fan_out):
        bound = 1.0 / jnp.sqrt(jnp.float32(fan_in))
        kw, kb = jax.random.split(k)
        W = jax.random.uniform(kw, (fan_out, fan_in), jnp.float32, -bound, bound)
        b = jax.random.uniform(kb, (fan_out,), jnp.float32, -bound, bound)
        return W, b

    p = {}
    p["lin1_w"], p["lin1_b"] = lin_init(ks[0], in_ch, H * fd)
    p["lin2_w"], p["lin2_b"] = lin_init(ks[1], H * fd, out_ch)
    p["right"], p["left"], p["eps"] = [], [], []
    p["edge_w"], p["edge_b"] = [], []
    for l in range(num_layers):
        # right weights: orthogonal init (spectral norm of an orthogonal matrix is 1)
        Q, _ = jnp.linalg.qr(jax.random.normal(ks[2 + l], (H, H), jnp.float32))
        p["right"].append(Q.astype(jnp.float32))
        # left weights: identity init (spectral_norm(eye) == eye)
        p["left"].append(jnp.eye(fd, dtype=jnp.float32))
        p["eps"].append(jnp.zeros((fd, 1), jnp.float32))
        # fused edge MLP = [sheaf learner | edge-weight learner]
        Ws, bs = lin_init(ks[2 + num_layers + l], 2 * H * fd, param_size)
        We, be = lin_init(ks[2 + 2 * num_layers + l], 2 * H * fd, 1)
        p["edge_w"].append(jnp.concatenate([Ws, We], axis=0))
        p["edge_b"].append(jnp.concatenate([bs, be], axis=0))
    return p


# ----------------------------------------------------------------------------
# Forward
# ----------------------------------------------------------------------------

def forward(params, x, edge_index, *, num_nodes, d, fd, H, num_layers,
            compute_energy=True, two_pass_energy=None):
    if two_pass_energy is None:
        two_pass_energy = _prefer_two_pass_energy()
    Nd = num_nodes * fd
    # input_dropout / dropout == 0.0 -> identity
    x = pallas_linear(x, params["lin1_w"], params["lin1_b"], act="elu")   # lin1 + ELU
    x = x.reshape(Nd, H)                                                   # view(N*fd, -1)
    x0 = x
    src, dst = edge_index[0], edge_index[1]
    energies = []

    for layer in range(num_layers):
        # --- nonlinear sheaf: rebuild Laplacian from current features -------
        x_node = x.reshape(num_nodes, fd * H)
        cat = jnp.concatenate([x_node[src], x_node[dst]], axis=-1)         # [E, 2*fd*H]
        # fused edge MLP (sheaf learner | edge-weight learner): output width is
        # param_size+1 == 2 -> a 2-of-128-lane store; left to XLA per perf review.
        ew_w, ew_b = params["edge_w"][layer], params["edge_b"][layer]
        param_size = ew_w.shape[0] - 1
        fused = cat @ ew_w.T + ew_b
        maps = jnp.tanh(fused[:, :param_size])                             # sheaf_act
        ew = jax.nn.sigmoid(fused[:, param_size:])                         # edge weights
        L = build_connection_laplacian(maps, ew, edge_index, num_nodes, d) # bf16
        # TODO(synk): eval-time scipy eigsh/svds lambda_max and torch.svd
        # spectral-norm logging are side effects only; skipped.

        # --- left weights: block-diagonal (I_N (x) Wl) apply (no dense kron) -
        xl = jnp.einsum("ab,nbh->nah", params["left"][layer],
                        x.reshape(num_nodes, fd, H)).reshape(Nd, H)
        xl = xl.astype(jnp.bfloat16)
        # right weights fused into the sheaf kernel via associativity.
        wrt = params["right"][layer].T                                     # [H, H] f32
        coeff = (1.0 + jnp.tanh(params["eps"][layer])).reshape(fd)         # fd scalars
        coeff = coeff.astype(jnp.float32)

        # --- sheaf diffusion + residual (+ Dirichlet energy) -----------------
        # x0's last use is this pallas_call -> the {x0 -> x_new} alias donates
        # its HBM buffer without a defensive copy.
        x, e = pallas_sheaf_layer(L, xl, wrt, x0, coeff, fd=fd,
                                  compute_energy=compute_energy,
                                  two_pass_energy=two_pass_energy)
        x0 = x
        if compute_energy:
            energies.append(e)

    # lin2: out_ch=8 -> 8-of-128-lane output; tiny GEMM left to XLA per review.
    out = x.reshape(num_nodes, fd * H) @ params["lin2_w"].T + params["lin2_b"]
    return out, energies


if __name__ == "__main__":
    # module hyper-params (add_lp=add_hp=False -> final_d == d)
    N, d = 512, 2
    fd = d
    in_ch, H, out_ch = 32, 32, 8
    num_layers = 2
    param_size = d * (d - 1) // 2              # orth_trans='householder'

    key = jax.random.PRNGKey(0)
    kx, kp = jax.random.split(key)
    x = jax.random.normal(kx, (N, in_ch), jnp.float32)

    # ring graph, one direction per undirected edge
    src = jnp.arange(N, dtype=jnp.int32)
    dst = jnp.roll(src, -1)
    edge_index = jnp.stack([src, dst], axis=0)

    params = init_params(kp, in_ch, H, fd, out_ch, num_layers, param_size)

    fwd_fused = jax.jit(functools.partial(
        forward, num_nodes=N, d=d, fd=fd, H=H, num_layers=num_layers,
        compute_energy=True, two_pass_energy=False))
    fwd_2pass = jax.jit(functools.partial(
        forward, num_nodes=N, d=d, fd=fd, H=H, num_layers=num_layers,
        compute_energy=True, two_pass_energy=True))
    fwd_fast = jax.jit(functools.partial(
        forward, num_nodes=N, d=d, fd=fd, H=H, num_layers=num_layers,
        compute_energy=False))

    out1, e1 = fwd_fused(params, x, edge_index)
    out2, e2 = fwd_2pass(params, x, edge_index)
    out3, _ = fwd_fast(params, x, edge_index)
    jax.block_until_ready((out1, out2, out3, e1, e2))

    assert out1.shape == (N, out_ch)
    assert bool(jnp.isfinite(out1).all())
    assert all(bool(jnp.isfinite(e)) for e in e1)
    assert all(bool(jnp.isfinite(e)) for e in e2)
    assert bool(jnp.allclose(out1, out2, atol=1e-2, rtol=1e-2))
    assert bool(jnp.allclose(out1, out3, atol=1e-2, rtol=1e-2))
    print("KERNEL_OK")
</pallas_src>

<mosaic_0001>
module attributes {stable_mosaic.version = 11 : i64} {
  func.func private @main(%arg0: i32) attributes {dimension_semantics = [#tpu.dimension_semantics<core_parallel>], iteration_bounds = array<i64: 2>, tpu.core_type = #tpu.core_type<sc_scalar_subcore>, window_params = []} {
    return
  }
}

module attributes {stable_mosaic.version = 11 : i64} {
  func.func private @main(%arg0: i32) attributes {dimension_semantics = [#tpu.dimension_semantics<core_parallel>], iteration_bounds = array<i64: 2>, tpu.core_type = #tpu.core_type<sc_scalar_subcore>, window_params = []} {
    return
  }
}

module attributes {stable_mosaic.version = 11 : i64} {
  func.func @_linear_kernel(%arg0: i32, %arg1: memref<256x32xbf16, #tpu.memory_space<vmem>>, %arg2: memref<32x64xbf16, #tpu.memory_space<vmem>>, %arg3: memref<1x64xf32, #tpu.memory_space<vmem>>, %arg4: memref<256x64xf32, #tpu.memory_space<vmem>>) attributes {dimension_semantics = [#tpu.dimension_semantics<parallel>], iteration_bounds = array<i64: 2>, scalar_prefetch = 0 : i64, scratch_operands = 0 : i64, tpu.core_type = #tpu.core_type<tc>, window_params = [{transform_indices = @transform_0, window_bounds = array<i64: 256, 32>}, {pipeline_mode = #tpu.pipeline_mode<synchronous>, transform_indices = @transform_1, window_bounds = array<i64: 32, 64>}, {pipeline_mode = #tpu.pipeline_mode<synchronous>, transform_indices = @transform_2, window_bounds = array<i64: 1, 64>}, {transform_indices = @transform_3, window_bounds = array<i64: 256, 64>}]} {
    %c0 = arith.constant 0 : index
    %c0_0 = arith.constant 0 : index
    %0 = vector.load %arg1[%c0, %c0_0] : memref<256x32xbf16, #tpu.memory_space<vmem>>, vector<256x32xbf16>
    %c0_1 = arith.constant 0 : index
    %c0_2 = arith.constant 0 : index
    %1 = vector.load %arg2[%c0_1, %c0_2] : memref<32x64xbf16, #tpu.memory_space<vmem>>, vector<32x64xbf16>
    %cst = arith.constant dense<0.000000e+00> : vector<256x64xf32>
    %2 = tpu.matmul %0, %1, %cst {dimension_numbers = #tpu.dot_dimension_numbers<[1], [0], [0], [1], [0, 0, 1, 1], [], []>} : vector<256x32xbf16>, vector<32x64xbf16>, vector<256x64xf32> -> vector<256x64xf32>
    %c0_3 = arith.constant 0 : index
    %c0_4 = arith.constant 0 : index
    %3 = vector.load %arg3[%c0_3, %c0_4] : memref<1x64xf32, #tpu.memory_space<vmem>>, vector<1x64xf32>
    %4 = vector.broadcast %3 : vector<1x64xf32> to vector<256x64xf32>
    %5 = arith.addf %2, %4 : vector<256x64xf32>
    %cst_5 = arith.constant 0.000000e+00 : f32
    %6 = vector.broadcast %cst_5 : f32 to vector<256x64xf32>
    %7 = arith.cmpf ogt, %5, %6 : vector<256x64xf32>
    %cst_6 = arith.constant 5.000000e-01 : f32
    %8 = vector.broadcast %cst_6 : f32 to vector<256x64xf32>
    %9 = arith.mulf %8, %5 : vector<256x64xf32>
    %10 = math.tanh %9 : vector<256x64xf32>
    %11 = math.exp %5 : vector<256x64xf32>
    %cst_7 = arith.constant 1.000000e+00 : f32
    %12 = vector.broadcast %cst_7 : f32 to vector<256x64xf32>
    %13 = arith.addf %11, %12 : vector<256x64xf32>
    %14 = arith.mulf %10, %13 : vector<256x64xf32>
    %15 = arith.select %7, %5, %14 : vector<256x64xi1>, vector<256x64xf32>
    %c0_8 = arith.constant 0 : index
    %c0_9 = arith.constant 0 : index
    %16 = vector.load %arg4[%c0_8, %c0_9] : memref<256x64xf32, #tpu.memory_space<vmem>>, vector<256x64xf32>
    tpu.vector_store %arg4[%c0_8, %c0_9], %15 {strides = array<i32>} : memref<256x64xf32, #tpu.memory_space<vmem>>, vector<256x64xf32>,
    return
  }
  func.func @transform_0(%arg0: i32) -> (i32, i32) {
    %c0_i32 = arith.constant 0 : i32
    %c0_i32_0 = arith.constant 0 : i32
    return %arg0, %c0_i32 : i32, i32
  }
  func.func @transform_1(%arg0: i32) -> (i32, i32) {
    %c0_i32 = arith.constant 0 : i32
    %c0_i32_0 = arith.constant 0 : i32
    %c0_i32_1 = arith.constant 0 : i32
    return %c0_i32, %c0_i32_0 : i32, i32
  }
  func.func @transform_2(%arg0: i32) -> (i32, i32) {
    %c0_i32 = arith.constant 0 : i32
    %c0_i32_0 = arith.constant 0 : i32
    %c0_i32_1 = arith.constant 0 : i32
    return %c0_i32, %c0_i32_0 : i32, i32
  }
  func.func @transform_3(%arg0: i32) -> (i32, i32) {
    %c0_i32 = arith.constant 0 : i32
    %c0_i32_0 = arith.constant 0 : i32
    return %arg0, %c0_i32 : i32, i32
  }
}

module attributes {stable_mosaic.version = 11 : i64} {
  func.func @_sheaf_energy_fused_kernel(%arg0: i32, %arg1: memref<256x1024xbf16, #tpu.memory_space<vmem>>, %arg2: memref<1024x32xbf16, #tpu.memory_space<vmem>>, %arg3: memref<32x32xf32, #tpu.memory_space<vmem>>, %arg4: memref<256x32xf32, #tpu.memory_space<vmem>>, %arg5: memref<2xf32, #tpu.memory_space<smem>>, %arg6: memref<256x32xf32, #tpu.memory_space<vmem>>, %arg7: memref<1x1xf32, #tpu.memory_space<vmem>>, %arg8: memref<1024x64xbf16, #tpu.memory_space<vmem>>) attributes {dimension_semantics = [#tpu.dimension_semantics<arbitrary>], iteration_bounds = array<i64: 4>, scalar_prefetch = 0 : i64, scratch_operands = 1 : i64, tpu.core_type = #tpu.core_type<tc>, window_params = [{transform_indices = @transform_0, window_bounds = array<i64: 256, 1024>}, {pipeline_mode = #tpu.pipeline_mode<synchronous>, transform_indices = @transform_1, window_bounds = array<i64: 1024, 32>}, {pipeline_mode = #tpu.pipeline_mode<synchronous>, transform_indices = @transform_2, window_bounds = array<i64: 32, 32>}, {transform_indices = @transform_3, window_bounds = array<i64: 256, 32>}, {transform_indices = @transform_4, window_bounds = array<i64: 2>}, {transform_indices = @transform_5, window_bounds = array<i64: 256, 32>}, {pipeline_mode = #tpu.pipeline_mode<synchronous>, transform_indices = @transform_6, window_bounds = array<i64: 1, 1>}]} {
    %c256_i32 = arith.constant 256 : i32
    %0 = arith.muli %arg0, %c256_i32 : i32
    %1 = tpu.assume_multiple %0, 256 : i32
    %c0_i32 = arith.constant 0 : i32
    %2 = arith.cmpi eq, %arg0, %c0_i32 : i32
    %3 = arith.extui %2 : i1 to i32
    %c0_i32_0 = arith.constant 0 : i32
    %4 = arith.cmpi ne, %3, %c0_i32_0 : i32
    scf.if %4 {
      %c0_30 = arith.constant 0 : index
      %c0_31 = arith.constant 0 : index
      %79 = vector.load %arg2[%c0_30, %c0_31] : memref<1024x32xbf16, #tpu.memory_space<vmem>>, vector<1024x32xbf16>
      %c0_32 = arith.constant 0 : index
      %c0_33 = arith.constant 0 : index
      %80 = vector.load %arg8[%c0_32, %c0_33] : memref<1024x64xbf16, #tpu.memory_space<vmem>>, vector<1024x32xbf16>
      tpu.vector_store %arg8[%c0_32, %c0_33], %79 {strides = array<i32>} : memref<1024x64xbf16, #tpu.memory_space<vmem>>, vector<1024x32xbf16>,
      %cst_34 = arith.constant 0.000000e+00 : bf16
      %81 = vector.broadcast %cst_34 : bf16 to vector<1024x32xbf16>
      %c0_35 = arith.constant 0 : index
      %c32_36 = arith.constant 32 : index
      %82 = vector.load %arg8[%c0_35, %c32_36] : memref<1024x64xbf16, #tpu.memory_space<vmem>>, vector<1024x32xbf16>
      tpu.vector_store %arg8[%c0_35, %c32_36], %81 {strides = array<i32>} : memref<1024x64xbf16, #tpu.memory_space<vmem>>, vector<1024x32xbf16>,
      %cst_37 = arith.constant 0.000000e+00 : f32
      %83 = vector.broadcast %cst_37 : f32 to vector<1x1xf32>
      %c0_38 = arith.constant 0 : index
      %c0_39 = arith.constant 0 : index
      %84 = vector.load %arg7[%c0_38, %c0_39] : memref<1x1xf32, #tpu.memory_space<vmem>>, vector<1x1xf32>
      tpu.vector_store %arg7[%c0_38, %c0_39], %83 {strides = array<i32>} : memref<1x1xf32, #tpu.memory_space<vmem>>, vector<1x1xf32>,
    } else {
    }
    %c0 = arith.constant 0 : index
    %c0_1 = arith.constant 0 : index
    %5 = vector.load %arg1[%c0, %c0_1] : memref<256x1024xbf16, #tpu.memory_space<vmem>>, vector<256x1024xbf16>
    %c0_2 = arith.constant 0 : index
    %c0_3 = arith.constant 0 : index
    %6 = vector.load %arg8[%c0_2, %c0_3] : memref<1024x64xbf16, #tpu.memory_space<vmem>>, vector<1024x64xbf16>
    %cst = arith.constant dense<0.000000e+00> : vector<256x64xf32>
    %7 = tpu.matmul %5, %6, %cst {dimension_numbers = #tpu.dot_dimension_numbers<[1], [0], [0], [1], [0, 0, 1, 1], [], []>} : vector<256x1024xbf16>, vector<1024x64xbf16>, vector<256x64xf32> -> vector<256x64xf32>
    %8 = vector.extract_strided_slice %7 {offsets = [0, 0], sizes = [256, 32], strides = [1, 1]} : vector<256x64xf32> to vector<256x32xf32>
    %c0_4 = arith.constant 0 : index
    %c0_5 = arith.constant 0 : index
    %9 = vector.load %arg3[%c0_4, %c0_5] : memref<32x32xf32, #tpu.memory_space<vmem>>, vector<32x32xf32>
    %cst_6 = arith.constant dense<0.000000e+00> : vector<256x32xf32>
    %10 = tpu.matmul %8, %9, %cst_6 {dimension_numbers = #tpu.dot_dimension_numbers<[1], [0], [0], [1], [0, 0, 1, 1], [], []>} : vector<256x32xf32>, vector<32x32xf32>, vector<256x32xf32> -> vector<256x32xf32>
    %cst_7 = arith.constant 0.000000e+00 : f32
    %11 = vector.broadcast %cst_7 : f32 to vector<256x32xf32>
    %12 = arith.cmpf ogt, %10, %11 : vector<256x32xf32>
    %cst_8 = arith.constant 5.000000e-01 : f32
    %13 = vector.broadcast %cst_8 : f32 to vector<256x32xf32>
    %14 = arith.mulf %13, %10 : vector<256x32xf32>
    %15 = math.tanh %14 : vector<256x32xf32>
    %16 = math.exp %10 : vector<256x32xf32>
    %cst_9 = arith.constant 1.000000e+00 : f32
    %17 = vector.broadcast %cst_9 : f32 to vector<256x32xf32>
    %18 = arith.addf %16, %17 : vector<256x32xf32>
    %19 = arith.mulf %15, %18 : vector<256x32xf32>
    %20 = arith.select %12, %10, %19 : vector<256x32xi1>, vector<256x32xf32>
    %21 = tpu.iota {dimensions = array<i32: 0>} : vector<256x1xi32>
    %22 = vector.broadcast %1 : i32 to vector<256x1xi32>
    %23 = arith.addi %22, %21 : vector<256x1xi32>
    %c2_i32 = arith.constant 2 : i32
    %c0_i32_10 = arith.constant 0 : i32
    %24 = arith.cmpi eq, %c2_i32, %c0_i32_10 : i32
    %c1_i32 = arith.constant 1 : i32
    %25 = arith.select %24, %c1_i32, %c2_i32 : i32
    %26 = vector.broadcast %25 : i32 to vector<256x1xi32>
    %27 = arith.remsi %23, %26 : vector<256x1xi32>
    %c0_i32_11 = arith.constant 0 : i32
    %28 = vector.broadcast %c0_i32_11 : i32 to vector<256x1xi32>
    %29 = arith.cmpi ne, %27, %28 : vector<256x1xi32>
    %c0_i32_12 = arith.constant 0 : i32
    %30 = vector.broadcast %c0_i32_12 : i32 to vector<256x1xi32>
    %31 = arith.cmpi slt, %27, %30 : vector<256x1xi32>
    %c0_i32_13 = arith.constant 0 : i32
    %32 = arith.cmpi slt, %25, %c0_i32_13 : i32
    %33 = vector.broadcast %32 : i1 to vector<256x1xi1>
    %34 = vector.broadcast %33 : vector<256x1xi1> to vector<256x1xi1>
    %35 = arith.xori %31, %34 : vector<256x1xi1>
    %36 = arith.andi %35, %29 : vector<256x1xi1>
    %37 = vector.broadcast %25 : i32 to vector<256x1xi32>
    %38 = arith.addi %27, %37 : vector<256x1xi32>
    %39 = arith.select %36, %38, %27 : vector<256x1xi1>, vector<256x1xi32>
    %cst_14 = arith.constant 0.000000e+00 : f32
    %40 = vector.broadcast %cst_14 : f32 to vector<256x1xf32>
    %c1 = arith.constant 1 : index
    %41 = memref.load %arg5[%c1] : memref<2xf32, #tpu.memory_space<smem>>
    %42 = vector.broadcast %41 : f32 to vector<256x1xf32>
    %43 = arith.addf %40, %42 : vector<256x1xf32>
    %c0_i32_15 = arith.constant 0 : i32
    %44 = vector.broadcast %c0_i32_15 : i32 to vector<256x1xi32>
    %45 = arith.cmpi eq, %39, %44 : vector<256x1xi32>
    %c0_16 = arith.constant 0 : index
    %46 = memref.load %arg5[%c0_16] : memref<2xf32, #tpu.memory_space<smem>>
    %47 = vector.broadcast %46 : f32 to vector<256x1xf32>
    %48 = arith.select %45, %47, %43 : vector<256x1xi1>, vector<256x1xf32>
    %c0_17 = arith.constant 0 : index
    %c0_18 = arith.constant 0 : index
    %49 = vector.load %arg4[%c0_17, %c0_18] : memref<256x32xf32, #tpu.memory_space<vmem>>, vector<256x32xf32>
    %50 = vector.broadcast %48 : vector<256x1xf32> to vector<256x32xf32>
    %51 = arith.mulf %50, %49 : vector<256x32xf32>
    %52 = arith.subf %51, %20 : vector<256x32xf32>
    %c0_19 = arith.constant 0 : index
    %c0_20 = arith.constant 0 : index
    %53 = vector.load %arg6[%c0_19, %c0_20] : memref<256x32xf32, #tpu.memory_space<vmem>>, vector<256x32xf32>
    tpu.vector_store %arg6[%c0_19, %c0_20], %52 {strides = array<i32>} : memref<256x32xf32, #tpu.memory_space<vmem>>, vector<256x32xf32>,
    %54 = arith.truncf %20 : vector<256x32xf32> to vector<256x32xbf16>
    %c0_21 = arith.constant 0 : index
    %55 = arith.index_cast %1 : i32 to index
    %56 = vector.load %arg1[%c0_21, %55] : memref<256x1024xbf16, #tpu.memory_space<vmem>>, vector<256x256xbf16>
    %cst_22 = arith.constant dense<0.000000e+00> : vector<256x32xf32>
    %57 = tpu.matmul %56, %54, %cst_22 {dimension_numbers = #tpu.dot_dimension_numbers<[1], [0], [0], [1], [0, 0, 1, 1], [], []>} : vector<256x256xbf16>, vector<256x32xbf16>, vector<256x32xf32> -> vector<256x32xf32>
    %c0_23 = arith.constant 0 : index
    %c0_24 = arith.constant 0 : index
    %58 = vector.load %arg7[%c0_23, %c0_24] : memref<1x1xf32, #tpu.memory_space<vmem>>, vector<1x1xf32>
    %59 = vector.extract_strided_slice %7 {offsets = [0, 32], sizes = [256, 32], strides = [1, 1]} : vector<256x64xf32> to vector<256x32xf32>
    %60 = arith.mulf %20, %59 : vector<256x32xf32>
    %61 = vector.shape_cast %60 : vector<256x32xf32> to vector<1x256x32xf32>
    %cst_25 = arith.constant dense<0.000000e+00> : vector<1xf32>
    %62 = vector.multi_reduction <add>, %61, %cst_25 [1, 2] : vector<1x256x32xf32> to vector<1xf32>
    %63 = vector.shape_cast %62 : vector<1xf32> to vector<1x1x1xf32>
    %64 = vector.extract %63[0, 0, 0] : f32 from vector<1x1x1xf32>
    %65 = vector.broadcast %64 : f32 to vector<1x1xf32>
    %cst_26 = arith.constant 2.000000e+00 : f32
    %66 = vector.broadcast %cst_26 : f32 to vector<1x1xf32>
    %67 = arith.mulf %66, %65 : vector<1x1xf32>
    %68 = arith.mulf %20, %57 : vector<256x32xf32>
    %69 = vector.shape_cast %68 : vector<256x32xf32> to vector<1x256x32xf32>
    %cst_27 = arith.constant dense<0.000000e+00> : vector<1xf32>
    %70 = vector.multi_reduction <add>, %69, %cst_27 [1, 2] : vector<1x256x32xf32> to vector<1xf32>
    %71 = vector.shape_cast %70 : vector<1xf32> to vector<1x1x1xf32>
    %72 = vector.extract %71[0, 0, 0] : f32 from vector<1x1x1xf32>
    %73 = vector.broadcast %72 : f32 to vector<1x1xf32>
    %74 = arith.addf %67, %73 : vector<1x1xf32>
    %75 = arith.addf %58, %74 : vector<1x1xf32>
    %c0_28 = arith.constant 0 : index
    %c0_29 = arith.constant 0 : index
    %76 = vector.load %arg7[%c0_28, %c0_29] : memref<1x1xf32, #tpu.memory_space<vmem>>, vector<1x1xf32>
    tpu.vector_store %arg7[%c0_28, %c0_29], %75 {strides = array<i32>} : memref<1x1xf32, #tpu.memory_space<vmem>>, vector<1x1xf32>,
    %77 = arith.index_cast %1 : i32 to index
    %c32 = arith.constant 32 : index
    %78 = vector.load %arg8[%77, %c32] : memref<1024x64xbf16, #tpu.memory_space<vmem>>, vector<256x32xbf16>
    tpu.vector_store %arg8[%77, %c32], %54 {strides = array<i32>} : memref<1024x64xbf16, #tpu.memory_space<vmem>>, vector<256x32xbf16>,
    return
  }
  func.func @transform_0(%arg0: i32) -> (i32, i32) {
    %c0_i32 = arith.constant 0 : i32
    %c0_i32_0 = arith.constant 0 : i32
    return %arg0, %c0_i32 : i32, i32
  }
  func.func @transform_1(%arg0: i32) -> (i32, i32) {
    %c0_i32 = arith.constant 0 : i32
    %c0_i32_0 = arith.constant 0 : i32
    %c0_i32_1 = arith.constant 0 : i32
    return %c0_i32, %c0_i32_0 : i32, i32
  }
  func.func @transform_2(%arg0: i32) -> (i32, i32) {
    %c0_i32 = arith.constant 0 : i32
    %c0_i32_0 = arith.constant 0 : i32
    %c0_i32_1 = arith.constant 0 : i32
    return %c0_i32, %c0_i32_0 : i32, i32
  }
  func.func @transform_3(%arg0: i32) -> (i32, i32) {
    %c0_i32 = arith.constant 0 : i32
    %c0_i32_0 = arith.constant 0 : i32
    return %arg0, %c0_i32 : i32, i32
  }
  func.func @transform_4(%arg0: i32) -> i32 {
    %c0_i32 = arith.constant 0 : i32
    %c0_i32_0 = arith.constant 0 : i32
    return %c0_i32 : i32
  }
  func.func @transform_5(%arg0: i32) -> (i32, i32) {
    %c0_i32 = arith.constant 0 : i32
    %c0_i32_0 = arith.constant 0 : i32
    return %arg0, %c0_i32 : i32, i32
  }
  func.func @transform_6(%arg0: i32) -> (i32, i32) {
    %c0_i32 = arith.constant 0 : i32
    %c0_i32_0 = arith.constant 0 : i32
    %c0_i32_1 = arith.constant 0 : i32
    return %c0_i32, %c0_i32_0 : i32, i32
  }
}

</mosaic_0001>

<llo_original>
// kernel: forward.3
$region0: #{forward.3}
  #allocation0 [shape = 'u32[]', space=smem, size = 0x4, offset = 0x4, fixed_abs, tag = 'smem constant byte address 0x4 - core index']
  #allocation1 [shape = 'u32[144,128]{1,0:T(1,128)}', space=vmem, size = 0x12000, scoped, tag = 'internal scratch']
  %s0 = inlined_call_operand.vmem [shape: bf16[512,32], index: 0, kind: input, shape index: {}]
  %s1 = inlined_call_operand.vmem [shape: bf16[32,64], index: 1, kind: input, shape index: {}]
  %s2 = inlined_call_operand.hbm [shape: f32[1,64], index: 2, kind: input, shape index: {}]
  %s3 = inlined_call_operand.vmem [shape: f32[512,64], index: 3, kind: output, shape index: {}]
  %s4 = sld [smem:[#allocation0]]
  $region49: #{forward.3} parent=0
    _
  %s6 = ssub.s32 1, %s4
  %s7 = scalar_select 0, %s6, %s4
  $region1: #{forward.3} parent=0
    #allocation2 [shape = 'u8[512]{0}', space=vmem, size = 0x400, scoped, tag = 'input window, operand 2, single buffered']
    #allocation3 [shape = 's32[2]{0}', space=sflag, size = 0x8, scoped, tag = 'scoped memory for forward.3']
    %8 = vsyncpa [#allocation3], 0
    loop: start=0, step=1, limit=4
    $region2: #{forward.3} parent=1 // loop_pre_header
      _
    $region3: #{forward.3} parent=1 // loop_header
      %s10 = sphi 0, %s14
      %p11 = scmp.ge.s32.totalorder %s10, 4
      %s20 = sphi 0, %s22
      %s23 = sphi 0, %s20
      %s24 = sphi 0, %s23
      %s40 = sphi 0, %s24
      %s44 = sphi 0, %s44
      %s46 = sphi 0, %s44
      %s47 = sphi 0, %s46
      %s61 = sphi 0, %s47
      %s65 = sphi 0, %s65
      %s67 = sphi 0, %s65
      %s68 = sphi 0, %s67
      %s82 = sphi 0, %s68
      %s88 = sphi 0, %s90
      %s91 = sphi 0, %s88
      %s92 = sphi 0, %s91
      %s108 = sphi 0, %s92
    $region4: #{forward.3} parent=1 // loop_header_branch
      %13 = sbr.rel (%p11) target = $region8
    $region5: #{forward.3} parent=1 // loop_body
      %s15 = ssub.s32 %s10, 1
      %s16 = ssub.s32 %s10, 2
      %s17 = sadd.s32 %s10, 1
      %s18 = ssub.s32 %s10, %s17
      %p19 = scmp.eq.s32.totalorder %s18, 0
      %s21 = sadd.s32 %s20, 1
      %s22 = scalar_select %p19, %s20, %s21
      %p25 = pneg %p19
      %p26 = scmp.eq.s32.totalorder %s10, 1
      %p27 = por %p25, %p26
      %p28 = scmp.ne.s32.totalorder %s20, %s23
      %p29 = scmp.eq.s32.totalorder %s10, 0
      %p30 = por %p28, %p29
      %p31 = scmp.ne.s32.totalorder %s20, %s23
      %p32 = scmp.eq.s32.totalorder %s15, 1
      %p33 = por %p31, %p32
      %p34 = scmp.ne.s32.totalorder %s23, %s24
      %p35 = scmp.eq.s32.totalorder %s15, 0
      %p36 = por %p34, %p35
      %p37 = scmp.ne.s32.totalorder %s23, %s24
      %p38 = scmp.eq.s32.totalorder %s16, 1
      %p39 = por %p37, %p38
      %p41 = scmp.ne.s32.totalorder %s24, %s40
      %p42 = scmp.eq.s32.totalorder %s16, 0
      %p43 = por %p41, %p42
      %s45 = sadd.s32 %s44, 1
      %p48 = scmp.eq.s32.totalorder %s10, 1
      %p49 = scmp.ne.s32.totalorder %s44, %s46
      %p50 = scmp.eq.s32.totalorder %s10, 0
      %p51 = por %p49, %p50
      %p52 = scmp.ne.s32.totalorder %s44, %s46
      %p53 = scmp.eq.s32.totalorder %s15, 1
      %p54 = por %p52, %p53
      %p55 = scmp.ne.s32.totalorder %s46, %s47
      %p56 = scmp.eq.s32.totalorder %s15, 0
      %p57 = por %p55, %p56
      %p58 = scmp.ne.s32.totalorder %s46, %s47
      %p59 = scmp.eq.s32.totalorder %s16, 1
      %p60 = por %p58, %p59
      %p62 = scmp.ne.s32.totalorder %s47, %s61
      %p63 = scmp.eq.s32.totalorder %s16, 0
      %p64 = por %p62, %p63
      %s66 = sadd.s32 %s65, 1
      %p69 = scmp.eq.s32.totalorder %s10, 1
      %p70 = scmp.ne.s32.totalorder %s65, %s67
      %p71 = scmp.eq.s32.totalorder %s10, 0
      %p72 = por %p70, %p71
      %p73 = scmp.ne.s32.totalorder %s65, %s67
      %p74 = scmp.eq.s32.totalorder %s15, 1
      %p75 = por %p73, %p74
      %p76 = scmp.ne.s32.totalorder %s67, %s68
      %p77 = scmp.eq.s32.totalorder %s15, 0
      %p78 = por %p76, %p77
      %p79 = scmp.ne.s32.totalorder %s67, %s68
      %p80 = scmp.eq.s32.totalorder %s16, 1
      %p81 = por %p79, %p80
      %p83 = scmp.ne.s32.totalorder %s68, %s82
      %p84 = scmp.eq.s32.totalorder %s16, 0
      %p85 = por %p83, %p84
      %s86 = ssub.s32 %s10, %s17
      %p87 = scmp.eq.s32.totalorder %s86, 0
      %s89 = sadd.s32 %s88, 1
      %s90 = scalar_select %p87, %s88, %s89
      %p93 = pneg %p87
      %p94 = scmp.eq.s32.totalorder %s10, 1
      %p95 = por %p93, %p94
      %p96 = scmp.ne.s32.totalorder %s88, %s91
      %p97 = scmp.eq.s32.totalorder %s10, 0
      %p98 = por %p96, %p97
      %p99 = scmp.ne.s32.totalorder %s88, %s91
      %p100 = scmp.eq.s32.totalorder %s15, 1
      %p101 = por %p99, %p100
      %p102 = scmp.ne.s32.totalorder %s91, %s92
      %p103 = scmp.eq.s32.totalorder %s15, 0
      %p104 = por %p102, %p103
      %p105 = scmp.ne.s32.totalorder %s91, %s92
      %p106 = scmp.eq.s32.totalorder %s16, 1
      %p107 = por %p105, %p106
      %p109 = scmp.ne.s32.totalorder %s92, %s108
      %p110 = scmp.eq.s32.totalorder %s16, 0
      %p111 = por %p109, %p110
      %p112 = scmp.le.s32.totalorder 1, %s10
      %p113 = scmp.lt.s32.totalorder %s10, 3
      %p114 = pnand %p112, %p113
      %p115 = pneg %p114
      // Predicated region
      $region9: #{forward.3} parent=5 // pred_check
        _
      $region10: #{forward.3} parent=5 // pred_check_branch
        %117 = sbr.rel (%p114) target = $region12
      $region11: #{forward.3} parent=5 // pred_region
        %s118 = ssub.s32 %s10, 1
        // Predicated region
        $region13: #{forward.3} parent=11 // pred_check
          %p119 = pneg %p57
        $region14: #{forward.3} parent=11 // pred_check_branch
          %121 = sbr.rel (%p119) target = $region16
        $region15: #{forward.3} parent=11 // pred_region
          _
        $region16: #{forward.3} parent=11 // pred_fallthru
          _
        // Predicated region
        $region17: #{forward.3} parent=11 // pred_check
          %p122 = pneg %p78
        $region18: #{forward.3} parent=11 // pred_check_branch
          %124 = sbr.rel (%p122) target = $region20
        $region19: #{forward.3} parent=11 // pred_region
          %s126 = ssub.s32 16, 16
          %127 = vsyncadd [#allocation3], %s126
          %s129 = sshll.u32 [#allocation2], 4
          %s130 = int_to_ptr.vmem [resolvable:$true] %s129
          %132 = dma.hbm_to_vmem [thread:$0]  %s2, 16, %s130, [#allocation3]
        $region20: #{forward.3} parent=11 // pred_fallthru
          _
      $region12: #{forward.3} parent=5 // pred_fallthru
        _
      %p133 = scmp.lt.s32.totalorder %s10, 2
      // Predicated region
      $region21: #{forward.3} parent=5 // pred_check
        %p134 = pneg %p133
      $region22: #{forward.3} parent=5 // pred_check_branch
        %136 = sbr.rel (%p134) target = $region24
      $region23: #{forward.3} parent=5 // pred_region
        // Predicated region
        $region25: #{forward.3} parent=23 // pred_check
          %p137 = pneg %p30
        $region26: #{forward.3} parent=23 // pred_check_branch
          %139 = sbr.rel (%p137) target = $region28
        $region27: #{forward.3} parent=23 // pred_region
          %s140 = smul.u32 32, %s10
          %p141 = scmp.lt.s32.totalorder %s140, 63
          %s142 = scalar_select %p141, %s140, 63
          %s143 = smul.addr %s142, 4
          %s144 = scalar_lea.vmem %s0, %s143
          %s145 = smul.u32 32, %s10
        $region28: #{forward.3} parent=23 // pred_fallthru
          _
      $region24: #{forward.3} parent=5 // pred_fallthru
        _
      %p146 = scmp.le.s32.totalorder 1, %s10
      %p147 = scmp.lt.s32.totalorder %s10, 3
      %p148 = pnand %p146, %p147
      %p149 = pneg %p148
      // Predicated region
      $region29: #{forward.3} parent=5 // pred_check
        _
      $region30: #{forward.3} parent=5 // pred_check_branch
        %151 = sbr.rel (%p148) target = $region32
      $region31: #{forward.3} parent=5 // pred_region
        %s152 = ssub.s32 %s10, 1
        // Predicated region
        $region33: #{forward.3} parent=31 // pred_check
          %p153 = pneg %p78
        $region34: #{forward.3} parent=31 // pred_check_branch
          %155 = sbr.rel (%p153) target = $region36
        $region35: #{forward.3} parent=31 // pred_region
          %156 = dma.done [#allocation3], 16
        $region36: #{forward.3} parent=31 // pred_fallthru
          _
        %s157 = smul.u32 32, %s15
        %p158 = scmp.lt.s32.totalorder %s157, 63
        %s159 = scalar_select %p158, %s157, 63
        %s160 = smul.addr %s159, 4
        %s161 = scalar_lea.vmem %s0, %s160
        %p162 = pneg %p36
        %p163 = pneg %p33
        %p164 = pneg %p57
        %p165 = pneg %p54
        %p166 = pneg %p78
        %p167 = pneg %p75
        %p168 = pneg %p104
        %p169 = pneg %p101
        %s170 = smul.u32 32, %s15
        %p171 = scmp.lt.s32.totalorder %s170, 63
        %s172 = scalar_select %p171, %s170, 63
        %s173 = smul.addr %s172, 8
        %s174 = scalar_lea.vmem %s3, %s173
        %s175 = smul.u32 32, %s15
        %p176 = scmp.lt.s32.totalorder %s175, 63
        %s177 = scalar_select %p176, %s175, 63
        %s178 = smul.addr %s177, 4
        %s179 = scalar_lea.vmem %s0, %s178
        %s180 = smul.u32 32, %s15
        %s181 = smul.u32 32, %s15
        %p182 = scmp.lt.s32.totalorder %s181, 63
        %s183 = scalar_select %p182, %s181, 63
        %s184 = smul.addr %s183, 8
        %s185 = scalar_lea.vmem %s3, %s184
        %s186 = smul.u32 32, %s15
        %v188 = vld [vmem:[%s179] sm:$0xf]
        %v189 = vld [vmem:[%s179 + $0x4] sm:$0xf]
        %v190 = vld [vmem:[%s179 + $0x8] sm:$0xf]
        %v191 = vld [vmem:[%s179 + $0xc] sm:$0xf]
        %v192 = vld [vmem:[%s179 + $0x10] sm:$0xf]
        %v193 = vld [vmem:[%s179 + $0x14] sm:$0xf]
        %v194 = vld [vmem:[%s179 + $0x18] sm:$0xf]
        %v195 = vld [vmem:[%s179 + $0x1c] sm:$0xf]
        %v196 = vld [vmem:[%s179 + $0x20] sm:$0xf]
        %v197 = vld [vmem:[%s179 + $0x24] sm:$0xf]
        %v198 = vld [vmem:[%s179 + $0x28] sm:$0xf]
        %v199 = vld [vmem:[%s179 + $0x2c] sm:$0xf]
        %v200 = vld [vmem:[%s179 + $0x30] sm:$0xf]
        %v201 = vld [vmem:[%s179 + $0x34] sm:$0xf]
        %v202 = vld [vmem:[%s179 + $0x38] sm:$0xf]
        %v203 = vld [vmem:[%s179 + $0x3c] sm:$0xf]
        %v204 = vld [vmem:[%s179 + $0x40] sm:$0xf]
        %v205 = vld [vmem:[%s179 + $0x44] sm:$0xf]
        %v206 = vld [vmem:[%s179 + $0x48] sm:$0xf]
        %v207 = vld [vmem:[%s179 + $0x4c] sm:$0xf]
        %v208 = vld [vmem:[%s179 + $0x50] sm:$0xf]
        %v209 = vld [vmem:[%s179 + $0x54] sm:$0xf]
        %v210 = vld [vmem:[%s179 + $0x58] sm:$0xf]
        %v211 = vld [vmem:[%s179 + $0x5c] sm:$0xf]
        %v212 = vld [vmem:[%s179 + $0x60] sm:$0xf]
        %v213 = vld [vmem:[%s179 + $0x64] sm:$0xf]
        %v214 = vld [vmem:[%s179 + $0x68] sm:$0xf]
        %v215 = vld [vmem:[%s179 + $0x6c] sm:$0xf]
        %v216 = vld [vmem:[%s179 + $0x70] sm:$0xf]
        %v217 = vld [vmem:[%s179 + $0x74] sm:$0xf]
        %v218 = vld [vmem:[%s179 + $0x78] sm:$0xf]
        %v219 = vld [vmem:[%s179 + $0x7c] sm:$0xf]
        %v220 = vld [vmem:[%s1] sm:$0xf]
        %v221 = vld [vmem:[%s1 + $0x4] sm:$0xf]
        %v222 = vld [vmem:[%s1 + $0x8] sm:$0xf]
        %v223 = vld [vmem:[%s1 + $0xc] sm:$0xf]
        %v224 = vld [vmem:[#allocation2] sm:$0x1]
        %v226 = vlaneseq
        %v227 = vshrl.u32 %v226, 7
        %v228 = vsub.s32 0, %v227
        %v229 = vrot.slane %v224, %v228
        %v263 = vunpack.c.l.b16 %v188
        %v264 = vunpack.c.l.b16 %v189
        %v265 = vunpack.c.l.b16 %v190
        %v266 = vunpack.c.l.b16 %v191
        %v267 = vunpack.c.l.b16 %v192
        %v268 = vunpack.c.l.b16 %v193
        %v269 = vunpack.c.l.b16 %v194
        %v270 = vunpack.c.l.b16 %v195
        %v271 = vunpack.c.l.b16 %v196
        %v272 = vunpack.c.l.b16 %v197
        %v273 = vunpack.c.l.b16 %v198
        %v274 = vunpack.c.l.b16 %v199
        %v275 = vunpack.c.l.b16 %v200
        %v276 = vunpack.c.l.b16 %v201
        %v277 = vunpack.c.l.b16 %v202
        %v278 = vunpack.c.l.b16 %v203
        %v279 = vunpack.c.l.b16 %v204
        %v280 = vunpack.c.l.b16 %v205
        %v281 = vunpack.c.l.b16 %v206
        %v282 = vunpack.c.l.b16 %v207
        %v283 = vunpack.c.l.b16 %v208
        %v284 = vunpack.c.l.b16 %v209
        %v285 = vunpack.c.l.b16 %v210
        %v286 = vunpack.c.l.b16 %v211
        %v287 = vunpack.c.l.b16 %v212
        %v288 = vunpack.c.l.b16 %v213
        %v289 = vunpack.c.l.b16 %v214
        %v290 = vunpack.c.l.b16 %v215
        %v291 = vunpack.c.l.b16 %v216
        %v292 = vunpack.c.l.b16 %v217
        %v293 = vunpack.c.l.b16 %v218
        %v294 = vunpack.c.l.b16 %v219
        %v295 = vpack.c.b16 %v264, %v263
        %v296 = vpack.c.b16 %v266, %v265
        %v297 = vpack.c.b16 %v268, %v267
        %v298 = vpack.c.b16 %v270, %v269
        %v299 = vpack.c.b16 %v272, %v271
        %v300 = vpack.c.b16 %v274, %v273
        %v301 = vpack.c.b16 %v276, %v275
        %v302 = vpack.c.b16 %v278, %v277
        %v303 = vpack.c.b16 %v280, %v279
        %v304 = vpack.c.b16 %v282, %v281
        %v305 = vpack.c.b16 %v284, %v283
        %v306 = vpack.c.b16 %v286, %v285
        %v307 = vpack.c.b16 %v288, %v287
        %v308 = vpack.c.b16 %v290, %v289
        %v309 = vpack.c.b16 %v292, %v291
        %v310 = vpack.c.b16 %v294, %v293
        %v315 = vunpack.c.l.b16 %v220
        %v316 = vunpack.c.l.b16 %v221
        %v317 = vunpack.c.l.b16 %v222
        %v318 = vunpack.c.l.b16 %v223
        %v319 = vpack.c.b16 %v316, %v315
        %v320 = vpack.c.b16 %v318, %v317
        %vm323 = vcmask 261120
        %v325 = vsel %vm323, %v295, 0
        %v328 = vsel %vm323, %v296, 0
        %v331 = vsel %vm323, %v297, 0
        %v334 = vsel %vm323, %v298, 0
        %v337 = vsel %vm323, %v299, 0
        %v340 = vsel %vm323, %v300, 0
        %v343 = vsel %vm323, %v301, 0
        %v346 = vsel %vm323, %v302, 0
        %v349 = vsel %vm323, %v303, 0
        %v352 = vsel %vm323, %v304, 0
        %v355 = vsel %vm323, %v305, 0
        %v358 = vsel %vm323, %v306, 0
        %v361 = vsel %vm323, %v307, 0
        %v364 = vsel %vm323, %v308, 0
        %v367 = vsel %vm323, %v309, 0
        %v370 = vsel %vm323, %v310, 0
        %372 = vmatprep.subr.bf16.mxu0 0
        %373 = vmatpush1.bf16.msra.mxu0 0
        %374 = vmatprep.subr.bf16.mxu0 0
        %375 = vmatpush1.bf16.msra.mxu0 0
        %376 = vmatprep.subr.bf16.mxu0 0
        %377 = vmatpush1.bf16.msra.mxu0 0
        %378 = vmatprep.subr.bf16.mxu0 0
        %379 = vmatpush1.bf16.msra.mxu0 0
        %380 = vmatprep.subr.bf16.mxu0 0
        %381 = vmatpush1.bf16.msra.mxu0 0
        %382 = vmatprep.subr.bf16.mxu0 0
        %383 = vmatpush1.bf16.msra.mxu0 0
        %384 = vmatprep.subr.bf16.mxu0 0
        %385 = vmatpush1.bf16.msra.mxu0 %v320
        %386 = vmatprep.subr.bf16.mxu0 0
        %387 = vmatpush1.bf16.msra.mxu0 %v319
        %388 = vmatprep.subr.bf16.mxu0 0
        %389 = vmatpush2.bf16.msra.mxu0 0
        %390 = vmatprep.subr.bf16.mxu0 0
        %391 = vmatpush2.bf16.msra.mxu0 0
        %392 = vmatprep.subr.bf16.mxu0 0
        %393 = vmatpush2.bf16.msra.mxu0 0
        %394 = vmatprep.subr.bf16.mxu0 0
        %395 = vmatpush2.bf16.msra.mxu0 0
        %396 = vmatprep.subr.bf16.mxu0 0
        %397 = vmatpush2.bf16.msra.mxu0 0
        %398 = vmatprep.subr.bf16.mxu0 0
        %399 = vmatpush2.bf16.msra.mxu0 0
        %400 = vmatprep.subr.bf16.mxu0 0
        %401 = vmatpush2.bf16.msra.mxu0 0
        %402 = vmatprep.subr.bf16.mxu0 0
        %403 = vmatpush2.bf16.msra.mxu0 0
        %404 = vmatprep.mubr.bf16.mxu0 0
        %405 = vmatmul.mubr.bf16.gmra.mxu0 %v325
        %v406 = vpop.f32.mrf.mxu0
        %v407 = vadd.f32 %v229, %v406
        %v408 = vpop.f32.mrf.mxu0
        %v409 = vpop.f32.mrf.mxu0
        %v410 = vadd.f32 %v229, %v409
        %v411 = vpop.f32.mrf.mxu0
        %412 = vmatprep.mubr.bf16.mxu0 0
        %413 = vmatmul.mubr.bf16.gmra.mxu0 %v328
        %v414 = vpop.f32.mrf.mxu0
        %v415 = vadd.f32 %v229, %v414
        %v416 = vpop.f32.mrf.mxu0
        %v417 = vpop.f32.mrf.mxu0
        %v418 = vadd.f32 %v229, %v417
        %v419 = vpop.f32.mrf.mxu0
        %420 = vmatprep.mubr.bf16.mxu0 0
        %421 = vmatmul.mubr.bf16.gmra.mxu0 %v331
        %v422 = vpop.f32.mrf.mxu0
        %v423 = vadd.f32 %v229, %v422
        %v424 = vpop.f32.mrf.mxu0
        %v425 = vpop.f32.mrf.mxu0
        %v426 = vadd.f32 %v229, %v425
        %v427 = vpop.f32.mrf.mxu0
        %428 = vmatprep.mubr.bf16.mxu0 0
        %429 = vmatmul.mubr.bf16.gmra.mxu0 %v334
        %v430 = vpop.f32.mrf.mxu0
        %v431 = vadd.f32 %v229, %v430
        %v432 = vpop.f32.mrf.mxu0
        %v433 = vpop.f32.mrf.mxu0
        %v434 = vadd.f32 %v229, %v433
        %v435 = vpop.f32.mrf.mxu0
        %436 = vmatprep.mubr.bf16.mxu0 0
        %437 = vmatmul.mubr.bf16.gmra.mxu0 %v337
        %v438 = vpop.f32.mrf.mxu0
        %v439 = vadd.f32 %v229, %v438
        %v440 = vpop.f32.mrf.mxu0
        %v441 = vpop.f32.mrf.mxu0
        %v442 = vadd.f32 %v229, %v441
        %v443 = vpop.f32.mrf.mxu0
        %444 = vmatprep.mubr.bf16.mxu0 0
        %445 = vmatmul.mubr.bf16.gmra.mxu0 %v340
        %v446 = vpop.f32.mrf.mxu0
        %v447 = vadd.f32 %v229, %v446
        %v448 = vpop.f32.mrf.mxu0
        %v449 = vpop.f32.mrf.mxu0
        %v450 = vadd.f32 %v229, %v449
        %v451 = vpop.f32.mrf.mxu0
        %452 = vmatprep.mubr.bf16.mxu0 0
        %453 = vmatmul.mubr.bf16.gmra.mxu0 %v343
        %v454 = vpop.f32.mrf.mxu0
        %v455 = vadd.f32 %v229, %v454
        %v456 = vpop.f32.mrf.mxu0
        %v457 = vpop.f32.mrf.mxu0
        %v458 = vadd.f32 %v229, %v457
        %v459 = vpop.f32.mrf.mxu0
        %460 = vmatprep.mubr.bf16.mxu0 0
        %461 = vmatmul.mubr.bf16.gmra.mxu0 %v346
        %v462 = vpop.f32.mrf.mxu0
        %v463 = vadd.f32 %v229, %v462
        %v464 = vpop.f32.mrf.mxu0
        %v465 = vpop.f32.mrf.mxu0
        %v466 = vadd.f32 %v229, %v465
        %v467 = vpop.f32.mrf.mxu0
        %468 = vmatprep.mubr.bf16.mxu0 0
        %469 = vmatmul.mubr.bf16.gmra.mxu0 %v349
        %v470 = vpop.f32.mrf.mxu0
        %v471 = vadd.f32 %v229, %v470
        %v472 = vpop.f32.mrf.mxu0
        %v473 = vpop.f32.mrf.mxu0
        %v474 = vadd.f32 %v229, %v473
        %v475 = vpop.f32.mrf.mxu0
        %476 = vmatprep.mubr.bf16.mxu0 0
        %477 = vmatmul.mubr.bf16.gmra.mxu0 %v352
        %v478 = vpop.f32.mrf.mxu0
        %v479 = vadd.f32 %v229, %v478
        %v480 = vpop.f32.mrf.mxu0
        %v481 = vpop.f32.mrf.mxu0
        %v482 = vadd.f32 %v229, %v481
        %v483 = vpop.f32.mrf.mxu0
        %484 = vmatprep.mubr.bf16.mxu0 0
        %485 = vmatmul.mubr.bf16.gmra.mxu0 %v355
        %v486 = vpop.f32.mrf.mxu0
        %v487 = vadd.f32 %v229, %v486
        %v488 = vpop.f32.mrf.mxu0
        %v489 = vpop.f32.mrf.mxu0
        %v490 = vadd.f32 %v229, %v489
        %v491 = vpop.f32.mrf.mxu0
        %492 = vmatprep.mubr.bf16.mxu0 0
        %493 = vmatmul.mubr.bf16.gmra.mxu0 %v358
        %v494 = vpop.f32.mrf.mxu0
        %v495 = vadd.f32 %v229, %v494
        %v496 = vpop.f32.mrf.mxu0
        %v497 = vpop.f32.mrf.mxu0
        %v498 = vadd.f32 %v229, %v497
        %v499 = vpop.f32.mrf.mxu0
        %500 = vmatprep.mubr.bf16.mxu0 0
        %501 = vmatmul.mubr.bf16.gmra.mxu0 %v361
        %v502 = vpop.f32.mrf.mxu0
        %v503 = vadd.f32 %v229, %v502
        %v504 = vpop.f32.mrf.mxu0
        %v505 = vpop.f32.mrf.mxu0
        %v506 = vadd.f32 %v229, %v505
        %v507 = vpop.f32.mrf.mxu0
        %508 = vmatprep.mubr.bf16.mxu0 0
        %509 = vmatmul.mubr.bf16.gmra.mxu0 %v364
        %v510 = vpop.f32.mrf.mxu0
        %v511 = vadd.f32 %v229, %v510
        %v512 = vpop.f32.mrf.mxu0
        %v513 = vpop.f32.mrf.mxu0
        %v514 = vadd.f32 %v229, %v513
        %v515 = vpop.f32.mrf.mxu0
        %516 = vmatprep.mubr.bf16.mxu0 0
        %517 = vmatmul.mubr.bf16.gmra.mxu0 %v367
        %v518 = vpop.f32.mrf.mxu0
        %v519 = vadd.f32 %v229, %v518
        %v520 = vpop.f32.mrf.mxu0
        %v521 = vpop.f32.mrf.mxu0
        %v522 = vadd.f32 %v229, %v521
        %v523 = vpop.f32.mrf.mxu0
        %524 = vmatprep.mubr.bf16.mxu0 0
        %525 = vmatmul.mubr.bf16.gmra.mxu0 %v370
        %v526 = vpop.f32.mrf.mxu0
        %v527 = vadd.f32 %v229, %v526
        %v528 = vpop.f32.mrf.mxu0
        %v529 = vpop.f32.mrf.mxu0
        %v530 = vadd.f32 %v229, %v529
        %v531 = vpop.f32.mrf.mxu0
        %532 = vdwg.mxu0
        %vm533 = vcmp.gt.f32.partialorder %v407, 0.0
        %vm534 = vcmp.gt.f32.partialorder %v410, 0.0
        %vm535 = vcmp.gt.f32.partialorder %v415, 0.0
        %vm536 = vcmp.gt.f32.partialorder %v418, 0.0
        %vm537 = vcmp.gt.f32.partialorder %v423, 0.0
        %vm538 = vcmp.gt.f32.partialorder %v426, 0.0
        %vm539 = vcmp.gt.f32.partialorder %v431, 0.0
        %vm540 = vcmp.gt.f32.partialorder %v434, 0.0
        %vm541 = vcmp.gt.f32.partialorder %v439, 0.0
        %vm542 = vcmp.gt.f32.partialorder %v442, 0.0
        %vm543 = vcmp.gt.f32.partialorder %v447, 0.0
        %vm544 = vcmp.gt.f32.partialorder %v450, 0.0
        %vm545 = vcmp.gt.f32.partialorder %v455, 0.0
        %vm546 = vcmp.gt.f32.partialorder %v458, 0.0
        %vm547 = vcmp.gt.f32.partialorder %v463, 0.0
        %vm548 = vcmp.gt.f32.partialorder %v466, 0.0
        %vm549 = vcmp.gt.f32.partialorder %v471, 0.0
        %vm550 = vcmp.gt.f32.partialorder %v474, 0.0
        %vm551 = vcmp.gt.f32.partialorder %v479, 0.0
        %vm552 = vcmp.gt.f32.partialorder %v482, 0.0
        %vm553 = vcmp.gt.f32.partialorder %v487, 0.0
        %vm554 = vcmp.gt.f32.partialorder %v490, 0.0
        %vm555 = vcmp.gt.f32.partialorder %v495, 0.0
        %vm556 = vcmp.gt.f32.partialorder %v498, 0.0
        %vm557 = vcmp.gt.f32.partialorder %v503, 0.0
        %vm558 = vcmp.gt.f32.partialorder %v506, 0.0
        %vm559 = vcmp.gt.f32.partialorder %v511, 0.0
        %vm560 = vcmp.gt.f32.partialorder %v514, 0.0
        %vm561 = vcmp.gt.f32.partialorder %v519, 0.0
        %vm562 = vcmp.gt.f32.partialorder %v522, 0.0
        %vm563 = vcmp.gt.f32.partialorder %v527, 0.0
        %vm564 = vcmp.gt.f32.partialorder %v530, 0.0
        %v565 = vmul.f32 %v407, 0.5
        %v566 = vmul.f32 %v410, 0.5
        %v567 = vmul.f32 %v415, 0.5
        %v568 = vmul.f32 %v418, 0.5
        %v569 = vmul.f32 %v423, 0.5
        %v570 = vmul.f32 %v426, 0.5
        %v571 = vmul.f32 %v431, 0.5
        %v572 = vmul.f32 %v434, 0.5
        %v573 = vmul.f32 %v439, 0.5
        %v574 = vmul.f32 %v442, 0.5
        %v575 = vmul.f32 %v447, 0.5
        %v576 = vmul.f32 %v450, 0.5
        %v577 = vmul.f32 %v455, 0.5
        %v578 = vmul.f32 %v458, 0.5
        %v579 = vmul.f32 %v463, 0.5
        %v580 = vmul.f32 %v466, 0.5
        %v581 = vmul.f32 %v471, 0.5
        %v582 = vmul.f32 %v474, 0.5
        %v583 = vmul.f32 %v479, 0.5
        %v584 = vmul.f32 %v482, 0.5
        %v585 = vmul.f32 %v487, 0.5
        %v586 = vmul.f32 %v490, 0.5
        %v587 = vmul.f32 %v495, 0.5
        %v588 = vmul.f32 %v498, 0.5
        %v589 = vmul.f32 %v503, 0.5
        %v590 = vmul.f32 %v506, 0.5
        %v591 = vmul.f32 %v511, 0.5
        %v592 = vmul.f32 %v514, 0.5
        %v593 = vmul.f32 %v519, 0.5
        %v594 = vmul.f32 %v522, 0.5
        %v595 = vmul.f32 %v527, 0.5
        %v596 = vmul.f32 %v530, 0.5
        %v597 = vtanh.pop %v565
        %v598 = vtanh.pop %v566
        %v599 = vtanh.pop %v567
        %v600 = vtanh.pop %v568
        %v601 = vtanh.pop %v569
        %v602 = vtanh.pop %v570
        %v603 = vtanh.pop %v571
        %v604 = vtanh.pop %v572
        %v605 = vtanh.pop %v573
        %v606 = vtanh.pop %v574
        %v607 = vtanh.pop %v575
        %v608 = vtanh.pop %v576
        %v609 = vtanh.pop %v577
        %v610 = vtanh.pop %v578
        %v611 = vtanh.pop %v579
        %v612 = vtanh.pop %v580
        %v613 = vtanh.pop %v581
        %v614 = vtanh.pop %v582
        %v615 = vtanh.pop %v583
        %v616 = vtanh.pop %v584
        %v617 = vtanh.pop %v585
        %v618 = vtanh.pop %v586
        %v619 = vtanh.pop %v587
        %v620 = vtanh.pop %v588
        %v621 = vtanh.pop %v589
        %v622 = vtanh.pop %v590
        %v623 = vtanh.pop %v591
        %v624 = vtanh.pop %v592
        %v625 = vtanh.pop %v593
        %v626 = vtanh.pop %v594
        %v627 = vtanh.pop %v595
        %v628 = vtanh.pop %v596
        %v629 = vmul.f32 %v407, 1.442695
        %v630 = vpow.pop %v629
        %v631 = vmul.f32 %v410, 1.442695
        %v632 = vpow.pop %v631
        %v633 = vmul.f32 %v415, 1.442695
        %v634 = vpow.pop %v633
        %v635 = vmul.f32 %v418, 1.442695
        %v636 = vpow.pop %v635
        %v637 = vmul.f32 %v423, 1.442695
        %v638 = vpow.pop %v637
        %v639 = vmul.f32 %v426, 1.442695
        %v640 = vpow.pop %v639
        %v641 = vmul.f32 %v431, 1.442695
        %v642 = vpow.pop %v641
        %v643 = vmul.f32 %v434, 1.442695
        %v644 = vpow.pop %v643
        %v645 = vmul.f32 %v439, 1.442695
        %v646 = vpow.pop %v645
        %v647 = vmul.f32 %v442, 1.442695
        %v648 = vpow.pop %v647
        %v649 = vmul.f32 %v447, 1.442695
        %v650 = vpow.pop %v649
        %v651 = vmul.f32 %v450, 1.442695
        %v652 = vpow.pop %v651
        %v653 = vmul.f32 %v455, 1.442695
        %v654 = vpow.pop %v653
        %v655 = vmul.f32 %v458, 1.442695
        %v656 = vpow.pop %v655
        %v657 = vmul.f32 %v463, 1.442695
        %v658 = vpow.pop %v657
        %v659 = vmul.f32 %v466, 1.442695
        %v660 = vpow.pop %v659
        %v661 = vmul.f32 %v471, 1.442695
        %v662 = vpow.pop %v661
        %v663 = vmul.f32 %v474, 1.442695
        %v664 = vpow.pop %v663
        %v665 = vmul.f32 %v479, 1.442695
        %v666 = vpow.pop %v665
        %v667 = vmul.f32 %v482, 1.442695
        %v668 = vpow.pop %v667
        %v669 = vmul.f32 %v487, 1.442695
        %v670 = vpow.pop %v669
        %v671 = vmul.f32 %v490, 1.442695
        %v672 = vpow.pop %v671
        %v673 = vmul.f32 %v495, 1.442695
        %v674 = vpow.pop %v673
        %v675 = vmul.f32 %v498, 1.442695
        %v676 = vpow.pop %v675
        %v677 = vmul.f32 %v503, 1.442695
        %v678 = vpow.pop %v677
        %v679 = vmul.f32 %v506, 1.442695
        %v680 = vpow.pop %v679
        %v681 = vmul.f32 %v511, 1.442695
        %v682 = vpow.pop %v681
        %v683 = vmul.f32 %v514, 1.442695
        %v684 = vpow.pop %v683
        %v685 = vmul.f32 %v519, 1.442695
        %v686 = vpow.pop %v685
        %v687 = vmul.f32 %v522, 1.442695
        %v688 = vpow.pop %v687
        %v689 = vmul.f32 %v527, 1.442695
        %v690 = vpow.pop %v689
        %v691 = vmul.f32 %v530, 1.442695
        %v692 = vpow.pop %v691
        %v693 = vadd.f32 %v630, 1.0
        %v694 = vadd.f32 %v632, 1.0
        %v695 = vadd.f32 %v634, 1.0
        %v696 = vadd.f32 %v636, 1.0
        %v697 = vadd.f32 %v638, 1.0
        %v698 = vadd.f32 %v640, 1.0
        %v699 = vadd.f32 %v642, 1.0
        %v700 = vadd.f32 %v644, 1.0
        %v701 = vadd.f32 %v646, 1.0
        %v702 = vadd.f32 %v648, 1.0
        %v703 = vadd.f32 %v650, 1.0
        %v704 = vadd.f32 %v652, 1.0
        %v705 = vadd.f32 %v654, 1.0
        %v706 = vadd.f32 %v656, 1.0
        %v707 = vadd.f32 %v658, 1.0
        %v708 = vadd.f32 %v660, 1.0
        %v709 = vadd.f32 %v662, 1.0
        %v710 = vadd.f32 %v664, 1.0
        %v711 = vadd.f32 %v666, 1.0
        %v712 = vadd.f32 %v668, 1.0
        %v713 = vadd.f32 %v670, 1.0
        %v714 = vadd.f32 %v672, 1.0
        %v715 = vadd.f32 %v674, 1.0
        %v716 = vadd.f32 %v676, 1.0
        %v717 = vadd.f32 %v678, 1.0
        %v718 = vadd.f32 %v680, 1.0
        %v719 = vadd.f32 %v682, 1.0
        %v720 = vadd.f32 %v684, 1.0
        %v721 = vadd.f32 %v686, 1.0
        %v722 = vadd.f32 %v688, 1.0
        %v723 = vadd.f32 %v690, 1.0
        %v724 = vadd.f32 %v692, 1.0
        %v725 = vmul.f32 %v597, %v693
        %v726 = vmul.f32 %v598, %v694
        %v727 = vmul.f32 %v599, %v695
        %v728 = vmul.f32 %v600, %v696
        %v729 = vmul.f32 %v601, %v697
        %v730 = vmul.f32 %v602, %v698
        %v731 = vmul.f32 %v603, %v699
        %v732 = vmul.f32 %v604, %v700
        %v733 = vmul.f32 %v605, %v701
        %v734 = vmul.f32 %v606, %v702
        %v735 = vmul.f32 %v607, %v703
        %v736 = vmul.f32 %v608, %v704
        %v737 = vmul.f32 %v609, %v705
        %v738 = vmul.f32 %v610, %v706
        %v739 = vmul.f32 %v611, %v707
        %v740 = vmul.f32 %v612, %v708
        %v741 = vmul.f32 %v613, %v709
        %v742 = vmul.f32 %v614, %v710
        %v743 = vmul.f32 %v615, %v711
        %v744 = vmul.f32 %v616, %v712
        %v745 = vmul.f32 %v617, %v713
        %v746 = vmul.f32 %v618, %v714
        %v747 = vmul.f32 %v619, %v715
        %v748 = vmul.f32 %v620, %v716
        %v749 = vmul.f32 %v621, %v717
        %v750 = vmul.f32 %v622, %v718
        %v751 = vmul.f32 %v623, %v719
        %v752 = vmul.f32 %v624, %v720
        %v753 = vmul.f32 %v625, %v721
        %v754 = vmul.f32 %v626, %v722
        %v755 = vmul.f32 %v627, %v723
        %v756 = vmul.f32 %v628, %v724
        %v757 = vsel %vm533, %v407, %v725
        %v758 = vsel %vm534, %v410, %v726
        %v759 = vsel %vm535, %v415, %v727
        %v760 = vsel %vm536, %v418, %v728
        %v761 = vsel %vm537, %v423, %v729
        %v762 = vsel %vm538, %v426, %v730
        %v763 = vsel %vm539, %v431, %v731
        %v764 = vsel %vm540, %v434, %v732
        %v765 = vsel %vm541, %v439, %v733
        %v766 = vsel %vm542, %v442, %v734
        %v767 = vsel %vm543, %v447, %v735
        %v768 = vsel %vm544, %v450, %v736
        %v769 = vsel %vm545, %v455, %v737
        %v770 = vsel %vm546, %v458, %v738
        %v771 = vsel %vm547, %v463, %v739
        %v772 = vsel %vm548, %v466, %v740
        %v773 = vsel %vm549, %v471, %v741
        %v774 = vsel %vm550, %v474, %v742
        %v775 = vsel %vm551, %v479, %v743
        %v776 = vsel %vm552, %v482, %v744
        %v777 = vsel %vm553, %v487, %v745
        %v778 = vsel %vm554, %v490, %v746
        %v779 = vsel %vm555, %v495, %v747
        %v780 = vsel %vm556, %v498, %v748
        %v781 = vsel %vm557, %v503, %v749
        %v782 = vsel %vm558, %v506, %v750
        %v783 = vsel %vm559, %v511, %v751
        %v784 = vsel %vm560, %v514, %v752
        %v785 = vsel %vm561, %v519, %v753
        %v786 = vsel %vm562, %v522, %v754
        %v787 = vsel %vm563, %v527, %v755
        %v788 = vsel %vm564, %v530, %v756
        %vm789 = vcmask 523264
        %790 = vst.msk [vmem:[%s185] sm:$0xff] %vm789, %v757
        %791 = vst.msk [vmem:[%s185 + $0x8] sm:$0xff] %vm789, %v758
        %792 = vst.msk [vmem:[%s185 + $0x10] sm:$0xff] %vm789, %v759
        %793 = vst.msk [vmem:[%s185 + $0x18] sm:$0xff] %vm789, %v760
        %794 = vst.msk [vmem:[%s185 + $0x20] sm:$0xff] %vm789, %v761
        %795 = vst.msk [vmem:[%s185 + $0x28] sm:$0xff] %vm789, %v762
        %796 = vst.msk [vmem:[%s185 + $0x30] sm:$0xff] %vm789, %v763
        %797 = vst.msk [vmem:[%s185 + $0x38] sm:$0xff] %vm789, %v764
        %798 = vst.msk [vmem:[%s185 + $0x40] sm:$0xff] %vm789, %v765
        %799 = vst.msk [vmem:[%s185 + $0x48] sm:$0xff] %vm789, %v766
        %800 = vst.msk [vmem:[%s185 + $0x50] sm:$0xff] %vm789, %v767
        %801 = vst.msk [vmem:[%s185 + $0x58] sm:$0xff] %vm789, %v768
        %802 = vst.msk [vmem:[%s185 + $0x60] sm:$0xff] %vm789, %v769
        %803 = vst.msk [vmem:[%s185 + $0x68] sm:$0xff] %vm789, %v770
        %804 = vst.msk [vmem:[%s185 + $0x70] sm:$0xff] %vm789, %v771
        %805 = vst.msk [vmem:[%s185 + $0x78] sm:$0xff] %vm789, %v772
        %806 = vst.msk [vmem:[%s185 + $0x80] sm:$0xff] %vm789, %v773
        %807 = vst.msk [vmem:[%s185 + $0x88] sm:$0xff] %vm789, %v774
        %808 = vst.msk [vmem:[%s185 + $0x90] sm:$0xff] %vm789, %v775
        %809 = vst.msk [vmem:[%s185 + $0x98] sm:$0xff] %vm789, %v776
        %810 = vst.msk [vmem:[%s185 + $0xa0] sm:$0xff] %vm789, %v777
        %811 = vst.msk [vmem:[%s185 + $0xa8] sm:$0xff] %vm789, %v778
        %812 = vst.msk [vmem:[%s185 + $0xb0] sm:$0xff] %vm789, %v779
        %813 = vst.msk [vmem:[%s185 + $0xb8] sm:$0xff] %vm789, %v780
        %814 = vst.msk [vmem:[%s185 + $0xc0] sm:$0xff] %vm789, %v781
        %815 = vst.msk [vmem:[%s185 + $0xc8] sm:$0xff] %vm789, %v782
        %816 = vst.msk [vmem:[%s185 + $0xd0] sm:$0xff] %vm789, %v783
        %817 = vst.msk [vmem:[%s185 + $0xd8] sm:$0xff] %vm789, %v784
        %818 = vst.msk [vmem:[%s185 + $0xe0] sm:$0xff] %vm789, %v785
        %819 = vst.msk [vmem:[%s185 + $0xe8] sm:$0xff] %vm789, %v786
        %820 = vst.msk [vmem:[%s185 + $0xf0] sm:$0xff] %vm789, %v787
        %821 = vst.msk [vmem:[%s185 + $0xf8] sm:$0xff] %vm789, %v788
        %s822 = smul.u32 32, %s15
        %p823 = scmp.lt.s32.totalorder %s822, 63
        %s824 = scalar_select %p823, %s822, 63
        %s825 = smul.addr %s824, 8
        %s826 = scalar_lea.vmem %s3, %s825
        // Predicated region
        $region37: #{forward.3} parent=31 // pred_check
          %p827 = pneg %p101
        $region38: #{forward.3} parent=31 // pred_check_branch
          %829 = sbr.rel (%p827) target = $region40
        $region39: #{forward.3} parent=31 // pred_region
          %s830 = smul.u32 32, %s15
        $region40: #{forward.3} parent=31 // pred_fallthru
          _
      $region32: #{forward.3} parent=5 // pred_fallthru
        _
      %p831 = scmp.le.s32.totalorder 2, %s10
      // Predicated region
      $region41: #{forward.3} parent=5 // pred_check
        %p832 = pneg %p831
      $region42: #{forward.3} parent=5 // pred_check_branch
        %834 = sbr.rel (%p832) target = $region44
      $region43: #{forward.3} parent=5 // pred_region
        %s835 = ssub.s32 %s10, 2
        // Predicated region
        $region45: #{forward.3} parent=43 // pred_check
          %p836 = pneg %p107
        $region46: #{forward.3} parent=43 // pred_check_branch
          %838 = sbr.rel (%p836) target = $region48
        $region47: #{forward.3} parent=43 // pred_region
          %s839 = smul.u32 32, %s16
          %p840 = scmp.lt.s32.totalorder %s839, 63
          %s841 = scalar_select %p840, %s839, 63
          %s842 = smul.addr %s841, 8
          %s843 = scalar_lea.vmem %s3, %s842
        $region48: #{forward.3} parent=43 // pred_fallthru
          _
      $region44: #{forward.3} parent=5 // pred_fallthru
        _
    $region6: #{forward.3} parent=1 // loop_footer
      %s14 = sadd.s32 1, %s10
    $region7: #{forward.3} parent=1 // loop_footer_branch
      %9 = sbr.rel target = $region3
    $region8: #{forward.3} parent=1 // loop_exit
      _
    %844 = vsyncpa [#allocation3], 1
    %s845 = scalar_lea.sflag [#allocation3], 1
    %846 = vsyncpa %s845, 1

// kernel: mul.53
$region0: #{mul.53}
  %s0 = inlined_call_operand.vmem [shape: f32[512,2], index: 0, kind: input, shape index: {}]
  %s1 = inlined_call_operand.vmem [shape: f32[1024], index: 1, kind: output, shape index: {}]
  %v2 = vld [vmem:[%s0] sm:$0x1]
  %s3 = scalar_lea.vmem %s0, 63
  %v4 = vld [vmem:[%s3] sm:$0x2]
  %vm5 = vcmask 1041409
  %v6 = vsel %vm5, %v4, %v2
  %s7 = scalar_lea.vmem %s0, 126
  %v8 = vld [vmem:[%s7] sm:$0x4]
  %vm9 = vcmask 1042434
  %v10 = vsel %vm9, %v8, %v6
  %s11 = scalar_lea.vmem %s0, 189
  %v12 = vld [vmem:[%s11] sm:$0x8]
  %vm13 = vcmask 1043459
  %v14 = vsel %vm13, %v12, %v10
  %s15 = scalar_lea.vmem %s0, 252
  %v16 = vld [vmem:[%s15] sm:$0x10]
  %vm17 = vcmask 1044484
  %v18 = vsel %vm17, %v16, %v14
  %s19 = scalar_lea.vmem %s0, 315
  %v20 = vld [vmem:[%s19] sm:$0x20]
  %vm21 = vcmask 1045509
  %v22 = vsel %vm21, %v20, %v18
  %s23 = scalar_lea.vmem %s0, 378
  %v24 = vld [vmem:[%s23] sm:$0x40]
  %vm25 = vcmask 1046534
  %v26 = vsel %vm25, %v24, %v22
  %s27 = scalar_lea.vmem %s0, 441
  %v28 = vld [vmem:[%s27] sm:$0x80]
  %vm29 = vcmask 1047559
  %v30 = vsel %vm29, %v28, %v26
  %vm31 = vcmask 15360
  %32 = vst.msk [vmem:[%s1] sm:$0xff] %vm31, %v30
  %s33 = scalar_lea.vmem %s0, 63
  %v34 = vld [vmem:[%s33] sm:$0x1]
  %s35 = scalar_lea.vmem %s0, 126
  %v36 = vld [vmem:[%s35] sm:$0x2]
  %vm37 = vcmask 1041409
  %v38 = vsel %vm37, %v36, %v34
  %s39 = scalar_lea.vmem %s0, 189
  %v40 = vld [vmem:[%s39] sm:$0x4]
  %vm41 = vcmask 1042434
  %v42 = vsel %vm41, %v40, %v38
  %s43 = scalar_lea.vmem %s0, 252
  %v44 = vld [vmem:[%s43] sm:$0x8]
  %vm45 = vcmask 1043459
  %v46 = vsel %vm45, %v44, %v42
  %s47 = scalar_lea.vmem %s0, 315
  %v48 = vld [vmem:[%s47] sm:$0x10]
  %vm49 = vcmask 1044484
  %v50 = vsel %vm49, %v48, %v46
  %s51 = scalar_lea.vmem %s0, 378
  %v52 = vld [vmem:[%s51] sm:$0x20]
  %vm53 = vcmask 1045509
  %v54 = vsel %vm53, %v52, %v50
  %s55 = scalar_lea.vmem %s0, 441
  %v56 = vld [vmem:[%s55] sm:$0x40]
  %vm57 = vcmask 1046534
  %v58 = vsel %vm57, %v56, %v54
  %s59 = scalar_lea.vmem %s0, 504
  %v60 = vld [vmem:[%s59] sm:$0x80]
  %vm61 = vcmask 1047559
  %v62 = vsel %vm61, %v60, %v58
  %63 = vrot.lane.b32.xlu0 %v62, 126
  %v64 = vpop.permute.xlu0 %63
  %vm65 = vcmask 1048560
  %66 = vst.msk [vmem:[%s1] sm:$0xff] %vm65, %v64
  %s67 = scalar_lea.vmem %s0, 62
  %v68 = vld [vmem:[%s67] sm:$0x1]
  %s69 = scalar_lea.vmem %s0, 125
  %v70 = vld [vmem:[%s69] sm:$0x2]
  %vm71 = vcmask 1041409
  %v72 = vsel %vm71, %v70, %v68
  %s73 = scalar_lea.vmem %s0, 188
  %v74 = vld [vmem:[%s73] sm:$0x4]
  %vm75 = vcmask 1042434
  %v76 = vsel %vm75, %v74, %v72
  %s77 = scalar_lea.vmem %s0, 251
  %v78 = vld [vmem:[%s77] sm:$0x8]
  %vm79 = vcmask 1043459
  %v80 = vsel %vm79, %v78, %v76
  %s81 = scalar_lea.vmem %s0, 314
  %v82 = vld [vmem:[%s81] sm:$0x10]
  %vm83 = vcmask 1044484
  %v84 = vsel %vm83, %v82, %v80
  %s85 = scalar_lea.vmem %s0, 377
  %v86 = vld [vmem:[%s85] sm:$0x20]
  %vm87 = vcmask 1045509
  %v88 = vsel %vm87, %v86, %v84
  %s89 = scalar_lea.vmem %s0, 440
  %v90 = vld [vmem:[%s89] sm:$0x40]
  %vm91 = vcmask 1046534
  %v92 = vsel %vm91, %v90, %v88
  %s93 = scalar_lea.vmem %s0, 503
  %v94 = vld [vmem:[%s93] sm:$0x80]
  %vm95 = vcmask 1047559
  %v96 = vsel %vm95, %v94, %v92
  %97 = vrot.lane.b32.xlu0 %v96, 124
  %v98 = vpop.permute.xlu0 %97
  %vm99 = vcmask 1032160
  %100 = vst.msk [vmem:[%s1] sm:$0xff] %vm99, %v98
  %s101 = scalar_lea.vmem %s0, 61
  %v102 = vld [vmem:[%s101] sm:$0x1]
  %s103 = scalar_lea.vmem %s0, 124
  %v104 = vld [vmem:[%s103] sm:$0x2]
  %vm105 = vcmask 1041409
  %v106 = vsel %vm105, %v104, %v102
  %s107 = scalar_lea.vmem %s0, 187
  %v108 = vld [vmem:[%s107] sm:$0x4]
  %vm109 = vcmask 1042434
  %v110 = vsel %vm109, %v108, %v106
  %s111 = scalar_lea.vmem %s0, 250
  %v112 = vld [vmem:[%s111] sm:$0x8]
  %vm113 = vcmask 1043459
  %v114 = vsel %vm113, %v112, %v110
  %s115 = scalar_lea.vmem %s0, 313
  %v116 = vld [vmem:[%s115] sm:$0x10]
  %vm117 = vcmask 1044484
  %v118 = vsel %vm117, %v116, %v114
  %s119 = scalar_lea.vmem %s0, 376
  %v120 = vld [vmem:[%s119] sm:$0x20]
  %vm121 = vcmask 1045509
  %v122 = vsel %vm121, %v120, %v118
  %s123 = scalar_lea.vmem %s0, 439
  %v124 = vld [vmem:[%s123] sm:$0x40]
  %vm125 = vcmask 1046534
  %v126 = vsel %vm125, %v124, %v122
  %s127 = scalar_lea.vmem %s0, 502
  %v128 = vld [vmem:[%s127] sm:$0x80]
  %vm129 = vcmask 1047559
  %v130 = vsel %vm129, %v128, %v126
  %131 = vrot.lane.b32.xlu0 %v130, 122
  %v132 = vpop.permute.xlu0 %131
  %vm133 = vcmask 1015760
  %134 = vst.msk [vmem:[%s1] sm:$0xff] %vm133, %v132
  %s135 = scalar_lea.vmem %s0, 60
  %v136 = vld [vmem:[%s135] sm:$0x1]
  %s137 = scalar_lea.vmem %s0, 123
  %v138 = vld [vmem:[%s137] sm:$0x2]
  %vm139 = vcmask 1041409
  %v140 = vsel %vm139, %v138, %v136
  %s141 = scalar_lea.vmem %s0, 186
  %v142 = vld [vmem:[%s141] sm:$0x4]
  %vm143 = vcmask 1042434
  %v144 = vsel %vm143, %v142, %v140
  %s145 = scalar_lea.vmem %s0, 249
  %v146 = vld [vmem:[%s145] sm:$0x8]
  %vm147 = vcmask 1043459
  %v148 = vsel %vm147, %v146, %v144
  %s149 = scalar_lea.vmem %s0, 312
  %v150 = vld [vmem:[%s149] sm:$0x10]
  %vm151 = vcmask 1044484
  %v152 = vsel %vm151, %v150, %v148
  %s153 = scalar_lea.vmem %s0, 375
  %v154 = vld [vmem:[%s153] sm:$0x20]
  %vm155 = vcmask 1045509
  %v156 = vsel %vm155, %v154, %v152
  %s157 = scalar_lea.vmem %s0, 438
  %v158 = vld [vmem:[%s157] sm:$0x40]
  %vm159 = vcmask 1046534
  %v160 = vsel %vm159, %v158, %v156
  %s161 = scalar_lea.vmem %s0, 501
  %v162 = vld [vmem:[%s161] sm:$0x80]
  %vm163 = vcmask 1047559
  %v164 = vsel %vm163, %v162, %v160
  %165 = vrot.lane.b32.xlu0 %v164, 120
  %v166 = vpop.permute.xlu0 %165
  %vm167 = vcmask 999360
  %168 = vst.msk [vmem:[%s1] sm:$0xff] %vm167, %v166
  %s169 = scalar_lea.vmem %s0, 59
  %v170 = vld [vmem:[%s169] sm:$0x1]
  %s171 = scalar_lea.vmem %s0, 122
  %v172 = vld [vmem:[%s171] sm:$0x2]
  %vm173 = vcmask 1041409
  %v174 = vsel %vm173, %v172, %v170
  %s175 = scalar_lea.vmem %s0, 185
  %v176 = vld [vmem:[%s175] sm:$0x4]
  %vm177 = vcmask 1042434
  %v178 = vsel %vm177, %v176, %v174
  %s179 = scalar_lea.vmem %s0, 248
  %v180 = vld [vmem:[%s179] sm:$0x8]
  %vm181 = vcmask 1043459
  %v182 = vsel %vm181, %v180, %v178
  %s183 = scalar_lea.vmem %s0, 311
  %v184 = vld [vmem:[%s183] sm:$0x10]
  %vm185 = vcmask 1044484
  %v186 = vsel %vm185, %v184, %v182
  %s187 = scalar_lea.vmem %s0, 374
  %v188 = vld [vmem:[%s187] sm:$0x20]
  %vm189 = vcmask 1045509
  %v190 = vsel %vm189, %v188, %v186
  %s191 = scalar_lea.vmem %s0, 437
  %v192 = vld [vmem:[%s191] sm:$0x40]
  %vm193 = vcmask 1046534
  %v194 = vsel %vm193, %v192, %v190
  %s195 = scalar_lea.vmem %s0, 500
  %v196 = vld [vmem:[%s195] sm:$0x80]
  %vm197 = vcmask 1047559
  %v198 = vsel %vm197, %v196, %v194
  %199 = vrot.lane.b32.xlu0 %v198, 118
  %v200 = vpop.permute.xlu0 %199
  %vm201 = vcmask 982960
  %202 = vst.msk [vmem:[%s1] sm:$0xff] %vm201, %v200
  %s203 = scalar_lea.vmem %s0, 58
  %v204 = vld [vmem:[%s203] sm:$0x1]
  %s205 = scalar_lea.vmem %s0, 121
  %v206 = vld [vmem:[%s205] sm:$0x2]
  %vm207 = vcmask 1041409
  %v208 = vsel %vm207, %v206, %v204
  %s209 = scalar_lea.vmem %s0, 184
  %v210 = vld [vmem:[%s209] sm:$0x4]
  %vm211 = vcmask 1042434
  %v212 = vsel %vm211, %v210, %v208
  %s213 = scalar_lea.vmem %s0, 247
  %v214 = vld [vmem:[%s213] sm:$0x8]
  %vm215 = vcmask 1043459
  %v216 = vsel %vm215, %v214, %v212
  %s217 = scalar_lea.vmem %s0, 310
  %v218 = vld [vmem:[%s217] sm:$0x10]
  %vm219 = vcmask 1044484
  %v220 = vsel %vm219, %v218, %v216
  %s221 = scalar_lea.vmem %s0, 373
  %v222 = vld [vmem:[%s221] sm:$0x20]
  %vm223 = vcmask 1045509
  %v224 = vsel %vm223, %v222, %v220
  %s225 = scalar_lea.vmem %s0, 436
  %v226 = vld [vmem:[%s225] sm:$0x40]
  %vm227 = vcmask 1046534
  %v228 = vsel %vm227, %v226, %v224
  %s229 = scalar_lea.vmem %s0, 499
  %v230 = vld [vmem:[%s229] sm:$0x80]
  %vm231 = vcmask 1047559
  %v232 = vsel %vm231, %v230, %v228
  %233 = vrot.lane.b32.xlu0 %v232, 116
  %v234 = vpop.permute.xlu0 %233
  %vm235 = vcmask 966560
  %236 = vst.msk [vmem:[%s1] sm:$0xff] %vm235, %v234
  %s237 = scalar_lea.vmem %s0, 57
  %v238 = vld [vmem:[%s237] sm:$0x1]
  %s239 = scalar_lea.vmem %s0, 120
  %v240 = vld [vmem:[%s239] sm:$0x2]
  %vm241 = vcmask 1041409
  %v242 = vsel %vm241, %v240, %v238
  %s243 = scalar_lea.vmem %s0, 183
  %v244 = vld [vmem:[%s243] sm:$0x4]
  %vm245 = vcmask 1042434
  %v246 = vsel %vm245, %v244, %v242
  %s247 = scalar_lea.vmem %s0, 246
  %v248 = vld [vmem:[%s247] sm:$0x8]
  %vm249 = vcmask 1043459
  %v250 = vsel %vm249, %v248, %v246
  %s251 = scalar_lea.vmem %s0, 309
  %v252 = vld [vmem:[%s251] sm:$0x10]
  %vm253 = vcmask 1044484
  %v254 = vsel %vm253, %v252, %v250
  %s255 = scalar_lea.vmem %s0, 372
  %v256 = vld [vmem:[%s255] sm:$0x20]
  %vm257 = vcmask 1045509
  %v258 = vsel %vm257, %v256, %v254
  %s259 = scalar_lea.vmem %s0, 435
  %v260 = vld [vmem:[%s259] sm:$0x40]
  %vm261 = vcmask 1046534
  %v262 = vsel %vm261, %v260, %v258
  %s263 = scalar_lea.vmem %s0, 498
  %v264 = vld [vmem:[%s263] sm:$0x80]
  %vm265 = vcmask 1047559
  %v266 = vsel %vm265, %v264, %v262
  %267 = vrot.lane.b32.xlu0 %v266, 114
  %v268 = vpop.permute.xlu0 %267
  %vm269 = vcmask 950160
  %270 = vst.msk [vmem:[%s1] sm:$0xff] %vm269, %v268
  %s271 = scalar_lea.vmem %s0, 56
  %v272 = vld [vmem:[%s271] sm:$0x1]
  %s273 = scalar_lea.vmem %s0, 119
  %v274 = vld [vmem:[%s273] sm:$0x2]
  %vm275 = vcmask 1041409
  %v276 = vsel %vm275, %v274, %v272
  %s277 = scalar_lea.vmem %s0, 182
  %v278 = vld [vmem:[%s277] sm:$0x4]
  %vm279 = vcmask 1042434
  %v280 = vsel %vm279, %v278, %v276
  %s281 = scalar_lea.vmem %s0, 245
  %v282 = vld [vmem:[%s281] sm:$0x8]
  %vm283 = vcmask 1043459
  %v284 = vsel %vm283, %v282, %v280
  %s285 = scalar_lea.vmem %s0, 308
  %v286 = vld [vmem:[%s285] sm:$0x10]
  %vm287 = vcmask 1044484
  %v288 = vsel %vm287, %v286, %v284
  %s289 = scalar_lea.vmem %s0, 371
  %v290 = vld [vmem:[%s289] sm:$0x20]
  %vm291 = vcmask 1045509
  %v292 = vsel %vm291, %v290, %v288
  %s293 = scalar_lea.vmem %s0, 434
  %v294 = vld [vmem:[%s293] sm:$0x40]
  %vm295 = vcmask 1046534
  %v296 = vsel %vm295, %v294, %v292
  %s297 = scalar_lea.vmem %s0, 497
  %v298 = vld [vmem:[%s297] sm:$0x80]
  %vm299 = vcmask 1047559
  %v300 = vsel %vm299, %v298, %v296
  %301 = vrot.lane.b32.xlu0 %v300, 112
  %v302 = vpop.permute.xlu0 %301
  %vm303 = vcmask 933760
  %304 = vst.msk [vmem:[%s1] sm:$0xff] %vm303, %v302
  %s305 = scalar_lea.vmem %s0, 55
  %v306 = vld [vmem:[%s305] sm:$0x1]
  %s307 = scalar_lea.vmem %s0, 118
  %v308 = vld [vmem:[%s307] sm:$0x2]
  %vm309 = vcmask 1041409
  %v310 = vsel %vm309, %v308, %v306
  %s311 = scalar_lea.vmem %s0, 181
  %v312 = vld [vmem:[%s311] sm:$0x4]
  %vm313 = vcmask 1042434
  %v314 = vsel %vm313, %v312, %v310
  %s315 = scalar_lea.vmem %s0, 244
  %v316 = vld [vmem:[%s315] sm:$0x8]
  %vm317 = vcmask 1043459
  %v318 = vsel %vm317, %v316, %v314
  %s319 = scalar_lea.vmem %s0, 307
  %v320 = vld [vmem:[%s319] sm:$0x10]
  %vm321 = vcmask 1044484
  %v322 = vsel %vm321, %v320, %v318
  %s323 = scalar_lea.vmem %s0, 370
  %v324 = vld [vmem:[%s323] sm:$0x20]
  %vm325 = vcmask 1045509
  %v326 = vsel %vm325, %v324, %v322
  %s327 = scalar_lea.vmem %s0, 433
  %v328 = vld [vmem:[%s327] sm:$0x40]
  %vm329 = vcmask 1046534
  %v330 = vsel %vm329, %v328, %v326
  %s331 = scalar_lea.vmem %s0, 496
  %v332 = vld [vmem:[%s331] sm:$0x80]
  %vm333 = vcmask 1047559
  %v334 = vsel %vm333, %v332, %v330
  %335 = vrot.lane.b32.xlu0 %v334, 110
  %v336 = vpop.permute.xlu0 %335
  %vm337 = vcmask 917360
  %338 = vst.msk [vmem:[%s1] sm:$0xff] %vm337, %v336
  %s339 = scalar_lea.vmem %s0, 54
  %v340 = vld [vmem:[%s339] sm:$0x1]
  %s341 = scalar_lea.vmem %s0, 117
  %v342 = vld [vmem:[%s341] sm:$0x2]
  %vm343 = vcmask 1041409
  %v344 = vsel %vm343, %v342, %v340
  %s345 = scalar_lea.vmem %s0, 180
  %v346 = vld [vmem:[%s345] sm:$0x4]
  %vm347 = vcmask 1042434
  %v348 = vsel %vm347, %v346, %v344
  %s349 = scalar_lea.vmem %s0, 243
  %v350 = vld [vmem:[%s349] sm:$0x8]
  %vm351 = vcmask 1043459
  %v352 = vsel %vm351, %v350, %v348
  %s353 = scalar_lea.vmem %s0, 306
  %v354 = vld [vmem:[%s353] sm:$0x10]
  %vm355 = vcmask 1044484
  %v356 = vsel %vm355, %v354, %v352
  %s357 = scalar_lea.vmem %s0, 369
  %v358 = vld [vmem:[%s357] sm:$0x20]
  %vm359 = vcmask 1045509
  %v360 = vsel %vm359, %v358, %v356
  %s361 = scalar_lea.vmem %s0, 432
  %v362 = vld [vmem:[%s361] sm:$0x40]
  %vm363 = vcmask 1046534
  %v364 = vsel %vm363, %v362, %v360
  %s365 = scalar_lea.vmem %s0, 495
  %v366 = vld [vmem:[%s365] sm:$0x80]
  %vm367 = vcmask 1047559
  %v368 = vsel %vm367, %v366, %v364
  %369 = vrot.lane.b32.xlu0 %v368, 108
  %v370 = vpop.permute.xlu0 %369
  %vm371 = vcmask 900960
  %372 = vst.msk [vmem:[%s1] sm:$0xff] %vm371, %v370
  %s373 = scalar_lea.vmem %s0, 53
  %v374 = vld [vmem:[%s373] sm:$0x1]
  %s375 = scalar_lea.vmem %s0, 116
  %v376 = vld [vmem:[%s375] sm:$0x2]
  %vm377 = vcmask 1041409
  %v378 = vsel %vm377, %v376, %v374
  %s379 = scalar_lea.vmem %s0, 179
  %v380 = vld [vmem:[%s379] sm:$0x4]
  %vm381 = vcmask 1042434
  %v382 = vsel %vm381, %v380, %v378
  %s383 = scalar_lea.vmem %s0, 242
  %v384 = vld [vmem:[%s383] sm:$0x8]
  %vm385 = vcmask 1043459
  %v386 = vsel %vm385, %v384, %v382
  %s387 = scalar_lea.vmem %s0, 305
  %v388 = vld [vmem:[%s387] sm:$0x10]
  %vm389 = vcmask 1044484
  %v390 = vsel %vm389, %v388, %v386
  %s391 = scalar_lea.vmem %s0, 368
  %v392 = vld [vmem:[%s391] sm:$0x20]
  %vm393 = vcmask 1045509
  %v394 = vsel %vm393, %v392, %v390
  %s395 = scalar_lea.vmem %s0, 431
  %v396 = vld [vmem:[%s395] sm:$0x40]
  %vm397 = vcmask 1046534
  %v398 = vsel %vm397, %v396, %v394
  %s399 = scalar_lea.vmem %s0, 494
  %v400 = vld [vmem:[%s399] sm:$0x80]
  %vm401 = vcmask 1047559
  %v402 = vsel %vm401, %v400, %v398
  %403 = vrot.lane.b32.xlu0 %v402, 106
  %v404 = vpop.permute.xlu0 %403
  %vm405 = vcmask 884560
  %406 = vst.msk [vmem:[%s1] sm:$0xff] %vm405, %v404
  %s407 = scalar_lea.vmem %s0, 52
  %v408 = vld [vmem:[%s407] sm:$0x1]
  %s409 = scalar_lea.vmem %s0, 115
  %v410 = vld [vmem:[%s409] sm:$0x2]
  %vm411 = vcmask 1041409
  %v412 = vsel %vm411, %v410, %v408
  %s413 = scalar_lea.vmem %s0, 178
  %v414 = vld [vmem:[%s413] sm:$0x4]
  %vm415 = vcmask 1042434
  %v416 = vsel %vm415, %v414, %v412
  %s417 = scalar_lea.vmem %s0, 241
  %v418 = vld [vmem:[%s417] sm:$0x8]
  %vm419 = vcmask 1043459
  %v420 = vsel %vm419, %v418, %v416
  %s421 = scalar_lea.vmem %s0, 304
  %v422 = vld [vmem:[%s421] sm:$0x10]
  %vm423 = vcmask 1044484
  %v424 = vsel %vm423, %v422, %v420
  %s425 = scalar_lea.vmem %s0, 367
  %v426 = vld [vmem:[%s425] sm:$0x20]
  %vm427 = vcmask 1045509
  %v428 = vsel %vm427, %v426, %v424
  %s429 = scalar_lea.vmem %s0, 430
  %v430 = vld [vmem:[%s429] sm:$0x40]
  %vm431 = vcmask 1046534
  %v432 = vsel %vm431, %v430, %v428
  %s433 = scalar_lea.vmem %s0, 493
  %v434 = vld [vmem:[%s433] sm:$0x80]
  %vm435 = vcmask 1047559
  %v436 = vsel %vm435, %v434, %v432
  %437 = vrot.lane.b32.xlu0 %v436, 104
  %v438 = vpop.permute.xlu0 %437
  %vm439 = vcmask 868160
  %440 = vst.msk [vmem:[%s1] sm:$0xff] %vm439, %v438
  %s441 = scalar_lea.vmem %s0, 51
  %v442 = vld [vmem:[%s441] sm:$0x1]
  %s443 = scalar_lea.vmem %s0, 114
  %v444 = vld [vmem:[%s443] sm:$0x2]
  %vm445 = vcmask 1041409
  %v446 = vsel %vm445, %v444, %v442
  %s447 = scalar_lea.vmem %s0, 177
  %v448 = vld [vmem:[%s447] sm:$0x4]
  %vm449 = vcmask 1042434
  %v450 = vsel %vm449, %v448, %v446
  %s451 = scalar_lea.vmem %s0, 240
  %v452 = vld [vmem:[%s451] sm:$0x8]
  %vm453 = vcmask 1043459
  %v454 = vsel %vm453, %v452, %v450
  %s455 = scalar_lea.vmem %s0, 303
  %v456 = vld [vmem:[%s455] sm:$0x10]
  %vm457 = vcmask 1044484
  %v458 = vsel %vm457, %v456, %v454
  %s459 = scalar_lea.vmem %s0, 366
  %v460 = vld [vmem:[%s459] sm:$0x20]
  %vm461 = vcmask 1045509
  %v462 = vsel %vm461, %v460, %v458
  %s463 = scalar_lea.vmem %s0, 429
  %v464 = vld [vmem:[%s463] sm:$0x40]
  %vm465 = vcmask 1046534
  %v466 = vsel %vm465, %v464, %v462
  %s467 = scalar_lea.vmem %s0, 492
  %v468 = vld [vmem:[%s467] sm:$0x80]
  %vm469 = vcmask 1047559
  %v470 = vsel %vm469, %v468, %v466
  %471 = vrot.lane.b32.xlu0 %v470, 102
  %v472 = vpop.permute.xlu0 %471
  %vm473 = vcmask 851760
  %474 = vst.msk [vmem:[%s1] sm:$0xff] %vm473, %v472
  %s475 = scalar_lea.vmem %s0, 50
  %v476 = vld [vmem:[%s475] sm:$0x1]
  %s477 = scalar_lea.vmem %s0, 113
  %v478 = vld [vmem:[%s477] sm:$0x2]
  %vm479 = vcmask 1041409
  %v480 = vsel %vm479, %v478, %v476
  %s481 = scalar_lea.vmem %s0, 176
  %v482 = vld [vmem:[%s481] sm:$0x4]
  %vm483 = vcmask 1042434
  %v484 = vsel %vm483, %v482, %v480
  %s485 = scalar_lea.vmem %s0, 239
  %v486 = vld [vmem:[%s485] sm:$0x8]
  %vm487 = vcmask 1043459
  %v488 = vsel %vm487, %v486, %v484
  %s489 = scalar_lea.vmem %s0, 302
  %v490 = vld [vmem:[%s489] sm:$0x10]
  %vm491 = vcmask 1044484
  %v492 = vsel %vm491, %v490, %v488
  %s493 = scalar_lea.vmem %s0, 365
  %v494 = vld [vmem:[%s493] sm:$0x20]
  %vm495 = vcmask 1045509
  %v496 = vsel %vm495, %v494, %v492
  %s497 = scalar_lea.vmem %s0, 428
  %v498 = vld [vmem:[%s497] sm:$0x40]
  %vm499 = vcmask 1046534
  %v500 = vsel %vm499, %v498, %v496
  %s501 = scalar_lea.vmem %s0, 491
  %v502 = vld [vmem:[%s501] sm:$0x80]
  %vm503 = vcmask 1047559
  %v504 = vsel %vm503, %v502, %v500
  %505 = vrot.lane.b32.xlu0 %v504, 100
  %v506 = vpop.permute.xlu0 %505
  %vm507 = vcmask 835360
  %508 = vst.msk [vmem:[%s1] sm:$0xff] %vm507, %v506
  %s509 = scalar_lea.vmem %s0, 49
  %v510 = vld [vmem:[%s509] sm:$0x1]
  %s511 = scalar_lea.vmem %s0, 112
  %v512 = vld [vmem:[%s511] sm:$0x2]
  %vm513 = vcmask 1041409
  %v514 = vsel %vm513, %v512, %v510
  %s515 = scalar_lea.vmem %s0, 175
  %v516 = vld [vmem:[%s515] sm:$0x4]
  %vm517 = vcmask 1042434
  %v518 = vsel %vm517, %v516, %v514
  %s519 = scalar_lea.vmem %s0, 238
  %v520 = vld [vmem:[%s519] sm:$0x8]
  %vm521 = vcmask 1043459
  %v522 = vsel %vm521, %v520, %v518
  %s523 = scalar_lea.vmem %s0, 301
  %v524 = vld [vmem:[%s523] sm:$0x10]
  %vm525 = vcmask 1044484
  %v526 = vsel %vm525, %v524, %v522
  %s527 = scalar_lea.vmem %s0, 364
  %v528 = vld [vmem:[%s527] sm:$0x20]
  %vm529 = vcmask 1045509
  %v530 = vsel %vm529, %v528, %v526
  %s531 = scalar_lea.vmem %s0, 427
  %v532 = vld [vmem:[%s531] sm:$0x40]
  %vm533 = vcmask 1046534
  %v534 = vsel %vm533, %v532, %v530
  %s535 = scalar_lea.vmem %s0, 490
  %v536 = vld [vmem:[%s535] sm:$0x80]
  %vm537 = vcmask 1047559
  %v538 = vsel %vm537, %v536, %v534
  %539 = vrot.lane.b32.xlu0 %v538, 98
  %v540 = vpop.permute.xlu0 %539
  %vm541 = vcmask 818960
  %542 = vst.msk [vmem:[%s1] sm:$0xff] %vm541, %v540
  %s543 = scalar_lea.vmem %s0, 48
  %v544 = vld [vmem:[%s543] sm:$0x1]
  %s545 = scalar_lea.vmem %s0, 111
  %v546 = vld [vmem:[%s545] sm:$0x2]
  %vm547 = vcmask 1041409
  %v548 = vsel %vm547, %v546, %v544
  %s549 = scalar_lea.vmem %s0, 174
  %v550 = vld [vmem:[%s549] sm:$0x4]
  %vm551 = vcmask 1042434
  %v552 = vsel %vm551, %v550, %v548
  %s553 = scalar_lea.vmem %s0, 237
  %v554 = vld [vmem:[%s553] sm:$0x8]
  %vm555 = vcmask 1043459
  %v556 = vsel %vm555, %v554, %v552
  %s557 = scalar_lea.vmem %s0, 300
  %v558 = vld [vmem:[%s557] sm:$0x10]
  %vm559 = vcmask 1044484
  %v560 = vsel %vm559, %v558, %v556
  %s561 = scalar_lea.vmem %s0, 363
  %v562 = vld [vmem:[%s561] sm:$0x20]
  %vm563 = vcmask 1045509
  %v564 = vsel %vm563, %v562, %v560
  %s565 = scalar_lea.vmem %s0, 426
  %v566 = vld [vmem:[%s565] sm:$0x40]
  %vm567 = vcmask 1046534
  %v568 = vsel %vm567, %v566, %v564
  %s569 = scalar_lea.vmem %s0, 489
  %v570 = vld [vmem:[%s569] sm:$0x80]
  %vm571 = vcmask 1047559
  %v572 = vsel %vm571, %v570, %v568
  %573 = vrot.lane.b32.xlu0 %v572, 96
  %v574 = vpop.permute.xlu0 %573
  %vm575 = vcmask 802560
  %576 = vst.msk [vmem:[%s1] sm:$0xff] %vm575, %v574
  %s577 = scalar_lea.vmem %s0, 47
  %v578 = vld [vmem:[%s577] sm:$0x1]
  %s579 = scalar_lea.vmem %s0, 110
  %v580 = vld [vmem:[%s579] sm:$0x2]
  %vm581 = vcmask 1041409
  %v582 = vsel %vm581, %v580, %v578
  %s583 = scalar_lea.vmem %s0, 173
  %v584 = vld [vmem:[%s583] sm:$0x4]
  %vm585 = vcmask 1042434
  %v586 = vsel %vm585, %v584, %v582
  %s587 = scalar_lea.vmem %s0, 236
  %v588 = vld [vmem:[%s587] sm:$0x8]
  %vm589 = vcmask 1043459
  %v590 = vsel %vm589, %v588, %v586
  %s591 = scalar_lea.vmem %s0, 299
  %v592 = vld [vmem:[%s591] sm:$0x10]
  %vm593 = vcmask 1044484
  %v594 = vsel %vm593, %v592, %v590
  %s595 = scalar_lea.vmem %s0, 362
  %v596 = vld [vmem:[%s595] sm:$0x20]
  %vm597 = vcmask 1045509
  %v598 = vsel %vm597, %v596, %v594
  %s599 = scalar_lea.vmem %s0, 425
  %v600 = vld [vmem:[%s599] sm:$0x40]
  %vm601 = vcmask 1046534
  %v602 = vsel %vm601, %v600, %v598
  %s603 = scalar_lea.vmem %s0, 488
  %v604 = vld [vmem:[%s603] sm:$0x80]
  %vm605 = vcmask 1047559
  %v606 = vsel %vm605, %v604, %v602
  %607 = vrot.lane.b32.xlu0 %v606, 94
  %v608 = vpop.permute.xlu0 %607
  %vm609 = vcmask 786160
  %610 = vst.msk [vmem:[%s1] sm:$0xff] %vm609, %v608
  %s611 = scalar_lea.vmem %s0, 46
  %v612 = vld [vmem:[%s611] sm:$0x1]
  %s613 = scalar_lea.vmem %s0, 109
  %v614 = vld [vmem:[%s613] sm:$0x2]
  %vm615 = vcmask 1041409
  %v616 = vsel %vm615, %v614, %v612
  %s617 = scalar_lea.vmem %s0, 172
  %v618 = vld [vmem:[%s617] sm:$0x4]
  %vm619 = vcmask 1042434
  %v620 = vsel %vm619, %v618, %v616
  %s621 = scalar_lea.vmem %s0, 235
  %v622 = vld [vmem:[%s621] sm:$0x8]
  %vm623 = vcmask 1043459
  %v624 = vsel %vm623, %v622, %v620
  %s625 = scalar_lea.vmem %s0, 298
  %v626 = vld [vmem:[%s625] sm:$0x10]
  %vm627 = vcmask 1044484
  %v628 = vsel %vm627, %v626, %v624
  %s629 = scalar_lea.vmem %s0, 361
  %v630 = vld [vmem:[%s629] sm:$0x20]
  %vm631 = vcmask 1045509
  %v632 = vsel %vm631, %v630, %v628
  %s633 = scalar_lea.vmem %s0, 424
  %v634 = vld [vmem:[%s633] sm:$0x40]
  %vm635 = vcmask 1046534
  %v636 = vsel %vm635, %v634, %v632
  %s637 = scalar_lea.vmem %s0, 487
  %v638 = vld [vmem:[%s637] sm:$0x80]
  %vm639 = vcmask 1047559
  %v640 = vsel %vm639, %v638, %v636
  %641 = vrot.lane.b32.xlu0 %v640, 92
  %v642 = vpop.permute.xlu0 %641
  %vm643 = vcmask 769760
  %644 = vst.msk [vmem:[%s1] sm:$0xff] %vm643, %v642
  %s645 = scalar_lea.vmem %s0, 45
  %v646 = vld [vmem:[%s645] sm:$0x1]
  %s647 = scalar_lea.vmem %s0, 108
  %v648 = vld [vmem:[%s647] sm:$0x2]
  %vm649 = vcmask 1041409
  %v650 = vsel %vm649, %v648, %v646
  %s651 = scalar_lea.vmem %s0, 171
  %v652 = vld [vmem:[%s651] sm:$0x4]
  %vm653 = vcmask 1042434
  %v654 = vsel %vm653, %v652, %v650
  %s655 = scalar_lea.vmem %s0, 234
  %v656 = vld [vmem:[%s655] sm:$0x8]
  %vm657 = vcmask 1043459
  %v658 = vsel %vm657, %v656, %v654
  %s659 = scalar_lea.vmem %s0, 297
  %v660 = vld [vmem:[%s659] sm:$0x10]
  %vm661 = vcmask 1044484
  %v662 = vsel %vm661, %v660, %v658
  %s663 = scalar_lea.vmem %s0, 360
  %v664 = vld [vmem:[%s663] sm:$0x20]
  %vm665 = vcmask 1045509
  %v666 = vsel %vm665, %v664, %v662
  %s667 = scalar_lea.vmem %s0, 423
  %v668 = vld [vmem:[%s667] sm:$0x40]
  %vm669 = vcmask 1046534
  %v670 = vsel %vm669, %v668, %v666
  %s671 = scalar_lea.vmem %s0, 486
  %v672 = vld [vmem:[%s671] sm:$0x80]
  %vm673 = vcmask 1047559
  %v674 = vsel %vm673, %v672, %v670
  %675 = vrot.lane.b32.xlu0 %v674, 90
  %v676 = vpop.permute.xlu0 %675
  %vm677 = vcmask 753360
  %678 = vst.msk [vmem:[%s1] sm:$0xff] %vm677, %v676
  %s679 = scalar_lea.vmem %s0, 44
  %v680 = vld [vmem:[%s679] sm:$0x1]
  %s681 = scalar_lea.vmem %s0, 107
  %v682 = vld [vmem:[%s681] sm:$0x2]
  %vm683 = vcmask 1041409
  %v684 = vsel %vm683, %v682, %v680
  %s685 = scalar_lea.vmem %s0, 170
  %v686 = vld [vmem:[%s685] sm:$0x4]
  %vm687 = vcmask 1042434
  %v688 = vsel %vm687, %v686, %v684
  %s689 = scalar_lea.vmem %s0, 233
  %v690 = vld [vmem:[%s689] sm:$0x8]
  %vm691 = vcmask 1043459
  %v692 = vsel %vm691, %v690, %v688
  %s693 = scalar_lea.vmem %s0, 296
  %v694 = vld [vmem:[%s693] sm:$0x10]
  %vm695 = vcmask 1044484
  %v696 = vsel %vm695, %v694, %v692
  %s697 = scalar_lea.vmem %s0, 359
  %v698 = vld [vmem:[%s697] sm:$0x20]
  %vm699 = vcmask 1045509
  %v700 = vsel %vm699, %v698, %v696
  %s701 = scalar_lea.vmem %s0, 422
  %v702 = vld [vmem:[%s701] sm:$0x40]
  %vm703 = vcmask 1046534
  %v704 = vsel %vm703, %v702, %v700
  %s705 = scalar_lea.vmem %s0, 485
  %v706 = vld [vmem:[%s705] sm:$0x80]
  %vm707 = vcmask 1047559
  %v708 = vsel %vm707, %v706, %v704
  %709 = vrot.lane.b32.xlu0 %v708, 88
  %v710 = vpop.permute.xlu0 %709
  %vm711 = vcmask 736960
  %712 = vst.msk [vmem:[%s1] sm:$0xff] %vm711, %v710
  %s713 = scalar_lea.vmem %s0, 43
  %v714 = vld [vmem:[%s713] sm:$0x1]
  %s715 = scalar_lea.vmem %s0, 106
  %v716 = vld [vmem:[%s715] sm:$0x2]
  %vm717 = vcmask 1041409
  %v718 = vsel %vm717, %v716, %v714
  %s719 = scalar_lea.vmem %s0, 169
  %v720 = vld [vmem:[%s719] sm:$0x4]
  %vm721 = vcmask 1042434
  %v722 = vsel %vm721, %v720, %v718
  %s723 = scalar_lea.vmem %s0, 232
  %v724 = vld [vmem:[%s723] sm:$0x8]
  %vm725 = vcmask 1043459
  %v726 = vsel %vm725, %v724, %v722
  %s727 = scalar_lea.vmem %s0, 295
  %v728 = vld [vmem:[%s727] sm:$0x10]
  %vm729 = vcmask 1044484
  %v730 = vsel %vm729, %v728, %v726
  %s731 = scalar_lea.vmem %s0, 358
  %v732 = vld [vmem:[%s731] sm:$0x20]
  %vm733 = vcmask 1045509
  %v734 = vsel %vm733, %v732, %v730
  %s735 = scalar_lea.vmem %s0, 421
  %v736 = vld [vmem:[%s735] sm:$0x40]
  %vm737 = vcmask 1046534
  %v738 = vsel %vm737, %v736, %v734
  %s739 = scalar_lea.vmem %s0, 484
  %v740 = vld [vmem:[%s739] sm:$0x80]
  %vm741 = vcmask 1047559
  %v742 = vsel %vm741, %v740, %v738
  %743 = vrot.lane.b32.xlu0 %v742, 86
  %v744 = vpop.permute.xlu0 %743
  %vm745 = vcmask 720560
  %746 = vst.msk [vmem:[%s1] sm:$0xff] %vm745, %v744
  %s747 = scalar_lea.vmem %s0, 42
  %v748 = vld [vmem:[%s747] sm:$0x1]
  %s749 = scalar_lea.vmem %s0, 105
  %v750 = vld [vmem:[%s749] sm:$0x2]
  %vm751 = vcmask 1041409
  %v752 = vsel %vm751, %v750, %v748
  %s753 = scalar_lea.vmem %s0, 168
  %v754 = vld [vmem:[%s753] sm:$0x4]
  %vm755 = vcmask 1042434
  %v756 = vsel %vm755, %v754, %v752
  %s757 = scalar_lea.vmem %s0, 231
  %v758 = vld [vmem:[%s757] sm:$0x8]
  %vm759 = vcmask 1043459
  %v760 = vsel %vm759, %v758, %v756
  %s761 = scalar_lea.vmem %s0, 294
  %v762 = vld [vmem:[%s761] sm:$0x10]
  %vm763 = vcmask 1044484
  %v764 = vsel %vm763, %v762, %v760
  %s765 = scalar_lea.vmem %s0, 357
  %v766 = vld [vmem:[%s765] sm:$0x20]
  %vm767 = vcmask 1045509
  %v768 = vsel %vm767, %v766, %v764
  %s769 = scalar_lea.vmem %s0, 420
  %v770 = vld [vmem:[%s769] sm:$0x40]
  %vm771 = vcmask 1046534
  %v772 = vsel %vm771, %v770, %v768
  %s773 = scalar_lea.vmem %s0, 483
  %v774 = vld [vmem:[%s773] sm:$0x80]
  %vm775 = vcmask 1047559
  %v776 = vsel %vm775, %v774, %v772
  %777 = vrot.lane.b32.xlu0 %v776, 84
  %v778 = vpop.permute.xlu0 %777
  %vm779 = vcmask 704160
  %780 = vst.msk [vmem:[%s1] sm:$0xff] %vm779, %v778
  %s781 = scalar_lea.vmem %s0, 41
  %v782 = vld [vmem:[%s781] sm:$0x1]
  %s783 = scalar_lea.vmem %s0, 104
  %v784 = vld [vmem:[%s783] sm:$0x2]
  %vm785 = vcmask 1041409
  %v786 = vsel %vm785, %v784, %v782
  %s787 = scalar_lea.vmem %s0, 167
  %v788 = vld [vmem:[%s787] sm:$0x4]
  %vm789 = vcmask 1042434
  %v790 = vsel %vm789, %v788, %v786
  %s791 = scalar_lea.vmem %s0, 230
  %v792 = vld [vmem:[%s791] sm:$0x8]
  %vm793 = vcmask 1043459
  %v794 = vsel %vm793, %v792, %v790
  %s795 = scalar_lea.vmem %s0, 293
  %v796 = vld [vmem:[%s795] sm:$0x10]
  %vm797 = vcmask 1044484
  %v798 = vsel %vm797, %v796, %v794
  %s799 = scalar_lea.vmem %s0, 356
  %v800 = vld [vmem:[%s799] sm:$0x20]
  %vm801 = vcmask 1045509
  %v802 = vsel %vm801, %v800, %v798
  %s803 = scalar_lea.vmem %s0, 419
  %v804 = vld [vmem:[%s803] sm:$0x40]
  %vm805 = vcmask 1046534
  %v806 = vsel %vm805, %v804, %v802
  %s807 = scalar_lea.vmem %s0, 482
  %v808 = vld [vmem:[%s807] sm:$0x80]
  %vm809 = vcmask 1047559
  %v810 = vsel %vm809, %v808, %v806
  %811 = vrot.lane.b32.xlu0 %v810, 82
  %v812 = vpop.permute.xlu0 %811
  %vm813 = vcmask 687760
  %814 = vst.msk [vmem:[%s1] sm:$0xff] %vm813, %v812
  %s815 = scalar_lea.vmem %s0, 40
  %v816 = vld [vmem:[%s815] sm:$0x1]
  %s817 = scalar_lea.vmem %s0, 103
  %v818 = vld [vmem:[%s817] sm:$0x2]
  %vm819 = vcmask 1041409
  %v820 = vsel %vm819, %v818, %v816
  %s821 = scalar_lea.vmem %s0, 166
  %v822 = vld [vmem:[%s821] sm:$0x4]
  %vm823 = vcmask 1042434
  %v824 = vsel %vm823, %v822, %v820
  %s825 = scalar_lea.vmem %s0, 229
  %v826 = vld [vmem:[%s825] sm:$0x8]
  %vm827 = vcmask 1043459
  %v828 = vsel %vm827, %v826, %v824
  %s829 = scalar_lea.vmem %s0, 292
  %v830 = vld [vmem:[%s829] sm:$0x10]
  %vm831 = vcmask 1044484
  %v832 = vsel %vm831, %v830, %v828
  %s833 = scalar_lea.vmem %s0, 355
  %v834 = vld [vmem:[%s833] sm:$0x20]
  %vm835 = vcmask 1045509
  %v836 = vsel %vm835, %v834, %v832
  %s837 = scalar_lea.vmem %s0, 418
  %v838 = vld [vmem:[%s837] sm:$0x40]
  %vm839 = vcmask 1046534
  %v840 = vsel %vm839, %v838, %v836
  %s841 = scalar_lea.vmem %s0, 481
  %v842 = vld [vmem:[%s841] sm:$0x80]
  %vm843 = vcmask 1047559
  %v844 = vsel %vm843, %v842, %v840
  %845 = vrot.lane.b32.xlu0 %v844, 80
  %v846 = vpop.permute.xlu0 %845
  %vm847 = vcmask 671360
  %848 = vst.msk [vmem:[%s1] sm:$0xff] %vm847, %v846
  %s849 = scalar_lea.vmem %s0, 39
  %v850 = vld [vmem:[%s849] sm:$0x1]
  %s851 = scalar_lea.vmem %s0, 102
  %v852 = vld [vmem:[%s851] sm:$0x2]
  %vm853 = vcmask 1041409
  %v854 = vsel %vm853, %v852, %v850
  %s855 = scalar_lea.vmem %s0, 165
  %v856 = vld [vmem:[%s855] sm:$0x4]
  %vm857 = vcmask 1042434
  %v858 = vsel %vm857, %v856, %v854
  %s859 = scalar_lea.vmem %s0, 228
  %v860 = vld [vmem:[%s859] sm:$0x8]
  %vm861 = vcmask 1043459
  %v862 = vsel %vm861, %v860, %v858
  %s863 = scalar_lea.vmem %s0, 291
  %v864 = vld [vmem:[%s863] sm:$0x10]
  %vm865 = vcmask 1044484
  %v866 = vsel %vm865, %v864, %v862
  %s867 = scalar_lea.vmem %s0, 354
  %v868 = vld [vmem:[%s867] sm:$0x20]
  %vm869 = vcmask 1045509
  %v870 = vsel %vm869, %v868, %v866
  %s871 = scalar_lea.vmem %s0, 417
  %v872 = vld [vmem:[%s871] sm:$0x40]
  %vm873 = vcmask 1046534
  %v874 = vsel %vm873, %v872, %v870
  %s875 = scalar_lea.vmem %s0, 480
  %v876 = vld [vmem:[%s875] sm:$0x80]
  %vm877 = vcmask 1047559
  %v878 = vsel %vm877, %v876, %v874
  %879 = vrot.lane.b32.xlu0 %v878, 78
  %v880 = vpop.permute.xlu0 %879
  %vm881 = vcmask 654960
  %882 = vst.msk [vmem:[%s1] sm:$0xff] %vm881, %v880
  %s883 = scalar_lea.vmem %s0, 38
  %v884 = vld [vmem:[%s883] sm:$0x1]
  %s885 = scalar_lea.vmem %s0, 101
  %v886 = vld [vmem:[%s885] sm:$0x2]
  %vm887 = vcmask 1041409
  %v888 = vsel %vm887, %v886, %v884
  %s889 = scalar_lea.vmem %s0, 164
  %v890 = vld [vmem:[%s889] sm:$0x4]
  %vm891 = vcmask 1042434
  %v892 = vsel %vm891, %v890, %v888
  %s893 = scalar_lea.vmem %s0, 227
  %v894 = vld [vmem:[%s893] sm:$0x8]
  %vm895 = vcmask 1043459
  %v896 = vsel %vm895, %v894, %v892
  %s897 = scalar_lea.vmem %s0, 290
  %v898 = vld [vmem:[%s897] sm:$0x10]
  %vm899 = vcmask 1044484
  %v900 = vsel %vm899, %v898, %v896
  %s901 = scalar_lea.vmem %s0, 353
  %v902 = vld [vmem:[%s901] sm:$0x20]
  %vm903 = vcmask 1045509
  %v904 = vsel %vm903, %v902, %v900
  %s905 = scalar_lea.vmem %s0, 416
  %v906 = vld [vmem:[%s905] sm:$0x40]
  %vm907 = vcmask 1046534
  %v908 = vsel %vm907, %v906, %v904
  %s909 = scalar_lea.vmem %s0, 479
  %v910 = vld [vmem:[%s909] sm:$0x80]
  %vm911 = vcmask 1047559
  %v912 = vsel %vm911, %v910, %v908
  %913 = vrot.lane.b32.xlu0 %v912, 76
  %v914 = vpop.permute.xlu0 %913
  %vm915 = vcmask 638560
  %916 = vst.msk [vmem:[%s1] sm:$0xff] %vm915, %v914
  %s917 = scalar_lea.vmem %s0, 37
  %v918 = vld [vmem:[%s917] sm:$0x1]
  %s919 = scalar_lea.vmem %s0, 100
  %v920 = vld [vmem:[%s919] sm:$0x2]
  %vm921 = vcmask 1041409
  %v922 = vsel %vm921, %v920, %v918
  %s923 = scalar_lea.vmem %s0, 163
  %v924 = vld [vmem:[%s923] sm:$0x4]
  %vm925 = vcmask 1042434
  %v926 = vsel %vm925, %v924, %v922
  %s927 = scalar_lea.vmem %s0, 226
  %v928 = vld [vmem:[%s927] sm:$0x8]
  %vm929 = vcmask 1043459
  %v930 = vsel %vm929, %v928, %v926
  %s931 = scalar_lea.vmem %s0, 289
  %v932 = vld [vmem:[%s931] sm:$0x10]
  %vm933 = vcmask 1044484
  %v934 = vsel %vm933, %v932, %v930
  %s935 = scalar_lea.vmem %s0, 352
  %v936 = vld [vmem:[%s935] sm:$0x20]
  %vm937 = vcmask 1045509
  %v938 = vsel %vm937, %v936, %v934
  %s939 = scalar_lea.vmem %s0, 415
  %v940 = vld [vmem:[%s939] sm:$0x40]
  %vm941 = vcmask 1046534
  %v942 = vsel %vm941, %v940, %v938
  %s943 = scalar_lea.vmem %s0, 478
  %v944 = vld [vmem:[%s943] sm:$0x80]
  %vm945 = vcmask 1047559
  %v946 = vsel %vm945, %v944, %v942
  %947 = vrot.lane.b32.xlu0 %v946, 74
  %v948 = vpop.permute.xlu0 %947
  %vm949 = vcmask 622160
  %950 = vst.msk [vmem:[%s1] sm:$0xff] %vm949, %v948
  %s951 = scalar_lea.vmem %s0, 36
  %v952 = vld [vmem:[%s951] sm:$0x1]
  %s953 = scalar_lea.vmem %s0, 99
  %v954 = vld [vmem:[%s953] sm:$0x2]
  %vm955 = vcmask 1041409
  %v956 = vsel %vm955, %v954, %v952
  %s957 = scalar_lea.vmem %s0, 162
  %v958 = vld [vmem:[%s957] sm:$0x4]
  %vm959 = vcmask 1042434
  %v960 = vsel %vm959, %v958, %v956
  %s961 = scalar_lea.vmem %s0, 225
  %v962 = vld [vmem:[%s961] sm:$0x8]
  %vm963 = vcmask 1043459
  %v964 = vsel %vm963, %v962, %v960
  %s965 = scalar_lea.vmem %s0, 288
  %v966 = vld [vmem:[%s965] sm:$0x10]
  %vm967 = vcmask 1044484
  %v968 = vsel %vm967, %v966, %v964
  %s969 = scalar_lea.vmem %s0, 351
  %v970 = vld [vmem:[%s969] sm:$0x20]
  %vm971 = vcmask 1045509
  %v972 = vsel %vm971, %v970, %v968
  %s973 = scalar_lea.vmem %s0, 414
  %v974 = vld [vmem:[%s973] sm:$0x40]
  %vm975 = vcmask 1046534
  %v976 = vsel %vm975, %v974, %v972
  %s977 = scalar_lea.vmem %s0, 477
  %v978 = vld [vmem:[%s977] sm:$0x80]
  %vm979 = vcmask 1047559
  %v980 = vsel %vm979, %v978, %v976
  %981 = vrot.lane.b32.xlu0 %v980, 72
  %v982 = vpop.permute.xlu0 %981
  %vm983 = vcmask 605760
  %984 = vst.msk [vmem:[%s1] sm:$0xff] %vm983, %v982
  %s985 = scalar_lea.vmem %s0, 35
  %v986 = vld [vmem:[%s985] sm:$0x1]
  %s987 = scalar_lea.vmem %s0, 98
  %v988 = vld [vmem:[%s987] sm:$0x2]
  %vm989 = vcmask 1041409
  %v990 = vsel %vm989, %v988, %v986
  %s991 = scalar_lea.vmem %s0, 161
  %v992 = vld [vmem:[%s991] sm:$0x4]
  %vm993 = vcmask 1042434
  %v994 = vsel %vm993, %v992, %v990
  %s995 = scalar_lea.vmem %s0, 224
  %v996 = vld [vmem:[%s995] sm:$0x8]
  %vm997 = vcmask 1043459
  %v998 = vsel %vm997, %v996, %v994
  %s999 = scalar_lea.vmem %s0, 287
  %v1000 = vld [vmem:[%s999] sm:$0x10]
  %vm1001 = vcmask 1044484
  %v1002 = vsel %vm1001, %v1000, %v998
  %s1003 = scalar_lea.vmem %s0, 350
  %v1004 = vld [vmem:[%s1003] sm:$0x20]
  %vm1005 = vcmask 1045509
  %v1006 = vsel %vm1005, %v1004, %v1002
  %s1007 = scalar_lea.vmem %s0, 413
  %v1008 = vld [vmem:[%s1007] sm:$0x40]
  %vm1009 = vcmask 1046534
  %v1010 = vsel %vm1009, %v1008, %v1006
  %s1011 = scalar_lea.vmem %s0, 476
  %v1012 = vld [vmem:[%s1011] sm:$0x80]
  %vm1013 = vcmask 1047559
  %v1014 = vsel %vm1013, %v1012, %v1010
  %1015 = vrot.lane.b32.xlu0 %v1014, 70
  %v1016 = vpop.permute.xlu0 %1015
  %vm1017 = vcmask 589360
  %1018 = vst.msk [vmem:[%s1] sm:$0xff] %vm1017, %v1016
  %s1019 = scalar_lea.vmem %s0, 34
  %v1020 = vld [vmem:[%s1019] sm:$0x1]
  %s1021 = scalar_lea.vmem %s0, 97
  %v1022 = vld [vmem:[%s1021] sm:$0x2]
  %vm1023 = vcmask 1041409
  %v1024 = vsel %vm1023, %v1022, %v1020
  %s1025 = scalar_lea.vmem %s0, 160
  %v1026 = vld [vmem:[%s1025] sm:$0x4]
  %vm1027 = vcmask 1042434
  %v1028 = vsel %vm1027, %v1026, %v1024
  %s1029 = scalar_lea.vmem %s0, 223
  %v1030 = vld [vmem:[%s1029] sm:$0x8]
  %vm1031 = vcmask 1043459
  %v1032 = vsel %vm1031, %v1030, %v1028
  %s1033 = scalar_lea.vmem %s0, 286
  %v1034 = vld [vmem:[%s1033] sm:$0x10]
  %vm1035 = vcmask 1044484
  %v1036 = vsel %vm1035, %v1034, %v1032
  %s1037 = scalar_lea.vmem %s0, 349
  %v1038 = vld [vmem:[%s1037] sm:$0x20]
  %vm1039 = vcmask 1045509
  %v1040 = vsel %vm1039, %v1038, %v1036
  %s1041 = scalar_lea.vmem %s0, 412
  %v1042 = vld [vmem:[%s1041] sm:$0x40]
  %vm1043 = vcmask 1046534
  %v1044 = vsel %vm1043, %v1042, %v1040
  %s1045 = scalar_lea.vmem %s0, 475
  %v1046 = vld [vmem:[%s1045] sm:$0x80]
  %vm1047 = vcmask 1047559
  %v1048 = vsel %vm1047, %v1046, %v1044
  %1049 = vrot.lane.b32.xlu0 %v1048, 68
  %v1050 = vpop.permute.xlu0 %1049
  %vm1051 = vcmask 572960
  %1052 = vst.msk [vmem:[%s1] sm:$0xff] %vm1051, %v1050
  %s1053 = scalar_lea.vmem %s0, 33
  %v1054 = vld [vmem:[%s1053] sm:$0x1]
  %s1055 = scalar_lea.vmem %s0, 96
  %v1056 = vld [vmem:[%s1055] sm:$0x2]
  %vm1057 = vcmask 1041409
  %v1058 = vsel %vm1057, %v1056, %v1054
  %s1059 = scalar_lea.vmem %s0, 159
  %v1060 = vld [vmem:[%s1059] sm:$0x4]
  %vm1061 = vcmask 1042434
  %v1062 = vsel %vm1061, %v1060, %v1058
  %s1063 = scalar_lea.vmem %s0, 222
  %v1064 = vld [vmem:[%s1063] sm:$0x8]
  %vm1065 = vcmask 1043459
  %v1066 = vsel %vm1065, %v1064, %v1062
  %s1067 = scalar_lea.vmem %s0, 285
  %v1068 = vld [vmem:[%s1067] sm:$0x10]
  %vm1069 = vcmask 1044484
  %v1070 = vsel %vm1069, %v1068, %v1066
  %s1071 = scalar_lea.vmem %s0, 348
  %v1072 = vld [vmem:[%s1071] sm:$0x20]
  %vm1073 = vcmask 1045509
  %v1074 = vsel %vm1073, %v1072, %v1070
  %s1075 = scalar_lea.vmem %s0, 411
  %v1076 = vld [vmem:[%s1075] sm:$0x40]
  %vm1077 = vcmask 1046534
  %v1078 = vsel %vm1077, %v1076, %v1074
  %s1079 = scalar_lea.vmem %s0, 474
  %v1080 = vld [vmem:[%s1079] sm:$0x80]
  %vm1081 = vcmask 1047559
  %v1082 = vsel %vm1081, %v1080, %v1078
  %1083 = vrot.lane.b32.xlu0 %v1082, 66
  %v1084 = vpop.permute.xlu0 %1083
  %vm1085 = vcmask 556560
  %1086 = vst.msk [vmem:[%s1] sm:$0xff] %vm1085, %v1084
  %s1087 = scalar_lea.vmem %s0, 32
  %v1088 = vld [vmem:[%s1087] sm:$0x1]
  %s1089 = scalar_lea.vmem %s0, 95
  %v1090 = vld [vmem:[%s1089] sm:$0x2]
  %vm1091 = vcmask 1041409
  %v1092 = vsel %vm1091, %v1090, %v1088
  %s1093 = scalar_lea.vmem %s0, 158
  %v1094 = vld [vmem:[%s1093] sm:$0x4]
  %vm1095 = vcmask 1042434
  %v1096 = vsel %vm1095, %v1094, %v1092
  %s1097 = scalar_lea.vmem %s0, 221
  %v1098 = vld [vmem:[%s1097] sm:$0x8]
  %vm1099 = vcmask 1043459
  %v1100 = vsel %vm1099, %v1098, %v1096
  %s1101 = scalar_lea.vmem %s0, 284
  %v1102 = vld [vmem:[%s1101] sm:$0x10]
  %vm1103 = vcmask 1044484
  %v1104 = vsel %vm1103, %v1102, %v1100
  %s1105 = scalar_lea.vmem %s0, 347
  %v1106 = vld [vmem:[%s1105] sm:$0x20]
  %vm1107 = vcmask 1045509
  %v1108 = vsel %vm1107, %v1106, %v1104
  %s1109 = scalar_lea.vmem %s0, 410
  %v1110 = vld [vmem:[%s1109] sm:$0x40]
  %vm1111 = vcmask 1046534
  %v1112 = vsel %vm1111, %v1110, %v1108
  %s1113 = scalar_lea.vmem %s0, 473
  %v1114 = vld [vmem:[%s1113] sm:$0x80]
  %vm1115 = vcmask 1047559
  %v1116 = vsel %vm1115, %v1114, %v1112
  %1117 = vrot.lane.b32.xlu0 %v1116, 64
  %v1118 = vpop.permute.xlu0 %1117
  %vm1119 = vcmask 540160
  %1120 = vst.msk [vmem:[%s1] sm:$0xff] %vm1119, %v1118
  %s1121 = scalar_lea.vmem %s0, 31
  %v1122 = vld [vmem:[%s1121] sm:$0x1]
  %s1123 = scalar_lea.vmem %s0, 94
  %v1124 = vld [vmem:[%s1123] sm:$0x2]
  %vm1125 = vcmask 1041409
  %v1126 = vsel %vm1125, %v1124, %v1122
  %s1127 = scalar_lea.vmem %s0, 157
  %v1128 = vld [vmem:[%s1127] sm:$0x4]
  %vm1129 = vcmask 1042434
  %v1130 = vsel %vm1129, %v1128, %v1126
  %s1131 = scalar_lea.vmem %s0, 220
  %v1132 = vld [vmem:[%s1131] sm:$0x8]
  %vm1133 = vcmask 1043459
  %v1134 = vsel %vm1133, %v1132, %v1130
  %s1135 = scalar_lea.vmem %s0, 283
  %v1136 = vld [vmem:[%s1135] sm:$0x10]
  %vm1137 = vcmask 1044484
  %v1138 = vsel %vm1137, %v1136, %v1134
  %s1139 = scalar_lea.vmem %s0, 346
  %v1140 = vld [vmem:[%s1139] sm:$0x20]
  %vm1141 = vcmask 1045509
  %v1142 = vsel %vm1141, %v1140, %v1138
  %s1143 = scalar_lea.vmem %s0, 409
  %v1144 = vld [vmem:[%s1143] sm:$0x40]
  %vm1145 = vcmask 1046534
  %v1146 = vsel %vm1145, %v1144, %v1142
  %s1147 = scalar_lea.vmem %s0, 472
  %v1148 = vld [vmem:[%s1147] sm:$0x80]
  %vm1149 = vcmask 1047559
  %v1150 = vsel %vm1149, %v1148, %v1146
  %1151 = vrot.lane.b32.xlu0 %v1150, 62
  %v1152 = vpop.permute.xlu0 %1151
  %vm1153 = vcmask 523760
  %1154 = vst.msk [vmem:[%s1] sm:$0xff] %vm1153, %v1152
  %s1155 = scalar_lea.vmem %s0, 30
  %v1156 = vld [vmem:[%s1155] sm:$0x1]
  %s1157 = scalar_lea.vmem %s0, 93
  %v1158 = vld [vmem:[%s1157] sm:$0x2]
  %vm1159 = vcmask 1041409
  %v1160 = vsel %vm1159, %v1158, %v1156
  %s1161 = scalar_lea.vmem %s0, 156
  %v1162 = vld [vmem:[%s1161] sm:$0x4]
  %vm1163 = vcmask 1042434
  %v1164 = vsel %vm1163, %v1162, %v1160
  %s1165 = scalar_lea.vmem %s0, 219
  %v1166 = vld [vmem:[%s1165] sm:$0x8]
  %vm1167 = vcmask 1043459
  %v1168 = vsel %vm1167, %v1166, %v1164
  %s1169 = scalar_lea.vmem %s0, 282
  %v1170 = vld [vmem:[%s1169] sm:$0x10]
  %vm1171 = vcmask 1044484
  %v1172 = vsel %vm1171, %v1170, %v1168
  %s1173 = scalar_lea.vmem %s0, 345
  %v1174 = vld [vmem:[%s1173] sm:$0x20]
  %vm1175 = vcmask 1045509
  %v1176 = vsel %vm1175, %v1174, %v1172
  %s1177 = scalar_lea.vmem %s0, 408
  %v1178 = vld [vmem:[%s1177] sm:$0x40]
  %vm1179 = vcmask 1046534
  %v1180 = vsel %vm1179, %v1178, %v1176
  %s1181 = scalar_lea.vmem %s0, 471
  %v1182 = vld [vmem:[%s1181] sm:$0x80]
  %vm1183 = vcmask 1047559
  %v1184 = vsel %vm1183, %v1182, %v1180
  %1185 = vrot.lane.b32.xlu0 %v1184, 60
  %v1186 = vpop.permute.xlu0 %1185
  %vm1187 = vcmask 507360
  %1188 = vst.msk [vmem:[%s1] sm:$0xff] %vm1187, %v1186
  %s1189 = scalar_lea.vmem %s0, 29
  %v1190 = vld [vmem:[%s1189] sm:$0x1]
  %s1191 = scalar_lea.vmem %s0, 92
  %v1192 = vld [vmem:[%s1191] sm:$0x2]
  %vm1193 = vcmask 1041409
  %v1194 = vsel %vm1193, %v1192, %v1190
  %s1195 = scalar_lea.vmem %s0, 155
  %v1196 = vld [vmem:[%s1195] sm:$0x4]
  %vm1197 = vcmask 1042434
  %v1198 = vsel %vm1197, %v1196, %v1194
  %s1199 = scalar_lea.vmem %s0, 218
  %v1200 = vld [vmem:[%s1199] sm:$0x8]
  %vm1201 = vcmask 1043459
  %v1202 = vsel %vm1201, %v1200, %v1198
  %s1203 = scalar_lea.vmem %s0, 281
  %v1204 = vld [vmem:[%s1203] sm:$0x10]
  %vm1205 = vcmask 1044484
  %v1206 = vsel %vm1205, %v1204, %v1202
  %s1207 = scalar_lea.vmem %s0, 344
  %v1208 = vld [vmem:[%s1207] sm:$0x20]
  %vm1209 = vcmask 1045509
  %v1210 = vsel %vm1209, %v1208, %v1206
  %s1211 = scalar_lea.vmem %s0, 407
  %v1212 = vld [vmem:[%s1211] sm:$0x40]
  %vm1213 = vcmask 1046534
  %v1214 = vsel %vm1213, %v1212, %v1210
  %s1215 = scalar_lea.vmem %s0, 470
  %v1216 = vld [vmem:[%s1215] sm:$0x80]
  %vm1217 = vcmask 1047559
  %v1218 = vsel %vm1217, %v1216, %v1214
  %1219 = vrot.lane.b32.xlu0 %v1218, 58
  %v1220 = vpop.permute.xlu0 %1219
  %vm1221 = vcmask 490960
  %1222 = vst.msk [vmem:[%s1] sm:$0xff] %vm1221, %v1220
  %s1223 = scalar_lea.vmem %s0, 28
  %v1224 = vld [vmem:[%s1223] sm:$0x1]
  %s1225 = scalar_lea.vmem %s0, 91
  %v1226 = vld [vmem:[%s1225] sm:$0x2]
  %vm1227 = vcmask 1041409
  %v1228 = vsel %vm1227, %v1226, %v1224
  %s1229 = scalar_lea.vmem %s0, 154
  %v1230 = vld [vmem:[%s1229] sm:$0x4]
  %vm1231 = vcmask 1042434
  %v1232 = vsel %vm1231, %v1230, %v1228
  %s1233 = scalar_lea.vmem %s0, 217
  %v1234 = vld [vmem:[%s1233] sm:$0x8]
  %vm1235 = vcmask 1043459
  %v1236 = vsel %vm1235, %v1234, %v1232
  %s1237 = scalar_lea.vmem %s0, 280
  %v1238 = vld [vmem:[%s1237] sm:$0x10]
  %vm1239 = vcmask 1044484
  %v1240 = vsel %vm1239, %v1238, %v1236
  %s1241 = scalar_lea.vmem %s0, 343
  %v1242 = vld [vmem:[%s1241] sm:$0x20]
  %vm1243 = vcmask 1045509
  %v1244 = vsel %vm1243, %v1242, %v1240
  %s1245 = scalar_lea.vmem %s0, 406
  %v1246 = vld [vmem:[%s1245] sm:$0x40]
  %vm1247 = vcmask 1046534
  %v1248 = vsel %vm1247, %v1246, %v1244
  %s1249 = scalar_lea.vmem %s0, 469
  %v1250 = vld [vmem:[%s1249] sm:$0x80]
  %vm1251 = vcmask 1047559
  %v1252 = vsel %vm1251, %v1250, %v1248
  %1253 = vrot.lane.b32.xlu0 %v1252, 56
  %v1254 = vpop.permute.xlu0 %1253
  %vm1255 = vcmask 474560
  %1256 = vst.msk [vmem:[%s1] sm:$0xff] %vm1255, %v1254
  %s1257 = scalar_lea.vmem %s0, 27
  %v1258 = vld [vmem:[%s1257] sm:$0x1]
  %s1259 = scalar_lea.vmem %s0, 90
  %v1260 = vld [vmem:[%s1259] sm:$0x2]
  %vm1261 = vcmask 1041409
  %v1262 = vsel %vm1261, %v1260, %v1258
  %s1263 = scalar_lea.vmem %s0, 153
  %v1264 = vld [vmem:[%s1263] sm:$0x4]
  %vm1265 = vcmask 1042434
  %v1266 = vsel %vm1265, %v1264, %v1262
  %s1267 = scalar_lea.vmem %s0, 216
  %v1268 = vld [vmem:[%s1267] sm:$0x8]
  %vm1269 = vcmask 1043459
  %v1270 = vsel %vm1269, %v1268, %v1266
  %s1271 = scalar_lea.vmem %s0, 279
  %v1272 = vld [vmem:[%s1271] sm:$0x10]
  %vm1273 = vcmask 1044484
  %v1274 = vsel %vm1273, %v1272, %v1270
  %s1275 = scalar_lea.vmem %s0, 342
  %v1276 = vld [vmem:[%s1275] sm:$0x20]
  %vm1277 = vcmask 1045509
  %v1278 = vsel %vm1277, %v1276, %v1274
  %s1279 = scalar_lea.vmem %s0, 405
  %v1280 = vld [vmem:[%s1279] sm:$0x40]
  %vm1281 = vcmask 1046534
  %v1282 = vsel %vm1281, %v1280, %v1278
  %s1283 = scalar_lea.vmem %s0, 468
  %v1284 = vld [vmem:[%s1283] sm:$0x80]
  %vm1285 = vcmask 1047559
  %v1286 = vsel %vm1285, %v1284, %v1282
  %1287 = vrot.lane.b32.xlu0 %v1286, 54
  %v1288 = vpop.permute.xlu0 %1287
  %vm1289 = vcmask 458160
  %1290 = vst.msk [vmem:[%s1] sm:$0xff] %vm1289, %v1288
  %s1291 = scalar_lea.vmem %s0, 26
  %v1292 = vld [vmem:[%s1291] sm:$0x1]
  %s1293 = scalar_lea.vmem %s0, 89
  %v1294 = vld [vmem:[%s1293] sm:$0x2]
  %vm1295 = vcmask 1041409
  %v1296 = vsel %vm1295, %v1294, %v1292
  %s1297 = scalar_lea.vmem %s0, 152
  %v1298 = vld [vmem:[%s1297] sm:$0x4]
  %vm1299 = vcmask 1042434
  %v1300 = vsel %vm1299, %v1298, %v1296
  %s1301 = scalar_lea.vmem %s0, 215
  %v1302 = vld [vmem:[%s1301] sm:$0x8]
  %vm1303 = vcmask 1043459
  %v1304 = vsel %vm1303, %v1302, %v1300
  %s1305 = scalar_lea.vmem %s0, 278
  %v1306 = vld [vmem:[%s1305] sm:$0x10]
  %vm1307 = vcmask 1044484
  %v1308 = vsel %vm1307, %v1306, %v1304
  %s1309 = scalar_lea.vmem %s0, 341
  %v1310 = vld [vmem:[%s1309] sm:$0x20]
  %vm1311 = vcmask 1045509
  %v1312 = vsel %vm1311, %v1310, %v1308
  %s1313 = scalar_lea.vmem %s0, 404
  %v1314 = vld [vmem:[%s1313] sm:$0x40]
  %vm1315 = vcmask 1046534
  %v1316 = vsel %vm1315, %v1314, %v1312
  %s1317 = scalar_lea.vmem %s0, 467
  %v1318 = vld [vmem:[%s1317] sm:$0x80]
  %vm1319 = vcmask 1047559
  %v1320 = vsel %vm1319, %v1318, %v1316
  %1321 = vrot.lane.b32.xlu0 %v1320, 52
  %v1322 = vpop.permute.xlu0 %1321
  %vm1323 = vcmask 441760
  %1324 = vst.msk [vmem:[%s1] sm:$0xff] %vm1323, %v1322
  %s1325 = scalar_lea.vmem %s0, 25
  %v1326 = vld [vmem:[%s1325] sm:$0x1]
  %s1327 = scalar_lea.vmem %s0, 88
  %v1328 = vld [vmem:[%s1327] sm:$0x2]
  %vm1329 = vcmask 1041409
  %v1330 = vsel %vm1329, %v1328, %v1326
  %s1331 = scalar_lea.vmem %s0, 151
  %v1332 = vld [vmem:[%s1331] sm:$0x4]
  %vm1333 = vcmask 1042434
  %v1334 = vsel %vm1333, %v1332, %v1330
  %s1335 = scalar_lea.vmem %s0, 214
  %v1336 = vld [vmem:[%s1335] sm:$0x8]
  %vm1337 = vcmask 1043459
  %v1338 = vsel %vm1337, %v1336, %v1334
  %s1339 = scalar_lea.vmem %s0, 277
  %v1340 = vld [vmem:[%s1339] sm:$0x10]
  %vm1341 = vcmask 1044484
  %v1342 = vsel %vm1341, %v1340, %v1338
  %s1343 = scalar_lea.vmem %s0, 340
  %v1344 = vld [vmem:[%s1343] sm:$0x20]
  %vm1345 = vcmask 1045509
  %v1346 = vsel %vm1345, %v1344, %v1342
  %s1347 = scalar_lea.vmem %s0, 403
  %v1348 = vld [vmem:[%s1347] sm:$0x40]
  %vm1349 = vcmask 1046534
  %v1350 = vsel %vm1349, %v1348, %v1346
  %s1351 = scalar_lea.vmem %s0, 466
  %v1352 = vld [vmem:[%s1351] sm:$0x80]
  %vm1353 = vcmask 1047559
  %v1354 = vsel %vm1353, %v1352, %v1350
  %1355 = vrot.lane.b32.xlu0 %v1354, 50
  %v1356 = vpop.permute.xlu0 %1355
  %vm1357 = vcmask 425360
  %1358 = vst.msk [vmem:[%s1] sm:$0xff] %vm1357, %v1356
  %s1359 = scalar_lea.vmem %s0, 24
  %v1360 = vld [vmem:[%s1359] sm:$0x1]
  %s1361 = scalar_lea.vmem %s0, 87
  %v1362 = vld [vmem:[%s1361] sm:$0x2]
  %vm1363 = vcmask 1041409
  %v1364 = vsel %vm1363, %v1362, %v1360
  %s1365 = scalar_lea.vmem %s0, 150
  %v1366 = vld [vmem:[%s1365] sm:$0x4]
  %vm1367 = vcmask 1042434
  %v1368 = vsel %vm1367, %v1366, %v1364
  %s1369 = scalar_lea.vmem %s0, 213
  %v1370 = vld [vmem:[%s1369] sm:$0x8]
  %vm1371 = vcmask 1043459
  %v1372 = vsel %vm1371, %v1370, %v1368
  %s1373 = scalar_lea.vmem %s0, 276
  %v1374 = vld [vmem:[%s1373] sm:$0x10]
  %vm1375 = vcmask 1044484
  %v1376 = vsel %vm1375, %v1374, %v1372
  %s1377 = scalar_lea.vmem %s0, 339
  %v1378 = vld [vmem:[%s1377] sm:$0x20]
  %vm1379 = vcmask 1045509
  %v1380 = vsel %vm1379, %v1378, %v1376
  %s1381 = scalar_lea.vmem %s0, 402
  %v1382 = vld [vmem:[%s1381] sm:$0x40]
  %vm1383 = vcmask 1046534
  %v1384 = vsel %vm1383, %v1382, %v1380
  %s1385 = scalar_lea.vmem %s0, 465
  %v1386 = vld [vmem:[%s1385] sm:$0x80]
  %vm1387 = vcmask 1047559
  %v1388 = vsel %vm1387, %v1386, %v1384
  %1389 = vrot.lane.b32.xlu0 %v1388, 48
  %v1390 = vpop.permute.xlu0 %1389
  %vm1391 = vcmask 408960
  %1392 = vst.msk [vmem:[%s1] sm:$0xff] %vm1391, %v1390
  %s1393 = scalar_lea.vmem %s0, 23
  %v1394 = vld [vmem:[%s1393] sm:$0x1]
  %s1395 = scalar_lea.vmem %s0, 86
  %v1396 = vld [vmem:[%s1395] sm:$0x2]
  %vm1397 = vcmask 1041409
  %v1398 = vsel %vm1397, %v1396, %v1394
  %s1399 = scalar_lea.vmem %s0, 149
  %v1400 = vld [vmem:[%s1399] sm:$0x4]
  %vm1401 = vcmask 1042434
  %v1402 = vsel %vm1401, %v1400, %v1398
  %s1403 = scalar_lea.vmem %s0, 212
  %v1404 = vld [vmem:[%s1403] sm:$0x8]
  %vm1405 = vcmask 1043459
  %v1406 = vsel %vm1405, %v1404, %v1402
  %s1407 = scalar_lea.vmem %s0, 275
  %v1408 = vld [vmem:[%s1407] sm:$0x10]
  %vm1409 = vcmask 1044484
  %v1410 = vsel %vm1409, %v1408, %v1406
  %s1411 = scalar_lea.vmem %s0, 338
  %v1412 = vld [vmem:[%s1411] sm:$0x20]
  %vm1413 = vcmask 1045509
  %v1414 = vsel %vm1413, %v1412, %v1410
  %s1415 = scalar_lea.vmem %s0, 401
  %v1416 = vld [vmem:[%s1415] sm:$0x40]
  %vm1417 = vcmask 1046534
  %v1418 = vsel %vm1417, %v1416, %v1414
  %s1419 = scalar_lea.vmem %s0, 464
  %v1420 = vld [vmem:[%s1419] sm:$0x80]
  %vm1421 = vcmask 1047559
  %v1422 = vsel %vm1421, %v1420, %v1418
  %1423 = vrot.lane.b32.xlu0 %v1422, 46
  %v1424 = vpop.permute.xlu0 %1423
  %vm1425 = vcmask 392560
  %1426 = vst.msk [vmem:[%s1] sm:$0xff] %vm1425, %v1424
  %s1427 = scalar_lea.vmem %s0, 22
  %v1428 = vld [vmem:[%s1427] sm:$0x1]
  %s1429 = scalar_lea.vmem %s0, 85
  %v1430 = vld [vmem:[%s1429] sm:$0x2]
  %vm1431 = vcmask 1041409
  %v1432 = vsel %vm1431, %v1430, %v1428
  %s1433 = scalar_lea.vmem %s0, 148
  %v1434 = vld [vmem:[%s1433] sm:$0x4]
  %vm1435 = vcmask 1042434
  %v1436 = vsel %vm1435, %v1434, %v1432
  %s1437 = scalar_lea.vmem %s0, 211
  %v1438 = vld [vmem:[%s1437] sm:$0x8]
  %vm1439 = vcmask 1043459
  %v1440 = vsel %vm1439, %v1438, %v1436
  %s1441 = scalar_lea.vmem %s0, 274
  %v1442 = vld [vmem:[%s1441] sm:$0x10]
  %vm1443 = vcmask 1044484
  %v1444 = vsel %vm1443, %v1442, %v1440
  %s1445 = scalar_lea.vmem %s0, 337
  %v1446 = vld [vmem:[%s1445] sm:$0x20]
  %vm1447 = vcmask 1045509
  %v1448 = vsel %vm1447, %v1446, %v1444
  %s1449 = scalar_lea.vmem %s0, 400
  %v1450 = vld [vmem:[%s1449] sm:$0x40]
  %vm1451 = vcmask 1046534
  %v1452 = vsel %vm1451, %v1450, %v1448
  %s1453 = scalar_lea.vmem %s0, 463
  %v1454 = vld [vmem:[%s1453] sm:$0x80]
  %vm1455 = vcmask 1047559
  %v1456 = vsel %vm1455, %v1454, %v1452
  %1457 = vrot.lane.b32.xlu0 %v1456, 44
  %v1458 = vpop.permute.xlu0 %1457
  %vm1459 = vcmask 376160
  %1460 = vst.msk [vmem:[%s1] sm:$0xff] %vm1459, %v1458
  %s1461 = scalar_lea.vmem %s0, 21
  %v1462 = vld [vmem:[%s1461] sm:$0x1]
  %s1463 = scalar_lea.vmem %s0, 84
  %v1464 = vld [vmem:[%s1463] sm:$0x2]
  %vm1465 = vcmask 1041409
  %v1466 = vsel %vm1465, %v1464, %v1462
  %s1467 = scalar_lea.vmem %s0, 147
  %v1468 = vld [vmem:[%s1467] sm:$0x4]
  %vm1469 = vcmask 1042434
  %v1470 = vsel %vm1469, %v1468, %v1466
  %s1471 = scalar_lea.vmem %s0, 210
  %v1472 = vld [vmem:[%s1471] sm:$0x8]
  %vm1473 = vcmask 1043459
  %v1474 = vsel %vm1473, %v1472, %v1470
  %s1475 = scalar_lea.vmem %s0, 273
  %v1476 = vld [vmem:[%s1475] sm:$0x10]
  %vm1477 = vcmask 1044484
  %v1478 = vsel %vm1477, %v1476, %v1474
  %s1479 = scalar_lea.vmem %s0, 336
  %v1480 = vld [vmem:[%s1479] sm:$0x20]
  %vm1481 = vcmask 1045509
  %v1482 = vsel %vm1481, %v1480, %v1478
  %s1483 = scalar_lea.vmem %s0, 399
  %v1484 = vld [vmem:[%s1483] sm:$0x40]
  %vm1485 = vcmask 1046534
  %v1486 = vsel %vm1485, %v1484, %v1482
  %s1487 = scalar_lea.vmem %s0, 462
  %v1488 = vld [vmem:[%s1487] sm:$0x80]
  %vm1489 = vcmask 1047559
  %v1490 = vsel %vm1489, %v1488, %v1486
  %1491 = vrot.lane.b32.xlu0 %v1490, 42
  %v1492 = vpop.permute.xlu0 %1491
  %vm1493 = vcmask 359760
  %1494 = vst.msk [vmem:[%s1] sm:$0xff] %vm1493, %v1492
  %s1495 = scalar_lea.vmem %s0, 20
  %v1496 = vld [vmem:[%s1495] sm:$0x1]
  %s1497 = scalar_lea.vmem %s0, 83
  %v1498 = vld [vmem:[%s1497] sm:$0x2]
  %vm1499 = vcmask 1041409
  %v1500 = vsel %vm1499, %v1498, %v1496
  %s1501 = scalar_lea.vmem %s0, 146
  %v1502 = vld [vmem:[%s1501] sm:$0x4]
  %vm1503 = vcmask 1042434
  %v1504 = vsel %vm1503, %v1502, %v1500
  %s1505 = scalar_lea.vmem %s0, 209
  %v1506 = vld [vmem:[%s1505] sm:$0x8]
  %vm1507 = vcmask 1043459
  %v1508 = vsel %vm1507, %v1506, %v1504
  %s1509 = scalar_lea.vmem %s0, 272
  %v1510 = vld [vmem:[%s1509] sm:$0x10]
  %vm1511 = vcmask 1044484
  %v1512 = vsel %vm1511, %v1510, %v1508
  %s1513 = scalar_lea.vmem %s0, 335
  %v1514 = vld [vmem:[%s1513] sm:$0x20]
  %vm1515 = vcmask 1045509
  %v1516 = vsel %vm1515, %v1514, %v1512
  %s1517 = scalar_lea.vmem %s0, 398
  %v1518 = vld [vmem:[%s1517] sm:$0x40]
  %vm1519 = vcmask 1046534
  %v1520 = vsel %vm1519, %v1518, %v1516
  %s1521 = scalar_lea.vmem %s0, 461
  %v1522 = vld [vmem:[%s1521] sm:$0x80]
  %vm1523 = vcmask 1047559
  %v1524 = vsel %vm1523, %v1522, %v1520
  %1525 = vrot.lane.b32.xlu0 %v1524, 40
  %v1526 = vpop.permute.xlu0 %1525
  %vm1527 = vcmask 343360
  %1528 = vst.msk [vmem:[%s1] sm:$0xff] %vm1527, %v1526
  %s1529 = scalar_lea.vmem %s0, 19
  %v1530 = vld [vmem:[%s1529] sm:$0x1]
  %s1531 = scalar_lea.vmem %s0, 82
  %v1532 = vld [vmem:[%s1531] sm:$0x2]
  %vm1533 = vcmask 1041409
  %v1534 = vsel %vm1533, %v1532, %v1530
  %s1535 = scalar_lea.vmem %s0, 145
  %v1536 = vld [vmem:[%s1535] sm:$0x4]
  %vm1537 = vcmask 1042434
  %v1538 = vsel %vm1537, %v1536, %v1534
  %s1539 = scalar_lea.vmem %s0, 208
  %v1540 = vld [vmem:[%s1539] sm:$0x8]
  %vm1541 = vcmask 1043459
  %v1542 = vsel %vm1541, %v1540, %v1538
  %s1543 = scalar_lea.vmem %s0, 271
  %v1544 = vld [vmem:[%s1543] sm:$0x10]
  %vm1545 = vcmask 1044484
  %v1546 = vsel %vm1545, %v1544, %v1542
  %s1547 = scalar_lea.vmem %s0, 334
  %v1548 = vld [vmem:[%s1547] sm:$0x20]
  %vm1549 = vcmask 1045509
  %v1550 = vsel %vm1549, %v1548, %v1546
  %s1551 = scalar_lea.vmem %s0, 397
  %v1552 = vld [vmem:[%s1551] sm:$0x40]
  %vm1553 = vcmask 1046534
  %v1554 = vsel %vm1553, %v1552, %v1550
  %s1555 = scalar_lea.vmem %s0, 460
  %v1556 = vld [vmem:[%s1555] sm:$0x80]
  %vm1557 = vcmask 1047559
  %v1558 = vsel %vm1557, %v1556, %v1554
  %1559 = vrot.lane.b32.xlu0 %v1558, 38
  %v1560 = vpop.permute.xlu0 %1559
  %vm1561 = vcmask 326960
  %1562 = vst.msk [vmem:[%s1] sm:$0xff] %vm1561, %v1560
  %s1563 = scalar_lea.vmem %s0, 18
  %v1564 = vld [vmem:[%s1563] sm:$0x1]
  %s1565 = scalar_lea.vmem %s0, 81
  %v1566 = vld [vmem:[%s1565] sm:$0x2]
  %vm1567 = vcmask 1041409
  %v1568 = vsel %vm1567, %v1566, %v1564
  %s1569 = scalar_lea.vmem %s0, 144
  %v1570 = vld [vmem:[%s1569] sm:$0x4]
  %vm1571 = vcmask 1042434
  %v1572 = vsel %vm1571, %v1570, %v1568
  %s1573 = scalar_lea.vmem %s0, 207
  %v1574 = vld [vmem:[%s1573] sm:$0x8]
  %vm1575 = vcmask 1043459
  %v1576 = vsel %vm1575, %v1574, %v1572
  %s1577 = scalar_lea.vmem %s0, 270
  %v1578 = vld [vmem:[%s1577] sm:$0x10]
  %vm1579 = vcmask 1044484
  %v1580 = vsel %vm1579, %v1578, %v1576
  %s1581 = scalar_lea.vmem %s0, 333
  %v1582 = vld [vmem:[%s1581] sm:$0x20]
  %vm1583 = vcmask 1045509
  %v1584 = vsel %vm1583, %v1582, %v1580
  %s1585 = scalar_lea.vmem %s0, 396
  %v1586 = vld [vmem:[%s1585] sm:$0x40]
  %vm1587 = vcmask 1046534
  %v1588 = vsel %vm1587, %v1586, %v1584
  %s1589 = scalar_lea.vmem %s0, 459
  %v1590 = vld [vmem:[%s1589] sm:$0x80]
  %vm1591 = vcmask 1047559
  %v1592 = vsel %vm1591, %v1590, %v1588
  %1593 = vrot.lane.b32.xlu0 %v1592, 36
  %v1594 = vpop.permute.xlu0 %1593
  %vm1595 = vcmask 310560
  %1596 = vst.msk [vmem:[%s1] sm:$0xff] %vm1595, %v1594
  %s1597 = scalar_lea.vmem %s0, 17
  %v1598 = vld [vmem:[%s1597] sm:$0x1]
  %s1599 = scalar_lea.vmem %s0, 80
  %v1600 = vld [vmem:[%s1599] sm:$0x2]
  %vm1601 = vcmask 1041409
  %v1602 = vsel %vm1601, %v1600, %v1598
  %s1603 = scalar_lea.vmem %s0, 143
  %v1604 = vld [vmem:[%s1603] sm:$0x4]
  %vm1605 = vcmask 1042434
  %v1606 = vsel %vm1605, %v1604, %v1602
  %s1607 = scalar_lea.vmem %s0, 206
  %v1608 = vld [vmem:[%s1607] sm:$0x8]
  %vm1609 = vcmask 1043459
  %v1610 = vsel %vm1609, %v1608, %v1606
  %s1611 = scalar_lea.vmem %s0, 269
  %v1612 = vld [vmem:[%s1611] sm:$0x10]
  %vm1613 = vcmask 1044484
  %v1614 = vsel %vm1613, %v1612, %v1610
  %s1615 = scalar_lea.vmem %s0, 332
  %v1616 = vld [vmem:[%s1615] sm:$0x20]
  %vm1617 = vcmask 1045509
  %v1618 = vsel %vm1617, %v1616, %v1614
  %s1619 = scalar_lea.vmem %s0, 395
  %v1620 = vld [vmem:[%s1619] sm:$0x40]
  %vm1621 = vcmask 1046534
  %v1622 = vsel %vm1621, %v1620, %v1618
  %s1623 = scalar_lea.vmem %s0, 458
  %v1624 = vld [vmem:[%s1623] sm:$0x80]
  %vm1625 = vcmask 1047559
  %v1626 = vsel %vm1625, %v1624, %v1622
  %1627 = vrot.lane.b32.xlu0 %v1626, 34
  %v1628 = vpop.permute.xlu0 %1627
  %vm1629 = vcmask 294160
  %1630 = vst.msk [vmem:[%s1] sm:$0xff] %vm1629, %v1628
  %s1631 = scalar_lea.vmem %s0, 16
  %v1632 = vld [vmem:[%s1631] sm:$0x1]
  %s1633 = scalar_lea.vmem %s0, 79
  %v1634 = vld [vmem:[%s1633] sm:$0x2]
  %vm1635 = vcmask 1041409
  %v1636 = vsel %vm1635, %v1634, %v1632
  %s1637 = scalar_lea.vmem %s0, 142
  %v1638 = vld [vmem:[%s1637] sm:$0x4]
  %vm1639 = vcmask 1042434
  %v1640 = vsel %vm1639, %v1638, %v1636
  %s1641 = scalar_lea.vmem %s0, 205
  %v1642 = vld [vmem:[%s1641] sm:$0x8]
  %vm1643 = vcmask 1043459
  %v1644 = vsel %vm1643, %v1642, %v1640
  %s1645 = scalar_lea.vmem %s0, 268
  %v1646 = vld [vmem:[%s1645] sm:$0x10]
  %vm1647 = vcmask 1044484
  %v1648 = vsel %vm1647, %v1646, %v1644
  %s1649 = scalar_lea.vmem %s0, 331
  %v1650 = vld [vmem:[%s1649] sm:$0x20]
  %vm1651 = vcmask 1045509
  %v1652 = vsel %vm1651, %v1650, %v1648
  %s1653 = scalar_lea.vmem %s0, 394
  %v1654 = vld [vmem:[%s1653] sm:$0x40]
  %vm1655 = vcmask 1046534
  %v1656 = vsel %vm1655, %v1654, %v1652
  %s1657 = scalar_lea.vmem %s0, 457
  %v1658 = vld [vmem:[%s1657] sm:$0x80]
  %vm1659 = vcmask 1047559
  %v1660 = vsel %vm1659, %v1658, %v1656
  %1661 = vrot.lane.b32.xlu0 %v1660, 32
  %v1662 = vpop.permute.xlu0 %1661
  %vm1663 = vcmask 277760
  %1664 = vst.msk [vmem:[%s1] sm:$0xff] %vm1663, %v1662
  %s1665 = scalar_lea.vmem %s0, 15
  %v1666 = vld [vmem:[%s1665] sm:$0x1]
  %s1667 = scalar_lea.vmem %s0, 78
  %v1668 = vld [vmem:[%s1667] sm:$0x2]
  %vm1669 = vcmask 1041409
  %v1670 = vsel %vm1669, %v1668, %v1666
  %s1671 = scalar_lea.vmem %s0, 141
  %v1672 = vld [vmem:[%s1671] sm:$0x4]
  %vm1673 = vcmask 1042434
  %v1674 = vsel %vm1673, %v1672, %v1670
  %s1675 = scalar_lea.vmem %s0, 204
  %v1676 = vld [vmem:[%s1675] sm:$0x8]
  %vm1677 = vcmask 1043459
  %v1678 = vsel %vm1677, %v1676, %v1674
  %s1679 = scalar_lea.vmem %s0, 267
  %v1680 = vld [vmem:[%s1679] sm:$0x10]
  %vm1681 = vcmask 1044484
  %v1682 = vsel %vm1681, %v1680, %v1678
  %s1683 = scalar_lea.vmem %s0, 330
  %v1684 = vld [vmem:[%s1683] sm:$0x20]
  %vm1685 = vcmask 1045509
  %v1686 = vsel %vm1685, %v1684, %v1682
  %s1687 = scalar_lea.vmem %s0, 393
  %v1688 = vld [vmem:[%s1687] sm:$0x40]
  %vm1689 = vcmask 1046534
  %v1690 = vsel %vm1689, %v1688, %v1686
  %s1691 = scalar_lea.vmem %s0, 456
  %v1692 = vld [vmem:[%s1691] sm:$0x80]
  %vm1693 = vcmask 1047559
  %v1694 = vsel %vm1693, %v1692, %v1690
  %1695 = vrot.lane.b32.xlu0 %v1694, 30
  %v1696 = vpop.permute.xlu0 %1695
  %vm1697 = vcmask 261360
  %1698 = vst.msk [vmem:[%s1] sm:$0xff] %vm1697, %v1696
  %s1699 = scalar_lea.vmem %s0, 14
  %v1700 = vld [vmem:[%s1699] sm:$0x1]
  %s1701 = scalar_lea.vmem %s0, 77
  %v1702 = vld [vmem:[%s1701] sm:$0x2]
  %vm1703 = vcmask 1041409
  %v1704 = vsel %vm1703, %v1702, %v1700
  %s1705 = scalar_lea.vmem %s0, 140
  %v1706 = vld [vmem:[%s1705] sm:$0x4]
  %vm1707 = vcmask 1042434
  %v1708 = vsel %vm1707, %v1706, %v1704
  %s1709 = scalar_lea.vmem %s0, 203
  %v1710 = vld [vmem:[%s1709] sm:$0x8]
  %vm1711 = vcmask 1043459
  %v1712 = vsel %vm1711, %v1710, %v1708
  %s1713 = scalar_lea.vmem %s0, 266
  %v1714 = vld [vmem:[%s1713] sm:$0x10]
  %vm1715 = vcmask 1044484
  %v1716 = vsel %vm1715, %v1714, %v1712
  %s1717 = scalar_lea.vmem %s0, 329
  %v1718 = vld [vmem:[%s1717] sm:$0x20]
  %vm1719 = vcmask 1045509
  %v1720 = vsel %vm1719, %v1718, %v1716
  %s1721 = scalar_lea.vmem %s0, 392
  %v1722 = vld [vmem:[%s1721] sm:$0x40]
  %vm1723 = vcmask 1046534
  %v1724 = vsel %vm1723, %v1722, %v1720
  %s1725 = scalar_lea.vmem %s0, 455
  %v1726 = vld [vmem:[%s1725] sm:$0x80]
  %vm1727 = vcmask 1047559
  %v1728 = vsel %vm1727, %v1726, %v1724
  %1729 = vrot.lane.b32.xlu0 %v1728, 28
  %v1730 = vpop.permute.xlu0 %1729
  %vm1731 = vcmask 244960
  %1732 = vst.msk [vmem:[%s1] sm:$0xff] %vm1731, %v1730
  %s1733 = scalar_lea.vmem %s0, 13
  %v1734 = vld [vmem:[%s1733] sm:$0x1]
  %s1735 = scalar_lea.vmem %s0, 76
  %v1736 = vld [vmem:[%s1735] sm:$0x2]
  %vm1737 = vcmask 1041409
  %v1738 = vsel %vm1737, %v1736, %v1734
  %s1739 = scalar_lea.vmem %s0, 139
  %v1740 = vld [vmem:[%s1739] sm:$0x4]
  %vm1741 = vcmask 1042434
  %v1742 = vsel %vm1741, %v1740, %v1738
  %s1743 = scalar_lea.vmem %s0, 202
  %v1744 = vld [vmem:[%s1743] sm:$0x8]
  %vm1745 = vcmask 1043459
  %v1746 = vsel %vm1745, %v1744, %v1742
  %s1747 = scalar_lea.vmem %s0, 265
  %v1748 = vld [vmem:[%s1747] sm:$0x10]
  %vm1749 = vcmask 1044484
  %v1750 = vsel %vm1749, %v1748, %v1746
  %s1751 = scalar_lea.vmem %s0, 328
  %v1752 = vld [vmem:[%s1751] sm:$0x20]
  %vm1753 = vcmask 1045509
  %v1754 = vsel %vm1753, %v1752, %v1750
  %s1755 = scalar_lea.vmem %s0, 391
  %v1756 = vld [vmem:[%s1755] sm:$0x40]
  %vm1757 = vcmask 1046534
  %v1758 = vsel %vm1757, %v1756, %v1754
  %s1759 = scalar_lea.vmem %s0, 454
  %v1760 = vld [vmem:[%s1759] sm:$0x80]
  %vm1761 = vcmask 1047559
  %v1762 = vsel %vm1761, %v1760, %v1758
  %1763 = vrot.lane.b32.xlu0 %v1762, 26
  %v1764 = vpop.permute.xlu0 %1763
  %vm1765 = vcmask 228560
  %1766 = vst.msk [vmem:[%s1] sm:$0xff] %vm1765, %v1764
  %s1767 = scalar_lea.vmem %s0, 12
  %v1768 = vld [vmem:[%s1767] sm:$0x1]
  %s1769 = scalar_lea.vmem %s0, 75
  %v1770 = vld [vmem:[%s1769] sm:$0x2]
  %vm1771 = vcmask 1041409
  %v1772 = vsel %vm1771, %v1770, %v1768
  %s1773 = scalar_lea.vmem %s0, 138
  %v1774 = vld [vmem:[%s1773] sm:$0x4]
  %vm1775 = vcmask 1042434
  %v1776 = vsel %vm1775, %v1774, %v1772
  %s1777 = scalar_lea.vmem %s0, 201
  %v1778 = vld [vmem:[%s1777] sm:$0x8]
  %vm1779 = vcmask 1043459
  %v1780 = vsel %vm1779, %v1778, %v1776
  %s1781 = scalar_lea.vmem %s0, 264
  %v1782 = vld [vmem:[%s1781] sm:$0x10]
  %vm1783 = vcmask 1044484
  %v1784 = vsel %vm1783, %v1782, %v1780
  %s1785 = scalar_lea.vmem %s0, 327
  %v1786 = vld [vmem:[%s1785] sm:$0x20]
  %vm1787 = vcmask 1045509
  %v1788 = vsel %vm1787, %v1786, %v1784
  %s1789 = scalar_lea.vmem %s0, 390
  %v1790 = vld [vmem:[%s1789] sm:$0x40]
  %vm1791 = vcmask 1046534
  %v1792 = vsel %vm1791, %v1790, %v1788
  %s1793 = scalar_lea.vmem %s0, 453
  %v1794 = vld [vmem:[%s1793] sm:$0x80]
  %vm1795 = vcmask 1047559
  %v1796 = vsel %vm1795, %v1794, %v1792
  %1797 = vrot.lane.b32.xlu0 %v1796, 24
  %v1798 = vpop.permute.xlu0 %1797
  %vm1799 = vcmask 212160
  %1800 = vst.msk [vmem:[%s1] sm:$0xff] %vm1799, %v1798
  %s1801 = scalar_lea.vmem %s0, 11
  %v1802 = vld [vmem:[%s1801] sm:$0x1]
  %s1803 = scalar_lea.vmem %s0, 74
  %v1804 = vld [vmem:[%s1803] sm:$0x2]
  %vm1805 = vcmask 1041409
  %v1806 = vsel %vm1805, %v1804, %v1802
  %s1807 = scalar_lea.vmem %s0, 137
  %v1808 = vld [vmem:[%s1807] sm:$0x4]
  %vm1809 = vcmask 1042434
  %v1810 = vsel %vm1809, %v1808, %v1806
  %s1811 = scalar_lea.vmem %s0, 200
  %v1812 = vld [vmem:[%s1811] sm:$0x8]
  %vm1813 = vcmask 1043459
  %v1814 = vsel %vm1813, %v1812, %v1810
  %s1815 = scalar_lea.vmem %s0, 263
  %v1816 = vld [vmem:[%s1815] sm:$0x10]
  %vm1817 = vcmask 1044484
  %v1818 = vsel %vm1817, %v1816, %v1814
  %s1819 = scalar_lea.vmem %s0, 326
  %v1820 = vld [vmem:[%s1819] sm:$0x20]
  %vm1821 = vcmask 1045509
  %v1822 = vsel %vm1821, %v1820, %v1818
  %s1823 = scalar_lea.vmem %s0, 389
  %v1824 = vld [vmem:[%s1823] sm:$0x40]
  %vm1825 = vcmask 1046534
  %v1826 = vsel %vm1825, %v1824, %v1822
  %s1827 = scalar_lea.vmem %s0, 452
  %v1828 = vld [vmem:[%s1827] sm:$0x80]
  %vm1829 = vcmask 1047559
  %v1830 = vsel %vm1829, %v1828, %v1826
  %1831 = vrot.lane.b32.xlu0 %v1830, 22
  %v1832 = vpop.permute.xlu0 %1831
  %vm1833 = vcmask 195760
  %1834 = vst.msk [vmem:[%s1] sm:$0xff] %vm1833, %v1832
  %s1835 = scalar_lea.vmem %s0, 10
  %v1836 = vld [vmem:[%s1835] sm:$0x1]
  %s1837 = scalar_lea.vmem %s0, 73
  %v1838 = vld [vmem:[%s1837] sm:$0x2]
  %vm1839 = vcmask 1041409
  %v1840 = vsel %vm1839, %v1838, %v1836
  %s1841 = scalar_lea.vmem %s0, 136
  %v1842 = vld [vmem:[%s1841] sm:$0x4]
  %vm1843 = vcmask 1042434
  %v1844 = vsel %vm1843, %v1842, %v1840
  %s1845 = scalar_lea.vmem %s0, 199
  %v1846 = vld [vmem:[%s1845] sm:$0x8]
  %vm1847 = vcmask 1043459
  %v1848 = vsel %vm1847, %v1846, %v1844
  %s1849 = scalar_lea.vmem %s0, 262
  %v1850 = vld [vmem:[%s1849] sm:$0x10]
  %vm1851 = vcmask 1044484
  %v1852 = vsel %vm1851, %v1850, %v1848
  %s1853 = scalar_lea.vmem %s0, 325
  %v1854 = vld [vmem:[%s1853] sm:$0x20]
  %vm1855 = vcmask 1045509
  %v1856 = vsel %vm1855, %v1854, %v1852
  %s1857 = scalar_lea.vmem %s0, 388
  %v1858 = vld [vmem:[%s1857] sm:$0x40]
  %vm1859 = vcmask 1046534
  %v1860 = vsel %vm1859, %v1858, %v1856
  %s1861 = scalar_lea.vmem %s0, 451
  %v1862 = vld [vmem:[%s1861] sm:$0x80]
  %vm1863 = vcmask 1047559
  %v1864 = vsel %vm1863, %v1862, %v1860
  %1865 = vrot.lane.b32.xlu0 %v1864, 20
  %v1866 = vpop.permute.xlu0 %1865
  %vm1867 = vcmask 179360
  %1868 = vst.msk [vmem:[%s1] sm:$0xff] %vm1867, %v1866
  %s1869 = scalar_lea.vmem %s0, 9
  %v1870 = vld [vmem:[%s1869] sm:$0x1]
  %s1871 = scalar_lea.vmem %s0, 72
  %v1872 = vld [vmem:[%s1871] sm:$0x2]
  %vm1873 = vcmask 1041409
  %v1874 = vsel %vm1873, %v1872, %v1870
  %s1875 = scalar_lea.vmem %s0, 135
  %v1876 = vld [vmem:[%s1875] sm:$0x4]
  %vm1877 = vcmask 1042434
  %v1878 = vsel %vm1877, %v1876, %v1874
  %s1879 = scalar_lea.vmem %s0, 198
  %v1880 = vld [vmem:[%s1879] sm:$0x8]
  %vm1881 = vcmask 1043459
  %v1882 = vsel %vm1881, %v1880, %v1878
  %s1883 = scalar_lea.vmem %s0, 261
  %v1884 = vld [vmem:[%s1883] sm:$0x10]
  %vm1885 = vcmask 1044484
  %v1886 = vsel %vm1885, %v1884, %v1882
  %s1887 = scalar_lea.vmem %s0, 324
  %v1888 = vld [vmem:[%s1887] sm:$0x20]
  %vm1889 = vcmask 1045509
  %v1890 = vsel %vm1889, %v1888, %v1886
  %s1891 = scalar_lea.vmem %s0, 387
  %v1892 = vld [vmem:[%s1891] sm:$0x40]
  %vm1893 = vcmask 1046534
  %v1894 = vsel %vm1893, %v1892, %v1890
  %s1895 = scalar_lea.vmem %s0, 450
  %v1896 = vld [vmem:[%s1895] sm:$0x80]
  %vm1897 = vcmask 1047559
  %v1898 = vsel %vm1897, %v1896, %v1894
  %1899 = vrot.lane.b32.xlu0 %v1898, 18
  %v1900 = vpop.permute.xlu0 %1899
  %vm1901 = vcmask 162960
  %1902 = vst.msk [vmem:[%s1] sm:$0xff] %vm1901, %v1900
  %s1903 = scalar_lea.vmem %s0, 8
  %v1904 = vld [vmem:[%s1903] sm:$0x1]
  %s1905 = scalar_lea.vmem %s0, 71
  %v1906 = vld [vmem:[%s1905] sm:$0x2]
  %vm1907 = vcmask 1041409
  %v1908 = vsel %vm1907, %v1906, %v1904
  %s1909 = scalar_lea.vmem %s0, 134
  %v1910 = vld [vmem:[%s1909] sm:$0x4]
  %vm1911 = vcmask 1042434
  %v1912 = vsel %vm1911, %v1910, %v1908
  %s1913 = scalar_lea.vmem %s0, 197
  %v1914 = vld [vmem:[%s1913] sm:$0x8]
  %vm1915 = vcmask 1043459
  %v1916 = vsel %vm1915, %v1914, %v1912
  %s1917 = scalar_lea.vmem %s0, 260
  %v1918 = vld [vmem:[%s1917] sm:$0x10]
  %vm1919 = vcmask 1044484
  %v1920 = vsel %vm1919, %v1918, %v1916
  %s1921 = scalar_lea.vmem %s0, 323
  %v1922 = vld [vmem:[%s1921] sm:$0x20]
  %vm1923 = vcmask 1045509
  %v1924 = vsel %vm1923, %v1922, %v1920
  %s1925 = scalar_lea.vmem %s0, 386
  %v1926 = vld [vmem:[%s1925] sm:$0x40]
  %vm1927 = vcmask 1046534
  %v1928 = vsel %vm1927, %v1926, %v1924
  %s1929 = scalar_lea.vmem %s0, 449
  %v1930 = vld [vmem:[%s1929] sm:$0x80]
  %vm1931 = vcmask 1047559
  %v1932 = vsel %vm1931, %v1930, %v1928
  %1933 = vrot.lane.b32.xlu0 %v1932, 16
  %v1934 = vpop.permute.xlu0 %1933
  %vm1935 = vcmask 146560
  %1936 = vst.msk [vmem:[%s1] sm:$0xff] %vm1935, %v1934
  %s1937 = scalar_lea.vmem %s0, 7
  %v1938 = vld [vmem:[%s1937] sm:$0x1]
  %s1939 = scalar_lea.vmem %s0, 70
  %v1940 = vld [vmem:[%s1939] sm:$0x2]
  %vm1941 = vcmask 1041409
  %v1942 = vsel %vm1941, %v1940, %v1938
  %s1943 = scalar_lea.vmem %s0, 133
  %v1944 = vld [vmem:[%s1943] sm:$0x4]
  %vm1945 = vcmask 1042434
  %v1946 = vsel %vm1945, %v1944, %v1942
  %s1947 = scalar_lea.vmem %s0, 196
  %v1948 = vld [vmem:[%s1947] sm:$0x8]
  %vm1949 = vcmask 1043459
  %v1950 = vsel %vm1949, %v1948, %v1946
  %s1951 = scalar_lea.vmem %s0, 259
  %v1952 = vld [vmem:[%s1951] sm:$0x10]
  %vm1953 = vcmask 1044484
  %v1954 = vsel %vm1953, %v1952, %v1950
  %s1955 = scalar_lea.vmem %s0, 322
  %v1956 = vld [vmem:[%s1955] sm:$0x20]
  %vm1957 = vcmask 1045509
  %v1958 = vsel %vm1957, %v1956, %v1954
  %s1959 = scalar_lea.vmem %s0, 385
  %v1960 = vld [vmem:[%s1959] sm:$0x40]
  %vm1961 = vcmask 1046534
  %v1962 = vsel %vm1961, %v1960, %v1958
  %s1963 = scalar_lea.vmem %s0, 448
  %v1964 = vld [vmem:[%s1963] sm:$0x80]
  %vm1965 = vcmask 1047559
  %v1966 = vsel %vm1965, %v1964, %v1962
  %1967 = vrot.lane.b32.xlu0 %v1966, 14
  %v1968 = vpop.permute.xlu0 %1967
  %vm1969 = vcmask 130160
  %1970 = vst.msk [vmem:[%s1] sm:$0xff] %vm1969, %v1968
  %s1971 = scalar_lea.vmem %s0, 6
  %v1972 = vld [vmem:[%s1971] sm:$0x1]
  %s1973 = scalar_lea.vmem %s0, 69
  %v1974 = vld [vmem:[%s1973] sm:$0x2]
  %vm1975 = vcmask 1041409
  %v1976 = vsel %vm1975, %v1974, %v1972
  %s1977 = scalar_lea.vmem %s0, 132
  %v1978 = vld [vmem:[%s1977] sm:$0x4]
  %vm1979 = vcmask 1042434
  %v1980 = vsel %vm1979, %v1978, %v1976
  %s1981 = scalar_lea.vmem %s0, 195
  %v1982 = vld [vmem:[%s1981] sm:$0x8]
  %vm1983 = vcmask 1043459
  %v1984 = vsel %vm1983, %v1982, %v1980
  %s1985 = scalar_lea.vmem %s0, 258
  %v1986 = vld [vmem:[%s1985] sm:$0x10]
  %vm1987 = vcmask 1044484
  %v1988 = vsel %vm1987, %v1986, %v1984
  %s1989 = scalar_lea.vmem %s0, 321
  %v1990 = vld [vmem:[%s1989] sm:$0x20]
  %vm1991 = vcmask 1045509
  %v1992 = vsel %vm1991, %v1990, %v1988
  %s1993 = scalar_lea.vmem %s0, 384
  %v1994 = vld [vmem:[%s1993] sm:$0x40]
  %vm1995 = vcmask 1046534
  %v1996 = vsel %vm1995, %v1994, %v1992
  %s1997 = scalar_lea.vmem %s0, 447
  %v1998 = vld [vmem:[%s1997] sm:$0x80]
  %vm1999 = vcmask 1047559
  %v2000 = vsel %vm1999, %v1998, %v1996
  %2001 = vrot.lane.b32.xlu0 %v2000, 12
  %v2002 = vpop.permute.xlu0 %2001
  %vm2003 = vcmask 113760
  %2004 = vst.msk [vmem:[%s1] sm:$0xff] %vm2003, %v2002
  %s2005 = scalar_lea.vmem %s0, 5
  %v2006 = vld [vmem:[%s2005] sm:$0x1]
  %s2007 = scalar_lea.vmem %s0, 68
  %v2008 = vld [vmem:[%s2007] sm:$0x2]
  %vm2009 = vcmask 1041409
  %v2010 = vsel %vm2009, %v2008, %v2006
  %s2011 = scalar_lea.vmem %s0, 131
  %v2012 = vld [vmem:[%s2011] sm:$0x4]
  %vm2013 = vcmask 1042434
  %v2014 = vsel %vm2013, %v2012, %v2010
  %s2015 = scalar_lea.vmem %s0, 194
  %v2016 = vld [vmem:[%s2015] sm:$0x8]
  %vm2017 = vcmask 1043459
  %v2018 = vsel %vm2017, %v2016, %v2014
  %s2019 = scalar_lea.vmem %s0, 257
  %v2020 = vld [vmem:[%s2019] sm:$0x10]
  %vm2021 = vcmask 1044484
  %v2022 = vsel %vm2021, %v2020, %v2018
  %s2023 = scalar_lea.vmem %s0, 320
  %v2024 = vld [vmem:[%s2023] sm:$0x20]
  %vm2025 = vcmask 1045509
  %v2026 = vsel %vm2025, %v2024, %v2022
  %s2027 = scalar_lea.vmem %s0, 383
  %v2028 = vld [vmem:[%s2027] sm:$0x40]
  %vm2029 = vcmask 1046534
  %v2030 = vsel %vm2029, %v2028, %v2026
  %s2031 = scalar_lea.vmem %s0, 446
  %v2032 = vld [vmem:[%s2031] sm:$0x80]
  %vm2033 = vcmask 1047559
  %v2034 = vsel %vm2033, %v2032, %v2030
  %2035 = vrot.lane.b32.xlu0 %v2034, 10
  %v2036 = vpop.permute.xlu0 %2035
  %vm2037 = vcmask 97360
  %2038 = vst.msk [vmem:[%s1] sm:$0xff] %vm2037, %v2036
  %s2039 = scalar_lea.vmem %s0, 4
  %v2040 = vld [vmem:[%s2039] sm:$0x1]
  %s2041 = scalar_lea.vmem %s0, 67
  %v2042 = vld [vmem:[%s2041] sm:$0x2]
  %vm2043 = vcmask 1041409
  %v2044 = vsel %vm2043, %v2042, %v2040
  %s2045 = scalar_lea.vmem %s0, 130
  %v2046 = vld [vmem:[%s2045] sm:$0x4]
  %vm2047 = vcmask 1042434
  %v2048 = vsel %vm2047, %v2046, %v2044
  %s2049 = scalar_lea.vmem %s0, 193
  %v2050 = vld [vmem:[%s2049] sm:$0x8]
  %vm2051 = vcmask 1043459
  %v2052 = vsel %vm2051, %v2050, %v2048
  %s2053 = scalar_lea.vmem %s0, 256
  %v2054 = vld [vmem:[%s2053] sm:$0x10]
  %vm2055 = vcmask 1044484
  %v2056 = vsel %vm2055, %v2054, %v2052
  %s2057 = scalar_lea.vmem %s0, 319
  %v2058 = vld [vmem:[%s2057] sm:$0x20]
  %vm2059 = vcmask 1045509
  %v2060 = vsel %vm2059, %v2058, %v2056
  %s2061 = scalar_lea.vmem %s0, 382
  %v2062 = vld [vmem:[%s2061] sm:$0x40]
  %vm2063 = vcmask 1046534
  %v2064 = vsel %vm2063, %v2062, %v2060
  %s2065 = scalar_lea.vmem %s0, 445
  %v2066 = vld [vmem:[%s2065] sm:$0x80]
  %vm2067 = vcmask 1047559
  %v2068 = vsel %vm2067, %v2066, %v2064
  %2069 = vrot.lane.b32.xlu0 %v2068, 8
  %v2070 = vpop.permute.xlu0 %2069
  %vm2071 = vcmask 80960
  %2072 = vst.msk [vmem:[%s1] sm:$0xff] %vm2071, %v2070
  %s2073 = scalar_lea.vmem %s0, 3
  %v2074 = vld [vmem:[%s2073] sm:$0x1]
  %s2075 = scalar_lea.vmem %s0, 66
  %v2076 = vld [vmem:[%s2075] sm:$0x2]
  %vm2077 = vcmask 1041409
  %v2078 = vsel %vm2077, %v2076, %v2074
  %s2079 = scalar_lea.vmem %s0, 129
  %v2080 = vld [vmem:[%s2079] sm:$0x4]
  %vm2081 = vcmask 1042434
  %v2082 = vsel %vm2081, %v2080, %v2078
  %s2083 = scalar_lea.vmem %s0, 192
  %v2084 = vld [vmem:[%s2083] sm:$0x8]
  %vm2085 = vcmask 1043459
  %v2086 = vsel %vm2085, %v2084, %v2082
  %s2087 = scalar_lea.vmem %s0, 255
  %v2088 = vld [vmem:[%s2087] sm:$0x10]
  %vm2089 = vcmask 1044484
  %v2090 = vsel %vm2089, %v2088, %v2086
  %s2091 = scalar_lea.vmem %s0, 318
  %v2092 = vld [vmem:[%s2091] sm:$0x20]
  %vm2093 = vcmask 1045509
  %v2094 = vsel %vm2093, %v2092, %v2090
  %s2095 = scalar_lea.vmem %s0, 381
  %v2096 = vld [vmem:[%s2095] sm:$0x40]
  %vm2097 = vcmask 1046534
  %v2098 = vsel %vm2097, %v2096, %v2094
  %s2099 = scalar_lea.vmem %s0, 444
  %v2100 = vld [vmem:[%s2099] sm:$0x80]
  %vm2101 = vcmask 1047559
  %v2102 = vsel %vm2101, %v2100, %v2098
  %2103 = vrot.lane.b32.xlu0 %v2102, 6
  %v2104 = vpop.permute.xlu0 %2103
  %vm2105 = vcmask 64560
  %2106 = vst.msk [vmem:[%s1] sm:$0xff] %vm2105, %v2104
  %s2107 = scalar_lea.vmem %s0, 2
  %v2108 = vld [vmem:[%s2107] sm:$0x1]
  %s2109 = scalar_lea.vmem %s0, 65
  %v2110 = vld [vmem:[%s2109] sm:$0x2]
  %vm2111 = vcmask 1041409
  %v2112 = vsel %vm2111, %v2110, %v2108
  %s2113 = scalar_lea.vmem %s0, 128
  %v2114 = vld [vmem:[%s2113] sm:$0x4]
  %vm2115 = vcmask 1042434
  %v2116 = vsel %vm2115, %v2114, %v2112
  %s2117 = scalar_lea.vmem %s0, 191
  %v2118 = vld [vmem:[%s2117] sm:$0x8]
  %vm2119 = vcmask 1043459
  %v2120 = vsel %vm2119, %v2118, %v2116
  %s2121 = scalar_lea.vmem %s0, 254
  %v2122 = vld [vmem:[%s2121] sm:$0x10]
  %vm2123 = vcmask 1044484
  %v2124 = vsel %vm2123, %v2122, %v2120
  %s2125 = scalar_lea.vmem %s0, 317
  %v2126 = vld [vmem:[%s2125] sm:$0x20]
  %vm2127 = vcmask 1045509
  %v2128 = vsel %vm2127, %v2126, %v2124
  %s2129 = scalar_lea.vmem %s0, 380
  %v2130 = vld [vmem:[%s2129] sm:$0x40]
  %vm2131 = vcmask 1046534
  %v2132 = vsel %vm2131, %v2130, %v2128
  %s2133 = scalar_lea.vmem %s0, 443
  %v2134 = vld [vmem:[%s2133] sm:$0x80]
  %vm2135 = vcmask 1047559
  %v2136 = vsel %vm2135, %v2134, %v2132
  %2137 = vrot.lane.b32.xlu0 %v2136, 4
  %v2138 = vpop.permute.xlu0 %2137
  %vm2139 = vcmask 48160
  %2140 = vst.msk [vmem:[%s1] sm:$0xff] %vm2139, %v2138
  %s2141 = scalar_lea.vmem %s0, 1
  %v2142 = vld [vmem:[%s2141] sm:$0x1]
  %s2143 = scalar_lea.vmem %s0, 64
  %v2144 = vld [vmem:[%s2143] sm:$0x2]
  %vm2145 = vcmask 1041409
  %v2146 = vsel %vm2145, %v2144, %v2142
  %s2147 = scalar_lea.vmem %s0, 127
  %v2148 = vld [vmem:[%s2147] sm:$0x4]
  %vm2149 = vcmask 1042434
  %v2150 = vsel %vm2149, %v2148, %v2146
  %s2151 = scalar_lea.vmem %s0, 190
  %v2152 = vld [vmem:[%s2151] sm:$0x8]
  %vm2153 = vcmask 1043459
  %v2154 = vsel %vm2153, %v2152, %v2150
  %s2155 = scalar_lea.vmem %s0, 253
  %v2156 = vld [vmem:[%s2155] sm:$0x10]
  %vm2157 = vcmask 1044484
  %v2158 = vsel %vm2157, %v2156, %v2154
  %s2159 = scalar_lea.vmem %s0, 316
  %v2160 = vld [vmem:[%s2159] sm:$0x20]
  %vm2161 = vcmask 1045509
  %v2162 = vsel %vm2161, %v2160, %v2158
  %s2163 = scalar_lea.vmem %s0, 379
  %v2164 = vld [vmem:[%s2163] sm:$0x40]
  %vm2165 = vcmask 1046534
  %v2166 = vsel %vm2165, %v2164, %v2162
  %s2167 = scalar_lea.vmem %s0, 442
  %v2168 = vld [vmem:[%s2167] sm:$0x80]
  %vm2169 = vcmask 1047559
  %v2170 = vsel %vm2169, %v2168, %v2166
  %2171 = vrot.lane.b32.xlu0 %v2170, 2
  %v2172 = vpop.permute.xlu0 %2171
  %vm2173 = vcmask 31760
  %2174 = vst.msk [vmem:[%s1] sm:$0xff] %vm2173, %v2172

// kernel: forward.4
$region0: #{forward.4}
  #allocation0 [shape = 'u32[]', space=smem, size = 0x4, offset = 0x4, fixed_abs, tag = 'smem constant byte address 0x4 - core index']
  #allocation1 [shape = 'u32[144,128]{1,0:T(1,128)}', space=vmem, size = 0x12000, scoped, tag = 'internal scratch']
  #allocation2 [shape = 'bf16[1024,64]{1,0:T(8,128)(2,1)}', space=vmem, size = 0x40000, scoped, tag = 'scratch operand']
  %s0 = inlined_call_operand.vmem [shape: bf16[1024,1024], index: 0, kind: input, shape index: {}]
  %s1 = inlined_call_operand.vmem [shape: bf16[1024,32], index: 1, kind: input, shape index: {}]
  %s2 = inlined_call_operand.vmem [shape: f32[32,32], index: 2, kind: input, shape index: {}]
  %s3 = inlined_call_operand.vmem [shape: f32[1024,32], index: 3, kind: input, shape index: {}, may-alias: {3,5}]
  %s4 = inlined_call_operand.vmem [shape: f32[2], index: 4, kind: input, shape index: {}]
  %s5 = inlined_call_operand.vmem [shape: f32[1024,32], index: 5, kind: output, shape index: {0}, may-alias: {3,5}]
  %s6 = inlined_call_operand.hbm [shape: f32[1,1], index: 6, kind: output, shape index: {1}]
  %7 = xla_tuple %s5, %s6
  %s8 = sld [smem:[#allocation0]]
  $region69: #{forward.4} parent=0
    _
  %s10 = ssub.s32 1, %s8
  %s11 = scalar_select 0, %s10, %s8
  $region1: #{forward.4} parent=0
    #allocation3 [shape = 'u8[512]{0}', space=smem, size = 0x200, scoped, tag = 'input window, operand 4, single buffered']
    #allocation4 [shape = 's32[2]{0}', space=sflag, size = 0x8, scoped, tag = 'scoped memory for forward.4']
    #allocation5 [shape = 's32[2]{0}', space=sflag, size = 0x8, scoped, tag = 'scoped memory for forward.4']
    #allocation6 [shape = 'u8[512]{0}', space=vmem, size = 0x400, scoped, tag = 'output window, operand 1, single buffered']
    %12 = vsyncpa [#allocation5], 0
    %13 = vsyncpa [#allocation4], 0
    loop: start=0, step=1, limit=6
    $region2: #{forward.4} parent=1 // loop_pre_header
      _
    $region3: #{forward.4} parent=1 // loop_header
      %s15 = sphi 0, %s19
      %p16 = scmp.ge.s32.totalorder %s15, 6
      %s25 = sphi 0, %s27
      %s28 = sphi 0, %s25
      %s29 = sphi 0, %s28
      %s45 = sphi 0, %s29
      %s49 = sphi 0, %s49
      %s51 = sphi 0, %s49
      %s52 = sphi 0, %s51
      %s66 = sphi 0, %s52
      %s70 = sphi 0, %s70
      %s72 = sphi 0, %s70
      %s73 = sphi 0, %s72
      %s87 = sphi 0, %s73
      %s93 = sphi 0, %s95
      %s96 = sphi 0, %s93
      %s97 = sphi 0, %s96
      %s113 = sphi 0, %s97
      %s117 = sphi 0, %s117
      %s119 = sphi 0, %s117
      %s120 = sphi 0, %s119
      %s134 = sphi 0, %s120
      %s140 = sphi 0, %s142
      %s143 = sphi 0, %s140
      %s144 = sphi 0, %s143
      %s160 = sphi 0, %s144
      %s164 = sphi 0, %s164
      %s166 = sphi 0, %s164
      %s167 = sphi 0, %s166
      %s181 = sphi 0, %s167
    $region4: #{forward.4} parent=1 // loop_header_branch
      %18 = sbr.rel (%p16) target = $region8
    $region5: #{forward.4} parent=1 // loop_body
      %s20 = ssub.s32 %s15, 1
      %s21 = ssub.s32 %s15, 2
      %s22 = sadd.s32 %s15, 1
      %s23 = ssub.s32 %s15, %s22
      %p24 = scmp.eq.s32.totalorder %s23, 0
      %s26 = sadd.s32 %s25, 1
      %s27 = scalar_select %p24, %s25, %s26
      %p30 = pneg %p24
      %p31 = scmp.eq.s32.totalorder %s15, 3
      %p32 = por %p30, %p31
      %p33 = scmp.ne.s32.totalorder %s25, %s28
      %p34 = scmp.eq.s32.totalorder %s15, 0
      %p35 = por %p33, %p34
      %p36 = scmp.ne.s32.totalorder %s25, %s28
      %p37 = scmp.eq.s32.totalorder %s20, 3
      %p38 = por %p36, %p37
      %p39 = scmp.ne.s32.totalorder %s28, %s29
      %p40 = scmp.eq.s32.totalorder %s20, 0
      %p41 = por %p39, %p40
      %p42 = scmp.ne.s32.totalorder %s28, %s29
      %p43 = scmp.eq.s32.totalorder %s21, 3
      %p44 = por %p42, %p43
      %p46 = scmp.ne.s32.totalorder %s29, %s45
      %p47 = scmp.eq.s32.totalorder %s21, 0
      %p48 = por %p46, %p47
      %s50 = sadd.s32 %s49, 1
      %p53 = scmp.eq.s32.totalorder %s15, 3
      %p54 = scmp.ne.s32.totalorder %s49, %s51
      %p55 = scmp.eq.s32.totalorder %s15, 0
      %p56 = por %p54, %p55
      %p57 = scmp.ne.s32.totalorder %s49, %s51
      %p58 = scmp.eq.s32.totalorder %s20, 3
      %p59 = por %p57, %p58
      %p60 = scmp.ne.s32.totalorder %s51, %s52
      %p61 = scmp.eq.s32.totalorder %s20, 0
      %p62 = por %p60, %p61
      %p63 = scmp.ne.s32.totalorder %s51, %s52
      %p64 = scmp.eq.s32.totalorder %s21, 3
      %p65 = por %p63, %p64
      %p67 = scmp.ne.s32.totalorder %s52, %s66
      %p68 = scmp.eq.s32.totalorder %s21, 0
      %p69 = por %p67, %p68
      %s71 = sadd.s32 %s70, 1
      %p74 = scmp.eq.s32.totalorder %s15, 3
      %p75 = scmp.ne.s32.totalorder %s70, %s72
      %p76 = scmp.eq.s32.totalorder %s15, 0
      %p77 = por %p75, %p76
      %p78 = scmp.ne.s32.totalorder %s70, %s72
      %p79 = scmp.eq.s32.totalorder %s20, 3
      %p80 = por %p78, %p79
      %p81 = scmp.ne.s32.totalorder %s72, %s73
      %p82 = scmp.eq.s32.totalorder %s20, 0
      %p83 = por %p81, %p82
      %p84 = scmp.ne.s32.totalorder %s72, %s73
      %p85 = scmp.eq.s32.totalorder %s21, 3
      %p86 = por %p84, %p85
      %p88 = scmp.ne.s32.totalorder %s73, %s87
      %p89 = scmp.eq.s32.totalorder %s21, 0
      %p90 = por %p88, %p89
      %s91 = ssub.s32 %s15, %s22
      %p92 = scmp.eq.s32.totalorder %s91, 0
      %s94 = sadd.s32 %s93, 1
      %s95 = scalar_select %p92, %s93, %s94
      %p98 = pneg %p92
      %p99 = scmp.eq.s32.totalorder %s15, 3
      %p100 = por %p98, %p99
      %p101 = scmp.ne.s32.totalorder %s93, %s96
      %p102 = scmp.eq.s32.totalorder %s15, 0
      %p103 = por %p101, %p102
      %p104 = scmp.ne.s32.totalorder %s93, %s96
      %p105 = scmp.eq.s32.totalorder %s20, 3
      %p106 = por %p104, %p105
      %p107 = scmp.ne.s32.totalorder %s96, %s97
      %p108 = scmp.eq.s32.totalorder %s20, 0
      %p109 = por %p107, %p108
      %p110 = scmp.ne.s32.totalorder %s96, %s97
      %p111 = scmp.eq.s32.totalorder %s21, 3
      %p112 = por %p110, %p111
      %p114 = scmp.ne.s32.totalorder %s97, %s113
      %p115 = scmp.eq.s32.totalorder %s21, 0
      %p116 = por %p114, %p115
      %s118 = sadd.s32 %s117, 1
      %p121 = scmp.eq.s32.totalorder %s15, 3
      %p122 = scmp.ne.s32.totalorder %s117, %s119
      %p123 = scmp.eq.s32.totalorder %s15, 0
      %p124 = por %p122, %p123
      %p125 = scmp.ne.s32.totalorder %s117, %s119
      %p126 = scmp.eq.s32.totalorder %s20, 3
      %p127 = por %p125, %p126
      %p128 = scmp.ne.s32.totalorder %s119, %s120
      %p129 = scmp.eq.s32.totalorder %s20, 0
      %p130 = por %p128, %p129
      %p131 = scmp.ne.s32.totalorder %s119, %s120
      %p132 = scmp.eq.s32.totalorder %s21, 3
      %p133 = por %p131, %p132
      %p135 = scmp.ne.s32.totalorder %s120, %s134
      %p136 = scmp.eq.s32.totalorder %s21, 0
      %p137 = por %p135, %p136
      %s138 = ssub.s32 %s15, %s22
      %p139 = scmp.eq.s32.totalorder %s138, 0
      %s141 = sadd.s32 %s140, 1
      %s142 = scalar_select %p139, %s140, %s141
      %p145 = pneg %p139
      %p146 = scmp.eq.s32.totalorder %s15, 3
      %p147 = por %p145, %p146
      %p148 = scmp.ne.s32.totalorder %s140, %s143
      %p149 = scmp.eq.s32.totalorder %s15, 0
      %p150 = por %p148, %p149
      %p151 = scmp.ne.s32.totalorder %s140, %s143
      %p152 = scmp.eq.s32.totalorder %s20, 3
      %p153 = por %p151, %p152
      %p154 = scmp.ne.s32.totalorder %s143, %s144
      %p155 = scmp.eq.s32.totalorder %s20, 0
      %p156 = por %p154, %p155
      %p157 = scmp.ne.s32.totalorder %s143, %s144
      %p158 = scmp.eq.s32.totalorder %s21, 3
      %p159 = por %p157, %p158
      %p161 = scmp.ne.s32.totalorder %s144, %s160
      %p162 = scmp.eq.s32.totalorder %s21, 0
      %p163 = por %p161, %p162
      %s165 = sadd.s32 %s164, 1
      %p168 = scmp.eq.s32.totalorder %s15, 3
      %p169 = scmp.ne.s32.totalorder %s164, %s166
      %p170 = scmp.eq.s32.totalorder %s15, 0
      %p171 = por %p169, %p170
      %p172 = scmp.ne.s32.totalorder %s164, %s166
      %p173 = scmp.eq.s32.totalorder %s20, 3
      %p174 = por %p172, %p173
      %p175 = scmp.ne.s32.totalorder %s166, %s167
      %p176 = scmp.eq.s32.totalorder %s20, 0
      %p177 = por %p175, %p176
      %p178 = scmp.ne.s32.totalorder %s166, %s167
      %p179 = scmp.eq.s32.totalorder %s21, 3
      %p180 = por %p178, %p179
      %p182 = scmp.ne.s32.totalorder %s167, %s181
      %p183 = scmp.eq.s32.totalorder %s21, 0
      %p184 = por %p182, %p183
      %p185 = scmp.le.s32.totalorder 1, %s15
      %p186 = scmp.lt.s32.totalorder %s15, 5
      %p187 = pnand %p185, %p186
      %p188 = pneg %p187
      // Predicated region
      $region9: #{forward.4} parent=5 // pred_check
        _
      $region10: #{forward.4} parent=5 // pred_check_branch
        %190 = sbr.rel (%p187) target = $region12
      $region11: #{forward.4} parent=5 // pred_region
        %s191 = ssub.s32 %s15, 1
        // Predicated region
        $region13: #{forward.4} parent=11 // pred_check
          %p192 = pneg %p62
        $region14: #{forward.4} parent=11 // pred_check_branch
          %194 = sbr.rel (%p192) target = $region16
        $region15: #{forward.4} parent=11 // pred_region
          _
        $region16: #{forward.4} parent=11 // pred_fallthru
          _
        // Predicated region
        $region17: #{forward.4} parent=11 // pred_check
          %p195 = pneg %p83
        $region18: #{forward.4} parent=11 // pred_check_branch
          %197 = sbr.rel (%p195) target = $region20
        $region19: #{forward.4} parent=11 // pred_region
          _
        $region20: #{forward.4} parent=11 // pred_fallthru
          _
        // Predicated region
        $region21: #{forward.4} parent=11 // pred_check
          %p198 = pneg %p130
        $region22: #{forward.4} parent=11 // pred_check_branch
          %200 = sbr.rel (%p198) target = $region24
        $region23: #{forward.4} parent=11 // pred_region
          %s202 = ssub.s32 16, 16
          %203 = vsyncadd [#allocation5], %s202
          %s205 = sshll.u32 %s4, 4
          %s206 = int_to_ptr.vmem [resolvable:$true] %s205
          %208 = dma.vmem_to_smem %s206, 16, [#allocation3], [#allocation5]
        $region24: #{forward.4} parent=11 // pred_fallthru
          _
      $region12: #{forward.4} parent=5 // pred_fallthru
        _
      %p209 = scmp.lt.s32.totalorder %s15, 4
      // Predicated region
      $region25: #{forward.4} parent=5 // pred_check
        %p210 = pneg %p209
      $region26: #{forward.4} parent=5 // pred_check_branch
        %212 = sbr.rel (%p210) target = $region28
      $region27: #{forward.4} parent=5 // pred_region
        // Predicated region
        $region29: #{forward.4} parent=27 // pred_check
          %p213 = pneg %p35
        $region30: #{forward.4} parent=27 // pred_check_branch
          %215 = sbr.rel (%p213) target = $region32
        $region31: #{forward.4} parent=27 // pred_region
          %s216 = smul.u32 32, %s15
          %p217 = scmp.lt.s32.totalorder %s216, 127
          %s218 = scalar_select %p217, %s216, 127
          %s219 = smul.addr %s218, 8
          %s220 = smul.addr %s219, 4
          %s221 = scalar_lea.vmem %s0, %s220
          %s222 = smul.u32 32, %s15
        $region32: #{forward.4} parent=27 // pred_fallthru
          _
        // Predicated region
        $region33: #{forward.4} parent=27 // pred_check
          %p223 = pneg %p103
        $region34: #{forward.4} parent=27 // pred_check_branch
          %225 = sbr.rel (%p223) target = $region36
        $region35: #{forward.4} parent=27 // pred_region
          %s226 = smul.u32 32, %s15
          %p227 = scmp.lt.s32.totalorder %s226, 127
          %s228 = scalar_select %p227, %s226, 127
          %s229 = smul.addr %s228, 8
          %s230 = scalar_lea.vmem %s3, %s229
          %s231 = smul.u32 32, %s15
        $region36: #{forward.4} parent=27 // pred_fallthru
          _
      $region28: #{forward.4} parent=5 // pred_fallthru
        _
      %p232 = scmp.le.s32.totalorder 1, %s15
      %p233 = scmp.lt.s32.totalorder %s15, 5
      %p234 = pnand %p232, %p233
      %p235 = pneg %p234
      // Predicated region
      $region37: #{forward.4} parent=5 // pred_check
        _
      $region38: #{forward.4} parent=5 // pred_check_branch
        %237 = sbr.rel (%p234) target = $region40
      $region39: #{forward.4} parent=5 // pred_region
        %s238 = ssub.s32 %s15, 1
        // Predicated region
        $region41: #{forward.4} parent=39 // pred_check
          %p239 = pneg %p130
        $region42: #{forward.4} parent=39 // pred_check_branch
          %241 = sbr.rel (%p239) target = $region44
        $region43: #{forward.4} parent=39 // pred_region
          %242 = dma.done [#allocation5], 16
        $region44: #{forward.4} parent=39 // pred_fallthru
          _
        %243 = sfence
        %s244 = smul.u32 32, %s20
        %p245 = scmp.lt.s32.totalorder %s244, 127
        %s246 = scalar_select %p245, %s244, 127
        %s247 = smul.addr %s246, 8
        %s248 = smul.addr %s247, 4
        %s249 = scalar_lea.vmem %s0, %s248
        %p250 = pneg %p41
        %p251 = pneg %p38
        %p252 = pneg %p62
        %p253 = pneg %p59
        %p254 = pneg %p83
        %p255 = pneg %p80
        %s256 = smul.u32 32, %s20
        %p257 = scmp.lt.s32.totalorder %s256, 127
        %s258 = scalar_select %p257, %s256, 127
        %s259 = smul.addr %s258, 8
        %s260 = scalar_lea.vmem %s3, %s259
        %p261 = pneg %p109
        %p262 = pneg %p106
        %p263 = pneg %p130
        %p264 = pneg %p127
        %p265 = pneg %p156
        %p266 = pneg %p153
        %s267 = smul.u32 32, %s20
        %p268 = scmp.lt.s32.totalorder %s267, 127
        %s269 = scalar_select %p268, %s267, 127
        %s270 = smul.addr %s269, 8
        %s271 = scalar_lea.vmem %s5, %s270
        %p272 = pneg %p177
        %p273 = pneg %p174
        %s274 = smul.u32 32, %s20
        %p275 = scmp.lt.s32.totalorder %s274, 127
        %s276 = scalar_select %p275, %s274, 127
        %s277 = smul.addr %s276, 8
        %s278 = smul.addr %s277, 4
        %s279 = scalar_lea.vmem %s0, %s278
        %s280 = smul.u32 32, %s20
        %s281 = smul.u32 32, %s20
        %p282 = scmp.lt.s32.totalorder %s281, 127
        %s283 = scalar_select %p282, %s281, 127
        %s284 = smul.addr %s283, 8
        %s285 = scalar_lea.vmem %s3, %s284
        %s286 = smul.u32 32, %s20
        %s287 = smul.u32 32, %s20
        %p288 = scmp.lt.s32.totalorder %s287, 127
        %s289 = scalar_select %p288, %s287, 127
        %s290 = smul.addr %s289, 8
        %s291 = scalar_lea.vmem %s5, %s290
        %s292 = smul.u32 32, %s20
        %s294 = smul.u32 %s20, 256
        %p295 = scmp.eq.s32.totalorder %s20, 0
        // Predicated region
        $region45: #{forward.4} parent=39 // pred_check
          %p296 = pneg %p295
        $region46: #{forward.4} parent=39 // pred_check_branch
          %298 = sbr.rel (%p296) target = $region48
        $region47: #{forward.4} parent=39 // pred_region
          %v299 = vld [vmem:[%s1] sm:$0xf]
          %v300 = vld [vmem:[%s1 + $0x4] sm:$0xf]
          %v301 = vld [vmem:[%s1 + $0x8] sm:$0xf]
          %v302 = vld [vmem:[%s1 + $0xc] sm:$0xf]
          %v303 = vld [vmem:[%s1 + $0x10] sm:$0xf]
          %v304 = vld [vmem:[%s1 + $0x14] sm:$0xf]
          %v305 = vld [vmem:[%s1 + $0x18] sm:$0xf]
          %v306 = vld [vmem:[%s1 + $0x1c] sm:$0xf]
          %v307 = vld [vmem:[%s1 + $0x20] sm:$0xf]
          %v308 = vld [vmem:[%s1 + $0x24] sm:$0xf]
          %v309 = vld [vmem:[%s1 + $0x28] sm:$0xf]
          %v310 = vld [vmem:[%s1 + $0x2c] sm:$0xf]
          %v311 = vld [vmem:[%s1 + $0x30] sm:$0xf]
          %v312 = vld [vmem:[%s1 + $0x34] sm:$0xf]
          %v313 = vld [vmem:[%s1 + $0x38] sm:$0xf]
          %v314 = vld [vmem:[%s1 + $0x3c] sm:$0xf]
          %v315 = vld [vmem:[%s1 + $0x40] sm:$0xf]
          %v316 = vld [vmem:[%s1 + $0x44] sm:$0xf]
          %v317 = vld [vmem:[%s1 + $0x48] sm:$0xf]
          %v318 = vld [vmem:[%s1 + $0x4c] sm:$0xf]
          %v319 = vld [vmem:[%s1 + $0x50] sm:$0xf]
          %v320 = vld [vmem:[%s1 + $0x54] sm:$0xf]
          %v321 = vld [vmem:[%s1 + $0x58] sm:$0xf]
          %v322 = vld [vmem:[%s1 + $0x5c] sm:$0xf]
          %v323 = vld [vmem:[%s1 + $0x60] sm:$0xf]
          %v324 = vld [vmem:[%s1 + $0x64] sm:$0xf]
          %v325 = vld [vmem:[%s1 + $0x68] sm:$0xf]
          %v326 = vld [vmem:[%s1 + $0x6c] sm:$0xf]
          %v327 = vld [vmem:[%s1 + $0x70] sm:$0xf]
          %v328 = vld [vmem:[%s1 + $0x74] sm:$0xf]
          %v329 = vld [vmem:[%s1 + $0x78] sm:$0xf]
          %v330 = vld [vmem:[%s1 + $0x7c] sm:$0xf]
          %v331 = vld [vmem:[%s1 + $0x80] sm:$0xf]
          %v332 = vld [vmem:[%s1 + $0x84] sm:$0xf]
          %v333 = vld [vmem:[%s1 + $0x88] sm:$0xf]
          %v334 = vld [vmem:[%s1 + $0x8c] sm:$0xf]
          %v335 = vld [vmem:[%s1 + $0x90] sm:$0xf]
          %v336 = vld [vmem:[%s1 + $0x94] sm:$0xf]
          %v337 = vld [vmem:[%s1 + $0x98] sm:$0xf]
          %v338 = vld [vmem:[%s1 + $0x9c] sm:$0xf]
          %v339 = vld [vmem:[%s1 + $0xa0] sm:$0xf]
          %v340 = vld [vmem:[%s1 + $0xa4] sm:$0xf]
          %v341 = vld [vmem:[%s1 + $0xa8] sm:$0xf]
          %v342 = vld [vmem:[%s1 + $0xac] sm:$0xf]
          %v343 = vld [vmem:[%s1 + $0xb0] sm:$0xf]
          %v344 = vld [vmem:[%s1 + $0xb4] sm:$0xf]
          %v345 = vld [vmem:[%s1 + $0xb8] sm:$0xf]
          %v346 = vld [vmem:[%s1 + $0xbc] sm:$0xf]
          %v347 = vld [vmem:[%s1 + $0xc0] sm:$0xf]
          %v348 = vld [vmem:[%s1 + $0xc4] sm:$0xf]
          %v349 = vld [vmem:[%s1 + $0xc8] sm:$0xf]
          %v350 = vld [vmem:[%s1 + $0xcc] sm:$0xf]
          %v351 = vld [vmem:[%s1 + $0xd0] sm:$0xf]
          %v352 = vld [vmem:[%s1 + $0xd4] sm:$0xf]
          %v353 = vld [vmem:[%s1 + $0xd8] sm:$0xf]
          %v354 = vld [vmem:[%s1 + $0xdc] sm:$0xf]
          %v355 = vld [vmem:[%s1 + $0xe0] sm:$0xf]
          %v356 = vld [vmem:[%s1 + $0xe4] sm:$0xf]
          %v357 = vld [vmem:[%s1 + $0xe8] sm:$0xf]
          %v358 = vld [vmem:[%s1 + $0xec] sm:$0xf]
          %v359 = vld [vmem:[%s1 + $0xf0] sm:$0xf]
          %v360 = vld [vmem:[%s1 + $0xf4] sm:$0xf]
          %v361 = vld [vmem:[%s1 + $0xf8] sm:$0xf]
          %v362 = vld [vmem:[%s1 + $0xfc] sm:$0xf]
          %v363 = vld [vmem:[%s1 + $0x100] sm:$0xf]
          %v364 = vld [vmem:[%s1 + $0x104] sm:$0xf]
          %v365 = vld [vmem:[%s1 + $0x108] sm:$0xf]
          %v366 = vld [vmem:[%s1 + $0x10c] sm:$0xf]
          %v367 = vld [vmem:[%s1 + $0x110] sm:$0xf]
          %v368 = vld [vmem:[%s1 + $0x114] sm:$0xf]
          %v369 = vld [vmem:[%s1 + $0x118] sm:$0xf]
          %v370 = vld [vmem:[%s1 + $0x11c] sm:$0xf]
          %v371 = vld [vmem:[%s1 + $0x120] sm:$0xf]
          %v372 = vld [vmem:[%s1 + $0x124] sm:$0xf]
          %v373 = vld [vmem:[%s1 + $0x128] sm:$0xf]
          %v374 = vld [vmem:[%s1 + $0x12c] sm:$0xf]
          %v375 = vld [vmem:[%s1 + $0x130] sm:$0xf]
          %v376 = vld [vmem:[%s1 + $0x134] sm:$0xf]
          %v377 = vld [vmem:[%s1 + $0x138] sm:$0xf]
          %v378 = vld [vmem:[%s1 + $0x13c] sm:$0xf]
          %v379 = vld [vmem:[%s1 + $0x140] sm:$0xf]
          %v380 = vld [vmem:[%s1 + $0x144] sm:$0xf]
          %v381 = vld [vmem:[%s1 + $0x148] sm:$0xf]
          %v382 = vld [vmem:[%s1 + $0x14c] sm:$0xf]
          %v383 = vld [vmem:[%s1 + $0x150] sm:$0xf]
          %v384 = vld [vmem:[%s1 + $0x154] sm:$0xf]
          %v385 = vld [vmem:[%s1 + $0x158] sm:$0xf]
          %v386 = vld [vmem:[%s1 + $0x15c] sm:$0xf]
          %v387 = vld [vmem:[%s1 + $0x160] sm:$0xf]
          %v388 = vld [vmem:[%s1 + $0x164] sm:$0xf]
          %v389 = vld [vmem:[%s1 + $0x168] sm:$0xf]
          %v390 = vld [vmem:[%s1 + $0x16c] sm:$0xf]
          %v391 = vld [vmem:[%s1 + $0x170] sm:$0xf]
          %v392 = vld [vmem:[%s1 + $0x174] sm:$0xf]
          %v393 = vld [vmem:[%s1 + $0x178] sm:$0xf]
          %v394 = vld [vmem:[%s1 + $0x17c] sm:$0xf]
          %v395 = vld [vmem:[%s1 + $0x180] sm:$0xf]
          %v396 = vld [vmem:[%s1 + $0x184] sm:$0xf]
          %v397 = vld [vmem:[%s1 + $0x188] sm:$0xf]
          %v398 = vld [vmem:[%s1 + $0x18c] sm:$0xf]
          %v399 = vld [vmem:[%s1 + $0x190] sm:$0xf]
          %v400 = vld [vmem:[%s1 + $0x194] sm:$0xf]
          %v401 = vld [vmem:[%s1 + $0x198] sm:$0xf]
          %v402 = vld [vmem:[%s1 + $0x19c] sm:$0xf]
          %v403 = vld [vmem:[%s1 + $0x1a0] sm:$0xf]
          %v404 = vld [vmem:[%s1 + $0x1a4] sm:$0xf]
          %v405 = vld [vmem:[%s1 + $0x1a8] sm:$0xf]
          %v406 = vld [vmem:[%s1 + $0x1ac] sm:$0xf]
          %v407 = vld [vmem:[%s1 + $0x1b0] sm:$0xf]
          %v408 = vld [vmem:[%s1 + $0x1b4] sm:$0xf]
          %v409 = vld [vmem:[%s1 + $0x1b8] sm:$0xf]
          %v410 = vld [vmem:[%s1 + $0x1bc] sm:$0xf]
          %v411 = vld [vmem:[%s1 + $0x1c0] sm:$0xf]
          %v412 = vld [vmem:[%s1 + $0x1c4] sm:$0xf]
          %v413 = vld [vmem:[%s1 + $0x1c8] sm:$0xf]
          %v414 = vld [vmem:[%s1 + $0x1cc] sm:$0xf]
          %v415 = vld [vmem:[%s1 + $0x1d0] sm:$0xf]
          %v416 = vld [vmem:[%s1 + $0x1d4] sm:$0xf]
          %v417 = vld [vmem:[%s1 + $0x1d8] sm:$0xf]
          %v418 = vld [vmem:[%s1 + $0x1dc] sm:$0xf]
          %v419 = vld [vmem:[%s1 + $0x1e0] sm:$0xf]
          %v420 = vld [vmem:[%s1 + $0x1e4] sm:$0xf]
          %v421 = vld [vmem:[%s1 + $0x1e8] sm:$0xf]
          %v422 = vld [vmem:[%s1 + $0x1ec] sm:$0xf]
          %v423 = vld [vmem:[%s1 + $0x1f0] sm:$0xf]
          %v424 = vld [vmem:[%s1 + $0x1f4] sm:$0xf]
          %v425 = vld [vmem:[%s1 + $0x1f8] sm:$0xf]
          %v426 = vld [vmem:[%s1 + $0x1fc] sm:$0xf]
          %vm427 = vcmask 257024
          %428 = vst.msk [vmem:[#allocation2] sm:$0xf] %vm427, %v299
          %429 = vst.msk [vmem:[#allocation2 + $0x4] sm:$0xf] %vm427, %v300
          %430 = vst.msk [vmem:[#allocation2 + $0x8] sm:$0xf] %vm427, %v301
          %431 = vst.msk [vmem:[#allocation2 + $0xc] sm:$0xf] %vm427, %v302
          %432 = vst.msk [vmem:[#allocation2 + $0x10] sm:$0xf] %vm427, %v303
          %433 = vst.msk [vmem:[#allocation2 + $0x14] sm:$0xf] %vm427, %v304
          %434 = vst.msk [vmem:[#allocation2 + $0x18] sm:$0xf] %vm427, %v305
          %435 = vst.msk [vmem:[#allocation2 + $0x1c] sm:$0xf] %vm427, %v306
          %436 = vst.msk [vmem:[#allocation2 + $0x20] sm:$0xf] %vm427, %v307
          %437 = vst.msk [vmem:[#allocation2 + $0x24] sm:$0xf] %vm427, %v308
          %438 = vst.msk [vmem:[#allocation2 + $0x28] sm:$0xf] %vm427, %v309
          %439 = vst.msk [vmem:[#allocation2 + $0x2c] sm:$0xf] %vm427, %v310
          %440 = vst.msk [vmem:[#allocation2 + $0x30] sm:$0xf] %vm427, %v311
          %441 = vst.msk [vmem:[#allocation2 + $0x34] sm:$0xf] %vm427, %v312
          %442 = vst.msk [vmem:[#allocation2 + $0x38] sm:$0xf] %vm427, %v313
          %443 = vst.msk [vmem:[#allocation2 + $0x3c] sm:$0xf] %vm427, %v314
          %444 = vst.msk [vmem:[#allocation2 + $0x40] sm:$0xf] %vm427, %v315
          %445 = vst.msk [vmem:[#allocation2 + $0x44] sm:$0xf] %vm427, %v316
          %446 = vst.msk [vmem:[#allocation2 + $0x48] sm:$0xf] %vm427, %v317
          %447 = vst.msk [vmem:[#allocation2 + $0x4c] sm:$0xf] %vm427, %v318
          %448 = vst.msk [vmem:[#allocation2 + $0x50] sm:$0xf] %vm427, %v319
          %449 = vst.msk [vmem:[#allocation2 + $0x54] sm:$0xf] %vm427, %v320
          %450 = vst.msk [vmem:[#allocation2 + $0x58] sm:$0xf] %vm427, %v321
          %451 = vst.msk [vmem:[#allocation2 + $0x5c] sm:$0xf] %vm427, %v322
          %452 = vst.msk [vmem:[#allocation2 + $0x60] sm:$0xf] %vm427, %v323
          %453 = vst.msk [vmem:[#allocation2 + $0x64] sm:$0xf] %vm427, %v324
          %454 = vst.msk [vmem:[#allocation2 + $0x68] sm:$0xf] %vm427, %v325
          %455 = vst.msk [vmem:[#allocation2 + $0x6c] sm:$0xf] %vm427, %v326
          %456 = vst.msk [vmem:[#allocation2 + $0x70] sm:$0xf] %vm427, %v327
          %457 = vst.msk [vmem:[#allocation2 + $0x74] sm:$0xf] %vm427, %v328
          %458 = vst.msk [vmem:[#allocation2 + $0x78] sm:$0xf] %vm427, %v329
          %459 = vst.msk [vmem:[#allocation2 + $0x7c] sm:$0xf] %vm427, %v330
          %460 = vst.msk [vmem:[#allocation2 + $0x80] sm:$0xf] %vm427, %v331
          %461 = vst.msk [vmem:[#allocation2 + $0x84] sm:$0xf] %vm427, %v332
          %462 = vst.msk [vmem:[#allocation2 + $0x88] sm:$0xf] %vm427, %v333
          %463 = vst.msk [vmem:[#allocation2 + $0x8c] sm:$0xf] %vm427, %v334
          %464 = vst.msk [vmem:[#allocation2 + $0x90] sm:$0xf] %vm427, %v335
          %465 = vst.msk [vmem:[#allocation2 + $0x94] sm:$0xf] %vm427, %v336
          %466 = vst.msk [vmem:[#allocation2 + $0x98] sm:$0xf] %vm427, %v337
          %467 = vst.msk [vmem:[#allocation2 + $0x9c] sm:$0xf] %vm427, %v338
          %468 = vst.msk [vmem:[#allocation2 + $0xa0] sm:$0xf] %vm427, %v339
          %469 = vst.msk [vmem:[#allocation2 + $0xa4] sm:$0xf] %vm427, %v340
          %470 = vst.msk [vmem:[#allocation2 + $0xa8] sm:$0xf] %vm427, %v341
          %471 = vst.msk [vmem:[#allocation2 + $0xac] sm:$0xf] %vm427, %v342
          %472 = vst.msk [vmem:[#allocation2 + $0xb0] sm:$0xf] %vm427, %v343
          %473 = vst.msk [vmem:[#allocation2 + $0xb4] sm:$0xf] %vm427, %v344
          %474 = vst.msk [vmem:[#allocation2 + $0xb8] sm:$0xf] %vm427, %v345
          %475 = vst.msk [vmem:[#allocation2 + $0xbc] sm:$0xf] %vm427, %v346
          %476 = vst.msk [vmem:[#allocation2 + $0xc0] sm:$0xf] %vm427, %v347
          %477 = vst.msk [vmem:[#allocation2 + $0xc4] sm:$0xf] %vm427, %v348
          %478 = vst.msk [vmem:[#allocation2 + $0xc8] sm:$0xf] %vm427, %v349
          %479 = vst.msk [vmem:[#allocation2 + $0xcc] sm:$0xf] %vm427, %v350
          %480 = vst.msk [vmem:[#allocation2 + $0xd0] sm:$0xf] %vm427, %v351
          %481 = vst.msk [vmem:[#allocation2 + $0xd4] sm:$0xf] %vm427, %v352
          %482 = vst.msk [vmem:[#allocation2 + $0xd8] sm:$0xf] %vm427, %v353
          %483 = vst.msk [vmem:[#allocation2 + $0xdc] sm:$0xf] %vm427, %v354
          %484 = vst.msk [vmem:[#allocation2 + $0xe0] sm:$0xf] %vm427, %v355
          %485 = vst.msk [vmem:[#allocation2 + $0xe4] sm:$0xf] %vm427, %v356
          %486 = vst.msk [vmem:[#allocation2 + $0xe8] sm:$0xf] %vm427, %v357
          %487 = vst.msk [vmem:[#allocation2 + $0xec] sm:$0xf] %vm427, %v358
          %488 = vst.msk [vmem:[#allocation2 + $0xf0] sm:$0xf] %vm427, %v359
          %489 = vst.msk [vmem:[#allocation2 + $0xf4] sm:$0xf] %vm427, %v360
          %490 = vst.msk [vmem:[#allocation2 + $0xf8] sm:$0xf] %vm427, %v361
          %491 = vst.msk [vmem:[#allocation2 + $0xfc] sm:$0xf] %vm427, %v362
          %492 = vst.msk [vmem:[#allocation2 + $0x100] sm:$0xf] %vm427, %v363
          %493 = vst.msk [vmem:[#allocation2 + $0x104] sm:$0xf] %vm427, %v364
          %494 = vst.msk [vmem:[#allocation2 + $0x108] sm:$0xf] %vm427, %v365
          %495 = vst.msk [vmem:[#allocation2 + $0x10c] sm:$0xf] %vm427, %v366
          %496 = vst.msk [vmem:[#allocation2 + $0x110] sm:$0xf] %vm427, %v367
          %497 = vst.msk [vmem:[#allocation2 + $0x114] sm:$0xf] %vm427, %v368
          %498 = vst.msk [vmem:[#allocation2 + $0x118] sm:$0xf] %vm427, %v369
          %499 = vst.msk [vmem:[#allocation2 + $0x11c] sm:$0xf] %vm427, %v370
          %500 = vst.msk [vmem:[#allocation2 + $0x120] sm:$0xf] %vm427, %v371
          %501 = vst.msk [vmem:[#allocation2 + $0x124] sm:$0xf] %vm427, %v372
          %502 = vst.msk [vmem:[#allocation2 + $0x128] sm:$0xf] %vm427, %v373
          %503 = vst.msk [vmem:[#allocation2 + $0x12c] sm:$0xf] %vm427, %v374
          %504 = vst.msk [vmem:[#allocation2 + $0x130] sm:$0xf] %vm427, %v375
          %505 = vst.msk [vmem:[#allocation2 + $0x134] sm:$0xf] %vm427, %v376
          %506 = vst.msk [vmem:[#allocation2 + $0x138] sm:$0xf] %vm427, %v377
          %507 = vst.msk [vmem:[#allocation2 + $0x13c] sm:$0xf] %vm427, %v378
          %508 = vst.msk [vmem:[#allocation2 + $0x140] sm:$0xf] %vm427, %v379
          %509 = vst.msk [vmem:[#allocation2 + $0x144] sm:$0xf] %vm427, %v380
          %510 = vst.msk [vmem:[#allocation2 + $0x148] sm:$0xf] %vm427, %v381
          %511 = vst.msk [vmem:[#allocation2 + $0x14c] sm:$0xf] %vm427, %v382
          %512 = vst.msk [vmem:[#allocation2 + $0x150] sm:$0xf] %vm427, %v383
          %513 = vst.msk [vmem:[#allocation2 + $0x154] sm:$0xf] %vm427, %v384
          %514 = vst.msk [vmem:[#allocation2 + $0x158] sm:$0xf] %vm427, %v385
          %515 = vst.msk [vmem:[#allocation2 + $0x15c] sm:$0xf] %vm427, %v386
          %516 = vst.msk [vmem:[#allocation2 + $0x160] sm:$0xf] %vm427, %v387
          %517 = vst.msk [vmem:[#allocation2 + $0x164] sm:$0xf] %vm427, %v388
          %518 = vst.msk [vmem:[#allocation2 + $0x168] sm:$0xf] %vm427, %v389
          %519 = vst.msk [vmem:[#allocation2 + $0x16c] sm:$0xf] %vm427, %v390
          %520 = vst.msk [vmem:[#allocation2 + $0x170] sm:$0xf] %vm427, %v391
          %521 = vst.msk [vmem:[#allocation2 + $0x174] sm:$0xf] %vm427, %v392
          %522 = vst.msk [vmem:[#allocation2 + $0x178] sm:$0xf] %vm427, %v393
          %523 = vst.msk [vmem:[#allocation2 + $0x17c] sm:$0xf] %vm427, %v394
          %524 = vst.msk [vmem:[#allocation2 + $0x180] sm:$0xf] %vm427, %v395
          %525 = vst.msk [vmem:[#allocation2 + $0x184] sm:$0xf] %vm427, %v396
          %526 = vst.msk [vmem:[#allocation2 + $0x188] sm:$0xf] %vm427, %v397
          %527 = vst.msk [vmem:[#allocation2 + $0x18c] sm:$0xf] %vm427, %v398
          %528 = vst.msk [vmem:[#allocation2 + $0x190] sm:$0xf] %vm427, %v399
          %529 = vst.msk [vmem:[#allocation2 + $0x194] sm:$0xf] %vm427, %v400
          %530 = vst.msk [vmem:[#allocation2 + $0x198] sm:$0xf] %vm427, %v401
          %531 = vst.msk [vmem:[#allocation2 + $0x19c] sm:$0xf] %vm427, %v402
          %532 = vst.msk [vmem:[#allocation2 + $0x1a0] sm:$0xf] %vm427, %v403
          %533 = vst.msk [vmem:[#allocation2 + $0x1a4] sm:$0xf] %vm427, %v404
          %534 = vst.msk [vmem:[#allocation2 + $0x1a8] sm:$0xf] %vm427, %v405
          %535 = vst.msk [vmem:[#allocation2 + $0x1ac] sm:$0xf] %vm427, %v406
          %536 = vst.msk [vmem:[#allocation2 + $0x1b0] sm:$0xf] %vm427, %v407
          %537 = vst.msk [vmem:[#allocation2 + $0x1b4] sm:$0xf] %vm427, %v408
          %538 = vst.msk [vmem:[#allocation2 + $0x1b8] sm:$0xf] %vm427, %v409
          %539 = vst.msk [vmem:[#allocation2 + $0x1bc] sm:$0xf] %vm427, %v410
          %540 = vst.msk [vmem:[#allocation2 + $0x1c0] sm:$0xf] %vm427, %v411
          %541 = vst.msk [vmem:[#allocation2 + $0x1c4] sm:$0xf] %vm427, %v412
          %542 = vst.msk [vmem:[#allocation2 + $0x1c8] sm:$0xf] %vm427, %v413
          %543 = vst.msk [vmem:[#allocation2 + $0x1cc] sm:$0xf] %vm427, %v414
          %544 = vst.msk [vmem:[#allocation2 + $0x1d0] sm:$0xf] %vm427, %v415
          %545 = vst.msk [vmem:[#allocation2 + $0x1d4] sm:$0xf] %vm427, %v416
          %546 = vst.msk [vmem:[#allocation2 + $0x1d8] sm:$0xf] %vm427, %v417
          %547 = vst.msk [vmem:[#allocation2 + $0x1dc] sm:$0xf] %vm427, %v418
          %548 = vst.msk [vmem:[#allocation2 + $0x1e0] sm:$0xf] %vm427, %v419
          %549 = vst.msk [vmem:[#allocation2 + $0x1e4] sm:$0xf] %vm427, %v420
          %550 = vst.msk [vmem:[#allocation2 + $0x1e8] sm:$0xf] %vm427, %v421
          %551 = vst.msk [vmem:[#allocation2 + $0x1ec] sm:$0xf] %vm427, %v422
          %552 = vst.msk [vmem:[#allocation2 + $0x1f0] sm:$0xf] %vm427, %v423
          %553 = vst.msk [vmem:[#allocation2 + $0x1f4] sm:$0xf] %vm427, %v424
          %554 = vst.msk [vmem:[#allocation2 + $0x1f8] sm:$0xf] %vm427, %v425
          %555 = vst.msk [vmem:[#allocation2 + $0x1fc] sm:$0xf] %vm427, %v426
          %vm556 = vcmask 519424
          %557 = vst.msk [vmem:[#allocation2] sm:$0xf] %vm556, 0
          %558 = vst.msk [vmem:[#allocation2 + $0x4] sm:$0xf] %vm556, 0
          %559 = vst.msk [vmem:[#allocation2 + $0x8] sm:$0xf] %vm556, 0
          %560 = vst.msk [vmem:[#allocation2 + $0xc] sm:$0xf] %vm556, 0
          %561 = vst.msk [vmem:[#allocation2 + $0x10] sm:$0xf] %vm556, 0
          %562 = vst.msk [vmem:[#allocation2 + $0x14] sm:$0xf] %vm556, 0
          %563 = vst.msk [vmem:[#allocation2 + $0x18] sm:$0xf] %vm556, 0
          %564 = vst.msk [vmem:[#allocation2 + $0x1c] sm:$0xf] %vm556, 0
          %565 = vst.msk [vmem:[#allocation2 + $0x20] sm:$0xf] %vm556, 0
          %566 = vst.msk [vmem:[#allocation2 + $0x24] sm:$0xf] %vm556, 0
          %567 = vst.msk [vmem:[#allocation2 + $0x28] sm:$0xf] %vm556, 0
          %568 = vst.msk [vmem:[#allocation2 + $0x2c] sm:$0xf] %vm556, 0
          %569 = vst.msk [vmem:[#allocation2 + $0x30] sm:$0xf] %vm556, 0
          %570 = vst.msk [vmem:[#allocation2 + $0x34] sm:$0xf] %vm556, 0
          %571 = vst.msk [vmem:[#allocation2 + $0x38] sm:$0xf] %vm556, 0
          %572 = vst.msk [vmem:[#allocation2 + $0x3c] sm:$0xf] %vm556, 0
          %573 = vst.msk [vmem:[#allocation2 + $0x40] sm:$0xf] %vm556, 0
          %574 = vst.msk [vmem:[#allocation2 + $0x44] sm:$0xf] %vm556, 0
          %575 = vst.msk [vmem:[#allocation2 + $0x48] sm:$0xf] %vm556, 0
          %576 = vst.msk [vmem:[#allocation2 + $0x4c] sm:$0xf] %vm556, 0
          %577 = vst.msk [vmem:[#allocation2 + $0x50] sm:$0xf] %vm556, 0
          %578 = vst.msk [vmem:[#allocation2 + $0x54] sm:$0xf] %vm556, 0
          %579 = vst.msk [vmem:[#allocation2 + $0x58] sm:$0xf] %vm556, 0
          %580 = vst.msk [vmem:[#allocation2 + $0x5c] sm:$0xf] %vm556, 0
          %581 = vst.msk [vmem:[#allocation2 + $0x60] sm:$0xf] %vm556, 0
          %582 = vst.msk [vmem:[#allocation2 + $0x64] sm:$0xf] %vm556, 0
          %583 = vst.msk [vmem:[#allocation2 + $0x68] sm:$0xf] %vm556, 0
          %584 = vst.msk [vmem:[#allocation2 + $0x6c] sm:$0xf] %vm556, 0
          %585 = vst.msk [vmem:[#allocation2 + $0x70] sm:$0xf] %vm556, 0
          %586 = vst.msk [vmem:[#allocation2 + $0x74] sm:$0xf] %vm556, 0
          %587 = vst.msk [vmem:[#allocation2 + $0x78] sm:$0xf] %vm556, 0
          %588 = vst.msk [vmem:[#allocation2 + $0x7c] sm:$0xf] %vm556, 0
          %589 = vst.msk [vmem:[#allocation2 + $0x80] sm:$0xf] %vm556, 0
          %590 = vst.msk [vmem:[#allocation2 + $0x84] sm:$0xf] %vm556, 0
          %591 = vst.msk [vmem:[#allocation2 + $0x88] sm:$0xf] %vm556, 0
          %592 = vst.msk [vmem:[#allocation2 + $0x8c] sm:$0xf] %vm556, 0
          %593 = vst.msk [vmem:[#allocation2 + $0x90] sm:$0xf] %vm556, 0
          %594 = vst.msk [vmem:[#allocation2 + $0x94] sm:$0xf] %vm556, 0
          %595 = vst.msk [vmem:[#allocation2 + $0x98] sm:$0xf] %vm556, 0
          %596 = vst.msk [vmem:[#allocation2 + $0x9c] sm:$0xf] %vm556, 0
          %597 = vst.msk [vmem:[#allocation2 + $0xa0] sm:$0xf] %vm556, 0
          %598 = vst.msk [vmem:[#allocation2 + $0xa4] sm:$0xf] %vm556, 0
          %599 = vst.msk [vmem:[#allocation2 + $0xa8] sm:$0xf] %vm556, 0
          %600 = vst.msk [vmem:[#allocation2 + $0xac] sm:$0xf] %vm556, 0
          %601 = vst.msk [vmem:[#allocation2 + $0xb0] sm:$0xf] %vm556, 0
          %602 = vst.msk [vmem:[#allocation2 + $0xb4] sm:$0xf] %vm556, 0
          %603 = vst.msk [vmem:[#allocation2 + $0xb8] sm:$0xf] %vm556, 0
          %604 = vst.msk [vmem:[#allocation2 + $0xbc] sm:$0xf] %vm556, 0
          %605 = vst.msk [vmem:[#allocation2 + $0xc0] sm:$0xf] %vm556, 0
          %606 = vst.msk [vmem:[#allocation2 + $0xc4] sm:$0xf] %vm556, 0
          %607 = vst.msk [vmem:[#allocation2 + $0xc8] sm:$0xf] %vm556, 0
          %608 = vst.msk [vmem:[#allocation2 + $0xcc] sm:$0xf] %vm556, 0
          %609 = vst.msk [vmem:[#allocation2 + $0xd0] sm:$0xf] %vm556, 0
          %610 = vst.msk [vmem:[#allocation2 + $0xd4] sm:$0xf] %vm556, 0
          %611 = vst.msk [vmem:[#allocation2 + $0xd8] sm:$0xf] %vm556, 0
          %612 = vst.msk [vmem:[#allocation2 + $0xdc] sm:$0xf] %vm556, 0
          %613 = vst.msk [vmem:[#allocation2 + $0xe0] sm:$0xf] %vm556, 0
          %614 = vst.msk [vmem:[#allocation2 + $0xe4] sm:$0xf] %vm556, 0
          %615 = vst.msk [vmem:[#allocation2 + $0xe8] sm:$0xf] %vm556, 0
          %616 = vst.msk [vmem:[#allocation2 + $0xec] sm:$0xf] %vm556, 0
          %617 = vst.msk [vmem:[#allocation2 + $0xf0] sm:$0xf] %vm556, 0
          %618 = vst.msk [vmem:[#allocation2 + $0xf4] sm:$0xf] %vm556, 0
          %619 = vst.msk [vmem:[#allocation2 + $0xf8] sm:$0xf] %vm556, 0
          %620 = vst.msk [vmem:[#allocation2 + $0xfc] sm:$0xf] %vm556, 0
          %621 = vst.msk [vmem:[#allocation2 + $0x100] sm:$0xf] %vm556, 0
          %622 = vst.msk [vmem:[#allocation2 + $0x104] sm:$0xf] %vm556, 0
          %623 = vst.msk [vmem:[#allocation2 + $0x108] sm:$0xf] %vm556, 0
          %624 = vst.msk [vmem:[#allocation2 + $0x10c] sm:$0xf] %vm556, 0
          %625 = vst.msk [vmem:[#allocation2 + $0x110] sm:$0xf] %vm556, 0
          %626 = vst.msk [vmem:[#allocation2 + $0x114] sm:$0xf] %vm556, 0
          %627 = vst.msk [vmem:[#allocation2 + $0x118] sm:$0xf] %vm556, 0
          %628 = vst.msk [vmem:[#allocation2 + $0x11c] sm:$0xf] %vm556, 0
          %629 = vst.msk [vmem:[#allocation2 + $0x120] sm:$0xf] %vm556, 0
          %630 = vst.msk [vmem:[#allocation2 + $0x124] sm:$0xf] %vm556, 0
          %631 = vst.msk [vmem:[#allocation2 + $0x128] sm:$0xf] %vm556, 0
          %632 = vst.msk [vmem:[#allocation2 + $0x12c] sm:$0xf] %vm556, 0
          %633 = vst.msk [vmem:[#allocation2 + $0x130] sm:$0xf] %vm556, 0
          %634 = vst.msk [vmem:[#allocation2 + $0x134] sm:$0xf] %vm556, 0
          %635 = vst.msk [vmem:[#allocation2 + $0x138] sm:$0xf] %vm556, 0
          %636 = vst.msk [vmem:[#allocation2 + $0x13c] sm:$0xf] %vm556, 0
          %637 = vst.msk [vmem:[#allocation2 + $0x140] sm:$0xf] %vm556, 0
          %638 = vst.msk [vmem:[#allocation2 + $0x144] sm:$0xf] %vm556, 0
          %639 = vst.msk [vmem:[#allocation2 + $0x148] sm:$0xf] %vm556, 0
          %640 = vst.msk [vmem:[#allocation2 + $0x14c] sm:$0xf] %vm556, 0
          %641 = vst.msk [vmem:[#allocation2 + $0x150] sm:$0xf] %vm556, 0
          %642 = vst.msk [vmem:[#allocation2 + $0x154] sm:$0xf] %vm556, 0
          %643 = vst.msk [vmem:[#allocation2 + $0x158] sm:$0xf] %vm556, 0
          %644 = vst.msk [vmem:[#allocation2 + $0x15c] sm:$0xf] %vm556, 0
          %645 = vst.msk [vmem:[#allocation2 + $0x160] sm:$0xf] %vm556, 0
          %646 = vst.msk [vmem:[#allocation2 + $0x164] sm:$0xf] %vm556, 0
          %647 = vst.msk [vmem:[#allocation2 + $0x168] sm:$0xf] %vm556, 0
          %648 = vst.msk [vmem:[#allocation2 + $0x16c] sm:$0xf] %vm556, 0
          %649 = vst.msk [vmem:[#allocation2 + $0x170] sm:$0xf] %vm556, 0
          %650 = vst.msk [vmem:[#allocation2 + $0x174] sm:$0xf] %vm556, 0
          %651 = vst.msk [vmem:[#allocation2 + $0x178] sm:$0xf] %vm556, 0
          %652 = vst.msk [vmem:[#allocation2 + $0x17c] sm:$0xf] %vm556, 0
          %653 = vst.msk [vmem:[#allocation2 + $0x180] sm:$0xf] %vm556, 0
          %654 = vst.msk [vmem:[#allocation2 + $0x184] sm:$0xf] %vm556, 0
          %655 = vst.msk [vmem:[#allocation2 + $0x188] sm:$0xf] %vm556, 0
          %656 = vst.msk [vmem:[#allocation2 + $0x18c] sm:$0xf] %vm556, 0
          %657 = vst.msk [vmem:[#allocation2 + $0x190] sm:$0xf] %vm556, 0
          %658 = vst.msk [vmem:[#allocation2 + $0x194] sm:$0xf] %vm556, 0
          %659 = vst.msk [vmem:[#allocation2 + $0x198] sm:$0xf] %vm556, 0
          %660 = vst.msk [vmem:[#allocation2 + $0x19c] sm:$0xf] %vm556, 0
          %661 = vst.msk [vmem:[#allocation2 + $0x1a0] sm:$0xf] %vm556, 0
          %662 = vst.msk [vmem:[#allocation2 + $0x1a4] sm:$0xf] %vm556, 0
          %663 = vst.msk [vmem:[#allocation2 + $0x1a8] sm:$0xf] %vm556, 0
          %664 = vst.msk [vmem:[#allocation2 + $0x1ac] sm:$0xf] %vm556, 0
          %665 = vst.msk [vmem:[#allocation2 + $0x1b0] sm:$0xf] %vm556, 0
          %666 = vst.msk [vmem:[#allocation2 + $0x1b4] sm:$0xf] %vm556, 0
          %667 = vst.msk [vmem:[#allocation2 + $0x1b8] sm:$0xf] %vm556, 0
          %668 = vst.msk [vmem:[#allocation2 + $0x1bc] sm:$0xf] %vm556, 0
          %669 = vst.msk [vmem:[#allocation2 + $0x1c0] sm:$0xf] %vm556, 0
          %670 = vst.msk [vmem:[#allocation2 + $0x1c4] sm:$0xf] %vm556, 0
          %671 = vst.msk [vmem:[#allocation2 + $0x1c8] sm:$0xf] %vm556, 0
          %672 = vst.msk [vmem:[#allocation2 + $0x1cc] sm:$0xf] %vm556, 0
          %673 = vst.msk [vmem:[#allocation2 + $0x1d0] sm:$0xf] %vm556, 0
          %674 = vst.msk [vmem:[#allocation2 + $0x1d4] sm:$0xf] %vm556, 0
          %675 = vst.msk [vmem:[#allocation2 + $0x1d8] sm:$0xf] %vm556, 0
          %676 = vst.msk [vmem:[#allocation2 + $0x1dc] sm:$0xf] %vm556, 0
          %677 = vst.msk [vmem:[#allocation2 + $0x1e0] sm:$0xf] %vm556, 0
          %678 = vst.msk [vmem:[#allocation2 + $0x1e4] sm:$0xf] %vm556, 0
          %679 = vst.msk [vmem:[#allocation2 + $0x1e8] sm:$0xf] %vm556, 0
          %680 = vst.msk [vmem:[#allocation2 + $0x1ec] sm:$0xf] %vm556, 0
          %681 = vst.msk [vmem:[#allocation2 + $0x1f0] sm:$0xf] %vm556, 0
          %682 = vst.msk [vmem:[#allocation2 + $0x1f4] sm:$0xf] %vm556, 0
          %683 = vst.msk [vmem:[#allocation2 + $0x1f8] sm:$0xf] %vm556, 0
          %684 = vst.msk [vmem:[#allocation2 + $0x1fc] sm:$0xf] %vm556, 0
          %vm685 = vcmask 0
          %686 = vst.msk [vmem:[#allocation6] sm:$0x1] %vm685, 0.0
        $region48: #{forward.4} parent=39 // pred_fallthru
          _
        %v687 = vld [vmem:[%s279] sm:$0xff]
        %v688 = vld [vmem:[%s279 + $0x8] sm:$0xff]
        %v689 = vld [vmem:[%s279 + $0x10] sm:$0xff]
        %v690 = vld [vmem:[%s279 + $0x18] sm:$0xff]
        %v691 = vld [vmem:[%s279 + $0x20] sm:$0xff]
        %v692 = vld [vmem:[%s279 + $0x28] sm:$0xff]
        %v693 = vld [vmem:[%s279 + $0x30] sm:$0xff]
        %v694 = vld [vmem:[%s279 + $0x38] sm:$0xff]
        %v695 = vld [vmem:[%s279 + $0x40] sm:$0xff]
        %v696 = vld [vmem:[%s279 + $0x48] sm:$0xff]
        %v697 = vld [vmem:[%s279 + $0x50] sm:$0xff]
        %v698 = vld [vmem:[%s279 + $0x58] sm:$0xff]
        %v699 = vld [vmem:[%s279 + $0x60] sm:$0xff]
        %v700 = vld [vmem:[%s279 + $0x68] sm:$0xff]
        %v701 = vld [vmem:[%s279 + $0x70] sm:$0xff]
        %v702 = vld [vmem:[%s279 + $0x78] sm:$0xff]
        %v703 = vld [vmem:[%s279 + $0x80] sm:$0xff]
        %v704 = vld [vmem:[%s279 + $0x88] sm:$0xff]
        %v705 = vld [vmem:[%s279 + $0x90] sm:$0xff]
        %v706 = vld [vmem:[%s279 + $0x98] sm:$0xff]
        %v707 = vld [vmem:[%s279 + $0xa0] sm:$0xff]
        %v708 = vld [vmem:[%s279 + $0xa8] sm:$0xff]
        %v709 = vld [vmem:[%s279 + $0xb0] sm:$0xff]
        %v710 = vld [vmem:[%s279 + $0xb8] sm:$0xff]
        %v711 = vld [vmem:[%s279 + $0xc0] sm:$0xff]
        %v712 = vld [vmem:[%s279 + $0xc8] sm:$0xff]
        %v713 = vld [vmem:[%s279 + $0xd0] sm:$0xff]
        %v714 = vld [vmem:[%s279 + $0xd8] sm:$0xff]
        %v715 = vld [vmem:[%s279 + $0xe0] sm:$0xff]
        %v716 = vld [vmem:[%s279 + $0xe8] sm:$0xff]
        %v717 = vld [vmem:[%s279 + $0xf0] sm:$0xff]
        %v718 = vld [vmem:[%s279 + $0xf8] sm:$0xff]
        %v719 = vld [vmem:[%s279 + $0x100] sm:$0xff]
        %v720 = vld [vmem:[%s279 + $0x108] sm:$0xff]
        %v721 = vld [vmem:[%s279 + $0x110] sm:$0xff]
        %v722 = vld [vmem:[%s279 + $0x118] sm:$0xff]
        %v723 = vld [vmem:[%s279 + $0x120] sm:$0xff]
        %v724 = vld [vmem:[%s279 + $0x128] sm:$0xff]
        %v725 = vld [vmem:[%s279 + $0x130] sm:$0xff]
        %v726 = vld [vmem:[%s279 + $0x138] sm:$0xff]
        %v727 = vld [vmem:[%s279 + $0x140] sm:$0xff]
        %v728 = vld [vmem:[%s279 + $0x148] sm:$0xff]
        %v729 = vld [vmem:[%s279 + $0x150] sm:$0xff]
        %v730 = vld [vmem:[%s279 + $0x158] sm:$0xff]
        %v731 = vld [vmem:[%s279 + $0x160] sm:$0xff]
        %v732 = vld [vmem:[%s279 + $0x168] sm:$0xff]
        %v733 = vld [vmem:[%s279 + $0x170] sm:$0xff]
        %v734 = vld [vmem:[%s279 + $0x178] sm:$0xff]
        %v735 = vld [vmem:[%s279 + $0x180] sm:$0xff]
        %v736 = vld [vmem:[%s279 + $0x188] sm:$0xff]
        %v737 = vld [vmem:[%s279 + $0x190] sm:$0xff]
        %v738 = vld [vmem:[%s279 + $0x198] sm:$0xff]
        %v739 = vld [vmem:[%s279 + $0x1a0] sm:$0xff]
        %v740 = vld [vmem:[%s279 + $0x1a8] sm:$0xff]
        %v741 = vld [vmem:[%s279 + $0x1b0] sm:$0xff]
        %v742 = vld [vmem:[%s279 + $0x1b8] sm:$0xff]
        %v743 = vld [vmem:[%s279 + $0x1c0] sm:$0xff]
        %v744 = vld [vmem:[%s279 + $0x1c8] sm:$0xff]
        %v745 = vld [vmem:[%s279 + $0x1d0] sm:$0xff]
        %v746 = vld [vmem:[%s279 + $0x1d8] sm:$0xff]
        %v747 = vld [vmem:[%s279 + $0x1e0] sm:$0xff]
        %v748 = vld [vmem:[%s279 + $0x1e8] sm:$0xff]
        %v749 = vld [vmem:[%s279 + $0x1f0] sm:$0xff]
        %v750 = vld [vmem:[%s279 + $0x1f8] sm:$0xff]
        %v751 = vld [vmem:[%s279 + $0x200] sm:$0xff]
        %v752 = vld [vmem:[%s279 + $0x208] sm:$0xff]
        %v753 = vld [vmem:[%s279 + $0x210] sm:$0xff]
        %v754 = vld [vmem:[%s279 + $0x218] sm:$0xff]
        %v755 = vld [vmem:[%s279 + $0x220] sm:$0xff]
        %v756 = vld [vmem:[%s279 + $0x228] sm:$0xff]
        %v757 = vld [vmem:[%s279 + $0x230] sm:$0xff]
        %v758 = vld [vmem:[%s279 + $0x238] sm:$0xff]
        %v759 = vld [vmem:[%s279 + $0x240] sm:$0xff]
        %v760 = vld [vmem:[%s279 + $0x248] sm:$0xff]
        %v761 = vld [vmem:[%s279 + $0x250] sm:$0xff]
        %v762 = vld [vmem:[%s279 + $0x258] sm:$0xff]
        %v763 = vld [vmem:[%s279 + $0x260] sm:$0xff]
        %v764 = vld [vmem:[%s279 + $0x268] sm:$0xff]
        %v765 = vld [vmem:[%s279 + $0x270] sm:$0xff]
        %v766 = vld [vmem:[%s279 + $0x278] sm:$0xff]
        %v767 = vld [vmem:[%s279 + $0x280] sm:$0xff]
        %v768 = vld [vmem:[%s279 + $0x288] sm:$0xff]
        %v769 = vld [vmem:[%s279 + $0x290] sm:$0xff]
        %v770 = vld [vmem:[%s279 + $0x298] sm:$0xff]
        %v771 = vld [vmem:[%s279 + $0x2a0] sm:$0xff]
        %v772 = vld [vmem:[%s279 + $0x2a8] sm:$0xff]
        %v773 = vld [vmem:[%s279 + $0x2b0] sm:$0xff]
        %v774 = vld [vmem:[%s279 + $0x2b8] sm:$0xff]
        %v775 = vld [vmem:[%s279 + $0x2c0] sm:$0xff]
        %v776 = vld [vmem:[%s279 + $0x2c8] sm:$0xff]
        %v777 = vld [vmem:[%s279 + $0x2d0] sm:$0xff]
        %v778 = vld [vmem:[%s279 + $0x2d8] sm:$0xff]
        %v779 = vld [vmem:[%s279 + $0x2e0] sm:$0xff]
        %v780 = vld [vmem:[%s279 + $0x2e8] sm:$0xff]
        %v781 = vld [vmem:[%s279 + $0x2f0] sm:$0xff]
        %v782 = vld [vmem:[%s279 + $0x2f8] sm:$0xff]
        %v783 = vld [vmem:[%s279 + $0x300] sm:$0xff]
        %v784 = vld [vmem:[%s279 + $0x308] sm:$0xff]
        %v785 = vld [vmem:[%s279 + $0x310] sm:$0xff]
        %v786 = vld [vmem:[%s279 + $0x318] sm:$0xff]
        %v787 = vld [vmem:[%s279 + $0x320] sm:$0xff]
        %v788 = vld [vmem:[%s279 + $0x328] sm:$0xff]
        %v789 = vld [vmem:[%s279 + $0x330] sm:$0xff]
        %v790 = vld [vmem:[%s279 + $0x338] sm:$0xff]
        %v791 = vld [vmem:[%s279 + $0x340] sm:$0xff]
        %v792 = vld [vmem:[%s279 + $0x348] sm:$0xff]
        %v793 = vld [vmem:[%s279 + $0x350] sm:$0xff]
        %v794 = vld [vmem:[%s279 + $0x358] sm:$0xff]
        %v795 = vld [vmem:[%s279 + $0x360] sm:$0xff]
        %v796 = vld [vmem:[%s279 + $0x368] sm:$0xff]
        %v797 = vld [vmem:[%s279 + $0x370] sm:$0xff]
        %v798 = vld [vmem:[%s279 + $0x378] sm:$0xff]
        %v799 = vld [vmem:[%s279 + $0x380] sm:$0xff]
        %v800 = vld [vmem:[%s279 + $0x388] sm:$0xff]
        %v801 = vld [vmem:[%s279 + $0x390] sm:$0xff]
        %v802 = vld [vmem:[%s279 + $0x398] sm:$0xff]
        %v803 = vld [vmem:[%s279 + $0x3a0] sm:$0xff]
        %v804 = vld [vmem:[%s279 + $0x3a8] sm:$0xff]
        %v805 = vld [vmem:[%s279 + $0x3b0] sm:$0xff]
        %v806 = vld [vmem:[%s279 + $0x3b8] sm:$0xff]
        %v807 = vld [vmem:[%s279 + $0x3c0] sm:$0xff]
        %v808 = vld [vmem:[%s279 + $0x3c8] sm:$0xff]
        %v809 = vld [vmem:[%s279 + $0x3d0] sm:$0xff]
        %v810 = vld [vmem:[%s279 + $0x3d8] sm:$0xff]
        %v811 = vld [vmem:[%s279 + $0x3e0] sm:$0xff]
        %v812 = vld [vmem:[%s279 + $0x3e8] sm:$0xff]
        %v813 = vld [vmem:[%s279 + $0x3f0] sm:$0xff]
        %v814 = vld [vmem:[%s279 + $0x3f8] sm:$0xff]
        %v815 = vld [vmem:[#allocation2] sm:$0xf]
        %v816 = vld [vmem:[#allocation2 + $0x4] sm:$0xf]
        %v817 = vld [vmem:[#allocation2 + $0x8] sm:$0xf]
        %v818 = vld [vmem:[#allocation2 + $0xc] sm:$0xf]
        %v819 = vld [vmem:[#allocation2 + $0x10] sm:$0xf]
        %v820 = vld [vmem:[#allocation2 + $0x14] sm:$0xf]
        %v821 = vld [vmem:[#allocation2 + $0x18] sm:$0xf]
        %v822 = vld [vmem:[#allocation2 + $0x1c] sm:$0xf]
        %v823 = vld [vmem:[#allocation2 + $0x20] sm:$0xf]
        %v824 = vld [vmem:[#allocation2 + $0x24] sm:$0xf]
        %v825 = vld [vmem:[#allocation2 + $0x28] sm:$0xf]
        %v826 = vld [vmem:[#allocation2 + $0x2c] sm:$0xf]
        %v827 = vld [vmem:[#allocation2 + $0x30] sm:$0xf]
        %v828 = vld [vmem:[#allocation2 + $0x34] sm:$0xf]
        %v829 = vld [vmem:[#allocation2 + $0x38] sm:$0xf]
        %v830 = vld [vmem:[#allocation2 + $0x3c] sm:$0xf]
        %v831 = vld [vmem:[#allocation2 + $0x40] sm:$0xf]
        %v832 = vld [vmem:[#allocation2 + $0x44] sm:$0xf]
        %v833 = vld [vmem:[#allocation2 + $0x48] sm:$0xf]
        %v834 = vld [vmem:[#allocation2 + $0x4c] sm:$0xf]
        %v835 = vld [vmem:[#allocation2 + $0x50] sm:$0xf]
        %v836 = vld [vmem:[#allocation2 + $0x54] sm:$0xf]
        %v837 = vld [vmem:[#allocation2 + $0x58] sm:$0xf]
        %v838 = vld [vmem:[#allocation2 + $0x5c] sm:$0xf]
        %v839 = vld [vmem:[#allocation2 + $0x60] sm:$0xf]
        %v840 = vld [vmem:[#allocation2 + $0x64] sm:$0xf]
        %v841 = vld [vmem:[#allocation2 + $0x68] sm:$0xf]
        %v842 = vld [vmem:[#allocation2 + $0x6c] sm:$0xf]
        %v843 = vld [vmem:[#allocation2 + $0x70] sm:$0xf]
        %v844 = vld [vmem:[#allocation2 + $0x74] sm:$0xf]
        %v845 = vld [vmem:[#allocation2 + $0x78] sm:$0xf]
        %v846 = vld [vmem:[#allocation2 + $0x7c] sm:$0xf]
        %v847 = vld [vmem:[#allocation2 + $0x80] sm:$0xf]
        %v848 = vld [vmem:[#allocation2 + $0x84] sm:$0xf]
        %v849 = vld [vmem:[#allocation2 + $0x88] sm:$0xf]
        %v850 = vld [vmem:[#allocation2 + $0x8c] sm:$0xf]
        %v851 = vld [vmem:[#allocation2 + $0x90] sm:$0xf]
        %v852 = vld [vmem:[#allocation2 + $0x94] sm:$0xf]
        %v853 = vld [vmem:[#allocation2 + $0x98] sm:$0xf]
        %v854 = vld [vmem:[#allocation2 + $0x9c] sm:$0xf]
        %v855 = vld [vmem:[#allocation2 + $0xa0] sm:$0xf]
        %v856 = vld [vmem:[#allocation2 + $0xa4] sm:$0xf]
        %v857 = vld [vmem:[#allocation2 + $0xa8] sm:$0xf]
        %v858 = vld [vmem:[#allocation2 + $0xac] sm:$0xf]
        %v859 = vld [vmem:[#allocation2 + $0xb0] sm:$0xf]
        %v860 = vld [vmem:[#allocation2 + $0xb4] sm:$0xf]
        %v861 = vld [vmem:[#allocation2 + $0xb8] sm:$0xf]
        %v862 = vld [vmem:[#allocation2 + $0xbc] sm:$0xf]
        %v863 = vld [vmem:[#allocation2 + $0xc0] sm:$0xf]
        %v864 = vld [vmem:[#allocation2 + $0xc4] sm:$0xf]
        %v865 = vld [vmem:[#allocation2 + $0xc8] sm:$0xf]
        %v866 = vld [vmem:[#allocation2 + $0xcc] sm:$0xf]
        %v867 = vld [vmem:[#allocation2 + $0xd0] sm:$0xf]
        %v868 = vld [vmem:[#allocation2 + $0xd4] sm:$0xf]
        %v869 = vld [vmem:[#allocation2 + $0xd8] sm:$0xf]
        %v870 = vld [vmem:[#allocation2 + $0xdc] sm:$0xf]
        %v871 = vld [vmem:[#allocation2 + $0xe0] sm:$0xf]
        %v872 = vld [vmem:[#allocation2 + $0xe4] sm:$0xf]
        %v873 = vld [vmem:[#allocation2 + $0xe8] sm:$0xf]
        %v874 = vld [vmem:[#allocation2 + $0xec] sm:$0xf]
        %v875 = vld [vmem:[#allocation2 + $0xf0] sm:$0xf]
        %v876 = vld [vmem:[#allocation2 + $0xf4] sm:$0xf]
        %v877 = vld [vmem:[#allocation2 + $0xf8] sm:$0xf]
        %v878 = vld [vmem:[#allocation2 + $0xfc] sm:$0xf]
        %v879 = vld [vmem:[#allocation2 + $0x100] sm:$0xf]
        %v880 = vld [vmem:[#allocation2 + $0x104] sm:$0xf]
        %v881 = vld [vmem:[#allocation2 + $0x108] sm:$0xf]
        %v882 = vld [vmem:[#allocation2 + $0x10c] sm:$0xf]
        %v883 = vld [vmem:[#allocation2 + $0x110] sm:$0xf]
        %v884 = vld [vmem:[#allocation2 + $0x114] sm:$0xf]
        %v885 = vld [vmem:[#allocation2 + $0x118] sm:$0xf]
        %v886 = vld [vmem:[#allocation2 + $0x11c] sm:$0xf]
        %v887 = vld [vmem:[#allocation2 + $0x120] sm:$0xf]
        %v888 = vld [vmem:[#allocation2 + $0x124] sm:$0xf]
        %v889 = vld [vmem:[#allocation2 + $0x128] sm:$0xf]
        %v890 = vld [vmem:[#allocation2 + $0x12c] sm:$0xf]
        %v891 = vld [vmem:[#allocation2 + $0x130] sm:$0xf]
        %v892 = vld [vmem:[#allocation2 + $0x134] sm:$0xf]
        %v893 = vld [vmem:[#allocation2 + $0x138] sm:$0xf]
        %v894 = vld [vmem:[#allocation2 + $0x13c] sm:$0xf]
        %v895 = vld [vmem:[#allocation2 + $0x140] sm:$0xf]
        %v896 = vld [vmem:[#allocation2 + $0x144] sm:$0xf]
        %v897 = vld [vmem:[#allocation2 + $0x148] sm:$0xf]
        %v898 = vld [vmem:[#allocation2 + $0x14c] sm:$0xf]
        %v899 = vld [vmem:[#allocation2 + $0x150] sm:$0xf]
        %v900 = vld [vmem:[#allocation2 + $0x154] sm:$0xf]
        %v901 = vld [vmem:[#allocation2 + $0x158] sm:$0xf]
        %v902 = vld [vmem:[#allocation2 + $0x15c] sm:$0xf]
        %v903 = vld [vmem:[#allocation2 + $0x160] sm:$0xf]
        %v904 = vld [vmem:[#allocation2 + $0x164] sm:$0xf]
        %v905 = vld [vmem:[#allocation2 + $0x168] sm:$0xf]
        %v906 = vld [vmem:[#allocation2 + $0x16c] sm:$0xf]
        %v907 = vld [vmem:[#allocation2 + $0x170] sm:$0xf]
        %v908 = vld [vmem:[#allocation2 + $0x174] sm:$0xf]
        %v909 = vld [vmem:[#allocation2 + $0x178] sm:$0xf]
        %v910 = vld [vmem:[#allocation2 + $0x17c] sm:$0xf]
        %v911 = vld [vmem:[#allocation2 + $0x180] sm:$0xf]
        %v912 = vld [vmem:[#allocation2 + $0x184] sm:$0xf]
        %v913 = vld [vmem:[#allocation2 + $0x188] sm:$0xf]
        %v914 = vld [vmem:[#allocation2 + $0x18c] sm:$0xf]
        %v915 = vld [vmem:[#allocation2 + $0x190] sm:$0xf]
        %v916 = vld [vmem:[#allocation2 + $0x194] sm:$0xf]
        %v917 = vld [vmem:[#allocation2 + $0x198] sm:$0xf]
        %v918 = vld [vmem:[#allocation2 + $0x19c] sm:$0xf]
        %v919 = vld [vmem:[#allocation2 + $0x1a0] sm:$0xf]
        %v920 = vld [vmem:[#allocation2 + $0x1a4] sm:$0xf]
        %v921 = vld [vmem:[#allocation2 + $0x1a8] sm:$0xf]
        %v922 = vld [vmem:[#allocation2 + $0x1ac] sm:$0xf]
        %v923 = vld [vmem:[#allocation2 + $0x1b0] sm:$0xf]
        %v924 = vld [vmem:[#allocation2 + $0x1b4] sm:$0xf]
        %v925 = vld [vmem:[#allocation2 + $0x1b8] sm:$0xf]
        %v926 = vld [vmem:[#allocation2 + $0x1bc] sm:$0xf]
        %v927 = vld [vmem:[#allocation2 + $0x1c0] sm:$0xf]
        %v928 = vld [vmem:[#allocation2 + $0x1c4] sm:$0xf]
        %v929 = vld [vmem:[#allocation2 + $0x1c8] sm:$0xf]
        %v930 = vld [vmem:[#allocation2 + $0x1cc] sm:$0xf]
        %v931 = vld [vmem:[#allocation2 + $0x1d0] sm:$0xf]
        %v932 = vld [vmem:[#allocation2 + $0x1d4] sm:$0xf]
        %v933 = vld [vmem:[#allocation2 + $0x1d8] sm:$0xf]
        %v934 = vld [vmem:[#allocation2 + $0x1dc] sm:$0xf]
        %v935 = vld [vmem:[#allocation2 + $0x1e0] sm:$0xf]
        %v936 = vld [vmem:[#allocation2 + $0x1e4] sm:$0xf]
        %v937 = vld [vmem:[#allocation2 + $0x1e8] sm:$0xf]
        %v938 = vld [vmem:[#allocation2 + $0x1ec] sm:$0xf]
        %v939 = vld [vmem:[#allocation2 + $0x1f0] sm:$0xf]
        %v940 = vld [vmem:[#allocation2 + $0x1f4] sm:$0xf]
        %v941 = vld [vmem:[#allocation2 + $0x1f8] sm:$0xf]
        %v942 = vld [vmem:[#allocation2 + $0x1fc] sm:$0xf]
        %v1071 = vunpack.c.l.b16 %v687
        %v1072 = vunpack.c.h.b16 %v687
        %v1073 = vunpack.c.l.b16 %v688
        %v1074 = vunpack.c.h.b16 %v688
        %v1075 = vunpack.c.l.b16 %v689
        %v1076 = vunpack.c.h.b16 %v689
        %v1077 = vunpack.c.l.b16 %v690
        %v1078 = vunpack.c.h.b16 %v690
        %v1079 = vunpack.c.l.b16 %v691
        %v1080 = vunpack.c.h.b16 %v691
        %v1081 = vunpack.c.l.b16 %v692
        %v1082 = vunpack.c.h.b16 %v692
        %v1083 = vunpack.c.l.b16 %v693
        %v1084 = vunpack.c.h.b16 %v693
        %v1085 = vunpack.c.l.b16 %v694
        %v1086 = vunpack.c.h.b16 %v694
        %v1087 = vunpack.c.l.b16 %v695
        %v1088 = vunpack.c.h.b16 %v695
        %v1089 = vunpack.c.l.b16 %v696
        %v1090 = vunpack.c.h.b16 %v696
        %v1091 = vunpack.c.l.b16 %v697
        %v1092 = vunpack.c.h.b16 %v697
        %v1093 = vunpack.c.l.b16 %v698
        %v1094 = vunpack.c.h.b16 %v698
        %v1095 = vunpack.c.l.b16 %v699
        %v1096 = vunpack.c.h.b16 %v699
        %v1097 = vunpack.c.l.b16 %v700
        %v1098 = vunpack.c.h.b16 %v700
        %v1099 = vunpack.c.l.b16 %v701
        %v1100 = vunpack.c.h.b16 %v701
        %v1101 = vunpack.c.l.b16 %v702
        %v1102 = vunpack.c.h.b16 %v702
        %v1103 = vunpack.c.l.b16 %v703
        %v1104 = vunpack.c.h.b16 %v703
        %v1105 = vunpack.c.l.b16 %v704
        %v1106 = vunpack.c.h.b16 %v704
        %v1107 = vunpack.c.l.b16 %v705
        %v1108 = vunpack.c.h.b16 %v705
        %v1109 = vunpack.c.l.b16 %v706
        %v1110 = vunpack.c.h.b16 %v706
        %v1111 = vunpack.c.l.b16 %v707
        %v1112 = vunpack.c.h.b16 %v707
        %v1113 = vunpack.c.l.b16 %v708
        %v1114 = vunpack.c.h.b16 %v708
        %v1115 = vunpack.c.l.b16 %v709
        %v1116 = vunpack.c.h.b16 %v709
        %v1117 = vunpack.c.l.b16 %v710
        %v1118 = vunpack.c.h.b16 %v710
        %v1119 = vunpack.c.l.b16 %v711
        %v1120 = vunpack.c.h.b16 %v711
        %v1121 = vunpack.c.l.b16 %v712
        %v1122 = vunpack.c.h.b16 %v712
        %v1123 = vunpack.c.l.b16 %v713
        %v1124 = vunpack.c.h.b16 %v713
        %v1125 = vunpack.c.l.b16 %v714
        %v1126 = vunpack.c.h.b16 %v714
        %v1127 = vunpack.c.l.b16 %v715
        %v1128 = vunpack.c.h.b16 %v715
        %v1129 = vunpack.c.l.b16 %v716
        %v1130 = vunpack.c.h.b16 %v716
        %v1131 = vunpack.c.l.b16 %v717
        %v1132 = vunpack.c.h.b16 %v717
        %v1133 = vunpack.c.l.b16 %v718
        %v1134 = vunpack.c.h.b16 %v718
        %v1135 = vunpack.c.l.b16 %v719
        %v1136 = vunpack.c.h.b16 %v719
        %v1137 = vunpack.c.l.b16 %v720
        %v1138 = vunpack.c.h.b16 %v720
        %v1139 = vunpack.c.l.b16 %v721
        %v1140 = vunpack.c.h.b16 %v721
        %v1141 = vunpack.c.l.b16 %v722
        %v1142 = vunpack.c.h.b16 %v722
        %v1143 = vunpack.c.l.b16 %v723
        %v1144 = vunpack.c.h.b16 %v723
        %v1145 = vunpack.c.l.b16 %v724
        %v1146 = vunpack.c.h.b16 %v724
        %v1147 = vunpack.c.l.b16 %v725
        %v1148 = vunpack.c.h.b16 %v725
        %v1149 = vunpack.c.l.b16 %v726
        %v1150 = vunpack.c.h.b16 %v726
        %v1151 = vunpack.c.l.b16 %v727
        %v1152 = vunpack.c.h.b16 %v727
        %v1153 = vunpack.c.l.b16 %v728
        %v1154 = vunpack.c.h.b16 %v728
        %v1155 = vunpack.c.l.b16 %v729
        %v1156 = vunpack.c.h.b16 %v729
        %v1157 = vunpack.c.l.b16 %v730
        %v1158 = vunpack.c.h.b16 %v730
        %v1159 = vunpack.c.l.b16 %v731
        %v1160 = vunpack.c.h.b16 %v731
        %v1161 = vunpack.c.l.b16 %v732
        %v1162 = vunpack.c.h.b16 %v732
        %v1163 = vunpack.c.l.b16 %v733
        %v1164 = vunpack.c.h.b16 %v733
        %v1165 = vunpack.c.l.b16 %v734
        %v1166 = vunpack.c.h.b16 %v734
        %v1167 = vunpack.c.l.b16 %v735
        %v1168 = vunpack.c.h.b16 %v735
        %v1169 = vunpack.c.l.b16 %v736
        %v1170 = vunpack.c.h.b16 %v736
        %v1171 = vunpack.c.l.b16 %v737
        %v1172 = vunpack.c.h.b16 %v737
        %v1173 = vunpack.c.l.b16 %v738
        %v1174 = vunpack.c.h.b16 %v738
        %v1175 = vunpack.c.l.b16 %v739
        %v1176 = vunpack.c.h.b16 %v739
        %v1177 = vunpack.c.l.b16 %v740
        %v1178 = vunpack.c.h.b16 %v740
        %v1179 = vunpack.c.l.b16 %v741
        %v1180 = vunpack.c.h.b16 %v741
        %v1181 = vunpack.c.l.b16 %v742
        %v1182 = vunpack.c.h.b16 %v742
        %v1183 = vunpack.c.l.b16 %v743
        %v1184 = vunpack.c.h.b16 %v743
        %v1185 = vunpack.c.l.b16 %v744
        %v1186 = vunpack.c.h.b16 %v744
        %v1187 = vunpack.c.l.b16 %v745
        %v1188 = vunpack.c.h.b16 %v745
        %v1189 = vunpack.c.l.b16 %v746
        %v1190 = vunpack.c.h.b16 %v746
        %v1191 = vunpack.c.l.b16 %v747
        %v1192 = vunpack.c.h.b16 %v747
        %v1193 = vunpack.c.l.b16 %v748
        %v1194 = vunpack.c.h.b16 %v748
        %v1195 = vunpack.c.l.b16 %v749
        %v1196 = vunpack.c.h.b16 %v749
        %v1197 = vunpack.c.l.b16 %v750
        %v1198 = vunpack.c.h.b16 %v750
        %v1199 = vunpack.c.l.b16 %v751
        %v1200 = vunpack.c.h.b16 %v751
        %v1201 = vunpack.c.l.b16 %v752
        %v1202 = vunpack.c.h.b16 %v752
        %v1203 = vunpack.c.l.b16 %v753
        %v1204 = vunpack.c.h.b16 %v753
        %v1205 = vunpack.c.l.b16 %v754
        %v1206 = vunpack.c.h.b16 %v754
        %v1207 = vunpack.c.l.b16 %v755
        %v1208 = vunpack.c.h.b16 %v755
        %v1209 = vunpack.c.l.b16 %v756
        %v1210 = vunpack.c.h.b16 %v756
        %v1211 = vunpack.c.l.b16 %v757
        %v1212 = vunpack.c.h.b16 %v757
        %v1213 = vunpack.c.l.b16 %v758
        %v1214 = vunpack.c.h.b16 %v758
        %v1215 = vunpack.c.l.b16 %v759
        %v1216 = vunpack.c.h.b16 %v759
        %v1217 = vunpack.c.l.b16 %v760
        %v1218 = vunpack.c.h.b16 %v760
        %v1219 = vunpack.c.l.b16 %v761
        %v1220 = vunpack.c.h.b16 %v761
        %v1221 = vunpack.c.l.b16 %v762
        %v1222 = vunpack.c.h.b16 %v762
        %v1223 = vunpack.c.l.b16 %v763
        %v1224 = vunpack.c.h.b16 %v763
        %v1225 = vunpack.c.l.b16 %v764
        %v1226 = vunpack.c.h.b16 %v764
        %v1227 = vunpack.c.l.b16 %v765
        %v1228 = vunpack.c.h.b16 %v765
        %v1229 = vunpack.c.l.b16 %v766
        %v1230 = vunpack.c.h.b16 %v766
        %v1231 = vunpack.c.l.b16 %v767
        %v1232 = vunpack.c.h.b16 %v767
        %v1233 = vunpack.c.l.b16 %v768
        %v1234 = vunpack.c.h.b16 %v768
        %v1235 = vunpack.c.l.b16 %v769
        %v1236 = vunpack.c.h.b16 %v769
        %v1237 = vunpack.c.l.b16 %v770
        %v1238 = vunpack.c.h.b16 %v770
        %v1239 = vunpack.c.l.b16 %v771
        %v1240 = vunpack.c.h.b16 %v771
        %v1241 = vunpack.c.l.b16 %v772
        %v1242 = vunpack.c.h.b16 %v772
        %v1243 = vunpack.c.l.b16 %v773
        %v1244 = vunpack.c.h.b16 %v773
        %v1245 = vunpack.c.l.b16 %v774
        %v1246 = vunpack.c.h.b16 %v774
        %v1247 = vunpack.c.l.b16 %v775
        %v1248 = vunpack.c.h.b16 %v775
        %v1249 = vunpack.c.l.b16 %v776
        %v1250 = vunpack.c.h.b16 %v776
        %v1251 = vunpack.c.l.b16 %v777
        %v1252 = vunpack.c.h.b16 %v777
        %v1253 = vunpack.c.l.b16 %v778
        %v1254 = vunpack.c.h.b16 %v778
        %v1255 = vunpack.c.l.b16 %v779
        %v1256 = vunpack.c.h.b16 %v779
        %v1257 = vunpack.c.l.b16 %v780
        %v1258 = vunpack.c.h.b16 %v780
        %v1259 = vunpack.c.l.b16 %v781
        %v1260 = vunpack.c.h.b16 %v781
        %v1261 = vunpack.c.l.b16 %v782
        %v1262 = vunpack.c.h.b16 %v782
        %v1263 = vunpack.c.l.b16 %v783
        %v1264 = vunpack.c.h.b16 %v783
        %v1265 = vunpack.c.l.b16 %v784
        %v1266 = vunpack.c.h.b16 %v784
        %v1267 = vunpack.c.l.b16 %v785
        %v1268 = vunpack.c.h.b16 %v785
        %v1269 = vunpack.c.l.b16 %v786
        %v1270 = vunpack.c.h.b16 %v786
        %v1271 = vunpack.c.l.b16 %v787
        %v1272 = vunpack.c.h.b16 %v787
        %v1273 = vunpack.c.l.b16 %v788
        %v1274 = vunpack.c.h.b16 %v788
        %v1275 = vunpack.c.l.b16 %v789
        %v1276 = vunpack.c.h.b16 %v789
        %v1277 = vunpack.c.l.b16 %v790
        %v1278 = vunpack.c.h.b16 %v790
        %v1279 = vunpack.c.l.b16 %v791
        %v1280 = vunpack.c.h.b16 %v791
        %v1281 = vunpack.c.l.b16 %v792
        %v1282 = vunpack.c.h.b16 %v792
        %v1283 = vunpack.c.l.b16 %v793
        %v1284 = vunpack.c.h.b16 %v793
        %v1285 = vunpack.c.l.b16 %v794
        %v1286 = vunpack.c.h.b16 %v794
        %v1287 = vunpack.c.l.b16 %v795
        %v1288 = vunpack.c.h.b16 %v795
        %v1289 = vunpack.c.l.b16 %v796
        %v1290 = vunpack.c.h.b16 %v796
        %v1291 = vunpack.c.l.b16 %v797
        %v1292 = vunpack.c.h.b16 %v797
        %v1293 = vunpack.c.l.b16 %v798
        %v1294 = vunpack.c.h.b16 %v798
        %v1295 = vunpack.c.l.b16 %v799
        %v1296 = vunpack.c.h.b16 %v799
        %v1297 = vunpack.c.l.b16 %v800
        %v1298 = vunpack.c.h.b16 %v800
        %v1299 = vunpack.c.l.b16 %v801
        %v1300 = vunpack.c.h.b16 %v801
        %v1301 = vunpack.c.l.b16 %v802
        %v1302 = vunpack.c.h.b16 %v802
        %v1303 = vunpack.c.l.b16 %v803
        %v1304 = vunpack.c.h.b16 %v803
        %v1305 = vunpack.c.l.b16 %v804
        %v1306 = vunpack.c.h.b16 %v804
        %v1307 = vunpack.c.l.b16 %v805
        %v1308 = vunpack.c.h.b16 %v805
        %v1309 = vunpack.c.l.b16 %v806
        %v1310 = vunpack.c.h.b16 %v806
        %v1311 = vunpack.c.l.b16 %v807
        %v1312 = vunpack.c.h.b16 %v807
        %v1313 = vunpack.c.l.b16 %v808
        %v1314 = vunpack.c.h.b16 %v808
        %v1315 = vunpack.c.l.b16 %v809
        %v1316 = vunpack.c.h.b16 %v809
        %v1317 = vunpack.c.l.b16 %v810
        %v1318 = vunpack.c.h.b16 %v810
        %v1319 = vunpack.c.l.b16 %v811
        %v1320 = vunpack.c.h.b16 %v811
        %v1321 = vunpack.c.l.b16 %v812
        %v1322 = vunpack.c.h.b16 %v812
        %v1323 = vunpack.c.l.b16 %v813
        %v1324 = vunpack.c.h.b16 %v813
        %v1325 = vunpack.c.l.b16 %v814
        %v1326 = vunpack.c.h.b16 %v814
        %v1327 = vpack.c.b16 %v1079, %v1071
        %v1328 = vpack.c.b16 %v1080, %v1072
        %v1329 = vpack.c.b16 %v1081, %v1073
        %v1330 = vpack.c.b16 %v1082, %v1074
        %v1331 = vpack.c.b16 %v1083, %v1075
        %v1332 = vpack.c.b16 %v1084, %v1076
        %v1333 = vpack.c.b16 %v1085, %v1077
        %v1334 = vpack.c.b16 %v1086, %v1078
        %v1335 = vpack.c.b16 %v1095, %v1087
        %v1336 = vpack.c.b16 %v1096, %v1088
        %v1337 = vpack.c.b16 %v1097, %v1089
        %v1338 = vpack.c.b16 %v1098, %v1090
        %v1339 = vpack.c.b16 %v1099, %v1091
        %v1340 = vpack.c.b16 %v1100, %v1092
        %v1341 = vpack.c.b16 %v1101, %v1093
        %v1342 = vpack.c.b16 %v1102, %v1094
        %v1343 = vpack.c.b16 %v1111, %v1103
        %v1344 = vpack.c.b16 %v1112, %v1104
        %v1345 = vpack.c.b16 %v1113, %v1105
        %v1346 = vpack.c.b16 %v1114, %v1106
        %v1347 = vpack.c.b16 %v1115, %v1107
        %v1348 = vpack.c.b16 %v1116, %v1108
        %v1349 = vpack.c.b16 %v1117, %v1109
        %v1350 = vpack.c.b16 %v1118, %v1110
        %v1351 = vpack.c.b16 %v1127, %v1119
        %v1352 = vpack.c.b16 %v1128, %v1120
        %v1353 = vpack.c.b16 %v1129, %v1121
        %v1354 = vpack.c.b16 %v1130, %v1122
        %v1355 = vpack.c.b16 %v1131, %v1123
        %v1356 = vpack.c.b16 %v1132, %v1124
        %v1357 = vpack.c.b16 %v1133, %v1125
        %v1358 = vpack.c.b16 %v1134, %v1126
        %v1359 = vpack.c.b16 %v1143, %v1135
        %v1360 = vpack.c.b16 %v1144, %v1136
        %v1361 = vpack.c.b16 %v1145, %v1137
        %v1362 = vpack.c.b16 %v1146, %v1138
        %v1363 = vpack.c.b16 %v1147, %v1139
        %v1364 = vpack.c.b16 %v1148, %v1140
        %v1365 = vpack.c.b16 %v1149, %v1141
        %v1366 = vpack.c.b16 %v1150, %v1142
        %v1367 = vpack.c.b16 %v1159, %v1151
        %v1368 = vpack.c.b16 %v1160, %v1152
        %v1369 = vpack.c.b16 %v1161, %v1153
        %v1370 = vpack.c.b16 %v1162, %v1154
        %v1371 = vpack.c.b16 %v1163, %v1155
        %v1372 = vpack.c.b16 %v1164, %v1156
        %v1373 = vpack.c.b16 %v1165, %v1157
        %v1374 = vpack.c.b16 %v1166, %v1158
        %v1375 = vpack.c.b16 %v1175, %v1167
        %v1376 = vpack.c.b16 %v1176, %v1168
        %v1377 = vpack.c.b16 %v1177, %v1169
        %v1378 = vpack.c.b16 %v1178, %v1170
        %v1379 = vpack.c.b16 %v1179, %v1171
        %v1380 = vpack.c.b16 %v1180, %v1172
        %v1381 = vpack.c.b16 %v1181, %v1173
        %v1382 = vpack.c.b16 %v1182, %v1174
        %v1383 = vpack.c.b16 %v1191, %v1183
        %v1384 = vpack.c.b16 %v1192, %v1184
        %v1385 = vpack.c.b16 %v1193, %v1185
        %v1386 = vpack.c.b16 %v1194, %v1186
        %v1387 = vpack.c.b16 %v1195, %v1187
        %v1388 = vpack.c.b16 %v1196, %v1188
        %v1389 = vpack.c.b16 %v1197, %v1189
        %v1390 = vpack.c.b16 %v1198, %v1190
        %v1391 = vpack.c.b16 %v1207, %v1199
        %v1392 = vpack.c.b16 %v1208, %v1200
        %v1393 = vpack.c.b16 %v1209, %v1201
        %v1394 = vpack.c.b16 %v1210, %v1202
        %v1395 = vpack.c.b16 %v1211, %v1203
        %v1396 = vpack.c.b16 %v1212, %v1204
        %v1397 = vpack.c.b16 %v1213, %v1205
        %v1398 = vpack.c.b16 %v1214, %v1206
        %v1399 = vpack.c.b16 %v1223, %v1215
        %v1400 = vpack.c.b16 %v1224, %v1216
        %v1401 = vpack.c.b16 %v1225, %v1217
        %v1402 = vpack.c.b16 %v1226, %v1218
        %v1403 = vpack.c.b16 %v1227, %v1219
        %v1404 = vpack.c.b16 %v1228, %v1220
        %v1405 = vpack.c.b16 %v1229, %v1221
        %v1406 = vpack.c.b16 %v1230, %v1222
        %v1407 = vpack.c.b16 %v1239, %v1231
        %v1408 = vpack.c.b16 %v1240, %v1232
        %v1409 = vpack.c.b16 %v1241, %v1233
        %v1410 = vpack.c.b16 %v1242, %v1234
        %v1411 = vpack.c.b16 %v1243, %v1235
        %v1412 = vpack.c.b16 %v1244, %v1236
        %v1413 = vpack.c.b16 %v1245, %v1237
        %v1414 = vpack.c.b16 %v1246, %v1238
        %v1415 = vpack.c.b16 %v1255, %v1247
        %v1416 = vpack.c.b16 %v1256, %v1248
        %v1417 = vpack.c.b16 %v1257, %v1249
        %v1418 = vpack.c.b16 %v1258, %v1250
        %v1419 = vpack.c.b16 %v1259, %v1251
        %v1420 = vpack.c.b16 %v1260, %v1252
        %v1421 = vpack.c.b16 %v1261, %v1253
        %v1422 = vpack.c.b16 %v1262, %v1254
        %v1423 = vpack.c.b16 %v1271, %v1263
        %v1424 = vpack.c.b16 %v1272, %v1264
        %v1425 = vpack.c.b16 %v1273, %v1265
        %v1426 = vpack.c.b16 %v1274, %v1266
        %v1427 = vpack.c.b16 %v1275, %v1267
        %v1428 = vpack.c.b16 %v1276, %v1268
        %v1429 = vpack.c.b16 %v1277, %v1269
        %v1430 = vpack.c.b16 %v1278, %v1270
        %v1431 = vpack.c.b16 %v1287, %v1279
        %v1432 = vpack.c.b16 %v1288, %v1280
        %v1433 = vpack.c.b16 %v1289, %v1281
        %v1434 = vpack.c.b16 %v1290, %v1282
        %v1435 = vpack.c.b16 %v1291, %v1283
        %v1436 = vpack.c.b16 %v1292, %v1284
        %v1437 = vpack.c.b16 %v1293, %v1285
        %v1438 = vpack.c.b16 %v1294, %v1286
        %v1439 = vpack.c.b16 %v1303, %v1295
        %v1440 = vpack.c.b16 %v1304, %v1296
        %v1441 = vpack.c.b16 %v1305, %v1297
        %v1442 = vpack.c.b16 %v1306, %v1298
        %v1443 = vpack.c.b16 %v1307, %v1299
        %v1444 = vpack.c.b16 %v1308, %v1300
        %v1445 = vpack.c.b16 %v1309, %v1301
        %v1446 = vpack.c.b16 %v1310, %v1302
        %v1447 = vpack.c.b16 %v1319, %v1311
        %v1448 = vpack.c.b16 %v1320, %v1312
        %v1449 = vpack.c.b16 %v1321, %v1313
        %v1450 = vpack.c.b16 %v1322, %v1314
        %v1451 = vpack.c.b16 %v1323, %v1315
        %v1452 = vpack.c.b16 %v1324, %v1316
        %v1453 = vpack.c.b16 %v1325, %v1317
        %v1454 = vpack.c.b16 %v1326, %v1318
        %v1711 = vunpack.c.l.b16 %v815
        %v1712 = vunpack.c.l.b16 %v816
        %v1713 = vunpack.c.l.b16 %v817
        %v1714 = vunpack.c.l.b16 %v818
        %v1715 = vunpack.c.l.b16 %v819
        %v1716 = vunpack.c.l.b16 %v820
        %v1717 = vunpack.c.l.b16 %v821
        %v1718 = vunpack.c.l.b16 %v822
        %v1719 = vunpack.c.l.b16 %v823
        %v1720 = vunpack.c.l.b16 %v824
        %v1721 = vunpack.c.l.b16 %v825
        %v1722 = vunpack.c.l.b16 %v826
        %v1723 = vunpack.c.l.b16 %v827
        %v1724 = vunpack.c.l.b16 %v828
        %v1725 = vunpack.c.l.b16 %v829
        %v1726 = vunpack.c.l.b16 %v830
        %v1727 = vunpack.c.l.b16 %v831
        %v1728 = vunpack.c.l.b16 %v832
        %v1729 = vunpack.c.l.b16 %v833
        %v1730 = vunpack.c.l.b16 %v834
        %v1731 = vunpack.c.l.b16 %v835
        %v1732 = vunpack.c.l.b16 %v836
        %v1733 = vunpack.c.l.b16 %v837
        %v1734 = vunpack.c.l.b16 %v838
        %v1735 = vunpack.c.l.b16 %v839
        %v1736 = vunpack.c.l.b16 %v840
        %v1737 = vunpack.c.l.b16 %v841
        %v1738 = vunpack.c.l.b16 %v842
        %v1739 = vunpack.c.l.b16 %v843
        %v1740 = vunpack.c.l.b16 %v844
        %v1741 = vunpack.c.l.b16 %v845
        %v1742 = vunpack.c.l.b16 %v846
        %v1743 = vunpack.c.l.b16 %v847
        %v1744 = vunpack.c.l.b16 %v848
        %v1745 = vunpack.c.l.b16 %v849
        %v1746 = vunpack.c.l.b16 %v850
        %v1747 = vunpack.c.l.b16 %v851
        %v1748 = vunpack.c.l.b16 %v852
        %v1749 = vunpack.c.l.b16 %v853
        %v1750 = vunpack.c.l.b16 %v854
        %v1751 = vunpack.c.l.b16 %v855
        %v1752 = vunpack.c.l.b16 %v856
        %v1753 = vunpack.c.l.b16 %v857
        %v1754 = vunpack.c.l.b16 %v858
        %v1755 = vunpack.c.l.b16 %v859
        %v1756 = vunpack.c.l.b16 %v860
        %v1757 = vunpack.c.l.b16 %v861
        %v1758 = vunpack.c.l.b16 %v862
        %v1759 = vunpack.c.l.b16 %v863
        %v1760 = vunpack.c.l.b16 %v864
        %v1761 = vunpack.c.l.b16 %v865
        %v1762 = vunpack.c.l.b16 %v866
        %v1763 = vunpack.c.l.b16 %v867
        %v1764 = vunpack.c.l.b16 %v868
        %v1765 = vunpack.c.l.b16 %v869
        %v1766 = vunpack.c.l.b16 %v870
        %v1767 = vunpack.c.l.b16 %v871
        %v1768 = vunpack.c.l.b16 %v872
        %v1769 = vunpack.c.l.b16 %v873
        %v1770 = vunpack.c.l.b16 %v874
        %v1771 = vunpack.c.l.b16 %v875
        %v1772 = vunpack.c.l.b16 %v876
        %v1773 = vunpack.c.l.b16 %v877
        %v1774 = vunpack.c.l.b16 %v878
        %v1775 = vunpack.c.l.b16 %v879
        %v1776 = vunpack.c.l.b16 %v880
        %v1777 = vunpack.c.l.b16 %v881
        %v1778 = vunpack.c.l.b16 %v882
        %v1779 = vunpack.c.l.b16 %v883
        %v1780 = vunpack.c.l.b16 %v884
        %v1781 = vunpack.c.l.b16 %v885
        %v1782 = vunpack.c.l.b16 %v886
        %v1783 = vunpack.c.l.b16 %v887
        %v1784 = vunpack.c.l.b16 %v888
        %v1785 = vunpack.c.l.b16 %v889
        %v1786 = vunpack.c.l.b16 %v890
        %v1787 = vunpack.c.l.b16 %v891
        %v1788 = vunpack.c.l.b16 %v892
        %v1789 = vunpack.c.l.b16 %v893
        %v1790 = vunpack.c.l.b16 %v894
        %v1791 = vunpack.c.l.b16 %v895
        %v1792 = vunpack.c.l.b16 %v896
        %v1793 = vunpack.c.l.b16 %v897
        %v1794 = vunpack.c.l.b16 %v898
        %v1795 = vunpack.c.l.b16 %v899
        %v1796 = vunpack.c.l.b16 %v900
        %v1797 = vunpack.c.l.b16 %v901
        %v1798 = vunpack.c.l.b16 %v902
        %v1799 = vunpack.c.l.b16 %v903
        %v1800 = vunpack.c.l.b16 %v904
        %v1801 = vunpack.c.l.b16 %v905
        %v1802 = vunpack.c.l.b16 %v906
        %v1803 = vunpack.c.l.b16 %v907
        %v1804 = vunpack.c.l.b16 %v908
        %v1805 = vunpack.c.l.b16 %v909
        %v1806 = vunpack.c.l.b16 %v910
        %v1807 = vunpack.c.l.b16 %v911
        %v1808 = vunpack.c.l.b16 %v912
        %v1809 = vunpack.c.l.b16 %v913
        %v1810 = vunpack.c.l.b16 %v914
        %v1811 = vunpack.c.l.b16 %v915
        %v1812 = vunpack.c.l.b16 %v916
        %v1813 = vunpack.c.l.b16 %v917
        %v1814 = vunpack.c.l.b16 %v918
        %v1815 = vunpack.c.l.b16 %v919
        %v1816 = vunpack.c.l.b16 %v920
        %v1817 = vunpack.c.l.b16 %v921
        %v1818 = vunpack.c.l.b16 %v922
        %v1819 = vunpack.c.l.b16 %v923
        %v1820 = vunpack.c.l.b16 %v924
        %v1821 = vunpack.c.l.b16 %v925
        %v1822 = vunpack.c.l.b16 %v926
        %v1823 = vunpack.c.l.b16 %v927
        %v1824 = vunpack.c.l.b16 %v928
        %v1825 = vunpack.c.l.b16 %v929
        %v1826 = vunpack.c.l.b16 %v930
        %v1827 = vunpack.c.l.b16 %v931
        %v1828 = vunpack.c.l.b16 %v932
        %v1829 = vunpack.c.l.b16 %v933
        %v1830 = vunpack.c.l.b16 %v934
        %v1831 = vunpack.c.l.b16 %v935
        %v1832 = vunpack.c.l.b16 %v936
        %v1833 = vunpack.c.l.b16 %v937
        %v1834 = vunpack.c.l.b16 %v938
        %v1835 = vunpack.c.l.b16 %v939
        %v1836 = vunpack.c.l.b16 %v940
        %v1837 = vunpack.c.l.b16 %v941
        %v1838 = vunpack.c.l.b16 %v942
        %v1839 = vpack.c.b16 %v1712, %v1711
        %v1840 = vpack.c.b16 %v1714, %v1713
        %v1841 = vpack.c.b16 %v1716, %v1715
        %v1842 = vpack.c.b16 %v1718, %v1717
        %v1843 = vpack.c.b16 %v1720, %v1719
        %v1844 = vpack.c.b16 %v1722, %v1721
        %v1845 = vpack.c.b16 %v1724, %v1723
        %v1846 = vpack.c.b16 %v1726, %v1725
        %v1847 = vpack.c.b16 %v1728, %v1727
        %v1848 = vpack.c.b16 %v1730, %v1729
        %v1849 = vpack.c.b16 %v1732, %v1731
        %v1850 = vpack.c.b16 %v1734, %v1733
        %v1851 = vpack.c.b16 %v1736, %v1735
        %v1852 = vpack.c.b16 %v1738, %v1737
        %v1853 = vpack.c.b16 %v1740, %v1739
        %v1854 = vpack.c.b16 %v1742, %v1741
        %v1855 = vpack.c.b16 %v1744, %v1743
        %v1856 = vpack.c.b16 %v1746, %v1745
        %v1857 = vpack.c.b16 %v1748, %v1747
        %v1858 = vpack.c.b16 %v1750, %v1749
        %v1859 = vpack.c.b16 %v1752, %v1751
        %v1860 = vpack.c.b16 %v1754, %v1753
        %v1861 = vpack.c.b16 %v1756, %v1755
        %v1862 = vpack.c.b16 %v1758, %v1757
        %v1863 = vpack.c.b16 %v1760, %v1759
        %v1864 = vpack.c.b16 %v1762, %v1761
        %v1865 = vpack.c.b16 %v1764, %v1763
        %v1866 = vpack.c.b16 %v1766, %v1765
        %v1867 = vpack.c.b16 %v1768, %v1767
        %v1868 = vpack.c.b16 %v1770, %v1769
        %v1869 = vpack.c.b16 %v1772, %v1771
        %v1870 = vpack.c.b16 %v1774, %v1773
        %v1871 = vpack.c.b16 %v1776, %v1775
        %v1872 = vpack.c.b16 %v1778, %v1777
        %v1873 = vpack.c.b16 %v1780, %v1779
        %v1874 = vpack.c.b16 %v1782, %v1781
        %v1875 = vpack.c.b16 %v1784, %v1783
        %v1876 = vpack.c.b16 %v1786, %v1785
        %v1877 = vpack.c.b16 %v1788, %v1787
        %v1878 = vpack.c.b16 %v1790, %v1789
        %v1879 = vpack.c.b16 %v1792, %v1791
        %v1880 = vpack.c.b16 %v1794, %v1793
        %v1881 = vpack.c.b16 %v1796, %v1795
        %v1882 = vpack.c.b16 %v1798, %v1797
        %v1883 = vpack.c.b16 %v1800, %v1799
        %v1884 = vpack.c.b16 %v1802, %v1801
        %v1885 = vpack.c.b16 %v1804, %v1803
        %v1886 = vpack.c.b16 %v1806, %v1805
        %v1887 = vpack.c.b16 %v1808, %v1807
        %v1888 = vpack.c.b16 %v1810, %v1809
        %v1889 = vpack.c.b16 %v1812, %v1811
        %v1890 = vpack.c.b16 %v1814, %v1813
        %v1891 = vpack.c.b16 %v1816, %v1815
        %v1892 = vpack.c.b16 %v1818, %v1817
        %v1893 = vpack.c.b16 %v1820, %v1819
        %v1894 = vpack.c.b16 %v1822, %v1821
        %v1895 = vpack.c.b16 %v1824, %v1823
        %v1896 = vpack.c.b16 %v1826, %v1825
        %v1897 = vpack.c.b16 %v1828, %v1827
        %v1898 = vpack.c.b16 %v1830, %v1829
        %v1899 = vpack.c.b16 %v1832, %v1831
        %v1900 = vpack.c.b16 %v1834, %v1833
        %v1901 = vpack.c.b16 %v1836, %v1835
        %v1902 = vpack.c.b16 %v1838, %v1837
        %1967 = vmatprep.subr.bf16.mxu0 0
        %1968 = vmatpush1.bf16.msra.mxu0 %v1846
        %1969 = vmatprep.subr.bf16.mxu0 0
        %1970 = vmatpush1.bf16.msra.mxu0 %v1845
        %1971 = vmatprep.subr.bf16.mxu0 0
        %1972 = vmatpush1.bf16.msra.mxu0 %v1844
        %1973 = vmatprep.subr.bf16.mxu0 0
        %1974 = vmatpush1.bf16.msra.mxu0 %v1843
        %1975 = vmatprep.subr.bf16.mxu0 0
        %1976 = vmatpush1.bf16.msra.mxu0 %v1842
        %1977 = vmatprep.subr.bf16.mxu0 0
        %1978 = vmatpush1.bf16.msra.mxu0 %v1841
        %1979 = vmatprep.subr.bf16.mxu0 0
        %1980 = vmatpush1.bf16.msra.mxu0 %v1840
        %1981 = vmatprep.subr.bf16.mxu0 0
        %1982 = vmatpush1.bf16.msra.mxu0 %v1839
        %1983 = vmatprep.subr.bf16.mxu0 0
        %1984 = vmatpush2.bf16.msra.mxu0 %v1854
        %1985 = vmatprep.subr.bf16.mxu0 0
        %1986 = vmatpush2.bf16.msra.mxu0 %v1853
        %1987 = vmatprep.subr.bf16.mxu0 0
        %1988 = vmatpush2.bf16.msra.mxu0 %v1852
        %1989 = vmatprep.subr.bf16.mxu0 0
        %1990 = vmatpush2.bf16.msra.mxu0 %v1851
        %1991 = vmatprep.subr.bf16.mxu0 0
        %1992 = vmatpush2.bf16.msra.mxu0 %v1850
        %1993 = vmatprep.subr.bf16.mxu0 0
        %1994 = vmatpush2.bf16.msra.mxu0 %v1849
        %1995 = vmatprep.subr.bf16.mxu0 0
        %1996 = vmatpush2.bf16.msra.mxu0 %v1848
        %1997 = vmatprep.subr.bf16.mxu0 0
        %1998 = vmatpush2.bf16.msra.mxu0 %v1847
        %1999 = vmatprep.mubr.bf16.mxu0 %v1328
        %2000 = vmatmul.mubr.bf16.gmra.mxu0 %v1327
        %v2001 = vpop.f32.mrf.mxu0
        %v2002 = vadd.f32 0.0, %v2001
        %v2003 = vpop.f32.mrf.mxu0
        %v2004 = vpop.f32.mrf.mxu0
        %v2005 = vadd.f32 0.0, %v2004
        %v2006 = vpop.f32.mrf.mxu0
        %2007 = vmatprep.mubr.bf16.mxu0 %v1336
        %2008 = vmatmul.mubr.bf16.gmra.mxu0 %v1335
        %v2009 = vpop.f32.mrf.mxu0
        %v2010 = vadd.f32 0.0, %v2009
        %v2011 = vpop.f32.mrf.mxu0
        %v2012 = vpop.f32.mrf.mxu0
        %v2013 = vadd.f32 0.0, %v2012
        %v2014 = vpop.f32.mrf.mxu0
        %2015 = vmatprep.mubr.bf16.mxu0 %v1344
        %2016 = vmatmul.mubr.bf16.gmra.mxu0 %v1343
        %v2017 = vpop.f32.mrf.mxu0
        %v2018 = vadd.f32 0.0, %v2017
        %v2019 = vpop.f32.mrf.mxu0
        %v2020 = vpop.f32.mrf.mxu0
        %v2021 = vadd.f32 0.0, %v2020
        %v2022 = vpop.f32.mrf.mxu0
        %2023 = vmatprep.mubr.bf16.mxu0 %v1352
        %2024 = vmatmul.mubr.bf16.gmra.mxu0 %v1351
        %v2025 = vpop.f32.mrf.mxu0
        %v2026 = vadd.f32 0.0, %v2025
        %v2027 = vpop.f32.mrf.mxu0
        %v2028 = vpop.f32.mrf.mxu0
        %v2029 = vadd.f32 0.0, %v2028
        %v2030 = vpop.f32.mrf.mxu0
        %2031 = vmatprep.mubr.bf16.mxu0 %v1360
        %2032 = vmatmul.mubr.bf16.gmra.mxu0 %v1359
        %v2033 = vpop.f32.mrf.mxu0
        %v2034 = vadd.f32 0.0, %v2033
        %v2035 = vpop.f32.mrf.mxu0
        %v2036 = vpop.f32.mrf.mxu0
        %v2037 = vadd.f32 0.0, %v2036
        %v2038 = vpop.f32.mrf.mxu0
        %2039 = vmatprep.mubr.bf16.mxu0 %v1368
        %2040 = vmatmul.mubr.bf16.gmra.mxu0 %v1367
        %v2041 = vpop.f32.mrf.mxu0
        %v2042 = vadd.f32 0.0, %v2041
        %v2043 = vpop.f32.mrf.mxu0
        %v2044 = vpop.f32.mrf.mxu0
        %v2045 = vadd.f32 0.0, %v2044
        %v2046 = vpop.f32.mrf.mxu0
        %2047 = vmatprep.mubr.bf16.mxu0 %v1376
        %2048 = vmatmul.mubr.bf16.gmra.mxu0 %v1375
        %v2049 = vpop.f32.mrf.mxu0
        %v2050 = vadd.f32 0.0, %v2049
        %v2051 = vpop.f32.mrf.mxu0
        %v2052 = vpop.f32.mrf.mxu0
        %v2053 = vadd.f32 0.0, %v2052
        %v2054 = vpop.f32.mrf.mxu0
        %2055 = vmatprep.mubr.bf16.mxu0 %v1384
        %2056 = vmatmul.mubr.bf16.gmra.mxu0 %v1383
        %v2057 = vpop.f32.mrf.mxu0
        %v2058 = vadd.f32 0.0, %v2057
        %v2059 = vpop.f32.mrf.mxu0
        %v2060 = vpop.f32.mrf.mxu0
        %v2061 = vadd.f32 0.0, %v2060
        %v2062 = vpop.f32.mrf.mxu0
        %2063 = vmatprep.mubr.bf16.mxu0 %v1392
        %2064 = vmatmul.mubr.bf16.gmra.mxu0 %v1391
        %v2065 = vpop.f32.mrf.mxu0
        %v2066 = vadd.f32 0.0, %v2065
        %v2067 = vpop.f32.mrf.mxu0
        %v2068 = vpop.f32.mrf.mxu0
        %v2069 = vadd.f32 0.0, %v2068
        %v2070 = vpop.f32.mrf.mxu0
        %2071 = vmatprep.mubr.bf16.mxu0 %v1400
        %2072 = vmatmul.mubr.bf16.gmra.mxu0 %v1399
        %v2073 = vpop.f32.mrf.mxu0
        %v2074 = vadd.f32 0.0, %v2073
        %v2075 = vpop.f32.mrf.mxu0
        %v2076 = vpop.f32.mrf.mxu0
        %v2077 = vadd.f32 0.0, %v2076
        %v2078 = vpop.f32.mrf.mxu0
        %2079 = vmatprep.mubr.bf16.mxu0 %v1408
        %2080 = vmatmul.mubr.bf16.gmra.mxu0 %v1407
        %v2081 = vpop.f32.mrf.mxu0
        %v2082 = vadd.f32 0.0, %v2081
        %v2083 = vpop.f32.mrf.mxu0
        %v2084 = vpop.f32.mrf.mxu0
        %v2085 = vadd.f32 0.0, %v2084
        %v2086 = vpop.f32.mrf.mxu0
        %2087 = vmatprep.mubr.bf16.mxu0 %v1416
        %2088 = vmatmul.mubr.bf16.gmra.mxu0 %v1415
        %v2089 = vpop.f32.mrf.mxu0
        %v2090 = vadd.f32 0.0, %v2089
        %v2091 = vpop.f32.mrf.mxu0
        %v2092 = vpop.f32.mrf.mxu0
        %v2093 = vadd.f32 0.0, %v2092
        %v2094 = vpop.f32.mrf.mxu0
        %2095 = vmatprep.mubr.bf16.mxu0 %v1424
        %2096 = vmatmul.mubr.bf16.gmra.mxu0 %v1423
        %v2097 = vpop.f32.mrf.mxu0
        %v2098 = vadd.f32 0.0, %v2097
        %v2099 = vpop.f32.mrf.mxu0
        %v2100 = vpop.f32.mrf.mxu0
        %v2101 = vadd.f32 0.0, %v2100
        %v2102 = vpop.f32.mrf.mxu0
        %2103 = vmatprep.mubr.bf16.mxu0 %v1432
        %2104 = vmatmul.mubr.bf16.gmra.mxu0 %v1431
        %v2105 = vpop.f32.mrf.mxu0
        %v2106 = vadd.f32 0.0, %v2105
        %v2107 = vpop.f32.mrf.mxu0
        %v2108 = vpop.f32.mrf.mxu0
        %v2109 = vadd.f32 0.0, %v2108
        %v2110 = vpop.f32.mrf.mxu0
        %2111 = vmatprep.mubr.bf16.mxu0 %v1440
        %2112 = vmatmul.mubr.bf16.gmra.mxu0 %v1439
        %v2113 = vpop.f32.mrf.mxu0
        %v2114 = vadd.f32 0.0, %v2113
        %v2115 = vpop.f32.mrf.mxu0
        %v2116 = vpop.f32.mrf.mxu0
        %v2117 = vadd.f32 0.0, %v2116
        %v2118 = vpop.f32.mrf.mxu0
        %2119 = vmatprep.mubr.bf16.mxu0 %v1448
        %2120 = vmatmul.mubr.bf16.gmra.mxu0 %v1447
        %v2121 = vpop.f32.mrf.mxu0
        %v2122 = vadd.f32 0.0, %v2121
        %v2123 = vpop.f32.mrf.mxu0
        %v2124 = vpop.f32.mrf.mxu0
        %v2125 = vadd.f32 0.0, %v2124
        %v2126 = vpop.f32.mrf.mxu0
        %2127 = vdwg.mxu0
        %2128 = vmatprep.subr.bf16.mxu0 0
        %2129 = vmatpush1.bf16.msra.mxu0 %v1862
        %2130 = vmatprep.subr.bf16.mxu0 0
        %2131 = vmatpush1.bf16.msra.mxu0 %v1861
        %2132 = vmatprep.subr.bf16.mxu0 0
        %2133 = vmatpush1.bf16.msra.mxu0 %v1860
        %2134 = vmatprep.subr.bf16.mxu0 0
        %2135 = vmatpush1.bf16.msra.mxu0 %v1859
        %2136 = vmatprep.subr.bf16.mxu0 0
        %2137 = vmatpush1.bf16.msra.mxu0 %v1858
        %2138 = vmatprep.subr.bf16.mxu0 0
        %2139 = vmatpush1.bf16.msra.mxu0 %v1857
        %2140 = vmatprep.subr.bf16.mxu0 0
        %2141 = vmatpush1.bf16.msra.mxu0 %v1856
        %2142 = vmatprep.subr.bf16.mxu0 0
        %2143 = vmatpush1.bf16.msra.mxu0 %v1855
        %2144 = vmatprep.subr.bf16.mxu0 0
        %2145 = vmatpush2.bf16.msra.mxu0 %v1870
        %2146 = vmatprep.subr.bf16.mxu0 0
        %2147 = vmatpush2.bf16.msra.mxu0 %v1869
        %2148 = vmatprep.subr.bf16.mxu0 0
        %2149 = vmatpush2.bf16.msra.mxu0 %v1868
        %2150 = vmatprep.subr.bf16.mxu0 0
        %2151 = vmatpush2.bf16.msra.mxu0 %v1867
        %2152 = vmatprep.subr.bf16.mxu0 0
        %2153 = vmatpush2.bf16.msra.mxu0 %v1866
        %2154 = vmatprep.subr.bf16.mxu0 0
        %2155 = vmatpush2.bf16.msra.mxu0 %v1865
        %2156 = vmatprep.subr.bf16.mxu0 0
        %2157 = vmatpush2.bf16.msra.mxu0 %v1864
        %2158 = vmatprep.subr.bf16.mxu0 0
        %2159 = vmatpush2.bf16.msra.mxu0 %v1863
        %2160 = vmatprep.mubr.bf16.mxu0 %v1330
        %2161 = vmatmul.mubr.bf16.gmra.mxu0 %v1329
        %v2162 = vpop.f32.mrf.mxu0
        %v2163 = vadd.f32 %v2002, %v2162
        %v2164 = vpop.f32.mrf.mxu0
        %v2165 = vpop.f32.mrf.mxu0
        %v2166 = vadd.f32 %v2005, %v2165
        %v2167 = vpop.f32.mrf.mxu0
        %2168 = vmatprep.mubr.bf16.mxu0 %v1338
        %2169 = vmatmul.mubr.bf16.gmra.mxu0 %v1337
        %v2170 = vpop.f32.mrf.mxu0
        %v2171 = vadd.f32 %v2010, %v2170
        %v2172 = vpop.f32.mrf.mxu0
        %v2173 = vpop.f32.mrf.mxu0
        %v2174 = vadd.f32 %v2013, %v2173
        %v2175 = vpop.f32.mrf.mxu0
        %2176 = vmatprep.mubr.bf16.mxu0 %v1346
        %2177 = vmatmul.mubr.bf16.gmra.mxu0 %v1345
        %v2178 = vpop.f32.mrf.mxu0
        %v2179 = vadd.f32 %v2018, %v2178
        %v2180 = vpop.f32.mrf.mxu0
        %v2181 = vpop.f32.mrf.mxu0
        %v2182 = vadd.f32 %v2021, %v2181
        %v2183 = vpop.f32.mrf.mxu0
        %2184 = vmatprep.mubr.bf16.mxu0 %v1354
        %2185 = vmatmul.mubr.bf16.gmra.mxu0 %v1353
        %v2186 = vpop.f32.mrf.mxu0
        %v2187 = vadd.f32 %v2026, %v2186
        %v2188 = vpop.f32.mrf.mxu0
        %v2189 = vpop.f32.mrf.mxu0
        %v2190 = vadd.f32 %v2029, %v2189
        %v2191 = vpop.f32.mrf.mxu0
        %2192 = vmatprep.mubr.bf16.mxu0 %v1362
        %2193 = vmatmul.mubr.bf16.gmra.mxu0 %v1361
        %v2194 = vpop.f32.mrf.mxu0
        %v2195 = vadd.f32 %v2034, %v2194
        %v2196 = vpop.f32.mrf.mxu0
        %v2197 = vpop.f32.mrf.mxu0
        %v2198 = vadd.f32 %v2037, %v2197
        %v2199 = vpop.f32.mrf.mxu0
        %2200 = vmatprep.mubr.bf16.mxu0 %v1370
        %2201 = vmatmul.mubr.bf16.gmra.mxu0 %v1369
        %v2202 = vpop.f32.mrf.mxu0
        %v2203 = vadd.f32 %v2042, %v2202
        %v2204 = vpop.f32.mrf.mxu0
        %v2205 = vpop.f32.mrf.mxu0
        %v2206 = vadd.f32 %v2045, %v2205
        %v2207 = vpop.f32.mrf.mxu0
        %2208 = vmatprep.mubr.bf16.mxu0 %v1378
        %2209 = vmatmul.mubr.bf16.gmra.mxu0 %v1377
        %v2210 = vpop.f32.mrf.mxu0
        %v2211 = vadd.f32 %v2050, %v2210
        %v2212 = vpop.f32.mrf.mxu0
        %v2213 = vpop.f32.mrf.mxu0
        %v2214 = vadd.f32 %v2053, %v2213
        %v2215 = vpop.f32.mrf.mxu0
        %2216 = vmatprep.mubr.bf16.mxu0 %v1386
        %2217 = vmatmul.mubr.bf16.gmra.mxu0 %v1385
        %v2218 = vpop.f32.mrf.mxu0
        %v2219 = vadd.f32 %v2058, %v2218
        %v2220 = vpop.f32.mrf.mxu0
        %v2221 = vpop.f32.mrf.mxu0
        %v2222 = vadd.f32 %v2061, %v2221
        %v2223 = vpop.f32.mrf.mxu0
        %2224 = vmatprep.mubr.bf16.mxu0 %v1394
        %2225 = vmatmul.mubr.bf16.gmra.mxu0 %v1393
        %v2226 = vpop.f32.mrf.mxu0
        %v2227 = vadd.f32 %v2066, %v2226
        %v2228 = vpop.f32.mrf.mxu0
        %v2229 = vpop.f32.mrf.mxu0
        %v2230 = vadd.f32 %v2069, %v2229
        %v2231 = vpop.f32.mrf.mxu0
        %2232 = vmatprep.mubr.bf16.mxu0 %v1402
        %2233 = vmatmul.mubr.bf16.gmra.mxu0 %v1401
        %v2234 = vpop.f32.mrf.mxu0
        %v2235 = vadd.f32 %v2074, %v2234
        %v2236 = vpop.f32.mrf.mxu0
        %v2237 = vpop.f32.mrf.mxu0
        %v2238 = vadd.f32 %v2077, %v2237
        %v2239 = vpop.f32.mrf.mxu0
        %2240 = vmatprep.mubr.bf16.mxu0 %v1410
        %2241 = vmatmul.mubr.bf16.gmra.mxu0 %v1409
        %v2242 = vpop.f32.mrf.mxu0
        %v2243 = vadd.f32 %v2082, %v2242
        %v2244 = vpop.f32.mrf.mxu0
        %v2245 = vpop.f32.mrf.mxu0
        %v2246 = vadd.f32 %v2085, %v2245
        %v2247 = vpop.f32.mrf.mxu0
        %2248 = vmatprep.mubr.bf16.mxu0 %v1418
        %2249 = vmatmul.mubr.bf16.gmra.mxu0 %v1417
        %v2250 = vpop.f32.mrf.mxu0
        %v2251 = vadd.f32 %v2090, %v2250
        %v2252 = vpop.f32.mrf.mxu0
        %v2253 = vpop.f32.mrf.mxu0
        %v2254 = vadd.f32 %v2093, %v2253
        %v2255 = vpop.f32.mrf.mxu0
        %2256 = vmatprep.mubr.bf16.mxu0 %v1426
        %2257 = vmatmul.mubr.bf16.gmra.mxu0 %v1425
        %v2258 = vpop.f32.mrf.mxu0
        %v2259 = vadd.f32 %v2098, %v2258
        %v2260 = vpop.f32.mrf.mxu0
        %v2261 = vpop.f32.mrf.mxu0
        %v2262 = vadd.f32 %v2101, %v2261
        %v2263 = vpop.f32.mrf.mxu0
        %2264 = vmatprep.mubr.bf16.mxu0 %v1434
        %2265 = vmatmul.mubr.bf16.gmra.mxu0 %v1433
        %v2266 = vpop.f32.mrf.mxu0
        %v2267 = vadd.f32 %v2106, %v2266
        %v2268 = vpop.f32.mrf.mxu0
        %v2269 = vpop.f32.mrf.mxu0
        %v2270 = vadd.f32 %v2109, %v2269
        %v2271 = vpop.f32.mrf.mxu0
        %2272 = vmatprep.mubr.bf16.mxu0 %v1442
        %2273 = vmatmul.mubr.bf16.gmra.mxu0 %v1441
        %v2274 = vpop.f32.mrf.mxu0
        %v2275 = vadd.f32 %v2114, %v2274
        %v2276 = vpop.f32.mrf.mxu0
        %v2277 = vpop.f32.mrf.mxu0
        %v2278 = vadd.f32 %v2117, %v2277
        %v2279 = vpop.f32.mrf.mxu0
        %2280 = vmatprep.mubr.bf16.mxu0 %v1450
        %2281 = vmatmul.mubr.bf16.gmra.mxu0 %v1449
        %v2282 = vpop.f32.mrf.mxu0
        %v2283 = vadd.f32 %v2122, %v2282
        %v2284 = vpop.f32.mrf.mxu0
        %v2285 = vpop.f32.mrf.mxu0
        %v2286 = vadd.f32 %v2125, %v2285
        %v2287 = vpop.f32.mrf.mxu0
        %2288 = vdwg.mxu0
        %2289 = vmatprep.subr.bf16.mxu0 0
        %2290 = vmatpush1.bf16.msra.mxu0 %v1878
        %2291 = vmatprep.subr.bf16.mxu0 0
        %2292 = vmatpush1.bf16.msra.mxu0 %v1877
        %2293 = vmatprep.subr.bf16.mxu0 0
        %2294 = vmatpush1.bf16.msra.mxu0 %v1876
        %2295 = vmatprep.subr.bf16.mxu0 0
        %2296 = vmatpush1.bf16.msra.mxu0 %v1875
        %2297 = vmatprep.subr.bf16.mxu0 0
        %2298 = vmatpush1.bf16.msra.mxu0 %v1874
        %2299 = vmatprep.subr.bf16.mxu0 0
        %2300 = vmatpush1.bf16.msra.mxu0 %v1873
        %2301 = vmatprep.subr.bf16.mxu0 0
        %2302 = vmatpush1.bf16.msra.mxu0 %v1872
        %2303 = vmatprep.subr.bf16.mxu0 0
        %2304 = vmatpush1.bf16.msra.mxu0 %v1871
        %2305 = vmatprep.subr.bf16.mxu0 0
        %2306 = vmatpush2.bf16.msra.mxu0 %v1886
        %2307 = vmatprep.subr.bf16.mxu0 0
        %2308 = vmatpush2.bf16.msra.mxu0 %v1885
        %2309 = vmatprep.subr.bf16.mxu0 0
        %2310 = vmatpush2.bf16.msra.mxu0 %v1884
        %2311 = vmatprep.subr.bf16.mxu0 0
        %2312 = vmatpush2.bf16.msra.mxu0 %v1883
        %2313 = vmatprep.subr.bf16.mxu0 0
        %2314 = vmatpush2.bf16.msra.mxu0 %v1882
        %2315 = vmatprep.subr.bf16.mxu0 0
        %2316 = vmatpush2.bf16.msra.mxu0 %v1881
        %2317 = vmatprep.subr.bf16.mxu0 0
        %2318 = vmatpush2.bf16.msra.mxu0 %v1880
        %2319 = vmatprep.subr.bf16.mxu0 0
        %2320 = vmatpush2.bf16.msra.mxu0 %v1879
        %2321 = vmatprep.mubr.bf16.mxu0 %v1332
        %2322 = vmatmul.mubr.bf16.gmra.mxu0 %v1331
        %v2323 = vpop.f32.mrf.mxu0
        %v2324 = vadd.f32 %v2163, %v2323
        %v2325 = vpop.f32.mrf.mxu0
        %v2326 = vpop.f32.mrf.mxu0
        %v2327 = vadd.f32 %v2166, %v2326
        %v2328 = vpop.f32.mrf.mxu0
        %2329 = vmatprep.mubr.bf16.mxu0 %v1340
        %2330 = vmatmul.mubr.bf16.gmra.mxu0 %v1339
        %v2331 = vpop.f32.mrf.mxu0
        %v2332 = vadd.f32 %v2171, %v2331
        %v2333 = vpop.f32.mrf.mxu0
        %v2334 = vpop.f32.mrf.mxu0
        %v2335 = vadd.f32 %v2174, %v2334
        %v2336 = vpop.f32.mrf.mxu0
        %2337 = vmatprep.mubr.bf16.mxu0 %v1348
        %2338 = vmatmul.mubr.bf16.gmra.mxu0 %v1347
        %v2339 = vpop.f32.mrf.mxu0
        %v2340 = vadd.f32 %v2179, %v2339
        %v2341 = vpop.f32.mrf.mxu0
        %v2342 = vpop.f32.mrf.mxu0
        %v2343 = vadd.f32 %v2182, %v2342
        %v2344 = vpop.f32.mrf.mxu0
        %2345 = vmatprep.mubr.bf16.mxu0 %v1356
        %2346 = vmatmul.mubr.bf16.gmra.mxu0 %v1355
        %v2347 = vpop.f32.mrf.mxu0
        %v2348 = vadd.f32 %v2187, %v2347
        %v2349 = vpop.f32.mrf.mxu0
        %v2350 = vpop.f32.mrf.mxu0
        %v2351 = vadd.f32 %v2190, %v2350
        %v2352 = vpop.f32.mrf.mxu0
        %2353 = vmatprep.mubr.bf16.mxu0 %v1364
        %2354 = vmatmul.mubr.bf16.gmra.mxu0 %v1363
        %v2355 = vpop.f32.mrf.mxu0
        %v2356 = vadd.f32 %v2195, %v2355
        %v2357 = vpop.f32.mrf.mxu0
        %v2358 = vpop.f32.mrf.mxu0
        %v2359 = vadd.f32 %v2198, %v2358
        %v2360 = vpop.f32.mrf.mxu0
        %2361 = vmatprep.mubr.bf16.mxu0 %v1372
        %2362 = vmatmul.mubr.bf16.gmra.mxu0 %v1371
        %v2363 = vpop.f32.mrf.mxu0
        %v2364 = vadd.f32 %v2203, %v2363
        %v2365 = vpop.f32.mrf.mxu0
        %v2366 = vpop.f32.mrf.mxu0
        %v2367 = vadd.f32 %v2206, %v2366
        %v2368 = vpop.f32.mrf.mxu0
        %2369 = vmatprep.mubr.bf16.mxu0 %v1380
        %2370 = vmatmul.mubr.bf16.gmra.mxu0 %v1379
        %v2371 = vpop.f32.mrf.mxu0
        %v2372 = vadd.f32 %v2211, %v2371
        %v2373 = vpop.f32.mrf.mxu0
        %v2374 = vpop.f32.mrf.mxu0
        %v2375 = vadd.f32 %v2214, %v2374
        %v2376 = vpop.f32.mrf.mxu0
        %2377 = vmatprep.mubr.bf16.mxu0 %v1388
        %2378 = vmatmul.mubr.bf16.gmra.mxu0 %v1387
        %v2379 = vpop.f32.mrf.mxu0
        %v2380 = vadd.f32 %v2219, %v2379
        %v2381 = vpop.f32.mrf.mxu0
        %v2382 = vpop.f32.mrf.mxu0
        %v2383 = vadd.f32 %v2222, %v2382
        %v2384 = vpop.f32.mrf.mxu0
        %2385 = vmatprep.mubr.bf16.mxu0 %v1396
        %2386 = vmatmul.mubr.bf16.gmra.mxu0 %v1395
        %v2387 = vpop.f32.mrf.mxu0
        %v2388 = vadd.f32 %v2227, %v2387
        %v2389 = vpop.f32.mrf.mxu0
        %v2390 = vpop.f32.mrf.mxu0
        %v2391 = vadd.f32 %v2230, %v2390
        %v2392 = vpop.f32.mrf.mxu0
        %2393 = vmatprep.mubr.bf16.mxu0 %v1404
        %2394 = vmatmul.mubr.bf16.gmra.mxu0 %v1403
        %v2395 = vpop.f32.mrf.mxu0
        %v2396 = vadd.f32 %v2235, %v2395
        %v2397 = vpop.f32.mrf.mxu0
        %v2398 = vpop.f32.mrf.mxu0
        %v2399 = vadd.f32 %v2238, %v2398
        %v2400 = vpop.f32.mrf.mxu0
        %2401 = vmatprep.mubr.bf16.mxu0 %v1412
        %2402 = vmatmul.mubr.bf16.gmra.mxu0 %v1411
        %v2403 = vpop.f32.mrf.mxu0
        %v2404 = vadd.f32 %v2243, %v2403
        %v2405 = vpop.f32.mrf.mxu0
        %v2406 = vpop.f32.mrf.mxu0
        %v2407 = vadd.f32 %v2246, %v2406
        %v2408 = vpop.f32.mrf.mxu0
        %2409 = vmatprep.mubr.bf16.mxu0 %v1420
        %2410 = vmatmul.mubr.bf16.gmra.mxu0 %v1419
        %v2411 = vpop.f32.mrf.mxu0
        %v2412 = vadd.f32 %v2251, %v2411
        %v2413 = vpop.f32.mrf.mxu0
        %v2414 = vpop.f32.mrf.mxu0
        %v2415 = vadd.f32 %v2254, %v2414
        %v2416 = vpop.f32.mrf.mxu0
        %2417 = vmatprep.mubr.bf16.mxu0 %v1428
        %2418 = vmatmul.mubr.bf16.gmra.mxu0 %v1427
        %v2419 = vpop.f32.mrf.mxu0
        %v2420 = vadd.f32 %v2259, %v2419
        %v2421 = vpop.f32.mrf.mxu0
        %v2422 = vpop.f32.mrf.mxu0
        %v2423 = vadd.f32 %v2262, %v2422
        %v2424 = vpop.f32.mrf.mxu0
        %2425 = vmatprep.mubr.bf16.mxu0 %v1436
        %2426 = vmatmul.mubr.bf16.gmra.mxu0 %v1435
        %v2427 = vpop.f32.mrf.mxu0
        %v2428 = vadd.f32 %v2267, %v2427
        %v2429 = vpop.f32.mrf.mxu0
        %v2430 = vpop.f32.mrf.mxu0
        %v2431 = vadd.f32 %v2270, %v2430
        %v2432 = vpop.f32.mrf.mxu0
        %2433 = vmatprep.mubr.bf16.mxu0 %v1444
        %2434 = vmatmul.mubr.bf16.gmra.mxu0 %v1443
        %v2435 = vpop.f32.mrf.mxu0
        %v2436 = vadd.f32 %v2275, %v2435
        %v2437 = vpop.f32.mrf.mxu0
        %v2438 = vpop.f32.mrf.mxu0
        %v2439 = vadd.f32 %v2278, %v2438
        %v2440 = vpop.f32.mrf.mxu0
        %2441 = vmatprep.mubr.bf16.mxu0 %v1452
        %2442 = vmatmul.mubr.bf16.gmra.mxu0 %v1451
        %v2443 = vpop.f32.mrf.mxu0
        %v2444 = vadd.f32 %v2283, %v2443
        %v2445 = vpop.f32.mrf.mxu0
        %v2446 = vpop.f32.mrf.mxu0
        %v2447 = vadd.f32 %v2286, %v2446
        %v2448 = vpop.f32.mrf.mxu0
        %2449 = vdwg.mxu0
        %2450 = vmatprep.subr.bf16.mxu0 0
        %2451 = vmatpush1.bf16.msra.mxu0 %v1894
        %2452 = vmatprep.subr.bf16.mxu0 0
        %2453 = vmatpush1.bf16.msra.mxu0 %v1893
        %2454 = vmatprep.subr.bf16.mxu0 0
        %2455 = vmatpush1.bf16.msra.mxu0 %v1892
        %2456 = vmatprep.subr.bf16.mxu0 0
        %2457 = vmatpush1.bf16.msra.mxu0 %v1891
        %2458 = vmatprep.subr.bf16.mxu0 0
        %2459 = vmatpush1.bf16.msra.mxu0 %v1890
        %2460 = vmatprep.subr.bf16.mxu0 0
        %2461 = vmatpush1.bf16.msra.mxu0 %v1889
        %2462 = vmatprep.subr.bf16.mxu0 0
        %2463 = vmatpush1.bf16.msra.mxu0 %v1888
        %2464 = vmatprep.subr.bf16.mxu0 0
        %2465 = vmatpush1.bf16.msra.mxu0 %v1887
        %2466 = vmatprep.subr.bf16.mxu0 0
        %2467 = vmatpush2.bf16.msra.mxu0 %v1902
        %2468 = vmatprep.subr.bf16.mxu0 0
        %2469 = vmatpush2.bf16.msra.mxu0 %v1901
        %2470 = vmatprep.subr.bf16.mxu0 0
        %2471 = vmatpush2.bf16.msra.mxu0 %v1900
        %2472 = vmatprep.subr.bf16.mxu0 0
        %2473 = vmatpush2.bf16.msra.mxu0 %v1899
        %2474 = vmatprep.subr.bf16.mxu0 0
        %2475 = vmatpush2.bf16.msra.mxu0 %v1898
        %2476 = vmatprep.subr.bf16.mxu0 0
        %2477 = vmatpush2.bf16.msra.mxu0 %v1897
        %2478 = vmatprep.subr.bf16.mxu0 0
        %2479 = vmatpush2.bf16.msra.mxu0 %v1896
        %2480 = vmatprep.subr.bf16.mxu0 0
        %2481 = vmatpush2.bf16.msra.mxu0 %v1895
        %2482 = vmatprep.mubr.bf16.mxu0 %v1334
        %2483 = vmatmul.mubr.bf16.gmra.mxu0 %v1333
        %v2484 = vpop.f32.mrf.mxu0
        %v2485 = vadd.f32 %v2324, %v2484
        %v2486 = vpop.f32.mrf.mxu0
        %v2487 = vpop.f32.mrf.mxu0
        %v2488 = vadd.f32 %v2327, %v2487
        %v2489 = vpop.f32.mrf.mxu0
        %2490 = vmatprep.mubr.bf16.mxu0 %v1342
        %2491 = vmatmul.mubr.bf16.gmra.mxu0 %v1341
        %v2492 = vpop.f32.mrf.mxu0
        %v2493 = vadd.f32 %v2332, %v2492
        %v2494 = vpop.f32.mrf.mxu0
        %v2495 = vpop.f32.mrf.mxu0
        %v2496 = vadd.f32 %v2335, %v2495
        %v2497 = vpop.f32.mrf.mxu0
        %2498 = vmatprep.mubr.bf16.mxu0 %v1350
        %2499 = vmatmul.mubr.bf16.gmra.mxu0 %v1349
        %v2500 = vpop.f32.mrf.mxu0
        %v2501 = vadd.f32 %v2340, %v2500
        %v2502 = vpop.f32.mrf.mxu0
        %v2503 = vpop.f32.mrf.mxu0
        %v2504 = vadd.f32 %v2343, %v2503
        %v2505 = vpop.f32.mrf.mxu0
        %2506 = vmatprep.mubr.bf16.mxu0 %v1358
        %2507 = vmatmul.mubr.bf16.gmra.mxu0 %v1357
        %v2508 = vpop.f32.mrf.mxu0
        %v2509 = vadd.f32 %v2348, %v2508
        %v2510 = vpop.f32.mrf.mxu0
        %v2511 = vpop.f32.mrf.mxu0
        %v2512 = vadd.f32 %v2351, %v2511
        %v2513 = vpop.f32.mrf.mxu0
        %2514 = vmatprep.mubr.bf16.mxu0 %v1366
        %2515 = vmatmul.mubr.bf16.gmra.mxu0 %v1365
        %v2516 = vpop.f32.mrf.mxu0
        %v2517 = vadd.f32 %v2356, %v2516
        %v2518 = vpop.f32.mrf.mxu0
        %v2519 = vpop.f32.mrf.mxu0
        %v2520 = vadd.f32 %v2359, %v2519
        %v2521 = vpop.f32.mrf.mxu0
        %2522 = vmatprep.mubr.bf16.mxu0 %v1374
        %2523 = vmatmul.mubr.bf16.gmra.mxu0 %v1373
        %v2524 = vpop.f32.mrf.mxu0
        %v2525 = vadd.f32 %v2364, %v2524
        %v2526 = vpop.f32.mrf.mxu0
        %v2527 = vpop.f32.mrf.mxu0
        %v2528 = vadd.f32 %v2367, %v2527
        %v2529 = vpop.f32.mrf.mxu0
        %2530 = vmatprep.mubr.bf16.mxu0 %v1382
        %2531 = vmatmul.mubr.bf16.gmra.mxu0 %v1381
        %v2532 = vpop.f32.mrf.mxu0
        %v2533 = vadd.f32 %v2372, %v2532
        %v2534 = vpop.f32.mrf.mxu0
        %v2535 = vpop.f32.mrf.mxu0
        %v2536 = vadd.f32 %v2375, %v2535
        %v2537 = vpop.f32.mrf.mxu0
        %2538 = vmatprep.mubr.bf16.mxu0 %v1390
        %2539 = vmatmul.mubr.bf16.gmra.mxu0 %v1389
        %v2540 = vpop.f32.mrf.mxu0
        %v2541 = vadd.f32 %v2380, %v2540
        %v2542 = vpop.f32.mrf.mxu0
        %v2543 = vpop.f32.mrf.mxu0
        %v2544 = vadd.f32 %v2383, %v2543
        %v2545 = vpop.f32.mrf.mxu0
        %2546 = vmatprep.mubr.bf16.mxu0 %v1398
        %2547 = vmatmul.mubr.bf16.gmra.mxu0 %v1397
        %v2548 = vpop.f32.mrf.mxu0
        %v2549 = vadd.f32 %v2388, %v2548
        %v2550 = vpop.f32.mrf.mxu0
        %v2551 = vpop.f32.mrf.mxu0
        %v2552 = vadd.f32 %v2391, %v2551
        %v2553 = vpop.f32.mrf.mxu0
        %2554 = vmatprep.mubr.bf16.mxu0 %v1406
        %2555 = vmatmul.mubr.bf16.gmra.mxu0 %v1405
        %v2556 = vpop.f32.mrf.mxu0
        %v2557 = vadd.f32 %v2396, %v2556
        %v2558 = vpop.f32.mrf.mxu0
        %v2559 = vpop.f32.mrf.mxu0
        %v2560 = vadd.f32 %v2399, %v2559
        %v2561 = vpop.f32.mrf.mxu0
        %2562 = vmatprep.mubr.bf16.mxu0 %v1414
        %2563 = vmatmul.mubr.bf16.gmra.mxu0 %v1413
        %v2564 = vpop.f32.mrf.mxu0
        %v2565 = vadd.f32 %v2404, %v2564
        %v2566 = vpop.f32.mrf.mxu0
        %v2567 = vpop.f32.mrf.mxu0
        %v2568 = vadd.f32 %v2407, %v2567
        %v2569 = vpop.f32.mrf.mxu0
        %2570 = vmatprep.mubr.bf16.mxu0 %v1422
        %2571 = vmatmul.mubr.bf16.gmra.mxu0 %v1421
        %v2572 = vpop.f32.mrf.mxu0
        %v2573 = vadd.f32 %v2412, %v2572
        %v2574 = vpop.f32.mrf.mxu0
        %v2575 = vpop.f32.mrf.mxu0
        %v2576 = vadd.f32 %v2415, %v2575
        %v2577 = vpop.f32.mrf.mxu0
        %2578 = vmatprep.mubr.bf16.mxu0 %v1430
        %2579 = vmatmul.mubr.bf16.gmra.mxu0 %v1429
        %v2580 = vpop.f32.mrf.mxu0
        %v2581 = vadd.f32 %v2420, %v2580
        %v2582 = vpop.f32.mrf.mxu0
        %v2583 = vpop.f32.mrf.mxu0
        %v2584 = vadd.f32 %v2423, %v2583
        %v2585 = vpop.f32.mrf.mxu0
        %2586 = vmatprep.mubr.bf16.mxu0 %v1438
        %2587 = vmatmul.mubr.bf16.gmra.mxu0 %v1437
        %v2588 = vpop.f32.mrf.mxu0
        %v2589 = vadd.f32 %v2428, %v2588
        %v2590 = vpop.f32.mrf.mxu0
        %v2591 = vpop.f32.mrf.mxu0
        %v2592 = vadd.f32 %v2431, %v2591
        %v2593 = vpop.f32.mrf.mxu0
        %2594 = vmatprep.mubr.bf16.mxu0 %v1446
        %2595 = vmatmul.mubr.bf16.gmra.mxu0 %v1445
        %v2596 = vpop.f32.mrf.mxu0
        %v2597 = vadd.f32 %v2436, %v2596
        %v2598 = vpop.f32.mrf.mxu0
        %v2599 = vpop.f32.mrf.mxu0
        %v2600 = vadd.f32 %v2439, %v2599
        %v2601 = vpop.f32.mrf.mxu0
        %2602 = vmatprep.mubr.bf16.mxu0 %v1454
        %2603 = vmatmul.mubr.bf16.gmra.mxu0 %v1453
        %v2604 = vpop.f32.mrf.mxu0
        %v2605 = vadd.f32 %v2444, %v2604
        %v2606 = vpop.f32.mrf.mxu0
        %v2607 = vpop.f32.mrf.mxu0
        %v2608 = vadd.f32 %v2447, %v2607
        %v2609 = vpop.f32.mrf.mxu0
        %2610 = vdwg.mxu0
        %v2611 = vld [vmem:[%s2] sm:$0xff]
        %v2612 = vld [vmem:[%s2 + $0x8] sm:$0xff]
        %v2613 = vld [vmem:[%s2 + $0x10] sm:$0xff]
        %v2614 = vld [vmem:[%s2 + $0x18] sm:$0xff]
        %vm2615 = vcmask 261120
        %v2617 = vsel %vm2615, %v2485, 0
        %v2620 = vsel %vm2615, %v2488, 0
        %v2623 = vsel %vm2615, %v2493, 0
        %v2626 = vsel %vm2615, %v2496, 0
        %v2629 = vsel %vm2615, %v2501, 0
        %v2632 = vsel %vm2615, %v2504, 0
        %v2635 = vsel %vm2615, %v2509, 0
        %v2638 = vsel %vm2615, %v2512, 0
        %v2641 = vsel %vm2615, %v2517, 0
        %v2644 = vsel %vm2615, %v2520, 0
        %v2647 = vsel %vm2615, %v2525, 0
        %v2650 = vsel %vm2615, %v2528, 0
        %v2653 = vsel %vm2615, %v2533, 0
        %v2656 = vsel %vm2615, %v2536, 0
        %v2659 = vsel %vm2615, %v2541, 0
        %v2662 = vsel %vm2615, %v2544, 0
        %v2665 = vsel %vm2615, %v2549, 0
        %v2668 = vsel %vm2615, %v2552, 0
        %v2671 = vsel %vm2615, %v2557, 0
        %v2674 = vsel %vm2615, %v2560, 0
        %v2677 = vsel %vm2615, %v2565, 0
        %v2680 = vsel %vm2615, %v2568, 0
        %v2683 = vsel %vm2615, %v2573, 0
        %v2686 = vsel %vm2615, %v2576, 0
        %v2689 = vsel %vm2615, %v2581, 0
        %v2692 = vsel %vm2615, %v2584, 0
        %v2695 = vsel %vm2615, %v2589, 0
        %v2698 = vsel %vm2615, %v2592, 0
        %v2701 = vsel %vm2615, %v2597, 0
        %v2704 = vsel %vm2615, %v2600, 0
        %v2707 = vsel %vm2615, %v2605, 0
        %v2710 = vsel %vm2615, %v2608, 0
        %2712 = vmatprep.subr.mxu0 0.0
        %2713 = vmatpush1.msra.mxu0 0.0
        %2714 = vmatprep.subr.mxu0 0.0
        %2715 = vmatpush1.msra.mxu0 0.0
        %2716 = vmatprep.subr.mxu0 0.0
        %2717 = vmatpush1.msra.mxu0 0.0
        %2718 = vmatprep.subr.mxu0 0.0
        %2719 = vmatpush1.msra.mxu0 0.0
        %2720 = vmatprep.subr.mxu0 0.0
        %2721 = vmatpush1.msra.mxu0 0.0
        %2722 = vmatprep.subr.mxu0 0.0
        %2723 = vmatpush1.msra.mxu0 0.0
        %2724 = vmatprep.subr.mxu0 0.0
        %2725 = vmatpush1.msra.mxu0 0.0
        %2726 = vmatprep.subr.mxu0 0.0
        %2727 = vmatpush1.msra.mxu0 0.0
        %2728 = vmatprep.subr.mxu0 0.0
        %2729 = vmatpush1.msra.mxu0 0.0
        %2730 = vmatprep.subr.mxu0 0.0
        %2731 = vmatpush1.msra.mxu0 0.0
        %2732 = vmatprep.subr.mxu0 0.0
        %2733 = vmatpush1.msra.mxu0 0.0
        %2734 = vmatprep.subr.mxu0 0.0
        %2735 = vmatpush1.msra.mxu0 0.0
        %2736 = vmatprep.subr.mxu0 0.0
        %2737 = vmatpush1.msra.mxu0 %v2614
        %2738 = vmatprep.subr.mxu0 0.0
        %2739 = vmatpush1.msra.mxu0 %v2613
        %2740 = vmatprep.subr.mxu0 0.0
        %2741 = vmatpush1.msra.mxu0 %v2612
        %2742 = vmatprep.subr.mxu0 0.0
        %2743 = vmatpush1.msra.mxu0 %v2611
        %2744 = vmatprep.subr.mxu0 0.0
        %2745 = vmatpush2.msra.mxu0 0.0
        %2746 = vmatprep.subr.mxu0 0.0
        %2747 = vmatpush2.msra.mxu0 0.0
        %2748 = vmatprep.subr.mxu0 0.0
        %2749 = vmatpush2.msra.mxu0 0.0
        %2750 = vmatprep.subr.mxu0 0.0
        %2751 = vmatpush2.msra.mxu0 0.0
        %2752 = vmatprep.subr.mxu0 0.0
        %2753 = vmatpush2.msra.mxu0 0.0
        %2754 = vmatprep.subr.mxu0 0.0
        %2755 = vmatpush2.msra.mxu0 0.0
        %2756 = vmatprep.subr.mxu0 0.0
        %2757 = vmatpush2.msra.mxu0 0.0
        %2758 = vmatprep.subr.mxu0 0.0
        %2759 = vmatpush2.msra.mxu0 0.0
        %2760 = vmatprep.subr.mxu0 0.0
        %2761 = vmatpush2.msra.mxu0 0.0
        %2762 = vmatprep.subr.mxu0 0.0
        %2763 = vmatpush2.msra.mxu0 0.0
        %2764 = vmatprep.subr.mxu0 0.0
        %2765 = vmatpush2.msra.mxu0 0.0
        %2766 = vmatprep.subr.mxu0 0.0
        %2767 = vmatpush2.msra.mxu0 0.0
        %2768 = vmatprep.subr.mxu0 0.0
        %2769 = vmatpush2.msra.mxu0 0.0
        %2770 = vmatprep.subr.mxu0 0.0
        %2771 = vmatpush2.msra.mxu0 0.0
        %2772 = vmatprep.subr.mxu0 0.0
        %2773 = vmatpush2.msra.mxu0 0.0
        %2774 = vmatprep.subr.mxu0 0.0
        %2775 = vmatpush2.msra.mxu0 0.0
        %2776 = vmatprep.mubr.f32.mxu0 0.0
        %2777 = vmatmul.mubr.f32.gmra.mxu0 %v2617
        %v2778 = vpop.f32.mrf.mxu0
        %v2779 = vadd.f32 0.0, %v2778
        %v2780 = vpop.f32.mrf.mxu0
        %2781 = vmatprep.mubr.f32.mxu0 0.0
        %2782 = vmatmul.mubr.f32.gmra.mxu0 %v2620
        %v2783 = vpop.f32.mrf.mxu0
        %v2784 = vadd.f32 0.0, %v2783
        %v2785 = vpop.f32.mrf.mxu0
        %2786 = vmatprep.mubr.f32.mxu0 0.0
        %2787 = vmatmul.mubr.f32.gmra.mxu0 %v2623
        %v2788 = vpop.f32.mrf.mxu0
        %v2789 = vadd.f32 0.0, %v2788
        %v2790 = vpop.f32.mrf.mxu0
        %2791 = vmatprep.mubr.f32.mxu0 0.0
        %2792 = vmatmul.mubr.f32.gmra.mxu0 %v2626
        %v2793 = vpop.f32.mrf.mxu0
        %v2794 = vadd.f32 0.0, %v2793
        %v2795 = vpop.f32.mrf.mxu0
        %2796 = vmatprep.mubr.f32.mxu0 0.0
        %2797 = vmatmul.mubr.f32.gmra.mxu0 %v2629
        %v2798 = vpop.f32.mrf.mxu0
        %v2799 = vadd.f32 0.0, %v2798
        %v2800 = vpop.f32.mrf.mxu0
        %2801 = vmatprep.mubr.f32.mxu0 0.0
        %2802 = vmatmul.mubr.f32.gmra.mxu0 %v2632
        %v2803 = vpop.f32.mrf.mxu0
        %v2804 = vadd.f32 0.0, %v2803
        %v2805 = vpop.f32.mrf.mxu0
        %2806 = vmatprep.mubr.f32.mxu0 0.0
        %2807 = vmatmul.mubr.f32.gmra.mxu0 %v2635
        %v2808 = vpop.f32.mrf.mxu0
        %v2809 = vadd.f32 0.0, %v2808
        %v2810 = vpop.f32.mrf.mxu0
        %2811 = vmatprep.mubr.f32.mxu0 0.0
        %2812 = vmatmul.mubr.f32.gmra.mxu0 %v2638
        %v2813 = vpop.f32.mrf.mxu0
        %v2814 = vadd.f32 0.0, %v2813
        %v2815 = vpop.f32.mrf.mxu0
        %2816 = vmatprep.mubr.f32.mxu0 0.0
        %2817 = vmatmul.mubr.f32.gmra.mxu0 %v2641
        %v2818 = vpop.f32.mrf.mxu0
        %v2819 = vadd.f32 0.0, %v2818
        %v2820 = vpop.f32.mrf.mxu0
        %2821 = vmatprep.mubr.f32.mxu0 0.0
        %2822 = vmatmul.mubr.f32.gmra.mxu0 %v2644
        %v2823 = vpop.f32.mrf.mxu0
        %v2824 = vadd.f32 0.0, %v2823
        %v2825 = vpop.f32.mrf.mxu0
        %2826 = vmatprep.mubr.f32.mxu0 0.0
        %2827 = vmatmul.mubr.f32.gmra.mxu0 %v2647
        %v2828 = vpop.f32.mrf.mxu0
        %v2829 = vadd.f32 0.0, %v2828
        %v2830 = vpop.f32.mrf.mxu0
        %2831 = vmatprep.mubr.f32.mxu0 0.0
        %2832 = vmatmul.mubr.f32.gmra.mxu0 %v2650
        %v2833 = vpop.f32.mrf.mxu0
        %v2834 = vadd.f32 0.0, %v2833
        %v2835 = vpop.f32.mrf.mxu0
        %2836 = vmatprep.mubr.f32.mxu0 0.0
        %2837 = vmatmul.mubr.f32.gmra.mxu0 %v2653
        %v2838 = vpop.f32.mrf.mxu0
        %v2839 = vadd.f32 0.0, %v2838
        %v2840 = vpop.f32.mrf.mxu0
        %2841 = vmatprep.mubr.f32.mxu0 0.0
        %2842 = vmatmul.mubr.f32.gmra.mxu0 %v2656
        %v2843 = vpop.f32.mrf.mxu0
        %v2844 = vadd.f32 0.0, %v2843
        %v2845 = vpop.f32.mrf.mxu0
        %2846 = vmatprep.mubr.f32.mxu0 0.0
        %2847 = vmatmul.mubr.f32.gmra.mxu0 %v2659
        %v2848 = vpop.f32.mrf.mxu0
        %v2849 = vadd.f32 0.0, %v2848
        %v2850 = vpop.f32.mrf.mxu0
        %2851 = vmatprep.mubr.f32.mxu0 0.0
        %2852 = vmatmul.mubr.f32.gmra.mxu0 %v2662
        %v2853 = vpop.f32.mrf.mxu0
        %v2854 = vadd.f32 0.0, %v2853
        %v2855 = vpop.f32.mrf.mxu0
        %2856 = vmatprep.mubr.f32.mxu0 0.0
        %2857 = vmatmul.mubr.f32.gmra.mxu0 %v2665
        %v2858 = vpop.f32.mrf.mxu0
        %v2859 = vadd.f32 0.0, %v2858
        %v2860 = vpop.f32.mrf.mxu0
        %2861 = vmatprep.mubr.f32.mxu0 0.0
        %2862 = vmatmul.mubr.f32.gmra.mxu0 %v2668
        %v2863 = vpop.f32.mrf.mxu0
        %v2864 = vadd.f32 0.0, %v2863
        %v2865 = vpop.f32.mrf.mxu0
        %2866 = vmatprep.mubr.f32.mxu0 0.0
        %2867 = vmatmul.mubr.f32.gmra.mxu0 %v2671
        %v2868 = vpop.f32.mrf.mxu0
        %v2869 = vadd.f32 0.0, %v2868
        %v2870 = vpop.f32.mrf.mxu0
        %2871 = vmatprep.mubr.f32.mxu0 0.0
        %2872 = vmatmul.mubr.f32.gmra.mxu0 %v2674
        %v2873 = vpop.f32.mrf.mxu0
        %v2874 = vadd.f32 0.0, %v2873
        %v2875 = vpop.f32.mrf.mxu0
        %2876 = vmatprep.mubr.f32.mxu0 0.0
        %2877 = vmatmul.mubr.f32.gmra.mxu0 %v2677
        %v2878 = vpop.f32.mrf.mxu0
        %v2879 = vadd.f32 0.0, %v2878
        %v2880 = vpop.f32.mrf.mxu0
        %2881 = vmatprep.mubr.f32.mxu0 0.0
        %2882 = vmatmul.mubr.f32.gmra.mxu0 %v2680
        %v2883 = vpop.f32.mrf.mxu0
        %v2884 = vadd.f32 0.0, %v2883
        %v2885 = vpop.f32.mrf.mxu0
        %2886 = vmatprep.mubr.f32.mxu0 0.0
        %2887 = vmatmul.mubr.f32.gmra.mxu0 %v2683
        %v2888 = vpop.f32.mrf.mxu0
        %v2889 = vadd.f32 0.0, %v2888
        %v2890 = vpop.f32.mrf.mxu0
        %2891 = vmatprep.mubr.f32.mxu0 0.0
        %2892 = vmatmul.mubr.f32.gmra.mxu0 %v2686
        %v2893 = vpop.f32.mrf.mxu0
        %v2894 = vadd.f32 0.0, %v2893
        %v2895 = vpop.f32.mrf.mxu0
        %2896 = vmatprep.mubr.f32.mxu0 0.0
        %2897 = vmatmul.mubr.f32.gmra.mxu0 %v2689
        %v2898 = vpop.f32.mrf.mxu0
        %v2899 = vadd.f32 0.0, %v2898
        %v2900 = vpop.f32.mrf.mxu0
        %2901 = vmatprep.mubr.f32.mxu0 0.0
        %2902 = vmatmul.mubr.f32.gmra.mxu0 %v2692
        %v2903 = vpop.f32.mrf.mxu0
        %v2904 = vadd.f32 0.0, %v2903
        %v2905 = vpop.f32.mrf.mxu0
        %2906 = vmatprep.mubr.f32.mxu0 0.0
        %2907 = vmatmul.mubr.f32.gmra.mxu0 %v2695
        %v2908 = vpop.f32.mrf.mxu0
        %v2909 = vadd.f32 0.0, %v2908
        %v2910 = vpop.f32.mrf.mxu0
        %2911 = vmatprep.mubr.f32.mxu0 0.0
        %2912 = vmatmul.mubr.f32.gmra.mxu0 %v2698
        %v2913 = vpop.f32.mrf.mxu0
        %v2914 = vadd.f32 0.0, %v2913
        %v2915 = vpop.f32.mrf.mxu0
        %2916 = vmatprep.mubr.f32.mxu0 0.0
        %2917 = vmatmul.mubr.f32.gmra.mxu0 %v2701
        %v2918 = vpop.f32.mrf.mxu0
        %v2919 = vadd.f32 0.0, %v2918
        %v2920 = vpop.f32.mrf.mxu0
        %2921 = vmatprep.mubr.f32.mxu0 0.0
        %2922 = vmatmul.mubr.f32.gmra.mxu0 %v2704
        %v2923 = vpop.f32.mrf.mxu0
        %v2924 = vadd.f32 0.0, %v2923
        %v2925 = vpop.f32.mrf.mxu0
        %2926 = vmatprep.mubr.f32.mxu0 0.0
        %2927 = vmatmul.mubr.f32.gmra.mxu0 %v2707
        %v2928 = vpop.f32.mrf.mxu0
        %v2929 = vadd.f32 0.0, %v2928
        %v2930 = vpop.f32.mrf.mxu0
        %2931 = vmatprep.mubr.f32.mxu0 0.0
        %2932 = vmatmul.mubr.f32.gmra.mxu0 %v2710
        %v2933 = vpop.f32.mrf.mxu0
        %v2934 = vadd.f32 0.0, %v2933
        %v2935 = vpop.f32.mrf.mxu0
        %2936 = vdwg.mxu0
        %vm2937 = vcmp.gt.f32.partialorder %v2779, 0.0
        %vm2938 = vcmp.gt.f32.partialorder %v2784, 0.0
        %vm2939 = vcmp.gt.f32.partialorder %v2789, 0.0
        %vm2940 = vcmp.gt.f32.partialorder %v2794, 0.0
        %vm2941 = vcmp.gt.f32.partialorder %v2799, 0.0
        %vm2942 = vcmp.gt.f32.partialorder %v2804, 0.0
        %vm2943 = vcmp.gt.f32.partialorder %v2809, 0.0
        %vm2944 = vcmp.gt.f32.partialorder %v2814, 0.0
        %vm2945 = vcmp.gt.f32.partialorder %v2819, 0.0
        %vm2946 = vcmp.gt.f32.partialorder %v2824, 0.0
        %vm2947 = vcmp.gt.f32.partialorder %v2829, 0.0
        %vm2948 = vcmp.gt.f32.partialorder %v2834, 0.0
        %vm2949 = vcmp.gt.f32.partialorder %v2839, 0.0
        %vm2950 = vcmp.gt.f32.partialorder %v2844, 0.0
        %vm2951 = vcmp.gt.f32.partialorder %v2849, 0.0
        %vm2952 = vcmp.gt.f32.partialorder %v2854, 0.0
        %vm2953 = vcmp.gt.f32.partialorder %v2859, 0.0
        %vm2954 = vcmp.gt.f32.partialorder %v2864, 0.0
        %vm2955 = vcmp.gt.f32.partialorder %v2869, 0.0
        %vm2956 = vcmp.gt.f32.partialorder %v2874, 0.0
        %vm2957 = vcmp.gt.f32.partialorder %v2879, 0.0
        %vm2958 = vcmp.gt.f32.partialorder %v2884, 0.0
        %vm2959 = vcmp.gt.f32.partialorder %v2889, 0.0
        %vm2960 = vcmp.gt.f32.partialorder %v2894, 0.0
        %vm2961 = vcmp.gt.f32.partialorder %v2899, 0.0
        %vm2962 = vcmp.gt.f32.partialorder %v2904, 0.0
        %vm2963 = vcmp.gt.f32.partialorder %v2909, 0.0
        %vm2964 = vcmp.gt.f32.partialorder %v2914, 0.0
        %vm2965 = vcmp.gt.f32.partialorder %v2919, 0.0
        %vm2966 = vcmp.gt.f32.partialorder %v2924, 0.0
        %vm2967 = vcmp.gt.f32.partialorder %v2929, 0.0
        %vm2968 = vcmp.gt.f32.partialorder %v2934, 0.0
        %v2969 = vmul.f32 %v2779, 0.5
        %v2970 = vmul.f32 %v2784, 0.5
        %v2971 = vmul.f32 %v2789, 0.5
        %v2972 = vmul.f32 %v2794, 0.5
        %v2973 = vmul.f32 %v2799, 0.5
        %v2974 = vmul.f32 %v2804, 0.5
        %v2975 = vmul.f32 %v2809, 0.5
        %v2976 = vmul.f32 %v2814, 0.5
        %v2977 = vmul.f32 %v2819, 0.5
        %v2978 = vmul.f32 %v2824, 0.5
        %v2979 = vmul.f32 %v2829, 0.5
        %v2980 = vmul.f32 %v2834, 0.5
        %v2981 = vmul.f32 %v2839, 0.5
        %v2982 = vmul.f32 %v2844, 0.5
        %v2983 = vmul.f32 %v2849, 0.5
        %v2984 = vmul.f32 %v2854, 0.5
        %v2985 = vmul.f32 %v2859, 0.5
        %v2986 = vmul.f32 %v2864, 0.5
        %v2987 = vmul.f32 %v2869, 0.5
        %v2988 = vmul.f32 %v2874, 0.5
        %v2989 = vmul.f32 %v2879, 0.5
        %v2990 = vmul.f32 %v2884, 0.5
        %v2991 = vmul.f32 %v2889, 0.5
        %v2992 = vmul.f32 %v2894, 0.5
        %v2993 = vmul.f32 %v2899, 0.5
        %v2994 = vmul.f32 %v2904, 0.5
        %v2995 = vmul.f32 %v2909, 0.5
        %v2996 = vmul.f32 %v2914, 0.5
        %v2997 = vmul.f32 %v2919, 0.5
        %v2998 = vmul.f32 %v2924, 0.5
        %v2999 = vmul.f32 %v2929, 0.5
        %v3000 = vmul.f32 %v2934, 0.5
        %v3001 = vtanh.pop %v2969
        %v3002 = vtanh.pop %v2970
        %v3003 = vtanh.pop %v2971
        %v3004 = vtanh.pop %v2972
        %v3005 = vtanh.pop %v2973
        %v3006 = vtanh.pop %v2974
        %v3007 = vtanh.pop %v2975
        %v3008 = vtanh.pop %v2976
        %v3009 = vtanh.pop %v2977
        %v3010 = vtanh.pop %v2978
        %v3011 = vtanh.pop %v2979
        %v3012 = vtanh.pop %v2980
        %v3013 = vtanh.pop %v2981
        %v3014 = vtanh.pop %v2982
        %v3015 = vtanh.pop %v2983
        %v3016 = vtanh.pop %v2984
        %v3017 = vtanh.pop %v2985
        %v3018 = vtanh.pop %v2986
        %v3019 = vtanh.pop %v2987
        %v3020 = vtanh.pop %v2988
        %v3021 = vtanh.pop %v2989
        %v3022 = vtanh.pop %v2990
        %v3023 = vtanh.pop %v2991
        %v3024 = vtanh.pop %v2992
        %v3025 = vtanh.pop %v2993
        %v3026 = vtanh.pop %v2994
        %v3027 = vtanh.pop %v2995
        %v3028 = vtanh.pop %v2996
        %v3029 = vtanh.pop %v2997
        %v3030 = vtanh.pop %v2998
        %v3031 = vtanh.pop %v2999
        %v3032 = vtanh.pop %v3000
        %v3033 = vmul.f32 %v2779, 1.442695
        %v3034 = vpow.pop %v3033
        %v3035 = vmul.f32 %v2784, 1.442695
        %v3036 = vpow.pop %v3035
        %v3037 = vmul.f32 %v2789, 1.442695
        %v3038 = vpow.pop %v3037
        %v3039 = vmul.f32 %v2794, 1.442695
        %v3040 = vpow.pop %v3039
        %v3041 = vmul.f32 %v2799, 1.442695
        %v3042 = vpow.pop %v3041
        %v3043 = vmul.f32 %v2804, 1.442695
        %v3044 = vpow.pop %v3043
        %v3045 = vmul.f32 %v2809, 1.442695
        %v3046 = vpow.pop %v3045
        %v3047 = vmul.f32 %v2814, 1.442695
        %v3048 = vpow.pop %v3047
        %v3049 = vmul.f32 %v2819, 1.442695
        %v3050 = vpow.pop %v3049
        %v3051 = vmul.f32 %v2824, 1.442695
        %v3052 = vpow.pop %v3051
        %v3053 = vmul.f32 %v2829, 1.442695
        %v3054 = vpow.pop %v3053
        %v3055 = vmul.f32 %v2834, 1.442695
        %v3056 = vpow.pop %v3055
        %v3057 = vmul.f32 %v2839, 1.442695
        %v3058 = vpow.pop %v3057
        %v3059 = vmul.f32 %v2844, 1.442695
        %v3060 = vpow.pop %v3059
        %v3061 = vmul.f32 %v2849, 1.442695
        %v3062 = vpow.pop %v3061
        %v3063 = vmul.f32 %v2854, 1.442695
        %v3064 = vpow.pop %v3063
        %v3065 = vmul.f32 %v2859, 1.442695
        %v3066 = vpow.pop %v3065
        %v3067 = vmul.f32 %v2864, 1.442695
        %v3068 = vpow.pop %v3067
        %v3069 = vmul.f32 %v2869, 1.442695
        %v3070 = vpow.pop %v3069
        %v3071 = vmul.f32 %v2874, 1.442695
        %v3072 = vpow.pop %v3071
        %v3073 = vmul.f32 %v2879, 1.442695
        %v3074 = vpow.pop %v3073
        %v3075 = vmul.f32 %v2884, 1.442695
        %v3076 = vpow.pop %v3075
        %v3077 = vmul.f32 %v2889, 1.442695
        %v3078 = vpow.pop %v3077
        %v3079 = vmul.f32 %v2894, 1.442695
        %v3080 = vpow.pop %v3079
        %v3081 = vmul.f32 %v2899, 1.442695
        %v3082 = vpow.pop %v3081
        %v3083 = vmul.f32 %v2904, 1.442695
        %v3084 = vpow.pop %v3083
        %v3085 = vmul.f32 %v2909, 1.442695
        %v3086 = vpow.pop %v3085
        %v3087 = vmul.f32 %v2914, 1.442695
        %v3088 = vpow.pop %v3087
        %v3089 = vmul.f32 %v2919, 1.442695
        %v3090 = vpow.pop %v3089
        %v3091 = vmul.f32 %v2924, 1.442695
        %v3092 = vpow.pop %v3091
        %v3093 = vmul.f32 %v2929, 1.442695
        %v3094 = vpow.pop %v3093
        %v3095 = vmul.f32 %v2934, 1.442695
        %v3096 = vpow.pop %v3095
        %v3097 = vadd.f32 %v3034, 1.0
        %v3098 = vadd.f32 %v3036, 1.0
        %v3099 = vadd.f32 %v3038, 1.0
        %v3100 = vadd.f32 %v3040, 1.0
        %v3101 = vadd.f32 %v3042, 1.0
        %v3102 = vadd.f32 %v3044, 1.0
        %v3103 = vadd.f32 %v3046, 1.0
        %v3104 = vadd.f32 %v3048, 1.0
        %v3105 = vadd.f32 %v3050, 1.0
        %v3106 = vadd.f32 %v3052, 1.0
        %v3107 = vadd.f32 %v3054, 1.0
        %v3108 = vadd.f32 %v3056, 1.0
        %v3109 = vadd.f32 %v3058, 1.0
        %v3110 = vadd.f32 %v3060, 1.0
        %v3111 = vadd.f32 %v3062, 1.0
        %v3112 = vadd.f32 %v3064, 1.0
        %v3113 = vadd.f32 %v3066, 1.0
        %v3114 = vadd.f32 %v3068, 1.0
        %v3115 = vadd.f32 %v3070, 1.0
        %v3116 = vadd.f32 %v3072, 1.0
        %v3117 = vadd.f32 %v3074, 1.0
        %v3118 = vadd.f32 %v3076, 1.0
        %v3119 = vadd.f32 %v3078, 1.0
        %v3120 = vadd.f32 %v3080, 1.0
        %v3121 = vadd.f32 %v3082, 1.0
        %v3122 = vadd.f32 %v3084, 1.0
        %v3123 = vadd.f32 %v3086, 1.0
        %v3124 = vadd.f32 %v3088, 1.0
        %v3125 = vadd.f32 %v3090, 1.0
        %v3126 = vadd.f32 %v3092, 1.0
        %v3127 = vadd.f32 %v3094, 1.0
        %v3128 = vadd.f32 %v3096, 1.0
        %v3129 = vmul.f32 %v3001, %v3097
        %v3130 = vmul.f32 %v3002, %v3098
        %v3131 = vmul.f32 %v3003, %v3099
        %v3132 = vmul.f32 %v3004, %v3100
        %v3133 = vmul.f32 %v3005, %v3101
        %v3134 = vmul.f32 %v3006, %v3102
        %v3135 = vmul.f32 %v3007, %v3103
        %v3136 = vmul.f32 %v3008, %v3104
        %v3137 = vmul.f32 %v3009, %v3105
        %v3138 = vmul.f32 %v3010, %v3106
        %v3139 = vmul.f32 %v3011, %v3107
        %v3140 = vmul.f32 %v3012, %v3108
        %v3141 = vmul.f32 %v3013, %v3109
        %v3142 = vmul.f32 %v3014, %v3110
        %v3143 = vmul.f32 %v3015, %v3111
        %v3144 = vmul.f32 %v3016, %v3112
        %v3145 = vmul.f32 %v3017, %v3113
        %v3146 = vmul.f32 %v3018, %v3114
        %v3147 = vmul.f32 %v3019, %v3115
        %v3148 = vmul.f32 %v3020, %v3116
        %v3149 = vmul.f32 %v3021, %v3117
        %v3150 = vmul.f32 %v3022, %v3118
        %v3151 = vmul.f32 %v3023, %v3119
        %v3152 = vmul.f32 %v3024, %v3120
        %v3153 = vmul.f32 %v3025, %v3121
        %v3154 = vmul.f32 %v3026, %v3122
        %v3155 = vmul.f32 %v3027, %v3123
        %v3156 = vmul.f32 %v3028, %v3124
        %v3157 = vmul.f32 %v3029, %v3125
        %v3158 = vmul.f32 %v3030, %v3126
        %v3159 = vmul.f32 %v3031, %v3127
        %v3160 = vmul.f32 %v3032, %v3128
        %v3161 = vsel %vm2937, %v2779, %v3129
        %v3162 = vsel %vm2938, %v2784, %v3130
        %v3163 = vsel %vm2939, %v2789, %v3131
        %v3164 = vsel %vm2940, %v2794, %v3132
        %v3165 = vsel %vm2941, %v2799, %v3133
        %v3166 = vsel %vm2942, %v2804, %v3134
        %v3167 = vsel %vm2943, %v2809, %v3135
        %v3168 = vsel %vm2944, %v2814, %v3136
        %v3169 = vsel %vm2945, %v2819, %v3137
        %v3170 = vsel %vm2946, %v2824, %v3138
        %v3171 = vsel %vm2947, %v2829, %v3139
        %v3172 = vsel %vm2948, %v2834, %v3140
        %v3173 = vsel %vm2949, %v2839, %v3141
        %v3174 = vsel %vm2950, %v2844, %v3142
        %v3175 = vsel %vm2951, %v2849, %v3143
        %v3176 = vsel %vm2952, %v2854, %v3144
        %v3177 = vsel %vm2953, %v2859, %v3145
        %v3178 = vsel %vm2954, %v2864, %v3146
        %v3179 = vsel %vm2955, %v2869, %v3147
        %v3180 = vsel %vm2956, %v2874, %v3148
        %v3181 = vsel %vm2957, %v2879, %v3149
        %v3182 = vsel %vm2958, %v2884, %v3150
        %v3183 = vsel %vm2959, %v2889, %v3151
        %v3184 = vsel %vm2960, %v2894, %v3152
        %v3185 = vsel %vm2961, %v2899, %v3153
        %v3186 = vsel %vm2962, %v2904, %v3154
        %v3187 = vsel %vm2963, %v2909, %v3155
        %v3188 = vsel %vm2964, %v2914, %v3156
        %v3189 = vsel %vm2965, %v2919, %v3157
        %v3190 = vsel %vm2966, %v2924, %v3158
        %v3191 = vsel %vm2967, %v2929, %v3159
        %v3192 = vsel %vm2968, %v2934, %v3160
        %v3193 = vlaneseq
        %v3194 = vshrl.u32 %v3193, 7
        %v3195 = vadd.s32 %v3194, 8
        %v3196 = vadd.s32 %v3194, 16
        %v3197 = vadd.s32 %v3194, 24
        %v3198 = vadd.s32 %v3194, 32
        %v3199 = vadd.s32 %v3194, 40
        %v3200 = vadd.s32 %v3194, 48
        %v3201 = vadd.s32 %v3194, 56
        %v3202 = vadd.s32 %v3194, 64
        %v3203 = vadd.s32 %v3194, 72
        %v3204 = vadd.s32 %v3194, 80
        %v3205 = vadd.s32 %v3194, 88
        %v3206 = vadd.s32 %v3194, 96
        %v3207 = vadd.s32 %v3194, 104
        %v3208 = vadd.s32 %v3194, 112
        %v3209 = vadd.s32 %v3194, 120
        %v3210 = vadd.s32 %v3194, 128
        %v3211 = vadd.s32 %v3194, 136
        %v3212 = vadd.s32 %v3194, 144
        %v3213 = vadd.s32 %v3194, 152
        %v3214 = vadd.s32 %v3194, 160
        %v3215 = vadd.s32 %v3194, 168
        %v3216 = vadd.s32 %v3194, 176
        %v3217 = vadd.s32 %v3194, 184
        %v3218 = vadd.s32 %v3194, 192
        %v3219 = vadd.s32 %v3194, 200
        %v3220 = vadd.s32 %v3194, 208
        %v3221 = vadd.s32 %v3194, 216
        %v3222 = vadd.s32 %v3194, 224
        %v3223 = vadd.s32 %v3194, 232
        %v3224 = vadd.s32 %v3194, 240
        %v3225 = vadd.s32 %v3194, 248
        %v3226 = vstv %s294
        %v3227 = vadd.s32 %v3226, %v3194
        %v3228 = vadd.s32 %v3226, %v3195
        %v3229 = vadd.s32 %v3226, %v3196
        %v3230 = vadd.s32 %v3226, %v3197
        %v3231 = vadd.s32 %v3226, %v3198
        %v3232 = vadd.s32 %v3226, %v3199
        %v3233 = vadd.s32 %v3226, %v3200
        %v3234 = vadd.s32 %v3226, %v3201
        %v3235 = vadd.s32 %v3226, %v3202
        %v3236 = vadd.s32 %v3226, %v3203
        %v3237 = vadd.s32 %v3226, %v3204
        %v3238 = vadd.s32 %v3226, %v3205
        %v3239 = vadd.s32 %v3226, %v3206
        %v3240 = vadd.s32 %v3226, %v3207
        %v3241 = vadd.s32 %v3226, %v3208
        %v3242 = vadd.s32 %v3226, %v3209
        %v3243 = vadd.s32 %v3226, %v3210
        %v3244 = vadd.s32 %v3226, %v3211
        %v3245 = vadd.s32 %v3226, %v3212
        %v3246 = vadd.s32 %v3226, %v3213
        %v3247 = vadd.s32 %v3226, %v3214
        %v3248 = vadd.s32 %v3226, %v3215
        %v3249 = vadd.s32 %v3226, %v3216
        %v3250 = vadd.s32 %v3226, %v3217
        %v3251 = vadd.s32 %v3226, %v3218
        %v3252 = vadd.s32 %v3226, %v3219
        %v3253 = vadd.s32 %v3226, %v3220
        %v3254 = vadd.s32 %v3226, %v3221
        %v3255 = vadd.s32 %v3226, %v3222
        %v3256 = vadd.s32 %v3226, %v3223
        %v3257 = vadd.s32 %v3226, %v3224
        %v3258 = vadd.s32 %v3226, %v3225
        %vm3259 = vcmp.lt.s32.totalorder %v3227, 0
        %v3260 = vsub.s32 0, %v3227
        %v3261 = vsel %vm3259, %v3260, %v3227
        %v3262 = vshrl.u32 %v3261, 1
        %v3263 = vand.u32 %v3261, 1
        %v3264 = vsub.s32 0, %v3263
        %v3265 = vsel %vm3259, %v3264, %v3263
        %vm3266 = vcmp.lt.s32.totalorder %v3228, 0
        %v3267 = vsub.s32 0, %v3228
        %v3268 = vsel %vm3266, %v3267, %v3228
        %v3269 = vshrl.u32 %v3268, 1
        %v3270 = vand.u32 %v3268, 1
        %v3271 = vsub.s32 0, %v3270
        %v3272 = vsel %vm3266, %v3271, %v3270
        %vm3273 = vcmp.lt.s32.totalorder %v3229, 0
        %v3274 = vsub.s32 0, %v3229
        %v3275 = vsel %vm3273, %v3274, %v3229
        %v3276 = vshrl.u32 %v3275, 1
        %v3277 = vand.u32 %v3275, 1
        %v3278 = vsub.s32 0, %v3277
        %v3279 = vsel %vm3273, %v3278, %v3277
        %vm3280 = vcmp.lt.s32.totalorder %v3230, 0
        %v3281 = vsub.s32 0, %v3230
        %v3282 = vsel %vm3280, %v3281, %v3230
        %v3283 = vshrl.u32 %v3282, 1
        %v3284 = vand.u32 %v3282, 1
        %v3285 = vsub.s32 0, %v3284
        %v3286 = vsel %vm3280, %v3285, %v3284
        %vm3287 = vcmp.lt.s32.totalorder %v3231, 0
        %v3288 = vsub.s32 0, %v3231
        %v3289 = vsel %vm3287, %v3288, %v3231
        %v3290 = vshrl.u32 %v3289, 1
        %v3291 = vand.u32 %v3289, 1
        %v3292 = vsub.s32 0, %v3291
        %v3293 = vsel %vm3287, %v3292, %v3291
        %vm3294 = vcmp.lt.s32.totalorder %v3232, 0
        %v3295 = vsub.s32 0, %v3232
        %v3296 = vsel %vm3294, %v3295, %v3232
        %v3297 = vshrl.u32 %v3296, 1
        %v3298 = vand.u32 %v3296, 1
        %v3299 = vsub.s32 0, %v3298
        %v3300 = vsel %vm3294, %v3299, %v3298
        %vm3301 = vcmp.lt.s32.totalorder %v3233, 0
        %v3302 = vsub.s32 0, %v3233
        %v3303 = vsel %vm3301, %v3302, %v3233
        %v3304 = vshrl.u32 %v3303, 1
        %v3305 = vand.u32 %v3303, 1
        %v3306 = vsub.s32 0, %v3305
        %v3307 = vsel %vm3301, %v3306, %v3305
        %vm3308 = vcmp.lt.s32.totalorder %v3234, 0
        %v3309 = vsub.s32 0, %v3234
        %v3310 = vsel %vm3308, %v3309, %v3234
        %v3311 = vshrl.u32 %v3310, 1
        %v3312 = vand.u32 %v3310, 1
        %v3313 = vsub.s32 0, %v3312
        %v3314 = vsel %vm3308, %v3313, %v3312
        %vm3315 = vcmp.lt.s32.totalorder %v3235, 0
        %v3316 = vsub.s32 0, %v3235
        %v3317 = vsel %vm3315, %v3316, %v3235
        %v3318 = vshrl.u32 %v3317, 1
        %v3319 = vand.u32 %v3317, 1
        %v3320 = vsub.s32 0, %v3319
        %v3321 = vsel %vm3315, %v3320, %v3319
        %vm3322 = vcmp.lt.s32.totalorder %v3236, 0
        %v3323 = vsub.s32 0, %v3236
        %v3324 = vsel %vm3322, %v3323, %v3236
        %v3325 = vshrl.u32 %v3324, 1
        %v3326 = vand.u32 %v3324, 1
        %v3327 = vsub.s32 0, %v3326
        %v3328 = vsel %vm3322, %v3327, %v3326
        %vm3329 = vcmp.lt.s32.totalorder %v3237, 0
        %v3330 = vsub.s32 0, %v3237
        %v3331 = vsel %vm3329, %v3330, %v3237
        %v3332 = vshrl.u32 %v3331, 1
        %v3333 = vand.u32 %v3331, 1
        %v3334 = vsub.s32 0, %v3333
        %v3335 = vsel %vm3329, %v3334, %v3333
        %vm3336 = vcmp.lt.s32.totalorder %v3238, 0
        %v3337 = vsub.s32 0, %v3238
        %v3338 = vsel %vm3336, %v3337, %v3238
        %v3339 = vshrl.u32 %v3338, 1
        %v3340 = vand.u32 %v3338, 1
        %v3341 = vsub.s32 0, %v3340
        %v3342 = vsel %vm3336, %v3341, %v3340
        %vm3343 = vcmp.lt.s32.totalorder %v3239, 0
        %v3344 = vsub.s32 0, %v3239
        %v3345 = vsel %vm3343, %v3344, %v3239
        %v3346 = vshrl.u32 %v3345, 1
        %v3347 = vand.u32 %v3345, 1
        %v3348 = vsub.s32 0, %v3347
        %v3349 = vsel %vm3343, %v3348, %v3347
        %vm3350 = vcmp.lt.s32.totalorder %v3240, 0
        %v3351 = vsub.s32 0, %v3240
        %v3352 = vsel %vm3350, %v3351, %v3240
        %v3353 = vshrl.u32 %v3352, 1
        %v3354 = vand.u32 %v3352, 1
        %v3355 = vsub.s32 0, %v3354
        %v3356 = vsel %vm3350, %v3355, %v3354
        %vm3357 = vcmp.lt.s32.totalorder %v3241, 0
        %v3358 = vsub.s32 0, %v3241
        %v3359 = vsel %vm3357, %v3358, %v3241
        %v3360 = vshrl.u32 %v3359, 1
        %v3361 = vand.u32 %v3359, 1
        %v3362 = vsub.s32 0, %v3361
        %v3363 = vsel %vm3357, %v3362, %v3361
        %vm3364 = vcmp.lt.s32.totalorder %v3242, 0
        %v3365 = vsub.s32 0, %v3242
        %v3366 = vsel %vm3364, %v3365, %v3242
        %v3367 = vshrl.u32 %v3366, 1
        %v3368 = vand.u32 %v3366, 1
        %v3369 = vsub.s32 0, %v3368
        %v3370 = vsel %vm3364, %v3369, %v3368
        %vm3371 = vcmp.lt.s32.totalorder %v3243, 0
        %v3372 = vsub.s32 0, %v3243
        %v3373 = vsel %vm3371, %v3372, %v3243
        %v3374 = vshrl.u32 %v3373, 1
        %v3375 = vand.u32 %v3373, 1
        %v3376 = vsub.s32 0, %v3375
        %v3377 = vsel %vm3371, %v3376, %v3375
        %vm3378 = vcmp.lt.s32.totalorder %v3244, 0
        %v3379 = vsub.s32 0, %v3244
        %v3380 = vsel %vm3378, %v3379, %v3244
        %v3381 = vshrl.u32 %v3380, 1
        %v3382 = vand.u32 %v3380, 1
        %v3383 = vsub.s32 0, %v3382
        %v3384 = vsel %vm3378, %v3383, %v3382
        %vm3385 = vcmp.lt.s32.totalorder %v3245, 0
        %v3386 = vsub.s32 0, %v3245
        %v3387 = vsel %vm3385, %v3386, %v3245
        %v3388 = vshrl.u32 %v3387, 1
        %v3389 = vand.u32 %v3387, 1
        %v3390 = vsub.s32 0, %v3389
        %v3391 = vsel %vm3385, %v3390, %v3389
        %vm3392 = vcmp.lt.s32.totalorder %v3246, 0
        %v3393 = vsub.s32 0, %v3246
        %v3394 = vsel %vm3392, %v3393, %v3246
        %v3395 = vshrl.u32 %v3394, 1
        %v3396 = vand.u32 %v3394, 1
        %v3397 = vsub.s32 0, %v3396
        %v3398 = vsel %vm3392, %v3397, %v3396
        %vm3399 = vcmp.lt.s32.totalorder %v3247, 0
        %v3400 = vsub.s32 0, %v3247
        %v3401 = vsel %vm3399, %v3400, %v3247
        %v3402 = vshrl.u32 %v3401, 1
        %v3403 = vand.u32 %v3401, 1
        %v3404 = vsub.s32 0, %v3403
        %v3405 = vsel %vm3399, %v3404, %v3403
        %vm3406 = vcmp.lt.s32.totalorder %v3248, 0
        %v3407 = vsub.s32 0, %v3248
        %v3408 = vsel %vm3406, %v3407, %v3248
        %v3409 = vshrl.u32 %v3408, 1
        %v3410 = vand.u32 %v3408, 1
        %v3411 = vsub.s32 0, %v3410
        %v3412 = vsel %vm3406, %v3411, %v3410
        %vm3413 = vcmp.lt.s32.totalorder %v3249, 0
        %v3414 = vsub.s32 0, %v3249
        %v3415 = vsel %vm3413, %v3414, %v3249
        %v3416 = vshrl.u32 %v3415, 1
        %v3417 = vand.u32 %v3415, 1
        %v3418 = vsub.s32 0, %v3417
        %v3419 = vsel %vm3413, %v3418, %v3417
        %vm3420 = vcmp.lt.s32.totalorder %v3250, 0
        %v3421 = vsub.s32 0, %v3250
        %v3422 = vsel %vm3420, %v3421, %v3250
        %v3423 = vshrl.u32 %v3422, 1
        %v3424 = vand.u32 %v3422, 1
        %v3425 = vsub.s32 0, %v3424
        %v3426 = vsel %vm3420, %v3425, %v3424
        %vm3427 = vcmp.lt.s32.totalorder %v3251, 0
        %v3428 = vsub.s32 0, %v3251
        %v3429 = vsel %vm3427, %v3428, %v3251
        %v3430 = vshrl.u32 %v3429, 1
        %v3431 = vand.u32 %v3429, 1
        %v3432 = vsub.s32 0, %v3431
        %v3433 = vsel %vm3427, %v3432, %v3431
        %vm3434 = vcmp.lt.s32.totalorder %v3252, 0
        %v3435 = vsub.s32 0, %v3252
        %v3436 = vsel %vm3434, %v3435, %v3252
        %v3437 = vshrl.u32 %v3436, 1
        %v3438 = vand.u32 %v3436, 1
        %v3439 = vsub.s32 0, %v3438
        %v3440 = vsel %vm3434, %v3439, %v3438
        %vm3441 = vcmp.lt.s32.totalorder %v3253, 0
        %v3442 = vsub.s32 0, %v3253
        %v3443 = vsel %vm3441, %v3442, %v3253
        %v3444 = vshrl.u32 %v3443, 1
        %v3445 = vand.u32 %v3443, 1
        %v3446 = vsub.s32 0, %v3445
        %v3447 = vsel %vm3441, %v3446, %v3445
        %vm3448 = vcmp.lt.s32.totalorder %v3254, 0
        %v3449 = vsub.s32 0, %v3254
        %v3450 = vsel %vm3448, %v3449, %v3254
        %v3451 = vshrl.u32 %v3450, 1
        %v3452 = vand.u32 %v3450, 1
        %v3453 = vsub.s32 0, %v3452
        %v3454 = vsel %vm3448, %v3453, %v3452
        %vm3455 = vcmp.lt.s32.totalorder %v3255, 0
        %v3456 = vsub.s32 0, %v3255
        %v3457 = vsel %vm3455, %v3456, %v3255
        %v3458 = vshrl.u32 %v3457, 1
        %v3459 = vand.u32 %v3457, 1
        %v3460 = vsub.s32 0, %v3459
        %v3461 = vsel %vm3455, %v3460, %v3459
        %vm3462 = vcmp.lt.s32.totalorder %v3256, 0
        %v3463 = vsub.s32 0, %v3256
        %v3464 = vsel %vm3462, %v3463, %v3256
        %v3465 = vshrl.u32 %v3464, 1
        %v3466 = vand.u32 %v3464, 1
        %v3467 = vsub.s32 0, %v3466
        %v3468 = vsel %vm3462, %v3467, %v3466
        %vm3469 = vcmp.lt.s32.totalorder %v3257, 0
        %v3470 = vsub.s32 0, %v3257
        %v3471 = vsel %vm3469, %v3470, %v3257
        %v3472 = vshrl.u32 %v3471, 1
        %v3473 = vand.u32 %v3471, 1
        %v3474 = vsub.s32 0, %v3473
        %v3475 = vsel %vm3469, %v3474, %v3473
        %vm3476 = vcmp.lt.s32.totalorder %v3258, 0
        %v3477 = vsub.s32 0, %v3258
        %v3478 = vsel %vm3476, %v3477, %v3258
        %v3479 = vshrl.u32 %v3478, 1
        %v3480 = vand.u32 %v3478, 1
        %v3481 = vsub.s32 0, %v3480
        %v3482 = vsel %vm3476, %v3481, %v3480
        %vm3483 = vcmp.ne.s32.totalorder %v3265, 0
        %vm3484 = vcmp.ne.s32.totalorder %v3272, 0
        %vm3485 = vcmp.ne.s32.totalorder %v3279, 0
        %vm3486 = vcmp.ne.s32.totalorder %v3286, 0
        %vm3487 = vcmp.ne.s32.totalorder %v3293, 0
        %vm3488 = vcmp.ne.s32.totalorder %v3300, 0
        %vm3489 = vcmp.ne.s32.totalorder %v3307, 0
        %vm3490 = vcmp.ne.s32.totalorder %v3314, 0
        %vm3491 = vcmp.ne.s32.totalorder %v3321, 0
        %vm3492 = vcmp.ne.s32.totalorder %v3328, 0
        %vm3493 = vcmp.ne.s32.totalorder %v3335, 0
        %vm3494 = vcmp.ne.s32.totalorder %v3342, 0
        %vm3495 = vcmp.ne.s32.totalorder %v3349, 0
        %vm3496 = vcmp.ne.s32.totalorder %v3356, 0
        %vm3497 = vcmp.ne.s32.totalorder %v3363, 0
        %vm3498 = vcmp.ne.s32.totalorder %v3370, 0
        %vm3499 = vcmp.ne.s32.totalorder %v3377, 0
        %vm3500 = vcmp.ne.s32.totalorder %v3384, 0
        %vm3501 = vcmp.ne.s32.totalorder %v3391, 0
        %vm3502 = vcmp.ne.s32.totalorder %v3398, 0
        %vm3503 = vcmp.ne.s32.totalorder %v3405, 0
        %vm3504 = vcmp.ne.s32.totalorder %v3412, 0
        %vm3505 = vcmp.ne.s32.totalorder %v3419, 0
        %vm3506 = vcmp.ne.s32.totalorder %v3426, 0
        %vm3507 = vcmp.ne.s32.totalorder %v3433, 0
        %vm3508 = vcmp.ne.s32.totalorder %v3440, 0
        %vm3509 = vcmp.ne.s32.totalorder %v3447, 0
        %vm3510 = vcmp.ne.s32.totalorder %v3454, 0
        %vm3511 = vcmp.ne.s32.totalorder %v3461, 0
        %vm3512 = vcmp.ne.s32.totalorder %v3468, 0
        %vm3513 = vcmp.ne.s32.totalorder %v3475, 0
        %vm3514 = vcmp.ne.s32.totalorder %v3482, 0
        %vm3515 = vcmp.lt.s32.totalorder %v3265, 0
        %vm3516 = vcmp.lt.s32.totalorder %v3272, 0
        %vm3517 = vcmp.lt.s32.totalorder %v3279, 0
        %vm3518 = vcmp.lt.s32.totalorder %v3286, 0
        %vm3519 = vcmp.lt.s32.totalorder %v3293, 0
        %vm3520 = vcmp.lt.s32.totalorder %v3300, 0
        %vm3521 = vcmp.lt.s32.totalorder %v3307, 0
        %vm3522 = vcmp.lt.s32.totalorder %v3314, 0
        %vm3523 = vcmp.lt.s32.totalorder %v3321, 0
        %vm3524 = vcmp.lt.s32.totalorder %v3328, 0
        %vm3525 = vcmp.lt.s32.totalorder %v3335, 0
        %vm3526 = vcmp.lt.s32.totalorder %v3342, 0
        %vm3527 = vcmp.lt.s32.totalorder %v3349, 0
        %vm3528 = vcmp.lt.s32.totalorder %v3356, 0
        %vm3529 = vcmp.lt.s32.totalorder %v3363, 0
        %vm3530 = vcmp.lt.s32.totalorder %v3370, 0
        %vm3531 = vcmp.lt.s32.totalorder %v3377, 0
        %vm3532 = vcmp.lt.s32.totalorder %v3384, 0
        %vm3533 = vcmp.lt.s32.totalorder %v3391, 0
        %vm3534 = vcmp.lt.s32.totalorder %v3398, 0
        %vm3535 = vcmp.lt.s32.totalorder %v3405, 0
        %vm3536 = vcmp.lt.s32.totalorder %v3412, 0
        %vm3537 = vcmp.lt.s32.totalorder %v3419, 0
        %vm3538 = vcmp.lt.s32.totalorder %v3426, 0
        %vm3539 = vcmp.lt.s32.totalorder %v3433, 0
        %vm3540 = vcmp.lt.s32.totalorder %v3440, 0
        %vm3541 = vcmp.lt.s32.totalorder %v3447, 0
        %vm3542 = vcmp.lt.s32.totalorder %v3454, 0
        %vm3543 = vcmp.lt.s32.totalorder %v3461, 0
        %vm3544 = vcmp.lt.s32.totalorder %v3468, 0
        %vm3545 = vcmp.lt.s32.totalorder %v3475, 0
        %vm3546 = vcmp.lt.s32.totalorder %v3482, 0
        %vm3547 = vmand %vm3515, %vm3483
        %vm3548 = vmand %vm3516, %vm3484
        %vm3549 = vmand %vm3517, %vm3485
        %vm3550 = vmand %vm3518, %vm3486
        %vm3551 = vmand %vm3519, %vm3487
        %vm3552 = vmand %vm3520, %vm3488
        %vm3553 = vmand %vm3521, %vm3489
        %vm3554 = vmand %vm3522, %vm3490
        %vm3555 = vmand %vm3523, %vm3491
        %vm3556 = vmand %vm3524, %vm3492
        %vm3557 = vmand %vm3525, %vm3493
        %vm3558 = vmand %vm3526, %vm3494
        %vm3559 = vmand %vm3527, %vm3495
        %vm3560 = vmand %vm3528, %vm3496
        %vm3561 = vmand %vm3529, %vm3497
        %vm3562 = vmand %vm3530, %vm3498
        %vm3563 = vmand %vm3531, %vm3499
        %vm3564 = vmand %vm3532, %vm3500
        %vm3565 = vmand %vm3533, %vm3501
        %vm3566 = vmand %vm3534, %vm3502
        %vm3567 = vmand %vm3535, %vm3503
        %vm3568 = vmand %vm3536, %vm3504
        %vm3569 = vmand %vm3537, %vm3505
        %vm3570 = vmand %vm3538, %vm3506
        %vm3571 = vmand %vm3539, %vm3507
        %vm3572 = vmand %vm3540, %vm3508
        %vm3573 = vmand %vm3541, %vm3509
        %vm3574 = vmand %vm3542, %vm3510
        %vm3575 = vmand %vm3543, %vm3511
        %vm3576 = vmand %vm3544, %vm3512
        %vm3577 = vmand %vm3545, %vm3513
        %vm3578 = vmand %vm3546, %vm3514
        %v3579 = vadd.s32 %v3265, 2
        %v3580 = vadd.s32 %v3272, 2
        %v3581 = vadd.s32 %v3279, 2
        %v3582 = vadd.s32 %v3286, 2
        %v3583 = vadd.s32 %v3293, 2
        %v3584 = vadd.s32 %v3300, 2
        %v3585 = vadd.s32 %v3307, 2
        %v3586 = vadd.s32 %v3314, 2
        %v3587 = vadd.s32 %v3321, 2
        %v3588 = vadd.s32 %v3328, 2
        %v3589 = vadd.s32 %v3335, 2
        %v3590 = vadd.s32 %v3342, 2
        %v3591 = vadd.s32 %v3349, 2
        %v3592 = vadd.s32 %v3356, 2
        %v3593 = vadd.s32 %v3363, 2
        %v3594 = vadd.s32 %v3370, 2
        %v3595 = vadd.s32 %v3377, 2
        %v3596 = vadd.s32 %v3384, 2
        %v3597 = vadd.s32 %v3391, 2
        %v3598 = vadd.s32 %v3398, 2
        %v3599 = vadd.s32 %v3405, 2
        %v3600 = vadd.s32 %v3412, 2
        %v3601 = vadd.s32 %v3419, 2
        %v3602 = vadd.s32 %v3426, 2
        %v3603 = vadd.s32 %v3433, 2
        %v3604 = vadd.s32 %v3440, 2
        %v3605 = vadd.s32 %v3447, 2
        %v3606 = vadd.s32 %v3454, 2
        %v3607 = vadd.s32 %v3461, 2
        %v3608 = vadd.s32 %v3468, 2
        %v3609 = vadd.s32 %v3475, 2
        %v3610 = vadd.s32 %v3482, 2
        %v3611 = vsel %vm3547, %v3579, %v3265
        %v3612 = vsel %vm3548, %v3580, %v3272
        %v3613 = vsel %vm3549, %v3581, %v3279
        %v3614 = vsel %vm3550, %v3582, %v3286
        %v3615 = vsel %vm3551, %v3583, %v3293
        %v3616 = vsel %vm3552, %v3584, %v3300
        %v3617 = vsel %vm3553, %v3585, %v3307
        %v3618 = vsel %vm3554, %v3586, %v3314
        %v3619 = vsel %vm3555, %v3587, %v3321
        %v3620 = vsel %vm3556, %v3588, %v3328
        %v3621 = vsel %vm3557, %v3589, %v3335
        %v3622 = vsel %vm3558, %v3590, %v3342
        %v3623 = vsel %vm3559, %v3591, %v3349
        %v3624 = vsel %vm3560, %v3592, %v3356
        %v3625 = vsel %vm3561, %v3593, %v3363
        %v3626 = vsel %vm3562, %v3594, %v3370
        %v3627 = vsel %vm3563, %v3595, %v3377
        %v3628 = vsel %vm3564, %v3596, %v3384
        %v3629 = vsel %vm3565, %v3597, %v3391
        %v3630 = vsel %vm3566, %v3598, %v3398
        %v3631 = vsel %vm3567, %v3599, %v3405
        %v3632 = vsel %vm3568, %v3600, %v3412
        %v3633 = vsel %vm3569, %v3601, %v3419
        %v3634 = vsel %vm3570, %v3602, %v3426
        %v3635 = vsel %vm3571, %v3603, %v3433
        %v3636 = vsel %vm3572, %v3604, %v3440
        %v3637 = vsel %vm3573, %v3605, %v3447
        %v3638 = vsel %vm3574, %v3606, %v3454
        %v3639 = vsel %vm3575, %v3607, %v3461
        %v3640 = vsel %vm3576, %v3608, %v3468
        %v3641 = vsel %vm3577, %v3609, %v3475
        %v3642 = vsel %vm3578, %v3610, %v3482
        %s3643 = sld [smem:[#allocation3 + $0x1]]
        %v3644 = vstv %s3643
        %v3645 = vadd.f32 %v3644, 0.0
        %vm3646 = vcmp.eq.s32.totalorder %v3611, 0
        %vm3647 = vcmp.eq.s32.totalorder %v3612, 0
        %vm3648 = vcmp.eq.s32.totalorder %v3613, 0
        %vm3649 = vcmp.eq.s32.totalorder %v3614, 0
        %vm3650 = vcmp.eq.s32.totalorder %v3615, 0
        %vm3651 = vcmp.eq.s32.totalorder %v3616, 0
        %vm3652 = vcmp.eq.s32.totalorder %v3617, 0
        %vm3653 = vcmp.eq.s32.totalorder %v3618, 0
        %vm3654 = vcmp.eq.s32.totalorder %v3619, 0
        %vm3655 = vcmp.eq.s32.totalorder %v3620, 0
        %vm3656 = vcmp.eq.s32.totalorder %v3621, 0
        %vm3657 = vcmp.eq.s32.totalorder %v3622, 0
        %vm3658 = vcmp.eq.s32.totalorder %v3623, 0
        %vm3659 = vcmp.eq.s32.totalorder %v3624, 0
        %vm3660 = vcmp.eq.s32.totalorder %v3625, 0
        %vm3661 = vcmp.eq.s32.totalorder %v3626, 0
        %vm3662 = vcmp.eq.s32.totalorder %v3627, 0
        %vm3663 = vcmp.eq.s32.totalorder %v3628, 0
        %vm3664 = vcmp.eq.s32.totalorder %v3629, 0
        %vm3665 = vcmp.eq.s32.totalorder %v3630, 0
        %vm3666 = vcmp.eq.s32.totalorder %v3631, 0
        %vm3667 = vcmp.eq.s32.totalorder %v3632, 0
        %vm3668 = vcmp.eq.s32.totalorder %v3633, 0
        %vm3669 = vcmp.eq.s32.totalorder %v3634, 0
        %vm3670 = vcmp.eq.s32.totalorder %v3635, 0
        %vm3671 = vcmp.eq.s32.totalorder %v3636, 0
        %vm3672 = vcmp.eq.s32.totalorder %v3637, 0
        %vm3673 = vcmp.eq.s32.totalorder %v3638, 0
        %vm3674 = vcmp.eq.s32.totalorder %v3639, 0
        %vm3675 = vcmp.eq.s32.totalorder %v3640, 0
        %vm3676 = vcmp.eq.s32.totalorder %v3641, 0
        %vm3677 = vcmp.eq.s32.totalorder %v3642, 0
        %s3678 = sld [smem:[#allocation3]]
        %v3679 = vstv %s3678
        %v3680 = vsel %vm3646, %v3679, %v3645
        %v3681 = vsel %vm3647, %v3679, %v3645
        %v3682 = vsel %vm3648, %v3679, %v3645
        %v3683 = vsel %vm3649, %v3679, %v3645
        %v3684 = vsel %vm3650, %v3679, %v3645
        %v3685 = vsel %vm3651, %v3679, %v3645
        %v3686 = vsel %vm3652, %v3679, %v3645
        %v3687 = vsel %vm3653, %v3679, %v3645
        %v3688 = vsel %vm3654, %v3679, %v3645
        %v3689 = vsel %vm3655, %v3679, %v3645
        %v3690 = vsel %vm3656, %v3679, %v3645
        %v3691 = vsel %vm3657, %v3679, %v3645
        %v3692 = vsel %vm3658, %v3679, %v3645
        %v3693 = vsel %vm3659, %v3679, %v3645
        %v3694 = vsel %vm3660, %v3679, %v3645
        %v3695 = vsel %vm3661, %v3679, %v3645
        %v3696 = vsel %vm3662, %v3679, %v3645
        %v3697 = vsel %vm3663, %v3679, %v3645
        %v3698 = vsel %vm3664, %v3679, %v3645
        %v3699 = vsel %vm3665, %v3679, %v3645
        %v3700 = vsel %vm3666, %v3679, %v3645
        %v3701 = vsel %vm3667, %v3679, %v3645
        %v3702 = vsel %vm3668, %v3679, %v3645
        %v3703 = vsel %vm3669, %v3679, %v3645
        %v3704 = vsel %vm3670, %v3679, %v3645
        %v3705 = vsel %vm3671, %v3679, %v3645
        %v3706 = vsel %vm3672, %v3679, %v3645
        %v3707 = vsel %vm3673, %v3679, %v3645
        %v3708 = vsel %vm3674, %v3679, %v3645
        %v3709 = vsel %vm3675, %v3679, %v3645
        %v3710 = vsel %vm3676, %v3679, %v3645
        %v3711 = vsel %vm3677, %v3679, %v3645
        %v3712 = vld [vmem:[%s285] sm:$0xff]
        %v3713 = vld [vmem:[%s285 + $0x8] sm:$0xff]
        %v3714 = vld [vmem:[%s285 + $0x10] sm:$0xff]
        %v3715 = vld [vmem:[%s285 + $0x18] sm:$0xff]
        %v3716 = vld [vmem:[%s285 + $0x20] sm:$0xff]
        %v3717 = vld [vmem:[%s285 + $0x28] sm:$0xff]
        %v3718 = vld [vmem:[%s285 + $0x30] sm:$0xff]
        %v3719 = vld [vmem:[%s285 + $0x38] sm:$0xff]
        %v3720 = vld [vmem:[%s285 + $0x40] sm:$0xff]
        %v3721 = vld [vmem:[%s285 + $0x48] sm:$0xff]
        %v3722 = vld [vmem:[%s285 + $0x50] sm:$0xff]
        %v3723 = vld [vmem:[%s285 + $0x58] sm:$0xff]
        %v3724 = vld [vmem:[%s285 + $0x60] sm:$0xff]
        %v3725 = vld [vmem:[%s285 + $0x68] sm:$0xff]
        %v3726 = vld [vmem:[%s285 + $0x70] sm:$0xff]
        %v3727 = vld [vmem:[%s285 + $0x78] sm:$0xff]
        %v3728 = vld [vmem:[%s285 + $0x80] sm:$0xff]
        %v3729 = vld [vmem:[%s285 + $0x88] sm:$0xff]
        %v3730 = vld [vmem:[%s285 + $0x90] sm:$0xff]
        %v3731 = vld [vmem:[%s285 + $0x98] sm:$0xff]
        %v3732 = vld [vmem:[%s285 + $0xa0] sm:$0xff]
        %v3733 = vld [vmem:[%s285 + $0xa8] sm:$0xff]
        %v3734 = vld [vmem:[%s285 + $0xb0] sm:$0xff]
        %v3735 = vld [vmem:[%s285 + $0xb8] sm:$0xff]
        %v3736 = vld [vmem:[%s285 + $0xc0] sm:$0xff]
        %v3737 = vld [vmem:[%s285 + $0xc8] sm:$0xff]
        %v3738 = vld [vmem:[%s285 + $0xd0] sm:$0xff]
        %v3739 = vld [vmem:[%s285 + $0xd8] sm:$0xff]
        %v3740 = vld [vmem:[%s285 + $0xe0] sm:$0xff]
        %v3741 = vld [vmem:[%s285 + $0xe8] sm:$0xff]
        %v3742 = vld [vmem:[%s285 + $0xf0] sm:$0xff]
        %v3743 = vld [vmem:[%s285 + $0xf8] sm:$0xff]
        %v3744 = vmul.f32 %v3680, %v3712
        %v3745 = vmul.f32 %v3681, %v3713
        %v3746 = vmul.f32 %v3682, %v3714
        %v3747 = vmul.f32 %v3683, %v3715
        %v3748 = vmul.f32 %v3684, %v3716
        %v3749 = vmul.f32 %v3685, %v3717
        %v3750 = vmul.f32 %v3686, %v3718
        %v3751 = vmul.f32 %v3687, %v3719
        %v3752 = vmul.f32 %v3688, %v3720
        %v3753 = vmul.f32 %v3689, %v3721
        %v3754 = vmul.f32 %v3690, %v3722
        %v3755 = vmul.f32 %v3691, %v3723
        %v3756 = vmul.f32 %v3692, %v3724
        %v3757 = vmul.f32 %v3693, %v3725
        %v3758 = vmul.f32 %v3694, %v3726
        %v3759 = vmul.f32 %v3695, %v3727
        %v3760 = vmul.f32 %v3696, %v3728
        %v3761 = vmul.f32 %v3697, %v3729
        %v3762 = vmul.f32 %v3698, %v3730
        %v3763 = vmul.f32 %v3699, %v3731
        %v3764 = vmul.f32 %v3700, %v3732
        %v3765 = vmul.f32 %v3701, %v3733
        %v3766 = vmul.f32 %v3702, %v3734
        %v3767 = vmul.f32 %v3703, %v3735
        %v3768 = vmul.f32 %v3704, %v3736
        %v3769 = vmul.f32 %v3705, %v3737
        %v3770 = vmul.f32 %v3706, %v3738
        %v3771 = vmul.f32 %v3707, %v3739
        %v3772 = vmul.f32 %v3708, %v3740
        %v3773 = vmul.f32 %v3709, %v3741
        %v3774 = vmul.f32 %v3710, %v3742
        %v3775 = vmul.f32 %v3711, %v3743
        %v3776 = vsub.f32 %v3744, %v3161
        %v3777 = vsub.f32 %v3745, %v3162
        %v3778 = vsub.f32 %v3746, %v3163
        %v3779 = vsub.f32 %v3747, %v3164
        %v3780 = vsub.f32 %v3748, %v3165
        %v3781 = vsub.f32 %v3749, %v3166
        %v3782 = vsub.f32 %v3750, %v3167
        %v3783 = vsub.f32 %v3751, %v3168
        %v3784 = vsub.f32 %v3752, %v3169
        %v3785 = vsub.f32 %v3753, %v3170
        %v3786 = vsub.f32 %v3754, %v3171
        %v3787 = vsub.f32 %v3755, %v3172
        %v3788 = vsub.f32 %v3756, %v3173
        %v3789 = vsub.f32 %v3757, %v3174
        %v3790 = vsub.f32 %v3758, %v3175
        %v3791 = vsub.f32 %v3759, %v3176
        %v3792 = vsub.f32 %v3760, %v3177
        %v3793 = vsub.f32 %v3761, %v3178
        %v3794 = vsub.f32 %v3762, %v3179
        %v3795 = vsub.f32 %v3763, %v3180
        %v3796 = vsub.f32 %v3764, %v3181
        %v3797 = vsub.f32 %v3765, %v3182
        %v3798 = vsub.f32 %v3766, %v3183
        %v3799 = vsub.f32 %v3767, %v3184
        %v3800 = vsub.f32 %v3768, %v3185
        %v3801 = vsub.f32 %v3769, %v3186
        %v3802 = vsub.f32 %v3770, %v3187
        %v3803 = vsub.f32 %v3771, %v3188
        %v3804 = vsub.f32 %v3772, %v3189
        %v3805 = vsub.f32 %v3773, %v3190
        %v3806 = vsub.f32 %v3774, %v3191
        %v3807 = vsub.f32 %v3775, %v3192
        %3808 = vst.msk [vmem:[%s291] sm:$0xff] %vm2615, %v3776
        %3809 = vst.msk [vmem:[%s291 + $0x8] sm:$0xff] %vm2615, %v3777
        %3810 = vst.msk [vmem:[%s291 + $0x10] sm:$0xff] %vm2615, %v3778
        %3811 = vst.msk [vmem:[%s291 + $0x18] sm:$0xff] %vm2615, %v3779
        %3812 = vst.msk [vmem:[%s291 + $0x20] sm:$0xff] %vm2615, %v3780
        %3813 = vst.msk [vmem:[%s291 + $0x28] sm:$0xff] %vm2615, %v3781
        %3814 = vst.msk [vmem:[%s291 + $0x30] sm:$0xff] %vm2615, %v3782
        %3815 = vst.msk [vmem:[%s291 + $0x38] sm:$0xff] %vm2615, %v3783
        %3816 = vst.msk [vmem:[%s291 + $0x40] sm:$0xff] %vm2615, %v3784
        %3817 = vst.msk [vmem:[%s291 + $0x48] sm:$0xff] %vm2615, %v3785
        %3818 = vst.msk [vmem:[%s291 + $0x50] sm:$0xff] %vm2615, %v3786
        %3819 = vst.msk [vmem:[%s291 + $0x58] sm:$0xff] %vm2615, %v3787
        %3820 = vst.msk [vmem:[%s291 + $0x60] sm:$0xff] %vm2615, %v3788
        %3821 = vst.msk [vmem:[%s291 + $0x68] sm:$0xff] %vm2615, %v3789
        %3822 = vst.msk [vmem:[%s291 + $0x70] sm:$0xff] %vm2615, %v3790
        %3823 = vst.msk [vmem:[%s291 + $0x78] sm:$0xff] %vm2615, %v3791
        %3824 = vst.msk [vmem:[%s291 + $0x80] sm:$0xff] %vm2615, %v3792
        %3825 = vst.msk [vmem:[%s291 + $0x88] sm:$0xff] %vm2615, %v3793
        %3826 = vst.msk [vmem:[%s291 + $0x90] sm:$0xff] %vm2615, %v3794
        %3827 = vst.msk [vmem:[%s291 + $0x98] sm:$0xff] %vm2615, %v3795
        %3828 = vst.msk [vmem:[%s291 + $0xa0] sm:$0xff] %vm2615, %v3796
        %3829 = vst.msk [vmem:[%s291 + $0xa8] sm:$0xff] %vm2615, %v3797
        %3830 = vst.msk [vmem:[%s291 + $0xb0] sm:$0xff] %vm2615, %v3798
        %3831 = vst.msk [vmem:[%s291 + $0xb8] sm:$0xff] %vm2615, %v3799
        %3832 = vst.msk [vmem:[%s291 + $0xc0] sm:$0xff] %vm2615, %v3800
        %3833 = vst.msk [vmem:[%s291 + $0xc8] sm:$0xff] %vm2615, %v3801
        %3834 = vst.msk [vmem:[%s291 + $0xd0] sm:$0xff] %vm2615, %v3802
        %3835 = vst.msk [vmem:[%s291 + $0xd8] sm:$0xff] %vm2615, %v3803
        %3836 = vst.msk [vmem:[%s291 + $0xe0] sm:$0xff] %vm2615, %v3804
        %3837 = vst.msk [vmem:[%s291 + $0xe8] sm:$0xff] %vm2615, %v3805
        %3838 = vst.msk [vmem:[%s291 + $0xf0] sm:$0xff] %vm2615, %v3806
        %3839 = vst.msk [vmem:[%s291 + $0xf8] sm:$0xff] %vm2615, %v3807
        %v3840 = vpack.c.bf16 %v3162, %v3161
        %v3841 = vpack.c.bf16 %v3164, %v3163
        %v3842 = vpack.c.bf16 %v3166, %v3165
        %v3843 = vpack.c.bf16 %v3168, %v3167
        %v3844 = vpack.c.bf16 %v3170, %v3169
        %v3845 = vpack.c.bf16 %v3172, %v3171
        %v3846 = vpack.c.bf16 %v3174, %v3173
        %v3847 = vpack.c.bf16 %v3176, %v3175
        %v3848 = vpack.c.bf16 %v3178, %v3177
        %v3849 = vpack.c.bf16 %v3180, %v3179
        %v3850 = vpack.c.bf16 %v3182, %v3181
        %v3851 = vpack.c.bf16 %v3184, %v3183
        %v3852 = vpack.c.bf16 %v3186, %v3185
        %v3853 = vpack.c.bf16 %v3188, %v3187
        %v3854 = vpack.c.bf16 %v3190, %v3189
        %v3855 = vpack.c.bf16 %v3192, %v3191
        %s3856 = sshra.s32 %s294, 7
        %s3857 = sand.u32 %s294, 127
        %s3858 = smul.addr %s3856, 4
        %s3859 = scalar_lea.vmem %s279, %s3858
        %v3860 = vld [vmem:[%s3859] sm:$0xff]
        %v3861 = vld [vmem:[%s3859 + $0x20] sm:$0xff]
        %v3862 = vld [vmem:[%s3859 + $0x40] sm:$0xff]
        %v3863 = vld [vmem:[%s3859 + $0x60] sm:$0xff]
        %v3864 = vld [vmem:[%s3859 + $0x80] sm:$0xff]
        %v3865 = vld [vmem:[%s3859 + $0xa0] sm:$0xff]
        %v3866 = vld [vmem:[%s3859 + $0xc0] sm:$0xff]
        %v3867 = vld [vmem:[%s3859 + $0xe0] sm:$0xff]
        %v3868 = vld [vmem:[%s3859 + $0x100] sm:$0xff]
        %v3869 = vld [vmem:[%s3859 + $0x120] sm:$0xff]
        %v3870 = vld [vmem:[%s3859 + $0x140] sm:$0xff]
        %v3871 = vld [vmem:[%s3859 + $0x160] sm:$0xff]
        %v3872 = vld [vmem:[%s3859 + $0x180] sm:$0xff]
        %v3873 = vld [vmem:[%s3859 + $0x1a0] sm:$0xff]
        %v3874 = vld [vmem:[%s3859 + $0x1c0] sm:$0xff]
        %v3875 = vld [vmem:[%s3859 + $0x1e0] sm:$0xff]
        %v3876 = vld [vmem:[%s3859 + $0x200] sm:$0xff]
        %v3877 = vld [vmem:[%s3859 + $0x220] sm:$0xff]
        %v3878 = vld [vmem:[%s3859 + $0x240] sm:$0xff]
        %v3879 = vld [vmem:[%s3859 + $0x260] sm:$0xff]
        %v3880 = vld [vmem:[%s3859 + $0x280] sm:$0xff]
        %v3881 = vld [vmem:[%s3859 + $0x2a0] sm:$0xff]
        %v3882 = vld [vmem:[%s3859 + $0x2c0] sm:$0xff]
        %v3883 = vld [vmem:[%s3859 + $0x2e0] sm:$0xff]
        %v3884 = vld [vmem:[%s3859 + $0x300] sm:$0xff]
        %v3885 = vld [vmem:[%s3859 + $0x320] sm:$0xff]
        %v3886 = vld [vmem:[%s3859 + $0x340] sm:$0xff]
        %v3887 = vld [vmem:[%s3859 + $0x360] sm:$0xff]
        %v3888 = vld [vmem:[%s3859 + $0x380] sm:$0xff]
        %v3889 = vld [vmem:[%s3859 + $0x3a0] sm:$0xff]
        %v3890 = vld [vmem:[%s3859 + $0x3c0] sm:$0xff]
        %v3891 = vld [vmem:[%s3859 + $0x3e0] sm:$0xff]
        %v3924 = vunpack.c.l.b16 %v3860
        %v3925 = vunpack.c.h.b16 %v3860
        %v3926 = vunpack.c.l.b16 %v3861
        %v3927 = vunpack.c.h.b16 %v3861
        %v3928 = vunpack.c.l.b16 %v3862
        %v3929 = vunpack.c.h.b16 %v3862
        %v3930 = vunpack.c.l.b16 %v3863
        %v3931 = vunpack.c.h.b16 %v3863
        %v3932 = vunpack.c.l.b16 %v3864
        %v3933 = vunpack.c.h.b16 %v3864
        %v3934 = vunpack.c.l.b16 %v3865
        %v3935 = vunpack.c.h.b16 %v3865
        %v3936 = vunpack.c.l.b16 %v3866
        %v3937 = vunpack.c.h.b16 %v3866
        %v3938 = vunpack.c.l.b16 %v3867
        %v3939 = vunpack.c.h.b16 %v3867
        %v3940 = vunpack.c.l.b16 %v3868
        %v3941 = vunpack.c.h.b16 %v3868
        %v3942 = vunpack.c.l.b16 %v3869
        %v3943 = vunpack.c.h.b16 %v3869
        %v3944 = vunpack.c.l.b16 %v3870
        %v3945 = vunpack.c.h.b16 %v3870
        %v3946 = vunpack.c.l.b16 %v3871
        %v3947 = vunpack.c.h.b16 %v3871
        %v3948 = vunpack.c.l.b16 %v3872
        %v3949 = vunpack.c.h.b16 %v3872
        %v3950 = vunpack.c.l.b16 %v3873
        %v3951 = vunpack.c.h.b16 %v3873
        %v3952 = vunpack.c.l.b16 %v3874
        %v3953 = vunpack.c.h.b16 %v3874
        %v3954 = vunpack.c.l.b16 %v3875
        %v3955 = vunpack.c.h.b16 %v3875
        %v3956 = vunpack.c.l.b16 %v3876
        %v3957 = vunpack.c.h.b16 %v3876
        %v3958 = vunpack.c.l.b16 %v3877
        %v3959 = vunpack.c.h.b16 %v3877
        %v3960 = vunpack.c.l.b16 %v3878
        %v3961 = vunpack.c.h.b16 %v3878
        %v3962 = vunpack.c.l.b16 %v3879
        %v3963 = vunpack.c.h.b16 %v3879
        %v3964 = vunpack.c.l.b16 %v3880
        %v3965 = vunpack.c.h.b16 %v3880
        %v3966 = vunpack.c.l.b16 %v3881
        %v3967 = vunpack.c.h.b16 %v3881
        %v3968 = vunpack.c.l.b16 %v3882
        %v3969 = vunpack.c.h.b16 %v3882
        %v3970 = vunpack.c.l.b16 %v3883
        %v3971 = vunpack.c.h.b16 %v3883
        %v3972 = vunpack.c.l.b16 %v3884
        %v3973 = vunpack.c.h.b16 %v3884
        %v3974 = vunpack.c.l.b16 %v3885
        %v3975 = vunpack.c.h.b16 %v3885
        %v3976 = vunpack.c.l.b16 %v3886
        %v3977 = vunpack.c.h.b16 %v3886
        %v3978 = vunpack.c.l.b16 %v3887
        %v3979 = vunpack.c.h.b16 %v3887
        %v3980 = vunpack.c.l.b16 %v3888
        %v3981 = vunpack.c.h.b16 %v3888
        %v3982 = vunpack.c.l.b16 %v3889
        %v3983 = vunpack.c.h.b16 %v3889
        %v3984 = vunpack.c.l.b16 %v3890
        %v3985 = vunpack.c.h.b16 %v3890
        %v3986 = vunpack.c.l.b16 %v3891
        %v3987 = vunpack.c.h.b16 %v3891
        %v3988 = vpack.c.b16 %v3926, %v3924
        %v3989 = vpack.c.b16 %v3927, %v3925
        %v3990 = vpack.c.b16 %v3930, %v3928
        %v3991 = vpack.c.b16 %v3931, %v3929
        %v3992 = vpack.c.b16 %v3934, %v3932
        %v3993 = vpack.c.b16 %v3935, %v3933
        %v3994 = vpack.c.b16 %v3938, %v3936
        %v3995 = vpack.c.b16 %v3939, %v3937
        %v3996 = vpack.c.b16 %v3942, %v3940
        %v3997 = vpack.c.b16 %v3943, %v3941
        %v3998 = vpack.c.b16 %v3946, %v3944
        %v3999 = vpack.c.b16 %v3947, %v3945
        %v4000 = vpack.c.b16 %v3950, %v3948
        %v4001 = vpack.c.b16 %v3951, %v3949
        %v4002 = vpack.c.b16 %v3954, %v3952
        %v4003 = vpack.c.b16 %v3955, %v3953
        %v4004 = vpack.c.b16 %v3958, %v3956
        %v4005 = vpack.c.b16 %v3959, %v3957
        %v4006 = vpack.c.b16 %v3962, %v3960
        %v4007 = vpack.c.b16 %v3963, %v3961
        %v4008 = vpack.c.b16 %v3966, %v3964
        %v4009 = vpack.c.b16 %v3967, %v3965
        %v4010 = vpack.c.b16 %v3970, %v3968
        %v4011 = vpack.c.b16 %v3971, %v3969
        %v4012 = vpack.c.b16 %v3974, %v3972
        %v4013 = vpack.c.b16 %v3975, %v3973
        %v4014 = vpack.c.b16 %v3978, %v3976
        %v4015 = vpack.c.b16 %v3979, %v3977
        %v4016 = vpack.c.b16 %v3982, %v3980
        %v4017 = vpack.c.b16 %v3983, %v3981
        %v4018 = vpack.c.b16 %v3986, %v3984
        %v4019 = vpack.c.b16 %v3987, %v3985
        %4052 = vmatprep.subr.bf16.mxu0 0
        %4053 = vmatpush1.bf16.msra.mxu0 %v3847
        %4054 = vmatprep.subr.bf16.mxu0 0
        %4055 = vmatpush1.bf16.msra.mxu0 %v3846
        %4056 = vmatprep.subr.bf16.mxu0 0
        %4057 = vmatpush1.bf16.msra.mxu0 %v3845
        %4058 = vmatprep.subr.bf16.mxu0 0
        %4059 = vmatpush1.bf16.msra.mxu0 %v3844
        %4060 = vmatprep.subr.bf16.mxu0 0
        %4061 = vmatpush1.bf16.msra.mxu0 %v3843
        %4062 = vmatprep.subr.bf16.mxu0 0
        %4063 = vmatpush1.bf16.msra.mxu0 %v3842
        %4064 = vmatprep.subr.bf16.mxu0 0
        %4065 = vmatpush1.bf16.msra.mxu0 %v3841
        %4066 = vmatprep.subr.bf16.mxu0 0
        %4067 = vmatpush1.bf16.msra.mxu0 %v3840
        %4068 = vmatprep.subr.bf16.mxu0 0
        %4069 = vmatpush2.bf16.msra.mxu0 %v3855
        %4070 = vmatprep.subr.bf16.mxu0 0
        %4071 = vmatpush2.bf16.msra.mxu0 %v3854
        %4072 = vmatprep.subr.bf16.mxu0 0
        %4073 = vmatpush2.bf16.msra.mxu0 %v3853
        %4074 = vmatprep.subr.bf16.mxu0 0
        %4075 = vmatpush2.bf16.msra.mxu0 %v3852
        %4076 = vmatprep.subr.bf16.mxu0 0
        %4077 = vmatpush2.bf16.msra.mxu0 %v3851
        %4078 = vmatprep.subr.bf16.mxu0 0
        %4079 = vmatpush2.bf16.msra.mxu0 %v3850
        %4080 = vmatprep.subr.bf16.mxu0 0
        %4081 = vmatpush2.bf16.msra.mxu0 %v3849
        %4082 = vmatprep.subr.bf16.mxu0 0
        %4083 = vmatpush2.bf16.msra.mxu0 %v3848
        %4084 = vmatprep.mubr.bf16.mxu0 %v3989
        %4085 = vmatmul.mubr.bf16.gmra.mxu0 %v3988
        %v4086 = vpop.f32.mrf.mxu0
        %v4087 = vadd.f32 0.0, %v4086
        %v4088 = vpop.f32.mrf.mxu0
        %v4089 = vpop.f32.mrf.mxu0
        %v4090 = vadd.f32 0.0, %v4089
        %v4091 = vpop.f32.mrf.mxu0
        %4092 = vmatprep.mubr.bf16.mxu0 %v3991
        %4093 = vmatmul.mubr.bf16.gmra.mxu0 %v3990
        %v4094 = vpop.f32.mrf.mxu0
        %v4095 = vadd.f32 0.0, %v4094
        %v4096 = vpop.f32.mrf.mxu0
        %v4097 = vpop.f32.mrf.mxu0
        %v4098 = vadd.f32 0.0, %v4097
        %v4099 = vpop.f32.mrf.mxu0
        %4100 = vmatprep.mubr.bf16.mxu0 %v3993
        %4101 = vmatmul.mubr.bf16.gmra.mxu0 %v3992
        %v4102 = vpop.f32.mrf.mxu0
        %v4103 = vadd.f32 0.0, %v4102
        %v4104 = vpop.f32.mrf.mxu0
        %v4105 = vpop.f32.mrf.mxu0
        %v4106 = vadd.f32 0.0, %v4105
        %v4107 = vpop.f32.mrf.mxu0
        %4108 = vmatprep.mubr.bf16.mxu0 %v3995
        %4109 = vmatmul.mubr.bf16.gmra.mxu0 %v3994
        %v4110 = vpop.f32.mrf.mxu0
        %v4111 = vadd.f32 0.0, %v4110
        %v4112 = vpop.f32.mrf.mxu0
        %v4113 = vpop.f32.mrf.mxu0
        %v4114 = vadd.f32 0.0, %v4113
        %v4115 = vpop.f32.mrf.mxu0
        %4116 = vmatprep.mubr.bf16.mxu0 %v3997
        %4117 = vmatmul.mubr.bf16.gmra.mxu0 %v3996
        %v4118 = vpop.f32.mrf.mxu0
        %v4119 = vadd.f32 0.0, %v4118
        %v4120 = vpop.f32.mrf.mxu0
        %v4121 = vpop.f32.mrf.mxu0
        %v4122 = vadd.f32 0.0, %v4121
        %v4123 = vpop.f32.mrf.mxu0
        %4124 = vmatprep.mubr.bf16.mxu0 %v3999
        %4125 = vmatmul.mubr.bf16.gmra.mxu0 %v3998
        %v4126 = vpop.f32.mrf.mxu0
        %v4127 = vadd.f32 0.0, %v4126
        %v4128 = vpop.f32.mrf.mxu0
        %v4129 = vpop.f32.mrf.mxu0
        %v4130 = vadd.f32 0.0, %v4129
        %v4131 = vpop.f32.mrf.mxu0
        %4132 = vmatprep.mubr.bf16.mxu0 %v4001
        %4133 = vmatmul.mubr.bf16.gmra.mxu0 %v4000
        %v4134 = vpop.f32.mrf.mxu0
        %v4135 = vadd.f32 0.0, %v4134
        %v4136 = vpop.f32.mrf.mxu0
        %v4137 = vpop.f32.mrf.mxu0
        %v4138 = vadd.f32 0.0, %v4137
        %v4139 = vpop.f32.mrf.mxu0
        %4140 = vmatprep.mubr.bf16.mxu0 %v4003
        %4141 = vmatmul.mubr.bf16.gmra.mxu0 %v4002
        %v4142 = vpop.f32.mrf.mxu0
        %v4143 = vadd.f32 0.0, %v4142
        %v4144 = vpop.f32.mrf.mxu0
        %v4145 = vpop.f32.mrf.mxu0
        %v4146 = vadd.f32 0.0, %v4145
        %v4147 = vpop.f32.mrf.mxu0
        %4148 = vmatprep.mubr.bf16.mxu0 %v4005
        %4149 = vmatmul.mubr.bf16.gmra.mxu0 %v4004
        %v4150 = vpop.f32.mrf.mxu0
        %v4151 = vadd.f32 0.0, %v4150
        %v4152 = vpop.f32.mrf.mxu0
        %v4153 = vpop.f32.mrf.mxu0
        %v4154 = vadd.f32 0.0, %v4153
        %v4155 = vpop.f32.mrf.mxu0
        %4156 = vmatprep.mubr.bf16.mxu0 %v4007
        %4157 = vmatmul.mubr.bf16.gmra.mxu0 %v4006
        %v4158 = vpop.f32.mrf.mxu0
        %v4159 = vadd.f32 0.0, %v4158
        %v4160 = vpop.f32.mrf.mxu0
        %v4161 = vpop.f32.mrf.mxu0
        %v4162 = vadd.f32 0.0, %v4161
        %v4163 = vpop.f32.mrf.mxu0
        %4164 = vmatprep.mubr.bf16.mxu0 %v4009
        %4165 = vmatmul.mubr.bf16.gmra.mxu0 %v4008
        %v4166 = vpop.f32.mrf.mxu0
        %v4167 = vadd.f32 0.0, %v4166
        %v4168 = vpop.f32.mrf.mxu0
        %v4169 = vpop.f32.mrf.mxu0
        %v4170 = vadd.f32 0.0, %v4169
        %v4171 = vpop.f32.mrf.mxu0
        %4172 = vmatprep.mubr.bf16.mxu0 %v4011
        %4173 = vmatmul.mubr.bf16.gmra.mxu0 %v4010
        %v4174 = vpop.f32.mrf.mxu0
        %v4175 = vadd.f32 0.0, %v4174
        %v4176 = vpop.f32.mrf.mxu0
        %v4177 = vpop.f32.mrf.mxu0
        %v4178 = vadd.f32 0.0, %v4177
        %v4179 = vpop.f32.mrf.mxu0
        %4180 = vmatprep.mubr.bf16.mxu0 %v4013
        %4181 = vmatmul.mubr.bf16.gmra.mxu0 %v4012
        %v4182 = vpop.f32.mrf.mxu0
        %v4183 = vadd.f32 0.0, %v4182
        %v4184 = vpop.f32.mrf.mxu0
        %v4185 = vpop.f32.mrf.mxu0
        %v4186 = vadd.f32 0.0, %v4185
        %v4187 = vpop.f32.mrf.mxu0
        %4188 = vmatprep.mubr.bf16.mxu0 %v4015
        %4189 = vmatmul.mubr.bf16.gmra.mxu0 %v4014
        %v4190 = vpop.f32.mrf.mxu0
        %v4191 = vadd.f32 0.0, %v4190
        %v4192 = vpop.f32.mrf.mxu0
        %v4193 = vpop.f32.mrf.mxu0
        %v4194 = vadd.f32 0.0, %v4193
        %v4195 = vpop.f32.mrf.mxu0
        %4196 = vmatprep.mubr.bf16.mxu0 %v4017
        %4197 = vmatmul.mubr.bf16.gmra.mxu0 %v4016
        %v4198 = vpop.f32.mrf.mxu0
        %v4199 = vadd.f32 0.0, %v4198
        %v4200 = vpop.f32.mrf.mxu0
        %v4201 = vpop.f32.mrf.mxu0
        %v4202 = vadd.f32 0.0, %v4201
        %v4203 = vpop.f32.mrf.mxu0
        %4204 = vmatprep.mubr.bf16.mxu0 %v4019
        %4205 = vmatmul.mubr.bf16.gmra.mxu0 %v4018
        %v4206 = vpop.f32.mrf.mxu0
        %v4207 = vadd.f32 0.0, %v4206
        %v4208 = vpop.f32.mrf.mxu0
        %v4209 = vpop.f32.mrf.mxu0
        %v4210 = vadd.f32 0.0, %v4209
        %v4211 = vpop.f32.mrf.mxu0
        %4212 = vdwg.mxu0
        %v4213 = vld [vmem:[#allocation6] sm:$0x1]
        %4214 = vrot.lane.b32.xlu0 %v2485, 96
        %v4215 = vpop.permute.xlu0 %4214
        %4216 = vrot.lane.b32.xlu0 %v2488, 96
        %v4217 = vpop.permute.xlu0 %4216
        %4218 = vrot.lane.b32.xlu0 %v2493, 96
        %v4219 = vpop.permute.xlu0 %4218
        %4220 = vrot.lane.b32.xlu0 %v2496, 96
        %v4221 = vpop.permute.xlu0 %4220
        %4222 = vrot.lane.b32.xlu0 %v2501, 96
        %v4223 = vpop.permute.xlu0 %4222
        %4224 = vrot.lane.b32.xlu0 %v2504, 96
        %v4225 = vpop.permute.xlu0 %4224
        %4226 = vrot.lane.b32.xlu0 %v2509, 96
        %v4227 = vpop.permute.xlu0 %4226
        %4228 = vrot.lane.b32.xlu0 %v2512, 96
        %v4229 = vpop.permute.xlu0 %4228
        %4230 = vrot.lane.b32.xlu0 %v2517, 96
        %v4231 = vpop.permute.xlu0 %4230
        %4232 = vrot.lane.b32.xlu0 %v2520, 96
        %v4233 = vpop.permute.xlu0 %4232
        %4234 = vrot.lane.b32.xlu0 %v2525, 96
        %v4235 = vpop.permute.xlu0 %4234
        %4236 = vrot.lane.b32.xlu0 %v2528, 96
        %v4237 = vpop.permute.xlu0 %4236
        %4238 = vrot.lane.b32.xlu0 %v2533, 96
        %v4239 = vpop.permute.xlu0 %4238
        %4240 = vrot.lane.b32.xlu0 %v2536, 96
        %v4241 = vpop.permute.xlu0 %4240
        %4242 = vrot.lane.b32.xlu0 %v2541, 96
        %v4243 = vpop.permute.xlu0 %4242
        %4244 = vrot.lane.b32.xlu0 %v2544, 96
        %v4245 = vpop.permute.xlu0 %4244
        %4246 = vrot.lane.b32.xlu0 %v2549, 96
        %v4247 = vpop.permute.xlu0 %4246
        %4248 = vrot.lane.b32.xlu0 %v2552, 96
        %v4249 = vpop.permute.xlu0 %4248
        %4250 = vrot.lane.b32.xlu0 %v2557, 96
        %v4251 = vpop.permute.xlu0 %4250
        %4252 = vrot.lane.b32.xlu0 %v2560, 96
        %v4253 = vpop.permute.xlu0 %4252
        %4254 = vrot.lane.b32.xlu0 %v2565, 96
        %v4255 = vpop.permute.xlu0 %4254
        %4256 = vrot.lane.b32.xlu0 %v2568, 96
        %v4257 = vpop.permute.xlu0 %4256
        %4258 = vrot.lane.b32.xlu0 %v2573, 96
        %v4259 = vpop.permute.xlu0 %4258
        %4260 = vrot.lane.b32.xlu0 %v2576, 96
        %v4261 = vpop.permute.xlu0 %4260
        %4262 = vrot.lane.b32.xlu0 %v2581, 96
        %v4263 = vpop.permute.xlu0 %4262
        %4264 = vrot.lane.b32.xlu0 %v2584, 96
        %v4265 = vpop.permute.xlu0 %4264
        %4266 = vrot.lane.b32.xlu0 %v2589, 96
        %v4267 = vpop.permute.xlu0 %4266
        %4268 = vrot.lane.b32.xlu0 %v2592, 96
        %v4269 = vpop.permute.xlu0 %4268
        %4270 = vrot.lane.b32.xlu0 %v2597, 96
        %v4271 = vpop.permute.xlu0 %4270
        %4272 = vrot.lane.b32.xlu0 %v2600, 96
        %v4273 = vpop.permute.xlu0 %4272
        %4274 = vrot.lane.b32.xlu0 %v2605, 96
        %v4275 = vpop.permute.xlu0 %4274
        %4276 = vrot.lane.b32.xlu0 %v2608, 96
        %v4277 = vpop.permute.xlu0 %4276
        %v4310 = vmul.f32 %v3161, %v4215
        %v4311 = vmul.f32 %v3162, %v4217
        %v4312 = vmul.f32 %v3163, %v4219
        %v4313 = vmul.f32 %v3164, %v4221
        %v4314 = vmul.f32 %v3165, %v4223
        %v4315 = vmul.f32 %v3166, %v4225
        %v4316 = vmul.f32 %v3167, %v4227
        %v4317 = vmul.f32 %v3168, %v4229
        %v4318 = vmul.f32 %v3169, %v4231
        %v4319 = vmul.f32 %v3170, %v4233
        %v4320 = vmul.f32 %v3171, %v4235
        %v4321 = vmul.f32 %v3172, %v4237
        %v4322 = vmul.f32 %v3173, %v4239
        %v4323 = vmul.f32 %v3174, %v4241
        %v4324 = vmul.f32 %v3175, %v4243
        %v4325 = vmul.f32 %v3176, %v4245
        %v4326 = vmul.f32 %v3177, %v4247
        %v4327 = vmul.f32 %v3178, %v4249
        %v4328 = vmul.f32 %v3179, %v4251
        %v4329 = vmul.f32 %v3180, %v4253
        %v4330 = vmul.f32 %v3181, %v4255
        %v4331 = vmul.f32 %v3182, %v4257
        %v4332 = vmul.f32 %v3183, %v4259
        %v4333 = vmul.f32 %v3184, %v4261
        %v4334 = vmul.f32 %v3185, %v4263
        %v4335 = vmul.f32 %v3186, %v4265
        %v4336 = vmul.f32 %v3187, %v4267
        %v4337 = vmul.f32 %v3188, %v4269
        %v4338 = vmul.f32 %v3189, %v4271
        %v4339 = vmul.f32 %v3190, %v4273
        %v4340 = vmul.f32 %v3191, %v4275
        %v4341 = vmul.f32 %v3192, %v4277
        %v4342 = vsel %vm2615, %v4310, 0.0
        %v4343 = vsel %vm2615, %v4311, 0.0
        %v4344 = vadd.f32 %v4342, %v4343
        %v4345 = vsel %vm2615, %v4312, 0.0
        %v4346 = vadd.f32 %v4344, %v4345
        %v4347 = vsel %vm2615, %v4313, 0.0
        %v4348 = vadd.f32 %v4346, %v4347
        %v4349 = vsel %vm2615, %v4314, 0.0
        %v4350 = vadd.f32 %v4348, %v4349
        %v4351 = vsel %vm2615, %v4315, 0.0
        %v4352 = vadd.f32 %v4350, %v4351
        %v4353 = vsel %vm2615, %v4316, 0.0
        %v4354 = vadd.f32 %v4352, %v4353
        %v4355 = vsel %vm2615, %v4317, 0.0
        %v4356 = vadd.f32 %v4354, %v4355
        %v4357 = vsel %vm2615, %v4318, 0.0
        %v4358 = vadd.f32 %v4356, %v4357
        %v4359 = vsel %vm2615, %v4319, 0.0
        %v4360 = vadd.f32 %v4358, %v4359
        %v4361 = vsel %vm2615, %v4320, 0.0
        %v4362 = vadd.f32 %v4360, %v4361
        %v4363 = vsel %vm2615, %v4321, 0.0
        %v4364 = vadd.f32 %v4362, %v4363
        %v4365 = vsel %vm2615, %v4322, 0.0
        %v4366 = vadd.f32 %v4364, %v4365
        %v4367 = vsel %vm2615, %v4323, 0.0
        %v4368 = vadd.f32 %v4366, %v4367
        %v4369 = vsel %vm2615, %v4324, 0.0
        %v4370 = vadd.f32 %v4368, %v4369
        %v4371 = vsel %vm2615, %v4325, 0.0
        %v4372 = vadd.f32 %v4370, %v4371
        %v4373 = vsel %vm2615, %v4326, 0.0
        %v4374 = vadd.f32 %v4372, %v4373
        %v4375 = vsel %vm2615, %v4327, 0.0
        %v4376 = vadd.f32 %v4374, %v4375
        %v4377 = vsel %vm2615, %v4328, 0.0
        %v4378 = vadd.f32 %v4376, %v4377
        %v4379 = vsel %vm2615, %v4329, 0.0
        %v4380 = vadd.f32 %v4378, %v4379
        %v4381 = vsel %vm2615, %v4330, 0.0
        %v4382 = vadd.f32 %v4380, %v4381
        %v4383 = vsel %vm2615, %v4331, 0.0
        %v4384 = vadd.f32 %v4382, %v4383
        %v4385 = vsel %vm2615, %v4332, 0.0
        %v4386 = vadd.f32 %v4384, %v4385
        %v4387 = vsel %vm2615, %v4333, 0.0
        %v4388 = vadd.f32 %v4386, %v4387
        %v4389 = vsel %vm2615, %v4334, 0.0
        %v4390 = vadd.f32 %v4388, %v4389
        %v4391 = vsel %vm2615, %v4335, 0.0
        %v4392 = vadd.f32 %v4390, %v4391
        %v4393 = vsel %vm2615, %v4336, 0.0
        %v4394 = vadd.f32 %v4392, %v4393
        %v4395 = vsel %vm2615, %v4337, 0.0
        %v4396 = vadd.f32 %v4394, %v4395
        %v4397 = vsel %vm2615, %v4338, 0.0
        %v4398 = vadd.f32 %v4396, %v4397
        %v4399 = vsel %vm2615, %v4339, 0.0
        %v4400 = vadd.f32 %v4398, %v4399
        %v4401 = vsel %vm2615, %v4340, 0.0
        %v4402 = vadd.f32 %v4400, %v4401
        %v4403 = vsel %vm2615, %v4341, 0.0
        %v4404 = vadd.f32 %v4402, %v4403
        %4405 = vadd.xlane.f32.xlu0 %v4404
        %v4406 = vpop.xlane.xlu0 %4405
        %v4407 = vrot.slane %v4406, 4
        %v4408 = vadd.f32 %v4406, %v4407
        %v4409 = vrot.slane %v4408, 2
        %v4410 = vadd.f32 %v4408, %v4409
        %v4411 = vrot.slane %v4410, 1
        %v4412 = vadd.f32 %v4410, %v4411
        %s4413 = vtos %v4412
        %v4414 = vstv %s4413
        %v4415 = vmul.f32 %v4414, 2.0
        %v4416 = vmul.f32 %v3161, %v4087
        %v4417 = vmul.f32 %v3162, %v4090
        %v4418 = vmul.f32 %v3163, %v4095
        %v4419 = vmul.f32 %v3164, %v4098
        %v4420 = vmul.f32 %v3165, %v4103
        %v4421 = vmul.f32 %v3166, %v4106
        %v4422 = vmul.f32 %v3167, %v4111
        %v4423 = vmul.f32 %v3168, %v4114
        %v4424 = vmul.f32 %v3169, %v4119
        %v4425 = vmul.f32 %v3170, %v4122
        %v4426 = vmul.f32 %v3171, %v4127
        %v4427 = vmul.f32 %v3172, %v4130
        %v4428 = vmul.f32 %v3173, %v4135
        %v4429 = vmul.f32 %v3174, %v4138
        %v4430 = vmul.f32 %v3175, %v4143
        %v4431 = vmul.f32 %v3176, %v4146
        %v4432 = vmul.f32 %v3177, %v4151
        %v4433 = vmul.f32 %v3178, %v4154
        %v4434 = vmul.f32 %v3179, %v4159
        %v4435 = vmul.f32 %v3180, %v4162
        %v4436 = vmul.f32 %v3181, %v4167
        %v4437 = vmul.f32 %v3182, %v4170
        %v4438 = vmul.f32 %v3183, %v4175
        %v4439 = vmul.f32 %v3184, %v4178
        %v4440 = vmul.f32 %v3185, %v4183
        %v4441 = vmul.f32 %v3186, %v4186
        %v4442 = vmul.f32 %v3187, %v4191
        %v4443 = vmul.f32 %v3188, %v4194
        %v4444 = vmul.f32 %v3189, %v4199
        %v4445 = vmul.f32 %v3190, %v4202
        %v4446 = vmul.f32 %v3191, %v4207
        %v4447 = vmul.f32 %v3192, %v4210
        %v4448 = vsel %vm2615, %v4416, 0.0
        %v4449 = vsel %vm2615, %v4417, 0.0
        %v4450 = vadd.f32 %v4448, %v4449
        %v4451 = vsel %vm2615, %v4418, 0.0
        %v4452 = vadd.f32 %v4450, %v4451
        %v4453 = vsel %vm2615, %v4419, 0.0
        %v4454 = vadd.f32 %v4452, %v4453
        %v4455 = vsel %vm2615, %v4420, 0.0
        %v4456 = vadd.f32 %v4454, %v4455
        %v4457 = vsel %vm2615, %v4421, 0.0
        %v4458 = vadd.f32 %v4456, %v4457
        %v4459 = vsel %vm2615, %v4422, 0.0
        %v4460 = vadd.f32 %v4458, %v4459
        %v4461 = vsel %vm2615, %v4423, 0.0
        %v4462 = vadd.f32 %v4460, %v4461
        %v4463 = vsel %vm2615, %v4424, 0.0
        %v4464 = vadd.f32 %v4462, %v4463
        %v4465 = vsel %vm2615, %v4425, 0.0
        %v4466 = vadd.f32 %v4464, %v4465
        %v4467 = vsel %vm2615, %v4426, 0.0
        %v4468 = vadd.f32 %v4466, %v4467
        %v4469 = vsel %vm2615, %v4427, 0.0
        %v4470 = vadd.f32 %v4468, %v4469
        %v4471 = vsel %vm2615, %v4428, 0.0
        %v4472 = vadd.f32 %v4470, %v4471
        %v4473 = vsel %vm2615, %v4429, 0.0
        %v4474 = vadd.f32 %v4472, %v4473
        %v4475 = vsel %vm2615, %v4430, 0.0
        %v4476 = vadd.f32 %v4474, %v4475
        %v4477 = vsel %vm2615, %v4431, 0.0
        %v4478 = vadd.f32 %v4476, %v4477
        %v4479 = vsel %vm2615, %v4432, 0.0
        %v4480 = vadd.f32 %v4478, %v4479
        %v4481 = vsel %vm2615, %v4433, 0.0
        %v4482 = vadd.f32 %v4480, %v4481
        %v4483 = vsel %vm2615, %v4434, 0.0
        %v4484 = vadd.f32 %v4482, %v4483
        %v4485 = vsel %vm2615, %v4435, 0.0
        %v4486 = vadd.f32 %v4484, %v4485
        %v4487 = vsel %vm2615, %v4436, 0.0
        %v4488 = vadd.f32 %v4486, %v4487
        %v4489 = vsel %vm2615, %v4437, 0.0
        %v4490 = vadd.f32 %v4488, %v4489
        %v4491 = vsel %vm2615, %v4438, 0.0
        %v4492 = vadd.f32 %v4490, %v4491
        %v4493 = vsel %vm2615, %v4439, 0.0
        %v4494 = vadd.f32 %v4492, %v4493
        %v4495 = vsel %vm2615, %v4440, 0.0
        %v4496 = vadd.f32 %v4494, %v4495
        %v4497 = vsel %vm2615, %v4441, 0.0
        %v4498 = vadd.f32 %v4496, %v4497
        %v4499 = vsel %vm2615, %v4442, 0.0
        %v4500 = vadd.f32 %v4498, %v4499
        %v4501 = vsel %vm2615, %v4443, 0.0
        %v4502 = vadd.f32 %v4500, %v4501
        %v4503 = vsel %vm2615, %v4444, 0.0
        %v4504 = vadd.f32 %v4502, %v4503
        %v4505 = vsel %vm2615, %v4445, 0.0
        %v4506 = vadd.f32 %v4504, %v4505
        %v4507 = vsel %vm2615, %v4446, 0.0
        %v4508 = vadd.f32 %v4506, %v4507
        %v4509 = vsel %vm2615, %v4447, 0.0
        %v4510 = vadd.f32 %v4508, %v4509
        %4511 = vadd.xlane.f32.xlu0 %v4510
        %v4512 = vpop.xlane.xlu0 %4511
        %v4513 = vrot.slane %v4512, 4
        %v4514 = vadd.f32 %v4512, %v4513
        %v4515 = vrot.slane %v4514, 2
        %v4516 = vadd.f32 %v4514, %v4515
        %v4517 = vrot.slane %v4516, 1
        %v4518 = vadd.f32 %v4516, %v4517
        %s4519 = vtos %v4518
        %v4520 = vstv %s4519
        %v4521 = vadd.f32 %v4415, %v4520
        %v4522 = vadd.f32 %v4213, %v4521
        %vm4523 = vcmask 0
        %4524 = vst.msk [vmem:[#allocation6] sm:$0x1] %vm4523, %v4522
        %v4541 = vunpack.c.l.b16 %v3840
        %v4542 = vunpack.c.h.b16 %v3840
        %v4543 = vunpack.c.l.b16 %v3841
        %v4544 = vunpack.c.h.b16 %v3841
        %v4545 = vunpack.c.l.b16 %v3842
        %v4546 = vunpack.c.h.b16 %v3842
        %v4547 = vunpack.c.l.b16 %v3843
        %v4548 = vunpack.c.h.b16 %v3843
        %v4549 = vunpack.c.l.b16 %v3844
        %v4550 = vunpack.c.h.b16 %v3844
        %v4551 = vunpack.c.l.b16 %v3845
        %v4552 = vunpack.c.h.b16 %v3845
        %v4553 = vunpack.c.l.b16 %v3846
        %v4554 = vunpack.c.h.b16 %v3846
        %v4555 = vunpack.c.l.b16 %v3847
        %v4556 = vunpack.c.h.b16 %v3847
        %v4557 = vunpack.c.l.b16 %v3848
        %v4558 = vunpack.c.h.b16 %v3848
        %v4559 = vunpack.c.l.b16 %v3849
        %v4560 = vunpack.c.h.b16 %v3849
        %v4561 = vunpack.c.l.b16 %v3850
        %v4562 = vunpack.c.h.b16 %v3850
        %v4563 = vunpack.c.l.b16 %v3851
        %v4564 = vunpack.c.h.b16 %v3851
        %v4565 = vunpack.c.l.b16 %v3852
        %v4566 = vunpack.c.h.b16 %v3852
        %v4567 = vunpack.c.l.b16 %v3853
        %v4568 = vunpack.c.h.b16 %v3853
        %v4569 = vunpack.c.l.b16 %v3854
        %v4570 = vunpack.c.h.b16 %v3854
        %v4571 = vunpack.c.l.b16 %v3855
        %v4572 = vunpack.c.h.b16 %v3855
        %v4573 = vpack.c.b16 %v4541, %v4541
        %v4574 = vpack.c.b16 %v4542, %v4542
        %v4575 = vpack.c.b16 %v4543, %v4543
        %v4576 = vpack.c.b16 %v4544, %v4544
        %v4577 = vpack.c.b16 %v4545, %v4545
        %v4578 = vpack.c.b16 %v4546, %v4546
        %v4579 = vpack.c.b16 %v4547, %v4547
        %v4580 = vpack.c.b16 %v4548, %v4548
        %v4581 = vpack.c.b16 %v4549, %v4549
        %v4582 = vpack.c.b16 %v4550, %v4550
        %v4583 = vpack.c.b16 %v4551, %v4551
        %v4584 = vpack.c.b16 %v4552, %v4552
        %v4585 = vpack.c.b16 %v4553, %v4553
        %v4586 = vpack.c.b16 %v4554, %v4554
        %v4587 = vpack.c.b16 %v4555, %v4555
        %v4588 = vpack.c.b16 %v4556, %v4556
        %v4589 = vpack.c.b16 %v4557, %v4557
        %v4590 = vpack.c.b16 %v4558, %v4558
        %v4591 = vpack.c.b16 %v4559, %v4559
        %v4592 = vpack.c.b16 %v4560, %v4560
        %v4593 = vpack.c.b16 %v4561, %v4561
        %v4594 = vpack.c.b16 %v4562, %v4562
        %v4595 = vpack.c.b16 %v4563, %v4563
        %v4596 = vpack.c.b16 %v4564, %v4564
        %v4597 = vpack.c.b16 %v4565, %v4565
        %v4598 = vpack.c.b16 %v4566, %v4566
        %v4599 = vpack.c.b16 %v4567, %v4567
        %v4600 = vpack.c.b16 %v4568, %v4568
        %v4601 = vpack.c.b16 %v4569, %v4569
        %v4602 = vpack.c.b16 %v4570, %v4570
        %v4603 = vpack.c.b16 %v4571, %v4571
        %v4604 = vpack.c.b16 %v4572, %v4572
        %4605 = vrot.lane.b32.xlu0 %v4573, 32
        %v4606 = vpop.permute.xlu0 %4605
        %4607 = vrot.lane.b32.xlu0 %v4574, 32
        %v4608 = vpop.permute.xlu0 %4607
        %4609 = vrot.lane.b32.xlu0 %v4575, 32
        %v4610 = vpop.permute.xlu0 %4609
        %4611 = vrot.lane.b32.xlu0 %v4576, 32
        %v4612 = vpop.permute.xlu0 %4611
        %4613 = vrot.lane.b32.xlu0 %v4577, 32
        %v4614 = vpop.permute.xlu0 %4613
        %4615 = vrot.lane.b32.xlu0 %v4578, 32
        %v4616 = vpop.permute.xlu0 %4615
        %4617 = vrot.lane.b32.xlu0 %v4579, 32
        %v4618 = vpop.permute.xlu0 %4617
        %4619 = vrot.lane.b32.xlu0 %v4580, 32
        %v4620 = vpop.permute.xlu0 %4619
        %4621 = vrot.lane.b32.xlu0 %v4581, 32
        %v4622 = vpop.permute.xlu0 %4621
        %4623 = vrot.lane.b32.xlu0 %v4582, 32
        %v4624 = vpop.permute.xlu0 %4623
        %4625 = vrot.lane.b32.xlu0 %v4583, 32
        %v4626 = vpop.permute.xlu0 %4625
        %4627 = vrot.lane.b32.xlu0 %v4584, 32
        %v4628 = vpop.permute.xlu0 %4627
        %4629 = vrot.lane.b32.xlu0 %v4585, 32
        %v4630 = vpop.permute.xlu0 %4629
        %4631 = vrot.lane.b32.xlu0 %v4586, 32
        %v4632 = vpop.permute.xlu0 %4631
        %4633 = vrot.lane.b32.xlu0 %v4587, 32
        %v4634 = vpop.permute.xlu0 %4633
        %4635 = vrot.lane.b32.xlu0 %v4588, 32
        %v4636 = vpop.permute.xlu0 %4635
        %4637 = vrot.lane.b32.xlu0 %v4589, 32
        %v4638 = vpop.permute.xlu0 %4637
        %4639 = vrot.lane.b32.xlu0 %v4590, 32
        %v4640 = vpop.permute.xlu0 %4639
        %4641 = vrot.lane.b32.xlu0 %v4591, 32
        %v4642 = vpop.permute.xlu0 %4641
        %4643 = vrot.lane.b32.xlu0 %v4592, 32
        %v4644 = vpop.permute.xlu0 %4643
        %4645 = vrot.lane.b32.xlu0 %v4593, 32
        %v4646 = vpop.permute.xlu0 %4645
        %4647 = vrot.lane.b32.xlu0 %v4594, 32
        %v4648 = vpop.permute.xlu0 %4647
        %4649 = vrot.lane.b32.xlu0 %v4595, 32
        %v4650 = vpop.permute.xlu0 %4649
        %4651 = vrot.lane.b32.xlu0 %v4596, 32
        %v4652 = vpop.permute.xlu0 %4651
        %4653 = vrot.lane.b32.xlu0 %v4597, 32
        %v4654 = vpop.permute.xlu0 %4653
        %4655 = vrot.lane.b32.xlu0 %v4598, 32
        %v4656 = vpop.permute.xlu0 %4655
        %4657 = vrot.lane.b32.xlu0 %v4599, 32
        %v4658 = vpop.permute.xlu0 %4657
        %4659 = vrot.lane.b32.xlu0 %v4600, 32
        %v4660 = vpop.permute.xlu0 %4659
        %4661 = vrot.lane.b32.xlu0 %v4601, 32
        %v4662 = vpop.permute.xlu0 %4661
        %4663 = vrot.lane.b32.xlu0 %v4602, 32
        %v4664 = vpop.permute.xlu0 %4663
        %4665 = vrot.lane.b32.xlu0 %v4603, 32
        %v4666 = vpop.permute.xlu0 %4665
        %4667 = vrot.lane.b32.xlu0 %v4604, 32
        %v4668 = vpop.permute.xlu0 %4667
        %s4701 = sshra.s32 %s294, 3
        %s4702 = sand.u32 %s294, 7
        %s4703 = smul.addr %s4701, 4
        %s4704 = scalar_lea.vmem [#allocation2], %s4703
        %vm4705 = vcmask 519424
        %4706 = vst.msk [vmem:[%s4704] sm:$0xf] %vm4705, %v4606
        %4707 = vst.msk [vmem:[%s4704 + $0x4] sm:$0xf] %vm4705, %v4608
        %4708 = vst.msk [vmem:[%s4704 + $0x8] sm:$0xf] %vm4705, %v4610
        %4709 = vst.msk [vmem:[%s4704 + $0xc] sm:$0xf] %vm4705, %v4612
        %4710 = vst.msk [vmem:[%s4704 + $0x10] sm:$0xf] %vm4705, %v4614
        %4711 = vst.msk [vmem:[%s4704 + $0x14] sm:$0xf] %vm4705, %v4616
        %4712 = vst.msk [vmem:[%s4704 + $0x18] sm:$0xf] %vm4705, %v4618
        %4713 = vst.msk [vmem:[%s4704 + $0x1c] sm:$0xf] %vm4705, %v4620
        %4714 = vst.msk [vmem:[%s4704 + $0x20] sm:$0xf] %vm4705, %v4622
        %4715 = vst.msk [vmem:[%s4704 + $0x24] sm:$0xf] %vm4705, %v4624
        %4716 = vst.msk [vmem:[%s4704 + $0x28] sm:$0xf] %vm4705, %v4626
        %4717 = vst.msk [vmem:[%s4704 + $0x2c] sm:$0xf] %vm4705, %v4628
        %4718 = vst.msk [vmem:[%s4704 + $0x30] sm:$0xf] %vm4705, %v4630
        %4719 = vst.msk [vmem:[%s4704 + $0x34] sm:$0xf] %vm4705, %v4632
        %4720 = vst.msk [vmem:[%s4704 + $0x38] sm:$0xf] %vm4705, %v4634
        %4721 = vst.msk [vmem:[%s4704 + $0x3c] sm:$0xf] %vm4705, %v4636
        %4722 = vst.msk [vmem:[%s4704 + $0x40] sm:$0xf] %vm4705, %v4638
        %4723 = vst.msk [vmem:[%s4704 + $0x44] sm:$0xf] %vm4705, %v4640
        %4724 = vst.msk [vmem:[%s4704 + $0x48] sm:$0xf] %vm4705, %v4642
        %4725 = vst.msk [vmem:[%s4704 + $0x4c] sm:$0xf] %vm4705, %v4644
        %4726 = vst.msk [vmem:[%s4704 + $0x50] sm:$0xf] %vm4705, %v4646
        %4727 = vst.msk [vmem:[%s4704 + $0x54] sm:$0xf] %vm4705, %v4648
        %4728 = vst.msk [vmem:[%s4704 + $0x58] sm:$0xf] %vm4705, %v4650
        %4729 = vst.msk [vmem:[%s4704 + $0x5c] sm:$0xf] %vm4705, %v4652
        %4730 = vst.msk [vmem:[%s4704 + $0x60] sm:$0xf] %vm4705, %v4654
        %4731 = vst.msk [vmem:[%s4704 + $0x64] sm:$0xf] %vm4705, %v4656
        %4732 = vst.msk [vmem:[%s4704 + $0x68] sm:$0xf] %vm4705, %v4658
        %4733 = vst.msk [vmem:[%s4704 + $0x6c] sm:$0xf] %vm4705, %v4660
        %4734 = vst.msk [vmem:[%s4704 + $0x70] sm:$0xf] %vm4705, %v4662
        %4735 = vst.msk [vmem:[%s4704 + $0x74] sm:$0xf] %vm4705, %v4664
        %4736 = vst.msk [vmem:[%s4704 + $0x78] sm:$0xf] %vm4705, %v4666
        %4737 = vst.msk [vmem:[%s4704 + $0x7c] sm:$0xf] %vm4705, %v4668
        %s4738 = smul.u32 32, %s20
        %p4739 = scmp.lt.s32.totalorder %s4738, 127
        %s4740 = scalar_select %p4739, %s4738, 127
        %s4741 = smul.addr %s4740, 8
        %s4742 = scalar_lea.vmem %s5, %s4741
        // Predicated region
        $region49: #{forward.4} parent=39 // pred_check
          %p4743 = pneg %p153
        $region50: #{forward.4} parent=39 // pred_check_branch
          %4745 = sbr.rel (%p4743) target = $region52
        $region51: #{forward.4} parent=39 // pred_region
          %s4746 = smul.u32 32, %s20
        $region52: #{forward.4} parent=39 // pred_fallthru
          _
        // Predicated region
        $region53: #{forward.4} parent=39 // pred_check
          %p4747 = pneg %p174
        $region54: #{forward.4} parent=39 // pred_check_branch
          %4749 = sbr.rel (%p4747) target = $region56
        $region55: #{forward.4} parent=39 // pred_region
          %s4751 = ssub.s32 16, 16
          %4752 = vsyncadd [#allocation4], %s4751
          %s4754 = sshll.u32 [#allocation6], 4
          %s4755 = int_to_ptr.vmem [resolvable:$true] %s4754
          %4757 = dma.vmem_to_hbm [thread:$0]  %s4755, 16, %s6, [#allocation4]
        $region56: #{forward.4} parent=39 // pred_fallthru
          _
        // Predicated region
        $region57: #{forward.4} parent=39 // pred_check
          %p4758 = pneg %p174
        $region58: #{forward.4} parent=39 // pred_check_branch
          %4760 = sbr.rel (%p4758) target = $region60
        $region59: #{forward.4} parent=39 // pred_region
          %4761 = dma.done [#allocation4], 16
        $region60: #{forward.4} parent=39 // pred_fallthru
          _
      $region40: #{forward.4} parent=5 // pred_fallthru
        _
      %p4762 = scmp.le.s32.totalorder 2, %s15
      // Predicated region
      $region61: #{forward.4} parent=5 // pred_check
        %p4763 = pneg %p4762
      $region62: #{forward.4} parent=5 // pred_check_branch
        %4765 = sbr.rel (%p4763) target = $region64
      $region63: #{forward.4} parent=5 // pred_region
        %s4766 = ssub.s32 %s15, 2
        // Predicated region
        $region65: #{forward.4} parent=63 // pred_check
          %p4767 = pneg %p159
        $region66: #{forward.4} parent=63 // pred_check_branch
          %4769 = sbr.rel (%p4767) target = $region68
        $region67: #{forward.4} parent=63 // pred_region
          %s4770 = smul.u32 32, %s21
          %p4771 = scmp.lt.s32.totalorder %s4770, 127
          %s4772 = scalar_select %p4771, %s4770, 127
          %s4773 = smul.addr %s4772, 8
          %s4774 = scalar_lea.vmem %s5, %s4773
        $region68: #{forward.4} parent=63 // pred_fallthru
          _
      $region64: #{forward.4} parent=5 // pred_fallthru
        _
    $region6: #{forward.4} parent=1 // loop_footer
      %s19 = sadd.s32 1, %s15
    $region7: #{forward.4} parent=1 // loop_footer_branch
      %14 = sbr.rel target = $region3
    $region8: #{forward.4} parent=1 // loop_exit
      _
    %4775 = vsyncpa [#allocation4], 1
    %s4776 = scalar_lea.sflag [#allocation4], 1
    %4777 = vsyncpa %s4776, 1
    %4778 = vsyncpa [#allocation5], 1
    %s4779 = scalar_lea.sflag [#allocation5], 1
    %4780 = vsyncpa %s4779, 1

</llo_original>
